<compile_context>
chip_gen: v7x
topology: tpu7x:2x2x1
jax: 0.10.0
libtpu: 0.0.40
codegen_flags: <defaults>
</compile_context>

<pallas_src>
import functools

import jax
import jax.numpy as jnp
from jax import lax
from jax.experimental import pallas as pl
from jax.experimental.pallas import tpu as pltpu

_VMEM_LIMIT = 48 * 1024 * 1024  # stays under v7x's 64 MiB physical VMEM


# ---------------------------------------------------------------------------
# tile selection helper (BN/LeakyReLU elementwise kernel)
# ---------------------------------------------------------------------------
def _largest_divisor(n, cap, step):
    """Largest multiple-of-`step` divisor of n that is <= cap (0 if none)."""
    best = 0
    d = step
    lim = min(cap, n)
    while d <= lim:
        if n % d == 0:
            best = d
        d += step
    return best


def _pick_bn_row_tile(M):
    # prefer >=2 grid blocks (feeds both v7x TensorCores), rows multiple of 8
    d = _largest_divisor(M, min(1024, M // 2), 8)
    if d == 0:
        d = _largest_divisor(M, 1024, 8)
    if d == 0:
        d = M  # tiny tensor: full-dim block is always legal
    return d


# ---------------------------------------------------------------------------
# Pallas kernel 1: direct conv (tap-sum of 2-D GEMMs, bf16 in / f32 acc)
#                  + fused (masked) partial BatchNorm statistics
# ---------------------------------------------------------------------------
def _conv_stats_kernel(x_ref, w_ref, mask_ref, conv_ref, psum_ref, psumsq_ref,
                       *, taps, Hh, Wh, Ho, Wo):
    # x_ref:    (1, FLAT, Cin) bf16 -- phase-decomposed, reflect-padded, row-flat
    # w_ref:    (16, Cin, Cout) bf16 -- one (Cin, Cout) slab per tap
    # mask_ref: (M, 1) f32           -- 1.0 for valid output columns, 0.0 else
    # conv_ref: (1, Ho, Wo, Cout) f32
    # psum/psumsq: (1, 1, Cout) f32  -- per-sample partial BN stats
    Cout = conv_ref.shape[-1]
    M = Ho * Wh
    acc = jnp.zeros((M, Cout), jnp.float32)
    for t, (p, di, dj) in enumerate(taps):
        base = (p * Hh + di) * Wh + dj              # static Python int
        lhs = x_ref[0, pl.ds(base, M), :]           # contiguous (M, Cin) bf16
        acc = acc + jnp.dot(lhs, w_ref[t], preferred_element_type=jnp.float32)

    # Store only the valid output columns (row-by-row, static slices).
    for ho in range(Ho):
        conv_ref[0, ho] = acc[ho * Wh:ho * Wh + Wo, :]

    # Masked partial BN statistics (garbage columns contribute zero).
    mask = mask_ref[...]                             # (M, 1)
    masked = acc * mask
    psum_ref[...] = jnp.sum(masked, axis=0, keepdims=True)[None]
    psumsq_ref[...] = jnp.sum(masked * acc, axis=0, keepdims=True)[None]


def _conv_with_bn_stats(flat, wk, mask, *, N, Ho, Wo, Wh, Hh, Cout, taps):
    """flat: (N, FLAT, Cin) bf16; wk: (16, Cin, Cout) bf16; mask: (Ho*Wh, 1) f32."""
    _, FLAT, Cin = flat.shape
    T = wk.shape[0]
    M = Ho * Wh

    kernel = functools.partial(_conv_stats_kernel, taps=taps, Hh=Hh, Wh=Wh,
                               Ho=Ho, Wo=Wo)
    conv, psum, psumsq = pl.pallas_call(
        kernel,
        out_shape=(
            jax.ShapeDtypeStruct((N, Ho, Wo, Cout), jnp.float32),
            jax.ShapeDtypeStruct((N, 1, Cout), jnp.float32),
            jax.ShapeDtypeStruct((N, 1, Cout), jnp.float32),
        ),
        grid_spec=pltpu.PrefetchScalarGridSpec(
            num_scalar_prefetch=0,
            grid=(N,),
            in_specs=[
                pl.BlockSpec((1, FLAT, Cin), lambda n: (n, 0, 0)),
                pl.BlockSpec((T, Cin, Cout), lambda n: (0, 0, 0)),
                pl.BlockSpec((M, 1), lambda n: (0, 0)),
            ],
            out_specs=[
                pl.BlockSpec((1, Ho, Wo, Cout), lambda n: (n, 0, 0, 0)),
                pl.BlockSpec((1, 1, Cout), lambda n: (n, 0, 0)),
                pl.BlockSpec((1, 1, Cout), lambda n: (n, 0, 0)),
            ],
        ),
        compiler_params=pltpu.CompilerParams(
            dimension_semantics=("parallel",),
            vmem_limit_bytes=_VMEM_LIMIT,
        ),
    )(flat, wk, mask)

    count = jnp.float32(N * Ho * Wo)
    total = jnp.sum(psum[:, 0, :], axis=0)
    total_sq = jnp.sum(psumsq[:, 0, :], axis=0)
    mean = total / count
    var = jnp.maximum(total_sq / count - mean * mean, 0.0)  # biased (training) var
    return conv, mean, var


# ---------------------------------------------------------------------------
# Pallas kernel 2: fused BatchNorm affine (precomputed scale/shift) + LeakyReLU
# ---------------------------------------------------------------------------
def _bn_lrelu_kernel(x_ref, sc_ref, sh_ref, o_ref):
    y = x_ref[...] * sc_ref[...] + sh_ref[...]
    o_ref[...] = jnp.where(y >= 0.0, y, 0.2 * y).astype(o_ref.dtype)


def bn_leakyrelu(x, scale, shift, out_dtype):
    """x: (M, C) f32; scale/shift: (C,) f32 -> (M, C) out_dtype."""
    M, C = x.shape
    tm = _pick_bn_row_tile(M)
    return pl.pallas_call(
        _bn_lrelu_kernel,
        out_shape=jax.ShapeDtypeStruct((M, C), out_dtype),
        grid_spec=pltpu.PrefetchScalarGridSpec(
            num_scalar_prefetch=0,
            grid=(M // tm,),
            in_specs=[
                pl.BlockSpec((tm, C), lambda i: (i, 0)),
                pl.BlockSpec((1, C), lambda i: (0, 0)),
                pl.BlockSpec((1, C), lambda i: (0, 0)),
            ],
            out_specs=pl.BlockSpec((tm, C), lambda i: (i, 0)),
        ),
        compiler_params=pltpu.CompilerParams(
            dimension_semantics=("parallel",),
            vmem_limit_bytes=_VMEM_LIMIT,
        ),
    )(x, scale.reshape(1, C), shift.reshape(1, C))


# ---------------------------------------------------------------------------
# One _down block: Conv(k=4, reflect pad, no bias) -> BN (batch stats) -> LeakyReLU
# ---------------------------------------------------------------------------
def _down_layer(x, w_oihw, gamma, beta, stride, out_dtype, eps=1e-5):
    Cout, Cin, kh, kw = w_oihw.shape
    N, H, W, C = x.shape
    assert C == Cin and kh == 4 and kw == 4

    # reflect pad (matches padding_mode='reflect'); cheap JAX glue
    xp = jnp.pad(x, ((0, 0), (1, 1), (1, 1), (0, 0)), mode="reflect")
    Hp, Wp = H + 2, W + 2

    if stride == 2:
        # phase decomposition: each tap then reads a *contiguous* window of the
        # flattened phase planes -- no strided access, no im2col blow-up.
        P = 4
        Hh, Wh = Hp // 2, Wp // 2
        Ho, Wo = (Hp - kh) // 2 + 1, (Wp - kw) // 2 + 1
        phases = jnp.concatenate(
            [xp[:, a::2, b::2, :] for a in (0, 1) for b in (0, 1)], axis=1)
        taps = tuple((2 * (i % 2) + (j % 2), i // 2, j // 2)
                     for i in range(kh) for j in range(kw))
    else:
        P = 1
        Hh, Wh = Hp, Wp
        Ho, Wo = Hp - kh + 1, Wp - kw + 1
        phases = xp
        taps = tuple((0, i, j) for i in range(kh) for j in range(kw))

    # flatten rows, pad one extra (zero) row so the widest tap slice stays in bounds
    flat = phases.reshape(N, P * Hh * Wh, Cin)
    flat = jnp.pad(flat, ((0, 0), (0, Wh), (0, 0))).astype(jnp.bfloat16)

    # (Cout, Cin, kh, kw) -> (kh*kw, Cin, Cout), tap-major, bf16 MXU operand
    wk = jnp.transpose(w_oihw, (2, 3, 1, 0)).reshape(kh * kw, Cin, Cout)
    wk = wk.astype(jnp.bfloat16)

    # valid-column mask over the (Ho*Wh)-row accumulator
    M = Ho * Wh
    mask = jnp.tile((jnp.arange(Wh) < Wo).astype(jnp.float32), Ho).reshape(M, 1)

    conv, mean, var = _conv_with_bn_stats(
        flat, wk, mask, N=N, Ho=Ho, Wo=Wo, Wh=Wh, Hh=Hh, Cout=Cout, taps=taps)

    scale = gamma * lax.rsqrt(var + eps)
    shift = beta - mean * scale
    y = bn_leakyrelu(conv.reshape(N * Ho * Wo, Cout), scale, shift, out_dtype)
    return y.reshape(N, Ho, Wo, Cout)


# ---------------------------------------------------------------------------
# Discriminator: params + forward
# ---------------------------------------------------------------------------
def init_discriminator_params(key, in_channel=3, features=64):
    specs = [
        (in_channel * 2, features),
        (features, features * 2),
        (features * 2, features * 4),
        (features * 4, 1),
    ]
    params = []
    for cin, cout in specs:
        key, wk = jax.random.split(key)
        fan_in = cin * 4 * 4
        w = jax.random.normal(wk, (cout, cin, 4, 4), jnp.float32) / jnp.sqrt(fan_in)
        gamma = jnp.ones((cout,), jnp.float32)   # BatchNorm2d default weight
        beta = jnp.zeros((cout,), jnp.float32)   # BatchNorm2d default bias
        params.append((w, gamma, beta))
    return params


def discriminator_forward(params, x_nchw, y_nchw):
    inp = jnp.concatenate([x_nchw, y_nchw], axis=1)            # torch.cat([x, y], 1)
    h = jnp.transpose(inp, (0, 2, 3, 1)).astype(jnp.bfloat16)  # NCHW -> NHWC, bf16
    strides = (2, 2, 2, 1)                                     # last block: stride 1
    for li, ((w, g, b), s) in enumerate(zip(params, strides)):
        last = li == len(params) - 1
        h = _down_layer(h, w, g, b, stride=s,
                        out_dtype=jnp.float32 if last else jnp.bfloat16)
    return jnp.transpose(h, (0, 3, 1, 2))                      # NHWC -> NCHW


if __name__ == "__main__":
    key = jax.random.PRNGKey(0)
    kx, ky, kp = jax.random.split(key, 3)

    batch, in_channel, H, W = 2, 3, 16, 16
    features = 16  # small, consistent with the module (default would be 64)

    x = jax.random.normal(kx, (batch, in_channel, H, W), jnp.float32)
    y = jax.random.normal(ky, (batch, in_channel, H, W), jnp.float32)
    params = init_discriminator_params(kp, in_channel=in_channel, features=features)

    fwd = jax.jit(discriminator_forward)
    out = fwd(params, x, y)
    jax.block_until_ready(out)

    # 16 -> 8 -> 4 -> 2 -> 1 spatial, final channel = 1
    assert out.shape == (batch, 1, 1, 1), out.shape
    assert bool(jnp.all(jnp.isfinite(out)))
    print("KERNEL_OK")
</pallas_src>

<mosaic_0001>
module attributes {stable_mosaic.version = 11 : i64} {
  func.func @_conv_stats_kernel(%arg0: i32, %arg1: memref<1x333x6xbf16, #tpu.memory_space<vmem>>, %arg2: memref<16x6x16xbf16, #tpu.memory_space<vmem>>, %arg3: memref<72x1xf32, #tpu.memory_space<vmem>>, %arg4: memref<1x8x8x16xf32, #tpu.memory_space<vmem>>, %arg5: memref<1x1x16xf32, #tpu.memory_space<vmem>>, %arg6: memref<1x1x16xf32, #tpu.memory_space<vmem>>) attributes {dimension_semantics = [#tpu.dimension_semantics<parallel>], iteration_bounds = array<i64: 2>, scalar_prefetch = 0 : i64, scratch_operands = 0 : i64, tpu.core_type = #tpu.core_type<tc>, window_params = [{transform_indices = @transform_0, window_bounds = array<i64: 1, 333, 6>}, {pipeline_mode = #tpu.pipeline_mode<synchronous>, transform_indices = @transform_1, window_bounds = array<i64: 16, 6, 16>}, {pipeline_mode = #tpu.pipeline_mode<synchronous>, transform_indices = @transform_2, window_bounds = array<i64: 72, 1>}, {transform_indices = @transform_3, window_bounds = array<i64: 1, 8, 8, 16>}, {transform_indices = @transform_4, window_bounds = array<i64: 1, 1, 16>}, {transform_indices = @transform_5, window_bounds = array<i64: 1, 1, 16>}]} {
    %cst = arith.constant 0.000000e+00 : f32
    %0 = vector.broadcast %cst : f32 to vector<72x16xf32>
    %c0 = arith.constant 0 : index
    %c0_0 = arith.constant 0 : index
    %c0_1 = arith.constant 0 : index
    %1 = vector.load %arg1[%c0, %c0_0, %c0_1] : memref<1x333x6xbf16, #tpu.memory_space<vmem>>, vector<1x72x6xbf16>
    %2 = vector.shape_cast %1 : vector<1x72x6xbf16> to vector<72x6xbf16>
    %c0_2 = arith.constant 0 : index
    %c0_3 = arith.constant 0 : index
    %c0_4 = arith.constant 0 : index
    %3 = vector.load %arg2[%c0_2, %c0_3, %c0_4] : memref<16x6x16xbf16, #tpu.memory_space<vmem>>, vector<1x6x16xbf16>
    %4 = vector.shape_cast %3 : vector<1x6x16xbf16> to vector<6x16xbf16>
    %cst_5 = arith.constant dense<0.000000e+00> : vector<72x16xf32>
    %5 = tpu.matmul %2, %4, %cst_5 {dimension_numbers = #tpu.dot_dimension_numbers<[1], [0], [0], [1], [0, 0, 1, 1], [], []>} : vector<72x6xbf16>, vector<6x16xbf16>, vector<72x16xf32> -> vector<72x16xf32>
    %6 = arith.addf %0, %5 : vector<72x16xf32>
    %c0_6 = arith.constant 0 : index
    %c81 = arith.constant 81 : index
    %c0_7 = arith.constant 0 : index
    %7 = vector.load %arg1[%c0_6, %c81, %c0_7] : memref<1x333x6xbf16, #tpu.memory_space<vmem>>, vector<1x72x6xbf16>
    %8 = vector.shape_cast %7 : vector<1x72x6xbf16> to vector<72x6xbf16>
    %c1 = arith.constant 1 : index
    %c0_8 = arith.constant 0 : index
    %c0_9 = arith.constant 0 : index
    %9 = vector.load %arg2[%c1, %c0_8, %c0_9] : memref<16x6x16xbf16, #tpu.memory_space<vmem>>, vector<1x6x16xbf16>
    %10 = vector.shape_cast %9 : vector<1x6x16xbf16> to vector<6x16xbf16>
    %cst_10 = arith.constant dense<0.000000e+00> : vector<72x16xf32>
    %11 = tpu.matmul %8, %10, %cst_10 {dimension_numbers = #tpu.dot_dimension_numbers<[1], [0], [0], [1], [0, 0, 1, 1], [], []>} : vector<72x6xbf16>, vector<6x16xbf16>, vector<72x16xf32> -> vector<72x16xf32>
    %12 = arith.addf %6, %11 : vector<72x16xf32>
    %c0_11 = arith.constant 0 : index
    %c1_12 = arith.constant 1 : index
    %c0_13 = arith.constant 0 : index
    %13 = vector.load %arg1[%c0_11, %c1_12, %c0_13] : memref<1x333x6xbf16, #tpu.memory_space<vmem>>, vector<1x72x6xbf16>
    %14 = vector.shape_cast %13 : vector<1x72x6xbf16> to vector<72x6xbf16>
    %c2 = arith.constant 2 : index
    %c0_14 = arith.constant 0 : index
    %c0_15 = arith.constant 0 : index
    %15 = vector.load %arg2[%c2, %c0_14, %c0_15] : memref<16x6x16xbf16, #tpu.memory_space<vmem>>, vector<1x6x16xbf16>
    %16 = vector.shape_cast %15 : vector<1x6x16xbf16> to vector<6x16xbf16>
    %cst_16 = arith.constant dense<0.000000e+00> : vector<72x16xf32>
    %17 = tpu.matmul %14, %16, %cst_16 {dimension_numbers = #tpu.dot_dimension_numbers<[1], [0], [0], [1], [0, 0, 1, 1], [], []>} : vector<72x6xbf16>, vector<6x16xbf16>, vector<72x16xf32> -> vector<72x16xf32>
    %18 = arith.addf %12, %17 : vector<72x16xf32>
    %c0_17 = arith.constant 0 : index
    %c82 = arith.constant 82 : index
    %c0_18 = arith.constant 0 : index
    %19 = vector.load %arg1[%c0_17, %c82, %c0_18] : memref<1x333x6xbf16, #tpu.memory_space<vmem>>, vector<1x72x6xbf16>
    %20 = vector.shape_cast %19 : vector<1x72x6xbf16> to vector<72x6xbf16>
    %c3 = arith.constant 3 : index
    %c0_19 = arith.constant 0 : index
    %c0_20 = arith.constant 0 : index
    %21 = vector.load %arg2[%c3, %c0_19, %c0_20] : memref<16x6x16xbf16, #tpu.memory_space<vmem>>, vector<1x6x16xbf16>
    %22 = vector.shape_cast %21 : vector<1x6x16xbf16> to vector<6x16xbf16>
    %cst_21 = arith.constant dense<0.000000e+00> : vector<72x16xf32>
    %23 = tpu.matmul %20, %22, %cst_21 {dimension_numbers = #tpu.dot_dimension_numbers<[1], [0], [0], [1], [0, 0, 1, 1], [], []>} : vector<72x6xbf16>, vector<6x16xbf16>, vector<72x16xf32> -> vector<72x16xf32>
    %24 = arith.addf %18, %23 : vector<72x16xf32>
    %c0_22 = arith.constant 0 : index
    %c162 = arith.constant 162 : index
    %c0_23 = arith.constant 0 : index
    %25 = vector.load %arg1[%c0_22, %c162, %c0_23] : memref<1x333x6xbf16, #tpu.memory_space<vmem>>, vector<1x72x6xbf16>
    %26 = vector.shape_cast %25 : vector<1x72x6xbf16> to vector<72x6xbf16>
    %c4 = arith.constant 4 : index
    %c0_24 = arith.constant 0 : index
    %c0_25 = arith.constant 0 : index
    %27 = vector.load %arg2[%c4, %c0_24, %c0_25] : memref<16x6x16xbf16, #tpu.memory_space<vmem>>, vector<1x6x16xbf16>
    %28 = vector.shape_cast %27 : vector<1x6x16xbf16> to vector<6x16xbf16>
    %cst_26 = arith.constant dense<0.000000e+00> : vector<72x16xf32>
    %29 = tpu.matmul %26, %28, %cst_26 {dimension_numbers = #tpu.dot_dimension_numbers<[1], [0], [0], [1], [0, 0, 1, 1], [], []>} : vector<72x6xbf16>, vector<6x16xbf16>, vector<72x16xf32> -> vector<72x16xf32>
    %30 = arith.addf %24, %29 : vector<72x16xf32>
    %c0_27 = arith.constant 0 : index
    %c243 = arith.constant 243 : index
    %c0_28 = arith.constant 0 : index
    %31 = vector.load %arg1[%c0_27, %c243, %c0_28] : memref<1x333x6xbf16, #tpu.memory_space<vmem>>, vector<1x72x6xbf16>
    %32 = vector.shape_cast %31 : vector<1x72x6xbf16> to vector<72x6xbf16>
    %c5 = arith.constant 5 : index
    %c0_29 = arith.constant 0 : index
    %c0_30 = arith.constant 0 : index
    %33 = vector.load %arg2[%c5, %c0_29, %c0_30] : memref<16x6x16xbf16, #tpu.memory_space<vmem>>, vector<1x6x16xbf16>
    %34 = vector.shape_cast %33 : vector<1x6x16xbf16> to vector<6x16xbf16>
    %cst_31 = arith.constant dense<0.000000e+00> : vector<72x16xf32>
    %35 = tpu.matmul %32, %34, %cst_31 {dimension_numbers = #tpu.dot_dimension_numbers<[1], [0], [0], [1], [0, 0, 1, 1], [], []>} : vector<72x6xbf16>, vector<6x16xbf16>, vector<72x16xf32> -> vector<72x16xf32>
    %36 = arith.addf %30, %35 : vector<72x16xf32>
    %c0_32 = arith.constant 0 : index
    %c163 = arith.constant 163 : index
    %c0_33 = arith.constant 0 : index
    %37 = vector.load %arg1[%c0_32, %c163, %c0_33] : memref<1x333x6xbf16, #tpu.memory_space<vmem>>, vector<1x72x6xbf16>
    %38 = vector.shape_cast %37 : vector<1x72x6xbf16> to vector<72x6xbf16>
    %c6 = arith.constant 6 : index
    %c0_34 = arith.constant 0 : index
    %c0_35 = arith.constant 0 : index
    %39 = vector.load %arg2[%c6, %c0_34, %c0_35] : memref<16x6x16xbf16, #tpu.memory_space<vmem>>, vector<1x6x16xbf16>
    %40 = vector.shape_cast %39 : vector<1x6x16xbf16> to vector<6x16xbf16>
    %cst_36 = arith.constant dense<0.000000e+00> : vector<72x16xf32>
    %41 = tpu.matmul %38, %40, %cst_36 {dimension_numbers = #tpu.dot_dimension_numbers<[1], [0], [0], [1], [0, 0, 1, 1], [], []>} : vector<72x6xbf16>, vector<6x16xbf16>, vector<72x16xf32> -> vector<72x16xf32>
    %42 = arith.addf %36, %41 : vector<72x16xf32>
    %c0_37 = arith.constant 0 : index
    %c244 = arith.constant 244 : index
    %c0_38 = arith.constant 0 : index
    %43 = vector.load %arg1[%c0_37, %c244, %c0_38] : memref<1x333x6xbf16, #tpu.memory_space<vmem>>, vector<1x72x6xbf16>
    %44 = vector.shape_cast %43 : vector<1x72x6xbf16> to vector<72x6xbf16>
    %c7 = arith.constant 7 : index
    %c0_39 = arith.constant 0 : index
    %c0_40 = arith.constant 0 : index
    %45 = vector.load %arg2[%c7, %c0_39, %c0_40] : memref<16x6x16xbf16, #tpu.memory_space<vmem>>, vector<1x6x16xbf16>
    %46 = vector.shape_cast %45 : vector<1x6x16xbf16> to vector<6x16xbf16>
    %cst_41 = arith.constant dense<0.000000e+00> : vector<72x16xf32>
    %47 = tpu.matmul %44, %46, %cst_41 {dimension_numbers = #tpu.dot_dimension_numbers<[1], [0], [0], [1], [0, 0, 1, 1], [], []>} : vector<72x6xbf16>, vector<6x16xbf16>, vector<72x16xf32> -> vector<72x16xf32>
    %48 = arith.addf %42, %47 : vector<72x16xf32>
    %c0_42 = arith.constant 0 : index
    %c9 = arith.constant 9 : index
    %c0_43 = arith.constant 0 : index
    %49 = vector.load %arg1[%c0_42, %c9, %c0_43] : memref<1x333x6xbf16, #tpu.memory_space<vmem>>, vector<1x72x6xbf16>
    %50 = vector.shape_cast %49 : vector<1x72x6xbf16> to vector<72x6xbf16>
    %c8 = arith.constant 8 : index
    %c0_44 = arith.constant 0 : index
    %c0_45 = arith.constant 0 : index
    %51 = vector.load %arg2[%c8, %c0_44, %c0_45] : memref<16x6x16xbf16, #tpu.memory_space<vmem>>, vector<1x6x16xbf16>
    %52 = vector.shape_cast %51 : vector<1x6x16xbf16> to vector<6x16xbf16>
    %cst_46 = arith.constant dense<0.000000e+00> : vector<72x16xf32>
    %53 = tpu.matmul %50, %52, %cst_46 {dimension_numbers = #tpu.dot_dimension_numbers<[1], [0], [0], [1], [0, 0, 1, 1], [], []>} : vector<72x6xbf16>, vector<6x16xbf16>, vector<72x16xf32> -> vector<72x16xf32>
    %54 = arith.addf %48, %53 : vector<72x16xf32>
    %c0_47 = arith.constant 0 : index
    %c90 = arith.constant 90 : index
    %c0_48 = arith.constant 0 : index
    %55 = vector.load %arg1[%c0_47, %c90, %c0_48] : memref<1x333x6xbf16, #tpu.memory_space<vmem>>, vector<1x72x6xbf16>
    %56 = vector.shape_cast %55 : vector<1x72x6xbf16> to vector<72x6xbf16>
    %c9_49 = arith.constant 9 : index
    %c0_50 = arith.constant 0 : index
    %c0_51 = arith.constant 0 : index
    %57 = vector.load %arg2[%c9_49, %c0_50, %c0_51] : memref<16x6x16xbf16, #tpu.memory_space<vmem>>, vector<1x6x16xbf16>
    %58 = vector.shape_cast %57 : vector<1x6x16xbf16> to vector<6x16xbf16>
    %cst_52 = arith.constant dense<0.000000e+00> : vector<72x16xf32>
    %59 = tpu.matmul %56, %58, %cst_52 {dimension_numbers = #tpu.dot_dimension_numbers<[1], [0], [0], [1], [0, 0, 1, 1], [], []>} : vector<72x6xbf16>, vector<6x16xbf16>, vector<72x16xf32> -> vector<72x16xf32>
    %60 = arith.addf %54, %59 : vector<72x16xf32>
    %c0_53 = arith.constant 0 : index
    %c10 = arith.constant 10 : index
    %c0_54 = arith.constant 0 : index
    %61 = vector.load %arg1[%c0_53, %c10, %c0_54] : memref<1x333x6xbf16, #tpu.memory_space<vmem>>, vector<1x72x6xbf16>
    %62 = vector.shape_cast %61 : vector<1x72x6xbf16> to vector<72x6xbf16>
    %c10_55 = arith.constant 10 : index
    %c0_56 = arith.constant 0 : index
    %c0_57 = arith.constant 0 : index
    %63 = vector.load %arg2[%c10_55, %c0_56, %c0_57] : memref<16x6x16xbf16, #tpu.memory_space<vmem>>, vector<1x6x16xbf16>
    %64 = vector.shape_cast %63 : vector<1x6x16xbf16> to vector<6x16xbf16>
    %cst_58 = arith.constant dense<0.000000e+00> : vector<72x16xf32>
    %65 = tpu.matmul %62, %64, %cst_58 {dimension_numbers = #tpu.dot_dimension_numbers<[1], [0], [0], [1], [0, 0, 1, 1], [], []>} : vector<72x6xbf16>, vector<6x16xbf16>, vector<72x16xf32> -> vector<72x16xf32>
    %66 = arith.addf %60, %65 : vector<72x16xf32>
    %c0_59 = arith.constant 0 : index
    %c91 = arith.constant 91 : index
    %c0_60 = arith.constant 0 : index
    %67 = vector.load %arg1[%c0_59, %c91, %c0_60] : memref<1x333x6xbf16, #tpu.memory_space<vmem>>, vector<1x72x6xbf16>
    %68 = vector.shape_cast %67 : vector<1x72x6xbf16> to vector<72x6xbf16>
    %c11 = arith.constant 11 : index
    %c0_61 = arith.constant 0 : index
    %c0_62 = arith.constant 0 : index
    %69 = vector.load %arg2[%c11, %c0_61, %c0_62] : memref<16x6x16xbf16, #tpu.memory_space<vmem>>, vector<1x6x16xbf16>
    %70 = vector.shape_cast %69 : vector<1x6x16xbf16> to vector<6x16xbf16>
    %cst_63 = arith.constant dense<0.000000e+00> : vector<72x16xf32>
    %71 = tpu.matmul %68, %70, %cst_63 {dimension_numbers = #tpu.dot_dimension_numbers<[1], [0], [0], [1], [0, 0, 1, 1], [], []>} : vector<72x6xbf16>, vector<6x16xbf16>, vector<72x16xf32> -> vector<72x16xf32>
    %72 = arith.addf %66, %71 : vector<72x16xf32>
    %c0_64 = arith.constant 0 : index
    %c171 = arith.constant 171 : index
    %c0_65 = arith.constant 0 : index
    %73 = vector.load %arg1[%c0_64, %c171, %c0_65] : memref<1x333x6xbf16, #tpu.memory_space<vmem>>, vector<1x72x6xbf16>
    %74 = vector.shape_cast %73 : vector<1x72x6xbf16> to vector<72x6xbf16>
    %c12 = arith.constant 12 : index
    %c0_66 = arith.constant 0 : index
    %c0_67 = arith.constant 0 : index
    %75 = vector.load %arg2[%c12, %c0_66, %c0_67] : memref<16x6x16xbf16, #tpu.memory_space<vmem>>, vector<1x6x16xbf16>
    %76 = vector.shape_cast %75 : vector<1x6x16xbf16> to vector<6x16xbf16>
    %cst_68 = arith.constant dense<0.000000e+00> : vector<72x16xf32>
    %77 = tpu.matmul %74, %76, %cst_68 {dimension_numbers = #tpu.dot_dimension_numbers<[1], [0], [0], [1], [0, 0, 1, 1], [], []>} : vector<72x6xbf16>, vector<6x16xbf16>, vector<72x16xf32> -> vector<72x16xf32>
    %78 = arith.addf %72, %77 : vector<72x16xf32>
    %c0_69 = arith.constant 0 : index
    %c252 = arith.constant 252 : index
    %c0_70 = arith.constant 0 : index
    %79 = vector.load %arg1[%c0_69, %c252, %c0_70] : memref<1x333x6xbf16, #tpu.memory_space<vmem>>, vector<1x72x6xbf16>
    %80 = vector.shape_cast %79 : vector<1x72x6xbf16> to vector<72x6xbf16>
    %c13 = arith.constant 13 : index
    %c0_71 = arith.constant 0 : index
    %c0_72 = arith.constant 0 : index
    %81 = vector.load %arg2[%c13, %c0_71, %c0_72] : memref<16x6x16xbf16, #tpu.memory_space<vmem>>, vector<1x6x16xbf16>
    %82 = vector.shape_cast %81 : vector<1x6x16xbf16> to vector<6x16xbf16>
    %cst_73 = arith.constant dense<0.000000e+00> : vector<72x16xf32>
    %83 = tpu.matmul %80, %82, %cst_73 {dimension_numbers = #tpu.dot_dimension_numbers<[1], [0], [0], [1], [0, 0, 1, 1], [], []>} : vector<72x6xbf16>, vector<6x16xbf16>, vector<72x16xf32> -> vector<72x16xf32>
    %84 = arith.addf %78, %83 : vector<72x16xf32>
    %c0_74 = arith.constant 0 : index
    %c172 = arith.constant 172 : index
    %c0_75 = arith.constant 0 : index
    %85 = vector.load %arg1[%c0_74, %c172, %c0_75] : memref<1x333x6xbf16, #tpu.memory_space<vmem>>, vector<1x72x6xbf16>
    %86 = vector.shape_cast %85 : vector<1x72x6xbf16> to vector<72x6xbf16>
    %c14 = arith.constant 14 : index
    %c0_76 = arith.constant 0 : index
    %c0_77 = arith.constant 0 : index
    %87 = vector.load %arg2[%c14, %c0_76, %c0_77] : memref<16x6x16xbf16, #tpu.memory_space<vmem>>, vector<1x6x16xbf16>
    %88 = vector.shape_cast %87 : vector<1x6x16xbf16> to vector<6x16xbf16>
    %cst_78 = arith.constant dense<0.000000e+00> : vector<72x16xf32>
    %89 = tpu.matmul %86, %88, %cst_78 {dimension_numbers = #tpu.dot_dimension_numbers<[1], [0], [0], [1], [0, 0, 1, 1], [], []>} : vector<72x6xbf16>, vector<6x16xbf16>, vector<72x16xf32> -> vector<72x16xf32>
    %90 = arith.addf %84, %89 : vector<72x16xf32>
    %c0_79 = arith.constant 0 : index
    %c253 = arith.constant 253 : index
    %c0_80 = arith.constant 0 : index
    %91 = vector.load %arg1[%c0_79, %c253, %c0_80] : memref<1x333x6xbf16, #tpu.memory_space<vmem>>, vector<1x72x6xbf16>
    %92 = vector.shape_cast %91 : vector<1x72x6xbf16> to vector<72x6xbf16>
    %c15 = arith.constant 15 : index
    %c0_81 = arith.constant 0 : index
    %c0_82 = arith.constant 0 : index
    %93 = vector.load %arg2[%c15, %c0_81, %c0_82] : memref<16x6x16xbf16, #tpu.memory_space<vmem>>, vector<1x6x16xbf16>
    %94 = vector.shape_cast %93 : vector<1x6x16xbf16> to vector<6x16xbf16>
    %cst_83 = arith.constant dense<0.000000e+00> : vector<72x16xf32>
    %95 = tpu.matmul %92, %94, %cst_83 {dimension_numbers = #tpu.dot_dimension_numbers<[1], [0], [0], [1], [0, 0, 1, 1], [], []>} : vector<72x6xbf16>, vector<6x16xbf16>, vector<72x16xf32> -> vector<72x16xf32>
    %96 = arith.addf %90, %95 : vector<72x16xf32>
    %97 = vector.extract_strided_slice %96 {offsets = [0, 0], sizes = [8, 16], strides = [1, 1]} : vector<72x16xf32> to vector<8x16xf32>
    %c0_84 = arith.constant 0 : index
    %c0_85 = arith.constant 0 : index
    %c0_86 = arith.constant 0 : index
    %c0_87 = arith.constant 0 : index
    %98 = vector.load %arg4[%c0_84, %c0_85, %c0_86, %c0_87] : memref<1x8x8x16xf32, #tpu.memory_space<vmem>>, vector<1x1x8x16xf32>
    %99 = vector.shape_cast %98 : vector<1x1x8x16xf32> to vector<8x16xf32>
    %100 = vector.shape_cast %97 : vector<8x16xf32> to vector<1x1x8x16xf32>
    tpu.vector_store %arg4[%c0_84, %c0_85, %c0_86, %c0_87], %100 {strides = array<i32>} : memref<1x8x8x16xf32, #tpu.memory_space<vmem>>, vector<1x1x8x16xf32>,
    %101 = vector.extract_strided_slice %96 {offsets = [9, 0], sizes = [8, 16], strides = [1, 1]} : vector<72x16xf32> to vector<8x16xf32>
    %c0_88 = arith.constant 0 : index
    %c1_89 = arith.constant 1 : index
    %c0_90 = arith.constant 0 : index
    %c0_91 = arith.constant 0 : index
    %102 = vector.load %arg4[%c0_88, %c1_89, %c0_90, %c0_91] : memref<1x8x8x16xf32, #tpu.memory_space<vmem>>, vector<1x1x8x16xf32>
    %103 = vector.shape_cast %102 : vector<1x1x8x16xf32> to vector<8x16xf32>
    %104 = vector.shape_cast %101 : vector<8x16xf32> to vector<1x1x8x16xf32>
    tpu.vector_store %arg4[%c0_88, %c1_89, %c0_90, %c0_91], %104 {strides = array<i32>} : memref<1x8x8x16xf32, #tpu.memory_space<vmem>>, vector<1x1x8x16xf32>,
    %105 = vector.extract_strided_slice %96 {offsets = [18, 0], sizes = [8, 16], strides = [1, 1]} : vector<72x16xf32> to vector<8x16xf32>
    %c0_92 = arith.constant 0 : index
    %c2_93 = arith.constant 2 : index
    %c0_94 = arith.constant 0 : index
    %c0_95 = arith.constant 0 : index
    %106 = vector.load %arg4[%c0_92, %c2_93, %c0_94, %c0_95] : memref<1x8x8x16xf32, #tpu.memory_space<vmem>>, vector<1x1x8x16xf32>
    %107 = vector.shape_cast %106 : vector<1x1x8x16xf32> to vector<8x16xf32>
    %108 = vector.shape_cast %105 : vector<8x16xf32> to vector<1x1x8x16xf32>
    tpu.vector_store %arg4[%c0_92, %c2_93, %c0_94, %c0_95], %108 {strides = array<i32>} : memref<1x8x8x16xf32, #tpu.memory_space<vmem>>, vector<1x1x8x16xf32>,
    %109 = vector.extract_strided_slice %96 {offsets = [27, 0], sizes = [8, 16], strides = [1, 1]} : vector<72x16xf32> to vector<8x16xf32>
    %c0_96 = arith.constant 0 : index
    %c3_97 = arith.constant 3 : index
    %c0_98 = arith.constant 0 : index
    %c0_99 = arith.constant 0 : index
    %110 = vector.load %arg4[%c0_96, %c3_97, %c0_98, %c0_99] : memref<1x8x8x16xf32, #tpu.memory_space<vmem>>, vector<1x1x8x16xf32>
    %111 = vector.shape_cast %110 : vector<1x1x8x16xf32> to vector<8x16xf32>
    %112 = vector.shape_cast %109 : vector<8x16xf32> to vector<1x1x8x16xf32>
    tpu.vector_store %arg4[%c0_96, %c3_97, %c0_98, %c0_99], %112 {strides = array<i32>} : memref<1x8x8x16xf32, #tpu.memory_space<vmem>>, vector<1x1x8x16xf32>,
    %113 = vector.extract_strided_slice %96 {offsets = [36, 0], sizes = [8, 16], strides = [1, 1]} : vector<72x16xf32> to vector<8x16xf32>
    %c0_100 = arith.constant 0 : index
    %c4_101 = arith.constant 4 : index
    %c0_102 = arith.constant 0 : index
    %c0_103 = arith.constant 0 : index
    %114 = vector.load %arg4[%c0_100, %c4_101, %c0_102, %c0_103] : memref<1x8x8x16xf32, #tpu.memory_space<vmem>>, vector<1x1x8x16xf32>
    %115 = vector.shape_cast %114 : vector<1x1x8x16xf32> to vector<8x16xf32>
    %116 = vector.shape_cast %113 : vector<8x16xf32> to vector<1x1x8x16xf32>
    tpu.vector_store %arg4[%c0_100, %c4_101, %c0_102, %c0_103], %116 {strides = array<i32>} : memref<1x8x8x16xf32, #tpu.memory_space<vmem>>, vector<1x1x8x16xf32>,
    %117 = vector.extract_strided_slice %96 {offsets = [45, 0], sizes = [8, 16], strides = [1, 1]} : vector<72x16xf32> to vector<8x16xf32>
    %c0_104 = arith.constant 0 : index
    %c5_105 = arith.constant 5 : index
    %c0_106 = arith.constant 0 : index
    %c0_107 = arith.constant 0 : index
    %118 = vector.load %arg4[%c0_104, %c5_105, %c0_106, %c0_107] : memref<1x8x8x16xf32, #tpu.memory_space<vmem>>, vector<1x1x8x16xf32>
    %119 = vector.shape_cast %118 : vector<1x1x8x16xf32> to vector<8x16xf32>
    %120 = vector.shape_cast %117 : vector<8x16xf32> to vector<1x1x8x16xf32>
    tpu.vector_store %arg4[%c0_104, %c5_105, %c0_106, %c0_107], %120 {strides = array<i32>} : memref<1x8x8x16xf32, #tpu.memory_space<vmem>>, vector<1x1x8x16xf32>,
    %121 = vector.extract_strided_slice %96 {offsets = [54, 0], sizes = [8, 16], strides = [1, 1]} : vector<72x16xf32> to vector<8x16xf32>
    %c0_108 = arith.constant 0 : index
    %c6_109 = arith.constant 6 : index
    %c0_110 = arith.constant 0 : index
    %c0_111 = arith.constant 0 : index
    %122 = vector.load %arg4[%c0_108, %c6_109, %c0_110, %c0_111] : memref<1x8x8x16xf32, #tpu.memory_space<vmem>>, vector<1x1x8x16xf32>
    %123 = vector.shape_cast %122 : vector<1x1x8x16xf32> to vector<8x16xf32>
    %124 = vector.shape_cast %121 : vector<8x16xf32> to vector<1x1x8x16xf32>
    tpu.vector_store %arg4[%c0_108, %c6_109, %c0_110, %c0_111], %124 {strides = array<i32>} : memref<1x8x8x16xf32, #tpu.memory_space<vmem>>, vector<1x1x8x16xf32>,
    %125 = vector.extract_strided_slice %96 {offsets = [63, 0], sizes = [8, 16], strides = [1, 1]} : vector<72x16xf32> to vector<8x16xf32>
    %c0_112 = arith.constant 0 : index
    %c7_113 = arith.constant 7 : index
    %c0_114 = arith.constant 0 : index
    %c0_115 = arith.constant 0 : index
    %126 = vector.load %arg4[%c0_112, %c7_113, %c0_114, %c0_115] : memref<1x8x8x16xf32, #tpu.memory_space<vmem>>, vector<1x1x8x16xf32>
    %127 = vector.shape_cast %126 : vector<1x1x8x16xf32> to vector<8x16xf32>
    %128 = vector.shape_cast %125 : vector<8x16xf32> to vector<1x1x8x16xf32>
    tpu.vector_store %arg4[%c0_112, %c7_113, %c0_114, %c0_115], %128 {strides = array<i32>} : memref<1x8x8x16xf32, #tpu.memory_space<vmem>>, vector<1x1x8x16xf32>,
    %c0_116 = arith.constant 0 : index
    %c0_117 = arith.constant 0 : index
    %129 = vector.load %arg3[%c0_116, %c0_117] : memref<72x1xf32, #tpu.memory_space<vmem>>, vector<72x1xf32>
    %130 = vector.broadcast %129 : vector<72x1xf32> to vector<72x16xf32>
    %131 = arith.mulf %96, %130 : vector<72x16xf32>
    %cst_118 = arith.constant dense<0.000000e+00> : vector<16xf32>
    %132 = vector.multi_reduction <add>, %131, %cst_118 [0] : vector<72x16xf32> to vector<16xf32>
    %133 = vector.shape_cast %132 : vector<16xf32> to vector<1x16xf32>
    %134 = vector.shape_cast %133 : vector<1x16xf32> to vector<1x1x16xf32>
    %c0_119 = arith.constant 0 : index
    %c0_120 = arith.constant 0 : index
    %c0_121 = arith.constant 0 : index
    %135 = vector.load %arg5[%c0_119, %c0_120, %c0_121] : memref<1x1x16xf32, #tpu.memory_space<vmem>>, vector<1x1x16xf32>
    tpu.vector_store %arg5[%c0_119, %c0_120, %c0_121], %134 {strides = array<i32>} : memref<1x1x16xf32, #tpu.memory_space<vmem>>, vector<1x1x16xf32>,
    %136 = arith.mulf %131, %96 : vector<72x16xf32>
    %cst_122 = arith.constant dense<0.000000e+00> : vector<16xf32>
    %137 = vector.multi_reduction <add>, %136, %cst_122 [0] : vector<72x16xf32> to vector<16xf32>
    %138 = vector.shape_cast %137 : vector<16xf32> to vector<1x16xf32>
    %139 = vector.shape_cast %138 : vector<1x16xf32> to vector<1x1x16xf32>
    %c0_123 = arith.constant 0 : index
    %c0_124 = arith.constant 0 : index
    %c0_125 = arith.constant 0 : index
    %140 = vector.load %arg6[%c0_123, %c0_124, %c0_125] : memref<1x1x16xf32, #tpu.memory_space<vmem>>, vector<1x1x16xf32>
    tpu.vector_store %arg6[%c0_123, %c0_124, %c0_125], %139 {strides = array<i32>} : memref<1x1x16xf32, #tpu.memory_space<vmem>>, vector<1x1x16xf32>,
    return
  }
  func.func @transform_0(%arg0: i32) -> (i32, i32, i32) {
    %c0_i32 = arith.constant 0 : i32
    %c0_i32_0 = arith.constant 0 : i32
    %c0_i32_1 = arith.constant 0 : i32
    return %arg0, %c0_i32, %c0_i32_0 : i32, i32, i32
  }
  func.func @transform_1(%arg0: i32) -> (i32, i32, i32) {
    %c0_i32 = arith.constant 0 : i32
    %c0_i32_0 = arith.constant 0 : i32
    %c0_i32_1 = arith.constant 0 : i32
    %c0_i32_2 = arith.constant 0 : i32
    return %c0_i32, %c0_i32_0, %c0_i32_1 : i32, i32, i32
  }
  func.func @transform_2(%arg0: i32) -> (i32, i32) {
    %c0_i32 = arith.constant 0 : i32
    %c0_i32_0 = arith.constant 0 : i32
    %c0_i32_1 = arith.constant 0 : i32
    return %c0_i32, %c0_i32_0 : i32, i32
  }
  func.func @transform_3(%arg0: i32) -> (i32, i32, i32, i32) {
    %c0_i32 = arith.constant 0 : i32
    %c0_i32_0 = arith.constant 0 : i32
    %c0_i32_1 = arith.constant 0 : i32
    %c0_i32_2 = arith.constant 0 : i32
    return %arg0, %c0_i32, %c0_i32_0, %c0_i32_1 : i32, i32, i32, i32
  }
  func.func @transform_4(%arg0: i32) -> (i32, i32, i32) {
    %c0_i32 = arith.constant 0 : i32
    %c0_i32_0 = arith.constant 0 : i32
    %c0_i32_1 = arith.constant 0 : i32
    return %arg0, %c0_i32, %c0_i32_0 : i32, i32, i32
  }
  func.func @transform_5(%arg0: i32) -> (i32, i32, i32) {
    %c0_i32 = arith.constant 0 : i32
    %c0_i32_0 = arith.constant 0 : i32
    %c0_i32_1 = arith.constant 0 : i32
    return %arg0, %c0_i32, %c0_i32_0 : i32, i32, i32
  }
}

module attributes {stable_mosaic.version = 11 : i64} {
  func.func @_bn_lrelu_kernel(%arg0: i32, %arg1: memref<64x16xf32, #tpu.memory_space<vmem>>, %arg2: memref<1x16xf32, #tpu.memory_space<vmem>>, %arg3: memref<1x16xf32, #tpu.memory_space<vmem>>, %arg4: memref<64x16xbf16, #tpu.memory_space<vmem>>) attributes {dimension_semantics = [#tpu.dimension_semantics<parallel>], iteration_bounds = array<i64: 2>, scalar_prefetch = 0 : i64, scratch_operands = 0 : i64, tpu.core_type = #tpu.core_type<tc>, window_params = [{transform_indices = @transform_0, window_bounds = array<i64: 64, 16>}, {pipeline_mode = #tpu.pipeline_mode<synchronous>, transform_indices = @transform_1, window_bounds = array<i64: 1, 16>}, {pipeline_mode = #tpu.pipeline_mode<synchronous>, transform_indices = @transform_2, window_bounds = array<i64: 1, 16>}, {transform_indices = @transform_3, window_bounds = array<i64: 64, 16>}]} {
    %c0 = arith.constant 0 : index
    %c0_0 = arith.constant 0 : index
    %0 = vector.load %arg1[%c0, %c0_0] : memref<64x16xf32, #tpu.memory_space<vmem>>, vector<64x16xf32>
    %c0_1 = arith.constant 0 : index
    %c0_2 = arith.constant 0 : index
    %1 = vector.load %arg2[%c0_1, %c0_2] : memref<1x16xf32, #tpu.memory_space<vmem>>, vector<1x16xf32>
    %2 = vector.broadcast %1 : vector<1x16xf32> to vector<64x16xf32>
    %3 = arith.mulf %0, %2 : vector<64x16xf32>
    %c0_3 = arith.constant 0 : index
    %c0_4 = arith.constant 0 : index
    %4 = vector.load %arg3[%c0_3, %c0_4] : memref<1x16xf32, #tpu.memory_space<vmem>>, vector<1x16xf32>
    %5 = vector.broadcast %4 : vector<1x16xf32> to vector<64x16xf32>
    %6 = arith.addf %3, %5 : vector<64x16xf32>
    %cst = arith.constant 0.000000e+00 : f32
    %7 = vector.broadcast %cst : f32 to vector<64x16xf32>
    %8 = arith.cmpf oge, %6, %7 : vector<64x16xf32>
    %cst_5 = arith.constant 2.000000e-01 : f32
    %9 = vector.broadcast %cst_5 : f32 to vector<64x16xf32>
    %10 = arith.mulf %9, %6 : vector<64x16xf32>
    %11 = arith.select %8, %6, %10 : vector<64x16xi1>, vector<64x16xf32>
    %12 = arith.truncf %11 : vector<64x16xf32> to vector<64x16xbf16>
    %c0_6 = arith.constant 0 : index
    %c0_7 = arith.constant 0 : index
    %13 = vector.load %arg4[%c0_6, %c0_7] : memref<64x16xbf16, #tpu.memory_space<vmem>>, vector<64x16xbf16>
    tpu.vector_store %arg4[%c0_6, %c0_7], %12 {strides = array<i32>} : memref<64x16xbf16, #tpu.memory_space<vmem>>, vector<64x16xbf16>,
    return
  }
  func.func @transform_0(%arg0: i32) -> (i32, i32) {
    %c0_i32 = arith.constant 0 : i32
    %c0_i32_0 = arith.constant 0 : i32
    return %arg0, %c0_i32 : i32, i32
  }
  func.func @transform_1(%arg0: i32) -> (i32, i32) {
    %c0_i32 = arith.constant 0 : i32
    %c0_i32_0 = arith.constant 0 : i32
    %c0_i32_1 = arith.constant 0 : i32
    return %c0_i32, %c0_i32_0 : i32, i32
  }
  func.func @transform_2(%arg0: i32) -> (i32, i32) {
    %c0_i32 = arith.constant 0 : i32
    %c0_i32_0 = arith.constant 0 : i32
    %c0_i32_1 = arith.constant 0 : i32
    return %c0_i32, %c0_i32_0 : i32, i32
  }
  func.func @transform_3(%arg0: i32) -> (i32, i32) {
    %c0_i32 = arith.constant 0 : i32
    %c0_i32_0 = arith.constant 0 : i32
    return %arg0, %c0_i32 : i32, i32
  }
}

module attributes {stable_mosaic.version = 11 : i64} {
  func.func @_conv_stats_kernel(%arg0: i32, %arg1: memref<1x105x16xbf16, #tpu.memory_space<vmem>>, %arg2: memref<16x16x32xbf16, #tpu.memory_space<vmem>>, %arg3: memref<20x1xf32, #tpu.memory_space<vmem>>, %arg4: memref<1x4x4x32xf32, #tpu.memory_space<vmem>>, %arg5: memref<1x1x32xf32, #tpu.memory_space<vmem>>, %arg6: memref<1x1x32xf32, #tpu.memory_space<vmem>>) attributes {dimension_semantics = [#tpu.dimension_semantics<parallel>], iteration_bounds = array<i64: 2>, scalar_prefetch = 0 : i64, scratch_operands = 0 : i64, tpu.core_type = #tpu.core_type<tc>, window_params = [{transform_indices = @transform_0, window_bounds = array<i64: 1, 105, 16>}, {pipeline_mode = #tpu.pipeline_mode<synchronous>, transform_indices = @transform_1, window_bounds = array<i64: 16, 16, 32>}, {pipeline_mode = #tpu.pipeline_mode<synchronous>, transform_indices = @transform_2, window_bounds = array<i64: 20, 1>}, {transform_indices = @transform_3, window_bounds = array<i64: 1, 4, 4, 32>}, {transform_indices = @transform_4, window_bounds = array<i64: 1, 1, 32>}, {transform_indices = @transform_5, window_bounds = array<i64: 1, 1, 32>}]} {
    %cst = arith.constant 0.000000e+00 : f32
    %0 = vector.broadcast %cst : f32 to vector<20x32xf32>
    %c0 = arith.constant 0 : index
    %c0_0 = arith.constant 0 : index
    %c0_1 = arith.constant 0 : index
    %1 = vector.load %arg1[%c0, %c0_0, %c0_1] : memref<1x105x16xbf16, #tpu.memory_space<vmem>>, vector<1x20x16xbf16>
    %2 = vector.shape_cast %1 : vector<1x20x16xbf16> to vector<20x16xbf16>
    %c0_2 = arith.constant 0 : index
    %c0_3 = arith.constant 0 : index
    %c0_4 = arith.constant 0 : index
    %3 = vector.load %arg2[%c0_2, %c0_3, %c0_4] : memref<16x16x32xbf16, #tpu.memory_space<vmem>>, vector<1x16x32xbf16>
    %4 = vector.shape_cast %3 : vector<1x16x32xbf16> to vector<16x32xbf16>
    %cst_5 = arith.constant dense<0.000000e+00> : vector<20x32xf32>
    %5 = tpu.matmul %2, %4, %cst_5 {dimension_numbers = #tpu.dot_dimension_numbers<[1], [0], [0], [1], [0, 0, 1, 1], [], []>} : vector<20x16xbf16>, vector<16x32xbf16>, vector<20x32xf32> -> vector<20x32xf32>
    %6 = arith.addf %0, %5 : vector<20x32xf32>
    %c0_6 = arith.constant 0 : index
    %c25 = arith.constant 25 : index
    %c0_7 = arith.constant 0 : index
    %7 = vector.load %arg1[%c0_6, %c25, %c0_7] : memref<1x105x16xbf16, #tpu.memory_space<vmem>>, vector<1x20x16xbf16>
    %8 = vector.shape_cast %7 : vector<1x20x16xbf16> to vector<20x16xbf16>
    %c1 = arith.constant 1 : index
    %c0_8 = arith.constant 0 : index
    %c0_9 = arith.constant 0 : index
    %9 = vector.load %arg2[%c1, %c0_8, %c0_9] : memref<16x16x32xbf16, #tpu.memory_space<vmem>>, vector<1x16x32xbf16>
    %10 = vector.shape_cast %9 : vector<1x16x32xbf16> to vector<16x32xbf16>
    %cst_10 = arith.constant dense<0.000000e+00> : vector<20x32xf32>
    %11 = tpu.matmul %8, %10, %cst_10 {dimension_numbers = #tpu.dot_dimension_numbers<[1], [0], [0], [1], [0, 0, 1, 1], [], []>} : vector<20x16xbf16>, vector<16x32xbf16>, vector<20x32xf32> -> vector<20x32xf32>
    %12 = arith.addf %6, %11 : vector<20x32xf32>
    %c0_11 = arith.constant 0 : index
    %c1_12 = arith.constant 1 : index
    %c0_13 = arith.constant 0 : index
    %13 = vector.load %arg1[%c0_11, %c1_12, %c0_13] : memref<1x105x16xbf16, #tpu.memory_space<vmem>>, vector<1x20x16xbf16>
    %14 = vector.shape_cast %13 : vector<1x20x16xbf16> to vector<20x16xbf16>
    %c2 = arith.constant 2 : index
    %c0_14 = arith.constant 0 : index
    %c0_15 = arith.constant 0 : index
    %15 = vector.load %arg2[%c2, %c0_14, %c0_15] : memref<16x16x32xbf16, #tpu.memory_space<vmem>>, vector<1x16x32xbf16>
    %16 = vector.shape_cast %15 : vector<1x16x32xbf16> to vector<16x32xbf16>
    %cst_16 = arith.constant dense<0.000000e+00> : vector<20x32xf32>
    %17 = tpu.matmul %14, %16, %cst_16 {dimension_numbers = #tpu.dot_dimension_numbers<[1], [0], [0], [1], [0, 0, 1, 1], [], []>} : vector<20x16xbf16>, vector<16x32xbf16>, vector<20x32xf32> -> vector<20x32xf32>
    %18 = arith.addf %12, %17 : vector<20x32xf32>
    %c0_17 = arith.constant 0 : index
    %c26 = arith.constant 26 : index
    %c0_18 = arith.constant 0 : index
    %19 = vector.load %arg1[%c0_17, %c26, %c0_18] : memref<1x105x16xbf16, #tpu.memory_space<vmem>>, vector<1x20x16xbf16>
    %20 = vector.shape_cast %19 : vector<1x20x16xbf16> to vector<20x16xbf16>
    %c3 = arith.constant 3 : index
    %c0_19 = arith.constant 0 : index
    %c0_20 = arith.constant 0 : index
    %21 = vector.load %arg2[%c3, %c0_19, %c0_20] : memref<16x16x32xbf16, #tpu.memory_space<vmem>>, vector<1x16x32xbf16>
    %22 = vector.shape_cast %21 : vector<1x16x32xbf16> to vector<16x32xbf16>
    %cst_21 = arith.constant dense<0.000000e+00> : vector<20x32xf32>
    %23 = tpu.matmul %20, %22, %cst_21 {dimension_numbers = #tpu.dot_dimension_numbers<[1], [0], [0], [1], [0, 0, 1, 1], [], []>} : vector<20x16xbf16>, vector<16x32xbf16>, vector<20x32xf32> -> vector<20x32xf32>
    %24 = arith.addf %18, %23 : vector<20x32xf32>
    %c0_22 = arith.constant 0 : index
    %c50 = arith.constant 50 : index
    %c0_23 = arith.constant 0 : index
    %25 = vector.load %arg1[%c0_22, %c50, %c0_23] : memref<1x105x16xbf16, #tpu.memory_space<vmem>>, vector<1x20x16xbf16>
    %26 = vector.shape_cast %25 : vector<1x20x16xbf16> to vector<20x16xbf16>
    %c4 = arith.constant 4 : index
    %c0_24 = arith.constant 0 : index
    %c0_25 = arith.constant 0 : index
    %27 = vector.load %arg2[%c4, %c0_24, %c0_25] : memref<16x16x32xbf16, #tpu.memory_space<vmem>>, vector<1x16x32xbf16>
    %28 = vector.shape_cast %27 : vector<1x16x32xbf16> to vector<16x32xbf16>
    %cst_26 = arith.constant dense<0.000000e+00> : vector<20x32xf32>
    %29 = tpu.matmul %26, %28, %cst_26 {dimension_numbers = #tpu.dot_dimension_numbers<[1], [0], [0], [1], [0, 0, 1, 1], [], []>} : vector<20x16xbf16>, vector<16x32xbf16>, vector<20x32xf32> -> vector<20x32xf32>
    %30 = arith.addf %24, %29 : vector<20x32xf32>
    %c0_27 = arith.constant 0 : index
    %c75 = arith.constant 75 : index
    %c0_28 = arith.constant 0 : index
    %31 = vector.load %arg1[%c0_27, %c75, %c0_28] : memref<1x105x16xbf16, #tpu.memory_space<vmem>>, vector<1x20x16xbf16>
    %32 = vector.shape_cast %31 : vector<1x20x16xbf16> to vector<20x16xbf16>
    %c5 = arith.constant 5 : index
    %c0_29 = arith.constant 0 : index
    %c0_30 = arith.constant 0 : index
    %33 = vector.load %arg2[%c5, %c0_29, %c0_30] : memref<16x16x32xbf16, #tpu.memory_space<vmem>>, vector<1x16x32xbf16>
    %34 = vector.shape_cast %33 : vector<1x16x32xbf16> to vector<16x32xbf16>
    %cst_31 = arith.constant dense<0.000000e+00> : vector<20x32xf32>
    %35 = tpu.matmul %32, %34, %cst_31 {dimension_numbers = #tpu.dot_dimension_numbers<[1], [0], [0], [1], [0, 0, 1, 1], [], []>} : vector<20x16xbf16>, vector<16x32xbf16>, vector<20x32xf32> -> vector<20x32xf32>
    %36 = arith.addf %30, %35 : vector<20x32xf32>
    %c0_32 = arith.constant 0 : index
    %c51 = arith.constant 51 : index
    %c0_33 = arith.constant 0 : index
    %37 = vector.load %arg1[%c0_32, %c51, %c0_33] : memref<1x105x16xbf16, #tpu.memory_space<vmem>>, vector<1x20x16xbf16>
    %38 = vector.shape_cast %37 : vector<1x20x16xbf16> to vector<20x16xbf16>
    %c6 = arith.constant 6 : index
    %c0_34 = arith.constant 0 : index
    %c0_35 = arith.constant 0 : index
    %39 = vector.load %arg2[%c6, %c0_34, %c0_35] : memref<16x16x32xbf16, #tpu.memory_space<vmem>>, vector<1x16x32xbf16>
    %40 = vector.shape_cast %39 : vector<1x16x32xbf16> to vector<16x32xbf16>
    %cst_36 = arith.constant dense<0.000000e+00> : vector<20x32xf32>
    %41 = tpu.matmul %38, %40, %cst_36 {dimension_numbers = #tpu.dot_dimension_numbers<[1], [0], [0], [1], [0, 0, 1, 1], [], []>} : vector<20x16xbf16>, vector<16x32xbf16>, vector<20x32xf32> -> vector<20x32xf32>
    %42 = arith.addf %36, %41 : vector<20x32xf32>
    %c0_37 = arith.constant 0 : index
    %c76 = arith.constant 76 : index
    %c0_38 = arith.constant 0 : index
    %43 = vector.load %arg1[%c0_37, %c76, %c0_38] : memref<1x105x16xbf16, #tpu.memory_space<vmem>>, vector<1x20x16xbf16>
    %44 = vector.shape_cast %43 : vector<1x20x16xbf16> to vector<20x16xbf16>
    %c7 = arith.constant 7 : index
    %c0_39 = arith.constant 0 : index
    %c0_40 = arith.constant 0 : index
    %45 = vector.load %arg2[%c7, %c0_39, %c0_40] : memref<16x16x32xbf16, #tpu.memory_space<vmem>>, vector<1x16x32xbf16>
    %46 = vector.shape_cast %45 : vector<1x16x32xbf16> to vector<16x32xbf16>
    %cst_41 = arith.constant dense<0.000000e+00> : vector<20x32xf32>
    %47 = tpu.matmul %44, %46, %cst_41 {dimension_numbers = #tpu.dot_dimension_numbers<[1], [0], [0], [1], [0, 0, 1, 1], [], []>} : vector<20x16xbf16>, vector<16x32xbf16>, vector<20x32xf32> -> vector<20x32xf32>
    %48 = arith.addf %42, %47 : vector<20x32xf32>
    %c0_42 = arith.constant 0 : index
    %c5_43 = arith.constant 5 : index
    %c0_44 = arith.constant 0 : index
    %49 = vector.load %arg1[%c0_42, %c5_43, %c0_44] : memref<1x105x16xbf16, #tpu.memory_space<vmem>>, vector<1x20x16xbf16>
    %50 = vector.shape_cast %49 : vector<1x20x16xbf16> to vector<20x16xbf16>
    %c8 = arith.constant 8 : index
    %c0_45 = arith.constant 0 : index
    %c0_46 = arith.constant 0 : index
    %51 = vector.load %arg2[%c8, %c0_45, %c0_46] : memref<16x16x32xbf16, #tpu.memory_space<vmem>>, vector<1x16x32xbf16>
    %52 = vector.shape_cast %51 : vector<1x16x32xbf16> to vector<16x32xbf16>
    %cst_47 = arith.constant dense<0.000000e+00> : vector<20x32xf32>
    %53 = tpu.matmul %50, %52, %cst_47 {dimension_numbers = #tpu.dot_dimension_numbers<[1], [0], [0], [1], [0, 0, 1, 1], [], []>} : vector<20x16xbf16>, vector<16x32xbf16>, vector<20x32xf32> -> vector<20x32xf32>
    %54 = arith.addf %48, %53 : vector<20x32xf32>
    %c0_48 = arith.constant 0 : index
    %c30 = arith.constant 30 : index
    %c0_49 = arith.constant 0 : index
    %55 = vector.load %arg1[%c0_48, %c30, %c0_49] : memref<1x105x16xbf16, #tpu.memory_space<vmem>>, vector<1x20x16xbf16>
    %56 = vector.shape_cast %55 : vector<1x20x16xbf16> to vector<20x16xbf16>
    %c9 = arith.constant 9 : index
    %c0_50 = arith.constant 0 : index
    %c0_51 = arith.constant 0 : index
    %57 = vector.load %arg2[%c9, %c0_50, %c0_51] : memref<16x16x32xbf16, #tpu.memory_space<vmem>>, vector<1x16x32xbf16>
    %58 = vector.shape_cast %57 : vector<1x16x32xbf16> to vector<16x32xbf16>
    %cst_52 = arith.constant dense<0.000000e+00> : vector<20x32xf32>
    %59 = tpu.matmul %56, %58, %cst_52 {dimension_numbers = #tpu.dot_dimension_numbers<[1], [0], [0], [1], [0, 0, 1, 1], [], []>} : vector<20x16xbf16>, vector<16x32xbf16>, vector<20x32xf32> -> vector<20x32xf32>
    %60 = arith.addf %54, %59 : vector<20x32xf32>
    %c0_53 = arith.constant 0 : index
    %c6_54 = arith.constant 6 : index
    %c0_55 = arith.constant 0 : index
    %61 = vector.load %arg1[%c0_53, %c6_54, %c0_55] : memref<1x105x16xbf16, #tpu.memory_space<vmem>>, vector<1x20x16xbf16>
    %62 = vector.shape_cast %61 : vector<1x20x16xbf16> to vector<20x16xbf16>
    %c10 = arith.constant 10 : index
    %c0_56 = arith.constant 0 : index
    %c0_57 = arith.constant 0 : index
    %63 = vector.load %arg2[%c10, %c0_56, %c0_57] : memref<16x16x32xbf16, #tpu.memory_space<vmem>>, vector<1x16x32xbf16>
    %64 = vector.shape_cast %63 : vector<1x16x32xbf16> to vector<16x32xbf16>
    %cst_58 = arith.constant dense<0.000000e+00> : vector<20x32xf32>
    %65 = tpu.matmul %62, %64, %cst_58 {dimension_numbers = #tpu.dot_dimension_numbers<[1], [0], [0], [1], [0, 0, 1, 1], [], []>} : vector<20x16xbf16>, vector<16x32xbf16>, vector<20x32xf32> -> vector<20x32xf32>
    %66 = arith.addf %60, %65 : vector<20x32xf32>
    %c0_59 = arith.constant 0 : index
    %c31 = arith.constant 31 : index
    %c0_60 = arith.constant 0 : index
    %67 = vector.load %arg1[%c0_59, %c31, %c0_60] : memref<1x105x16xbf16, #tpu.memory_space<vmem>>, vector<1x20x16xbf16>
    %68 = vector.shape_cast %67 : vector<1x20x16xbf16> to vector<20x16xbf16>
    %c11 = arith.constant 11 : index
    %c0_61 = arith.constant 0 : index
    %c0_62 = arith.constant 0 : index
    %69 = vector.load %arg2[%c11, %c0_61, %c0_62] : memref<16x16x32xbf16, #tpu.memory_space<vmem>>, vector<1x16x32xbf16>
    %70 = vector.shape_cast %69 : vector<1x16x32xbf16> to vector<16x32xbf16>
    %cst_63 = arith.constant dense<0.000000e+00> : vector<20x32xf32>
    %71 = tpu.matmul %68, %70, %cst_63 {dimension_numbers = #tpu.dot_dimension_numbers<[1], [0], [0], [1], [0, 0, 1, 1], [], []>} : vector<20x16xbf16>, vector<16x32xbf16>, vector<20x32xf32> -> vector<20x32xf32>
    %72 = arith.addf %66, %71 : vector<20x32xf32>
    %c0_64 = arith.constant 0 : index
    %c55 = arith.constant 55 : index
    %c0_65 = arith.constant 0 : index
    %73 = vector.load %arg1[%c0_64, %c55, %c0_65] : memref<1x105x16xbf16, #tpu.memory_space<vmem>>, vector<1x20x16xbf16>
    %74 = vector.shape_cast %73 : vector<1x20x16xbf16> to vector<20x16xbf16>
    %c12 = arith.constant 12 : index
    %c0_66 = arith.constant 0 : index
    %c0_67 = arith.constant 0 : index
    %75 = vector.load %arg2[%c12, %c0_66, %c0_67] : memref<16x16x32xbf16, #tpu.memory_space<vmem>>, vector<1x16x32xbf16>
    %76 = vector.shape_cast %75 : vector<1x16x32xbf16> to vector<16x32xbf16>
    %cst_68 = arith.constant dense<0.000000e+00> : vector<20x32xf32>
    %77 = tpu.matmul %74, %76, %cst_68 {dimension_numbers = #tpu.dot_dimension_numbers<[1], [0], [0], [1], [0, 0, 1, 1], [], []>} : vector<20x16xbf16>, vector<16x32xbf16>, vector<20x32xf32> -> vector<20x32xf32>
    %78 = arith.addf %72, %77 : vector<20x32xf32>
    %c0_69 = arith.constant 0 : index
    %c80 = arith.constant 80 : index
    %c0_70 = arith.constant 0 : index
    %79 = vector.load %arg1[%c0_69, %c80, %c0_70] : memref<1x105x16xbf16, #tpu.memory_space<vmem>>, vector<1x20x16xbf16>
    %80 = vector.shape_cast %79 : vector<1x20x16xbf16> to vector<20x16xbf16>
    %c13 = arith.constant 13 : index
    %c0_71 = arith.constant 0 : index
    %c0_72 = arith.constant 0 : index
    %81 = vector.load %arg2[%c13, %c0_71, %c0_72] : memref<16x16x32xbf16, #tpu.memory_space<vmem>>, vector<1x16x32xbf16>
    %82 = vector.shape_cast %81 : vector<1x16x32xbf16> to vector<16x32xbf16>
    %cst_73 = arith.constant dense<0.000000e+00> : vector<20x32xf32>
    %83 = tpu.matmul %80, %82, %cst_73 {dimension_numbers = #tpu.dot_dimension_numbers<[1], [0], [0], [1], [0, 0, 1, 1], [], []>} : vector<20x16xbf16>, vector<16x32xbf16>, vector<20x32xf32> -> vector<20x32xf32>
    %84 = arith.addf %78, %83 : vector<20x32xf32>
    %c0_74 = arith.constant 0 : index
    %c56 = arith.constant 56 : index
    %c0_75 = arith.constant 0 : index
    %85 = vector.load %arg1[%c0_74, %c56, %c0_75] : memref<1x105x16xbf16, #tpu.memory_space<vmem>>, vector<1x20x16xbf16>
    %86 = vector.shape_cast %85 : vector<1x20x16xbf16> to vector<20x16xbf16>
    %c14 = arith.constant 14 : index
    %c0_76 = arith.constant 0 : index
    %c0_77 = arith.constant 0 : index
    %87 = vector.load %arg2[%c14, %c0_76, %c0_77] : memref<16x16x32xbf16, #tpu.memory_space<vmem>>, vector<1x16x32xbf16>
    %88 = vector.shape_cast %87 : vector<1x16x32xbf16> to vector<16x32xbf16>
    %cst_78 = arith.constant dense<0.000000e+00> : vector<20x32xf32>
    %89 = tpu.matmul %86, %88, %cst_78 {dimension_numbers = #tpu.dot_dimension_numbers<[1], [0], [0], [1], [0, 0, 1, 1], [], []>} : vector<20x16xbf16>, vector<16x32xbf16>, vector<20x32xf32> -> vector<20x32xf32>
    %90 = arith.addf %84, %89 : vector<20x32xf32>
    %c0_79 = arith.constant 0 : index
    %c81 = arith.constant 81 : index
    %c0_80 = arith.constant 0 : index
    %91 = vector.load %arg1[%c0_79, %c81, %c0_80] : memref<1x105x16xbf16, #tpu.memory_space<vmem>>, vector<1x20x16xbf16>
    %92 = vector.shape_cast %91 : vector<1x20x16xbf16> to vector<20x16xbf16>
    %c15 = arith.constant 15 : index
    %c0_81 = arith.constant 0 : index
    %c0_82 = arith.constant 0 : index
    %93 = vector.load %arg2[%c15, %c0_81, %c0_82] : memref<16x16x32xbf16, #tpu.memory_space<vmem>>, vector<1x16x32xbf16>
    %94 = vector.shape_cast %93 : vector<1x16x32xbf16> to vector<16x32xbf16>
    %cst_83 = arith.constant dense<0.000000e+00> : vector<20x32xf32>
    %95 = tpu.matmul %92, %94, %cst_83 {dimension_numbers = #tpu.dot_dimension_numbers<[1], [0], [0], [1], [0, 0, 1, 1], [], []>} : vector<20x16xbf16>, vector<16x32xbf16>, vector<20x32xf32> -> vector<20x32xf32>
    %96 = arith.addf %90, %95 : vector<20x32xf32>
    %97 = vector.extract_strided_slice %96 {offsets = [0, 0], sizes = [4, 32], strides = [1, 1]} : vector<20x32xf32> to vector<4x32xf32>
    %c0_84 = arith.constant 0 : index
    %c0_85 = arith.constant 0 : index
    %c0_86 = arith.constant 0 : index
    %c0_87 = arith.constant 0 : index
    %98 = vector.load %arg4[%c0_84, %c0_85, %c0_86, %c0_87] : memref<1x4x4x32xf32, #tpu.memory_space<vmem>>, vector<1x1x4x32xf32>
    %99 = vector.shape_cast %98 : vector<1x1x4x32xf32> to vector<4x32xf32>
    %100 = vector.shape_cast %97 : vector<4x32xf32> to vector<1x1x4x32xf32>
    tpu.vector_store %arg4[%c0_84, %c0_85, %c0_86, %c0_87], %100 {strides = array<i32>} : memref<1x4x4x32xf32, #tpu.memory_space<vmem>>, vector<1x1x4x32xf32>,
    %101 = vector.extract_strided_slice %96 {offsets = [5, 0], sizes = [4, 32], strides = [1, 1]} : vector<20x32xf32> to vector<4x32xf32>
    %c0_88 = arith.constant 0 : index
    %c1_89 = arith.constant 1 : index
    %c0_90 = arith.constant 0 : index
    %c0_91 = arith.constant 0 : index
    %102 = vector.load %arg4[%c0_88, %c1_89, %c0_90, %c0_91] : memref<1x4x4x32xf32, #tpu.memory_space<vmem>>, vector<1x1x4x32xf32>
    %103 = vector.shape_cast %102 : vector<1x1x4x32xf32> to vector<4x32xf32>
    %104 = vector.shape_cast %101 : vector<4x32xf32> to vector<1x1x4x32xf32>
    tpu.vector_store %arg4[%c0_88, %c1_89, %c0_90, %c0_91], %104 {strides = array<i32>} : memref<1x4x4x32xf32, #tpu.memory_space<vmem>>, vector<1x1x4x32xf32>,
    %105 = vector.extract_strided_slice %96 {offsets = [10, 0], sizes = [4, 32], strides = [1, 1]} : vector<20x32xf32> to vector<4x32xf32>
    %c0_92 = arith.constant 0 : index
    %c2_93 = arith.constant 2 : index
    %c0_94 = arith.constant 0 : index
    %c0_95 = arith.constant 0 : index
    %106 = vector.load %arg4[%c0_92, %c2_93, %c0_94, %c0_95] : memref<1x4x4x32xf32, #tpu.memory_space<vmem>>, vector<1x1x4x32xf32>
    %107 = vector.shape_cast %106 : vector<1x1x4x32xf32> to vector<4x32xf32>
    %108 = vector.shape_cast %105 : vector<4x32xf32> to vector<1x1x4x32xf32>
    tpu.vector_store %arg4[%c0_92, %c2_93, %c0_94, %c0_95], %108 {strides = array<i32>} : memref<1x4x4x32xf32, #tpu.memory_space<vmem>>, vector<1x1x4x32xf32>,
    %109 = vector.extract_strided_slice %96 {offsets = [15, 0], sizes = [4, 32], strides = [1, 1]} : vector<20x32xf32> to vector<4x32xf32>
    %c0_96 = arith.constant 0 : index
    %c3_97 = arith.constant 3 : index
    %c0_98 = arith.constant 0 : index
    %c0_99 = arith.constant 0 : index
    %110 = vector.load %arg4[%c0_96, %c3_97, %c0_98, %c0_99] : memref<1x4x4x32xf32, #tpu.memory_space<vmem>>, vector<1x1x4x32xf32>
    %111 = vector.shape_cast %110 : vector<1x1x4x32xf32> to vector<4x32xf32>
    %112 = vector.shape_cast %109 : vector<4x32xf32> to vector<1x1x4x32xf32>
    tpu.vector_store %arg4[%c0_96, %c3_97, %c0_98, %c0_99], %112 {strides = array<i32>} : memref<1x4x4x32xf32, #tpu.memory_space<vmem>>, vector<1x1x4x32xf32>,
    %c0_100 = arith.constant 0 : index
    %c0_101 = arith.constant 0 : index
    %113 = vector.load %arg3[%c0_100, %c0_101] : memref<20x1xf32, #tpu.memory_space<vmem>>, vector<20x1xf32>
    %114 = vector.broadcast %113 : vector<20x1xf32> to vector<20x32xf32>
    %115 = arith.mulf %96, %114 : vector<20x32xf32>
    %cst_102 = arith.constant dense<0.000000e+00> : vector<32xf32>
    %116 = vector.multi_reduction <add>, %115, %cst_102 [0] : vector<20x32xf32> to vector<32xf32>
    %117 = vector.shape_cast %116 : vector<32xf32> to vector<1x32xf32>
    %118 = vector.shape_cast %117 : vector<1x32xf32> to vector<1x1x32xf32>
    %c0_103 = arith.constant 0 : index
    %c0_104 = arith.constant 0 : index
    %c0_105 = arith.constant 0 : index
    %119 = vector.load %arg5[%c0_103, %c0_104, %c0_105] : memref<1x1x32xf32, #tpu.memory_space<vmem>>, vector<1x1x32xf32>
    tpu.vector_store %arg5[%c0_103, %c0_104, %c0_105], %118 {strides = array<i32>} : memref<1x1x32xf32, #tpu.memory_space<vmem>>, vector<1x1x32xf32>,
    %120 = arith.mulf %115, %96 : vector<20x32xf32>
    %cst_106 = arith.constant dense<0.000000e+00> : vector<32xf32>
    %121 = vector.multi_reduction <add>, %120, %cst_106 [0] : vector<20x32xf32> to vector<32xf32>
    %122 = vector.shape_cast %121 : vector<32xf32> to vector<1x32xf32>
    %123 = vector.shape_cast %122 : vector<1x32xf32> to vector<1x1x32xf32>
    %c0_107 = arith.constant 0 : index
    %c0_108 = arith.constant 0 : index
    %c0_109 = arith.constant 0 : index
    %124 = vector.load %arg6[%c0_107, %c0_108, %c0_109] : memref<1x1x32xf32, #tpu.memory_space<vmem>>, vector<1x1x32xf32>
    tpu.vector_store %arg6[%c0_107, %c0_108, %c0_109], %123 {strides = array<i32>} : memref<1x1x32xf32, #tpu.memory_space<vmem>>, vector<1x1x32xf32>,
    return
  }
  func.func @transform_0(%arg0: i32) -> (i32, i32, i32) {
    %c0_i32 = arith.constant 0 : i32
    %c0_i32_0 = arith.constant 0 : i32
    %c0_i32_1 = arith.constant 0 : i32
    return %arg0, %c0_i32, %c0_i32_0 : i32, i32, i32
  }
  func.func @transform_1(%arg0: i32) -> (i32, i32, i32) {
    %c0_i32 = arith.constant 0 : i32
    %c0_i32_0 = arith.constant 0 : i32
    %c0_i32_1 = arith.constant 0 : i32
    %c0_i32_2 = arith.constant 0 : i32
    return %c0_i32, %c0_i32_0, %c0_i32_1 : i32, i32, i32
  }
  func.func @transform_2(%arg0: i32) -> (i32, i32) {
    %c0_i32 = arith.constant 0 : i32
    %c0_i32_0 = arith.constant 0 : i32
    %c0_i32_1 = arith.constant 0 : i32
    return %c0_i32, %c0_i32_0 : i32, i32
  }
  func.func @transform_3(%arg0: i32) -> (i32, i32, i32, i32) {
    %c0_i32 = arith.constant 0 : i32
    %c0_i32_0 = arith.constant 0 : i32
    %c0_i32_1 = arith.constant 0 : i32
    %c0_i32_2 = arith.constant 0 : i32
    return %arg0, %c0_i32, %c0_i32_0, %c0_i32_1 : i32, i32, i32, i32
  }
  func.func @transform_4(%arg0: i32) -> (i32, i32, i32) {
    %c0_i32 = arith.constant 0 : i32
    %c0_i32_0 = arith.constant 0 : i32
    %c0_i32_1 = arith.constant 0 : i32
    return %arg0, %c0_i32, %c0_i32_0 : i32, i32, i32
  }
  func.func @transform_5(%arg0: i32) -> (i32, i32, i32) {
    %c0_i32 = arith.constant 0 : i32
    %c0_i32_0 = arith.constant 0 : i32
    %c0_i32_1 = arith.constant 0 : i32
    return %arg0, %c0_i32, %c0_i32_0 : i32, i32, i32
  }
}

module attributes {stable_mosaic.version = 11 : i64} {
  func.func @_bn_lrelu_kernel(%arg0: i32, %arg1: memref<16x32xf32, #tpu.memory_space<vmem>>, %arg2: memref<1x32xf32, #tpu.memory_space<vmem>>, %arg3: memref<1x32xf32, #tpu.memory_space<vmem>>, %arg4: memref<16x32xbf16, #tpu.memory_space<vmem>>) attributes {dimension_semantics = [#tpu.dimension_semantics<parallel>], iteration_bounds = array<i64: 2>, scalar_prefetch = 0 : i64, scratch_operands = 0 : i64, tpu.core_type = #tpu.core_type<tc>, window_params = [{transform_indices = @transform_0, window_bounds = array<i64: 16, 32>}, {pipeline_mode = #tpu.pipeline_mode<synchronous>, transform_indices = @transform_1, window_bounds = array<i64: 1, 32>}, {pipeline_mode = #tpu.pipeline_mode<synchronous>, transform_indices = @transform_2, window_bounds = array<i64: 1, 32>}, {transform_indices = @transform_3, window_bounds = array<i64: 16, 32>}]} {
    %c0 = arith.constant 0 : index
    %c0_0 = arith.constant 0 : index
    %0 = vector.load %arg1[%c0, %c0_0] : memref<16x32xf32, #tpu.memory_space<vmem>>, vector<16x32xf32>
    %c0_1 = arith.constant 0 : index
    %c0_2 = arith.constant 0 : index
    %1 = vector.load %arg2[%c0_1, %c0_2] : memref<1x32xf32, #tpu.memory_space<vmem>>, vector<1x32xf32>
    %2 = vector.broadcast %1 : vector<1x32xf32> to vector<16x32xf32>
    %3 = arith.mulf %0, %2 : vector<16x32xf32>
    %c0_3 = arith.constant 0 : index
    %c0_4 = arith.constant 0 : index
    %4 = vector.load %arg3[%c0_3, %c0_4] : memref<1x32xf32, #tpu.memory_space<vmem>>, vector<1x32xf32>
    %5 = vector.broadcast %4 : vector<1x32xf32> to vector<16x32xf32>
    %6 = arith.addf %3, %5 : vector<16x32xf32>
    %cst = arith.constant 0.000000e+00 : f32
    %7 = vector.broadcast %cst : f32 to vector<16x32xf32>
    %8 = arith.cmpf oge, %6, %7 : vector<16x32xf32>
    %cst_5 = arith.constant 2.000000e-01 : f32
    %9 = vector.broadcast %cst_5 : f32 to vector<16x32xf32>
    %10 = arith.mulf %9, %6 : vector<16x32xf32>
    %11 = arith.select %8, %6, %10 : vector<16x32xi1>, vector<16x32xf32>
    %12 = arith.truncf %11 : vector<16x32xf32> to vector<16x32xbf16>
    %c0_6 = arith.constant 0 : index
    %c0_7 = arith.constant 0 : index
    %13 = vector.load %arg4[%c0_6, %c0_7] : memref<16x32xbf16, #tpu.memory_space<vmem>>, vector<16x32xbf16>
    tpu.vector_store %arg4[%c0_6, %c0_7], %12 {strides = array<i32>} : memref<16x32xbf16, #tpu.memory_space<vmem>>, vector<16x32xbf16>,
    return
  }
  func.func @transform_0(%arg0: i32) -> (i32, i32) {
    %c0_i32 = arith.constant 0 : i32
    %c0_i32_0 = arith.constant 0 : i32
    return %arg0, %c0_i32 : i32, i32
  }
  func.func @transform_1(%arg0: i32) -> (i32, i32) {
    %c0_i32 = arith.constant 0 : i32
    %c0_i32_0 = arith.constant 0 : i32
    %c0_i32_1 = arith.constant 0 : i32
    return %c0_i32, %c0_i32_0 : i32, i32
  }
  func.func @transform_2(%arg0: i32) -> (i32, i32) {
    %c0_i32 = arith.constant 0 : i32
    %c0_i32_0 = arith.constant 0 : i32
    %c0_i32_1 = arith.constant 0 : i32
    return %c0_i32, %c0_i32_0 : i32, i32
  }
  func.func @transform_3(%arg0: i32) -> (i32, i32) {
    %c0_i32 = arith.constant 0 : i32
    %c0_i32_0 = arith.constant 0 : i32
    return %arg0, %c0_i32 : i32, i32
  }
}

module attributes {stable_mosaic.version = 11 : i64} {
  func.func @_conv_stats_kernel(%arg0: i32, %arg1: memref<1x39x32xbf16, #tpu.memory_space<vmem>>, %arg2: memref<16x32x64xbf16, #tpu.memory_space<vmem>>, %arg3: memref<6x1xf32, #tpu.memory_space<vmem>>, %arg4: memref<1x2x2x64xf32, #tpu.memory_space<vmem>>, %arg5: memref<1x1x64xf32, #tpu.memory_space<vmem>>, %arg6: memref<1x1x64xf32, #tpu.memory_space<vmem>>) attributes {dimension_semantics = [#tpu.dimension_semantics<parallel>], iteration_bounds = array<i64: 2>, scalar_prefetch = 0 : i64, scratch_operands = 0 : i64, tpu.core_type = #tpu.core_type<tc>, window_params = [{transform_indices = @transform_0, window_bounds = array<i64: 1, 39, 32>}, {pipeline_mode = #tpu.pipeline_mode<synchronous>, transform_indices = @transform_1, window_bounds = array<i64: 16, 32, 64>}, {pipeline_mode = #tpu.pipeline_mode<synchronous>, transform_indices = @transform_2, window_bounds = array<i64: 6, 1>}, {transform_indices = @transform_3, window_bounds = array<i64: 1, 2, 2, 64>}, {transform_indices = @transform_4, window_bounds = array<i64: 1, 1, 64>}, {transform_indices = @transform_5, window_bounds = array<i64: 1, 1, 64>}]} {
    %cst = arith.constant 0.000000e+00 : f32
    %0 = vector.broadcast %cst : f32 to vector<6x64xf32>
    %c0 = arith.constant 0 : index
    %c0_0 = arith.constant 0 : index
    %c0_1 = arith.constant 0 : index
    %1 = vector.load %arg1[%c0, %c0_0, %c0_1] : memref<1x39x32xbf16, #tpu.memory_space<vmem>>, vector<1x6x32xbf16>
    %2 = vector.shape_cast %1 : vector<1x6x32xbf16> to vector<6x32xbf16>
    %c0_2 = arith.constant 0 : index
    %c0_3 = arith.constant 0 : index
    %c0_4 = arith.constant 0 : index
    %3 = vector.load %arg2[%c0_2, %c0_3, %c0_4] : memref<16x32x64xbf16, #tpu.memory_space<vmem>>, vector<1x32x64xbf16>
    %4 = vector.shape_cast %3 : vector<1x32x64xbf16> to vector<32x64xbf16>
    %cst_5 = arith.constant dense<0.000000e+00> : vector<6x64xf32>
    %5 = tpu.matmul %2, %4, %cst_5 {dimension_numbers = #tpu.dot_dimension_numbers<[1], [0], [0], [1], [0, 0, 1, 1], [], []>} : vector<6x32xbf16>, vector<32x64xbf16>, vector<6x64xf32> -> vector<6x64xf32>
    %6 = arith.addf %0, %5 : vector<6x64xf32>
    %c0_6 = arith.constant 0 : index
    %c9 = arith.constant 9 : index
    %c0_7 = arith.constant 0 : index
    %7 = vector.load %arg1[%c0_6, %c9, %c0_7] : memref<1x39x32xbf16, #tpu.memory_space<vmem>>, vector<1x6x32xbf16>
    %8 = vector.shape_cast %7 : vector<1x6x32xbf16> to vector<6x32xbf16>
    %c1 = arith.constant 1 : index
    %c0_8 = arith.constant 0 : index
    %c0_9 = arith.constant 0 : index
    %9 = vector.load %arg2[%c1, %c0_8, %c0_9] : memref<16x32x64xbf16, #tpu.memory_space<vmem>>, vector<1x32x64xbf16>
    %10 = vector.shape_cast %9 : vector<1x32x64xbf16> to vector<32x64xbf16>
    %cst_10 = arith.constant dense<0.000000e+00> : vector<6x64xf32>
    %11 = tpu.matmul %8, %10, %cst_10 {dimension_numbers = #tpu.dot_dimension_numbers<[1], [0], [0], [1], [0, 0, 1, 1], [], []>} : vector<6x32xbf16>, vector<32x64xbf16>, vector<6x64xf32> -> vector<6x64xf32>
    %12 = arith.addf %6, %11 : vector<6x64xf32>
    %c0_11 = arith.constant 0 : index
    %c1_12 = arith.constant 1 : index
    %c0_13 = arith.constant 0 : index
    %13 = vector.load %arg1[%c0_11, %c1_12, %c0_13] : memref<1x39x32xbf16, #tpu.memory_space<vmem>>, vector<1x6x32xbf16>
    %14 = vector.shape_cast %13 : vector<1x6x32xbf16> to vector<6x32xbf16>
    %c2 = arith.constant 2 : index
    %c0_14 = arith.constant 0 : index
    %c0_15 = arith.constant 0 : index
    %15 = vector.load %arg2[%c2, %c0_14, %c0_15] : memref<16x32x64xbf16, #tpu.memory_space<vmem>>, vector<1x32x64xbf16>
    %16 = vector.shape_cast %15 : vector<1x32x64xbf16> to vector<32x64xbf16>
    %cst_16 = arith.constant dense<0.000000e+00> : vector<6x64xf32>
    %17 = tpu.matmul %14, %16, %cst_16 {dimension_numbers = #tpu.dot_dimension_numbers<[1], [0], [0], [1], [0, 0, 1, 1], [], []>} : vector<6x32xbf16>, vector<32x64xbf16>, vector<6x64xf32> -> vector<6x64xf32>
    %18 = arith.addf %12, %17 : vector<6x64xf32>
    %c0_17 = arith.constant 0 : index
    %c10 = arith.constant 10 : index
    %c0_18 = arith.constant 0 : index
    %19 = vector.load %arg1[%c0_17, %c10, %c0_18] : memref<1x39x32xbf16, #tpu.memory_space<vmem>>, vector<1x6x32xbf16>
    %20 = vector.shape_cast %19 : vector<1x6x32xbf16> to vector<6x32xbf16>
    %c3 = arith.constant 3 : index
    %c0_19 = arith.constant 0 : index
    %c0_20 = arith.constant 0 : index
    %21 = vector.load %arg2[%c3, %c0_19, %c0_20] : memref<16x32x64xbf16, #tpu.memory_space<vmem>>, vector<1x32x64xbf16>
    %22 = vector.shape_cast %21 : vector<1x32x64xbf16> to vector<32x64xbf16>
    %cst_21 = arith.constant dense<0.000000e+00> : vector<6x64xf32>
    %23 = tpu.matmul %20, %22, %cst_21 {dimension_numbers = #tpu.dot_dimension_numbers<[1], [0], [0], [1], [0, 0, 1, 1], [], []>} : vector<6x32xbf16>, vector<32x64xbf16>, vector<6x64xf32> -> vector<6x64xf32>
    %24 = arith.addf %18, %23 : vector<6x64xf32>
    %c0_22 = arith.constant 0 : index
    %c18 = arith.constant 18 : index
    %c0_23 = arith.constant 0 : index
    %25 = vector.load %arg1[%c0_22, %c18, %c0_23] : memref<1x39x32xbf16, #tpu.memory_space<vmem>>, vector<1x6x32xbf16>
    %26 = vector.shape_cast %25 : vector<1x6x32xbf16> to vector<6x32xbf16>
    %c4 = arith.constant 4 : index
    %c0_24 = arith.constant 0 : index
    %c0_25 = arith.constant 0 : index
    %27 = vector.load %arg2[%c4, %c0_24, %c0_25] : memref<16x32x64xbf16, #tpu.memory_space<vmem>>, vector<1x32x64xbf16>
    %28 = vector.shape_cast %27 : vector<1x32x64xbf16> to vector<32x64xbf16>
    %cst_26 = arith.constant dense<0.000000e+00> : vector<6x64xf32>
    %29 = tpu.matmul %26, %28, %cst_26 {dimension_numbers = #tpu.dot_dimension_numbers<[1], [0], [0], [1], [0, 0, 1, 1], [], []>} : vector<6x32xbf16>, vector<32x64xbf16>, vector<6x64xf32> -> vector<6x64xf32>
    %30 = arith.addf %24, %29 : vector<6x64xf32>
    %c0_27 = arith.constant 0 : index
    %c27 = arith.constant 27 : index
    %c0_28 = arith.constant 0 : index
    %31 = vector.load %arg1[%c0_27, %c27, %c0_28] : memref<1x39x32xbf16, #tpu.memory_space<vmem>>, vector<1x6x32xbf16>
    %32 = vector.shape_cast %31 : vector<1x6x32xbf16> to vector<6x32xbf16>
    %c5 = arith.constant 5 : index
    %c0_29 = arith.constant 0 : index
    %c0_30 = arith.constant 0 : index
    %33 = vector.load %arg2[%c5, %c0_29, %c0_30] : memref<16x32x64xbf16, #tpu.memory_space<vmem>>, vector<1x32x64xbf16>
    %34 = vector.shape_cast %33 : vector<1x32x64xbf16> to vector<32x64xbf16>
    %cst_31 = arith.constant dense<0.000000e+00> : vector<6x64xf32>
    %35 = tpu.matmul %32, %34, %cst_31 {dimension_numbers = #tpu.dot_dimension_numbers<[1], [0], [0], [1], [0, 0, 1, 1], [], []>} : vector<6x32xbf16>, vector<32x64xbf16>, vector<6x64xf32> -> vector<6x64xf32>
    %36 = arith.addf %30, %35 : vector<6x64xf32>
    %c0_32 = arith.constant 0 : index
    %c19 = arith.constant 19 : index
    %c0_33 = arith.constant 0 : index
    %37 = vector.load %arg1[%c0_32, %c19, %c0_33] : memref<1x39x32xbf16, #tpu.memory_space<vmem>>, vector<1x6x32xbf16>
    %38 = vector.shape_cast %37 : vector<1x6x32xbf16> to vector<6x32xbf16>
    %c6 = arith.constant 6 : index
    %c0_34 = arith.constant 0 : index
    %c0_35 = arith.constant 0 : index
    %39 = vector.load %arg2[%c6, %c0_34, %c0_35] : memref<16x32x64xbf16, #tpu.memory_space<vmem>>, vector<1x32x64xbf16>
    %40 = vector.shape_cast %39 : vector<1x32x64xbf16> to vector<32x64xbf16>
    %cst_36 = arith.constant dense<0.000000e+00> : vector<6x64xf32>
    %41 = tpu.matmul %38, %40, %cst_36 {dimension_numbers = #tpu.dot_dimension_numbers<[1], [0], [0], [1], [0, 0, 1, 1], [], []>} : vector<6x32xbf16>, vector<32x64xbf16>, vector<6x64xf32> -> vector<6x64xf32>
    %42 = arith.addf %36, %41 : vector<6x64xf32>
    %c0_37 = arith.constant 0 : index
    %c28 = arith.constant 28 : index
    %c0_38 = arith.constant 0 : index
    %43 = vector.load %arg1[%c0_37, %c28, %c0_38] : memref<1x39x32xbf16, #tpu.memory_space<vmem>>, vector<1x6x32xbf16>
    %44 = vector.shape_cast %43 : vector<1x6x32xbf16> to vector<6x32xbf16>
    %c7 = arith.constant 7 : index
    %c0_39 = arith.constant 0 : index
    %c0_40 = arith.constant 0 : index
    %45 = vector.load %arg2[%c7, %c0_39, %c0_40] : memref<16x32x64xbf16, #tpu.memory_space<vmem>>, vector<1x32x64xbf16>
    %46 = vector.shape_cast %45 : vector<1x32x64xbf16> to vector<32x64xbf16>
    %cst_41 = arith.constant dense<0.000000e+00> : vector<6x64xf32>
    %47 = tpu.matmul %44, %46, %cst_41 {dimension_numbers = #tpu.dot_dimension_numbers<[1], [0], [0], [1], [0, 0, 1, 1], [], []>} : vector<6x32xbf16>, vector<32x64xbf16>, vector<6x64xf32> -> vector<6x64xf32>
    %48 = arith.addf %42, %47 : vector<6x64xf32>
    %c0_42 = arith.constant 0 : index
    %c3_43 = arith.constant 3 : index
    %c0_44 = arith.constant 0 : index
    %49 = vector.load %arg1[%c0_42, %c3_43, %c0_44] : memref<1x39x32xbf16, #tpu.memory_space<vmem>>, vector<1x6x32xbf16>
    %50 = vector.shape_cast %49 : vector<1x6x32xbf16> to vector<6x32xbf16>
    %c8 = arith.constant 8 : index
    %c0_45 = arith.constant 0 : index
    %c0_46 = arith.constant 0 : index
    %51 = vector.load %arg2[%c8, %c0_45, %c0_46] : memref<16x32x64xbf16, #tpu.memory_space<vmem>>, vector<1x32x64xbf16>
    %52 = vector.shape_cast %51 : vector<1x32x64xbf16> to vector<32x64xbf16>
    %cst_47 = arith.constant dense<0.000000e+00> : vector<6x64xf32>
    %53 = tpu.matmul %50, %52, %cst_47 {dimension_numbers = #tpu.dot_dimension_numbers<[1], [0], [0], [1], [0, 0, 1, 1], [], []>} : vector<6x32xbf16>, vector<32x64xbf16>, vector<6x64xf32> -> vector<6x64xf32>
    %54 = arith.addf %48, %53 : vector<6x64xf32>
    %c0_48 = arith.constant 0 : index
    %c12 = arith.constant 12 : index
    %c0_49 = arith.constant 0 : index
    %55 = vector.load %arg1[%c0_48, %c12, %c0_49] : memref<1x39x32xbf16, #tpu.memory_space<vmem>>, vector<1x6x32xbf16>
    %56 = vector.shape_cast %55 : vector<1x6x32xbf16> to vector<6x32xbf16>
    %c9_50 = arith.constant 9 : index
    %c0_51 = arith.constant 0 : index
    %c0_52 = arith.constant 0 : index
    %57 = vector.load %arg2[%c9_50, %c0_51, %c0_52] : memref<16x32x64xbf16, #tpu.memory_space<vmem>>, vector<1x32x64xbf16>
    %58 = vector.shape_cast %57 : vector<1x32x64xbf16> to vector<32x64xbf16>
    %cst_53 = arith.constant dense<0.000000e+00> : vector<6x64xf32>
    %59 = tpu.matmul %56, %58, %cst_53 {dimension_numbers = #tpu.dot_dimension_numbers<[1], [0], [0], [1], [0, 0, 1, 1], [], []>} : vector<6x32xbf16>, vector<32x64xbf16>, vector<6x64xf32> -> vector<6x64xf32>
    %60 = arith.addf %54, %59 : vector<6x64xf32>
    %c0_54 = arith.constant 0 : index
    %c4_55 = arith.constant 4 : index
    %c0_56 = arith.constant 0 : index
    %61 = vector.load %arg1[%c0_54, %c4_55, %c0_56] : memref<1x39x32xbf16, #tpu.memory_space<vmem>>, vector<1x6x32xbf16>
    %62 = vector.shape_cast %61 : vector<1x6x32xbf16> to vector<6x32xbf16>
    %c10_57 = arith.constant 10 : index
    %c0_58 = arith.constant 0 : index
    %c0_59 = arith.constant 0 : index
    %63 = vector.load %arg2[%c10_57, %c0_58, %c0_59] : memref<16x32x64xbf16, #tpu.memory_space<vmem>>, vector<1x32x64xbf16>
    %64 = vector.shape_cast %63 : vector<1x32x64xbf16> to vector<32x64xbf16>
    %cst_60 = arith.constant dense<0.000000e+00> : vector<6x64xf32>
    %65 = tpu.matmul %62, %64, %cst_60 {dimension_numbers = #tpu.dot_dimension_numbers<[1], [0], [0], [1], [0, 0, 1, 1], [], []>} : vector<6x32xbf16>, vector<32x64xbf16>, vector<6x64xf32> -> vector<6x64xf32>
    %66 = arith.addf %60, %65 : vector<6x64xf32>
    %c0_61 = arith.constant 0 : index
    %c13 = arith.constant 13 : index
    %c0_62 = arith.constant 0 : index
    %67 = vector.load %arg1[%c0_61, %c13, %c0_62] : memref<1x39x32xbf16, #tpu.memory_space<vmem>>, vector<1x6x32xbf16>
    %68 = vector.shape_cast %67 : vector<1x6x32xbf16> to vector<6x32xbf16>
    %c11 = arith.constant 11 : index
    %c0_63 = arith.constant 0 : index
    %c0_64 = arith.constant 0 : index
    %69 = vector.load %arg2[%c11, %c0_63, %c0_64] : memref<16x32x64xbf16, #tpu.memory_space<vmem>>, vector<1x32x64xbf16>
    %70 = vector.shape_cast %69 : vector<1x32x64xbf16> to vector<32x64xbf16>
    %cst_65 = arith.constant dense<0.000000e+00> : vector<6x64xf32>
    %71 = tpu.matmul %68, %70, %cst_65 {dimension_numbers = #tpu.dot_dimension_numbers<[1], [0], [0], [1], [0, 0, 1, 1], [], []>} : vector<6x32xbf16>, vector<32x64xbf16>, vector<6x64xf32> -> vector<6x64xf32>
    %72 = arith.addf %66, %71 : vector<6x64xf32>
    %c0_66 = arith.constant 0 : index
    %c21 = arith.constant 21 : index
    %c0_67 = arith.constant 0 : index
    %73 = vector.load %arg1[%c0_66, %c21, %c0_67] : memref<1x39x32xbf16, #tpu.memory_space<vmem>>, vector<1x6x32xbf16>
    %74 = vector.shape_cast %73 : vector<1x6x32xbf16> to vector<6x32xbf16>
    %c12_68 = arith.constant 12 : index
    %c0_69 = arith.constant 0 : index
    %c0_70 = arith.constant 0 : index
    %75 = vector.load %arg2[%c12_68, %c0_69, %c0_70] : memref<16x32x64xbf16, #tpu.memory_space<vmem>>, vector<1x32x64xbf16>
    %76 = vector.shape_cast %75 : vector<1x32x64xbf16> to vector<32x64xbf16>
    %cst_71 = arith.constant dense<0.000000e+00> : vector<6x64xf32>
    %77 = tpu.matmul %74, %76, %cst_71 {dimension_numbers = #tpu.dot_dimension_numbers<[1], [0], [0], [1], [0, 0, 1, 1], [], []>} : vector<6x32xbf16>, vector<32x64xbf16>, vector<6x64xf32> -> vector<6x64xf32>
    %78 = arith.addf %72, %77 : vector<6x64xf32>
    %c0_72 = arith.constant 0 : index
    %c30 = arith.constant 30 : index
    %c0_73 = arith.constant 0 : index
    %79 = vector.load %arg1[%c0_72, %c30, %c0_73] : memref<1x39x32xbf16, #tpu.memory_space<vmem>>, vector<1x6x32xbf16>
    %80 = vector.shape_cast %79 : vector<1x6x32xbf16> to vector<6x32xbf16>
    %c13_74 = arith.constant 13 : index
    %c0_75 = arith.constant 0 : index
    %c0_76 = arith.constant 0 : index
    %81 = vector.load %arg2[%c13_74, %c0_75, %c0_76] : memref<16x32x64xbf16, #tpu.memory_space<vmem>>, vector<1x32x64xbf16>
    %82 = vector.shape_cast %81 : vector<1x32x64xbf16> to vector<32x64xbf16>
    %cst_77 = arith.constant dense<0.000000e+00> : vector<6x64xf32>
    %83 = tpu.matmul %80, %82, %cst_77 {dimension_numbers = #tpu.dot_dimension_numbers<[1], [0], [0], [1], [0, 0, 1, 1], [], []>} : vector<6x32xbf16>, vector<32x64xbf16>, vector<6x64xf32> -> vector<6x64xf32>
    %84 = arith.addf %78, %83 : vector<6x64xf32>
    %c0_78 = arith.constant 0 : index
    %c22 = arith.constant 22 : index
    %c0_79 = arith.constant 0 : index
    %85 = vector.load %arg1[%c0_78, %c22, %c0_79] : memref<1x39x32xbf16, #tpu.memory_space<vmem>>, vector<1x6x32xbf16>
    %86 = vector.shape_cast %85 : vector<1x6x32xbf16> to vector<6x32xbf16>
    %c14 = arith.constant 14 : index
    %c0_80 = arith.constant 0 : index
    %c0_81 = arith.constant 0 : index
    %87 = vector.load %arg2[%c14, %c0_80, %c0_81] : memref<16x32x64xbf16, #tpu.memory_space<vmem>>, vector<1x32x64xbf16>
    %88 = vector.shape_cast %87 : vector<1x32x64xbf16> to vector<32x64xbf16>
    %cst_82 = arith.constant dense<0.000000e+00> : vector<6x64xf32>
    %89 = tpu.matmul %86, %88, %cst_82 {dimension_numbers = #tpu.dot_dimension_numbers<[1], [0], [0], [1], [0, 0, 1, 1], [], []>} : vector<6x32xbf16>, vector<32x64xbf16>, vector<6x64xf32> -> vector<6x64xf32>
    %90 = arith.addf %84, %89 : vector<6x64xf32>
    %c0_83 = arith.constant 0 : index
    %c31 = arith.constant 31 : index
    %c0_84 = arith.constant 0 : index
    %91 = vector.load %arg1[%c0_83, %c31, %c0_84] : memref<1x39x32xbf16, #tpu.memory_space<vmem>>, vector<1x6x32xbf16>
    %92 = vector.shape_cast %91 : vector<1x6x32xbf16> to vector<6x32xbf16>
    %c15 = arith.constant 15 : index
    %c0_85 = arith.constant 0 : index
    %c0_86 = arith.constant 0 : index
    %93 = vector.load %arg2[%c15, %c0_85, %c0_86] : memref<16x32x64xbf16, #tpu.memory_space<vmem>>, vector<1x32x64xbf16>
    %94 = vector.shape_cast %93 : vector<1x32x64xbf16> to vector<32x64xbf16>
    %cst_87 = arith.constant dense<0.000000e+00> : vector<6x64xf32>
    %95 = tpu.matmul %92, %94, %cst_87 {dimension_numbers = #tpu.dot_dimension_numbers<[1], [0], [0], [1], [0, 0, 1, 1], [], []>} : vector<6x32xbf16>, vector<32x64xbf16>, vector<6x64xf32> -> vector<6x64xf32>
    %96 = arith.addf %90, %95 : vector<6x64xf32>
    %97 = vector.extract_strided_slice %96 {offsets = [0, 0], sizes = [2, 64], strides = [1, 1]} : vector<6x64xf32> to vector<2x64xf32>
    %c0_88 = arith.constant 0 : index
    %c0_89 = arith.constant 0 : index
    %c0_90 = arith.constant 0 : index
    %c0_91 = arith.constant 0 : index
    %98 = vector.load %arg4[%c0_88, %c0_89, %c0_90, %c0_91] : memref<1x2x2x64xf32, #tpu.memory_space<vmem>>, vector<1x1x2x64xf32>
    %99 = vector.shape_cast %98 : vector<1x1x2x64xf32> to vector<2x64xf32>
    %100 = vector.shape_cast %97 : vector<2x64xf32> to vector<1x1x2x64xf32>
    tpu.vector_store %arg4[%c0_88, %c0_89, %c0_90, %c0_91], %100 {strides = array<i32>} : memref<1x2x2x64xf32, #tpu.memory_space<vmem>>, vector<1x1x2x64xf32>,
    %101 = vector.extract_strided_slice %96 {offsets = [3, 0], sizes = [2, 64], strides = [1, 1]} : vector<6x64xf32> to vector<2x64xf32>
    %c0_92 = arith.constant 0 : index
    %c1_93 = arith.constant 1 : index
    %c0_94 = arith.constant 0 : index
    %c0_95 = arith.constant 0 : index
    %102 = vector.load %arg4[%c0_92, %c1_93, %c0_94, %c0_95] : memref<1x2x2x64xf32, #tpu.memory_space<vmem>>, vector<1x1x2x64xf32>
    %103 = vector.shape_cast %102 : vector<1x1x2x64xf32> to vector<2x64xf32>
    %104 = vector.shape_cast %101 : vector<2x64xf32> to vector<1x1x2x64xf32>
    tpu.vector_store %arg4[%c0_92, %c1_93, %c0_94, %c0_95], %104 {strides = array<i32>} : memref<1x2x2x64xf32, #tpu.memory_space<vmem>>, vector<1x1x2x64xf32>,
    %c0_96 = arith.constant 0 : index
    %c0_97 = arith.constant 0 : index
    %105 = vector.load %arg3[%c0_96, %c0_97] : memref<6x1xf32, #tpu.memory_space<vmem>>, vector<6x1xf32>
    %106 = vector.broadcast %105 : vector<6x1xf32> to vector<6x64xf32>
    %107 = arith.mulf %96, %106 : vector<6x64xf32>
    %cst_98 = arith.constant dense<0.000000e+00> : vector<64xf32>
    %108 = vector.multi_reduction <add>, %107, %cst_98 [0] : vector<6x64xf32> to vector<64xf32>
    %109 = vector.shape_cast %108 : vector<64xf32> to vector<1x64xf32>
    %110 = vector.shape_cast %109 : vector<1x64xf32> to vector<1x1x64xf32>
    %c0_99 = arith.constant 0 : index
    %c0_100 = arith.constant 0 : index
    %c0_101 = arith.constant 0 : index
    %111 = vector.load %arg5[%c0_99, %c0_100, %c0_101] : memref<1x1x64xf32, #tpu.memory_space<vmem>>, vector<1x1x64xf32>
    tpu.vector_store %arg5[%c0_99, %c0_100, %c0_101], %110 {strides = array<i32>} : memref<1x1x64xf32, #tpu.memory_space<vmem>>, vector<1x1x64xf32>,
    %112 = arith.mulf %107, %96 : vector<6x64xf32>
    %cst_102 = arith.constant dense<0.000000e+00> : vector<64xf32>
    %113 = vector.multi_reduction <add>, %112, %cst_102 [0] : vector<6x64xf32> to vector<64xf32>
    %114 = vector.shape_cast %113 : vector<64xf32> to vector<1x64xf32>
    %115 = vector.shape_cast %114 : vector<1x64xf32> to vector<1x1x64xf32>
    %c0_103 = arith.constant 0 : index
    %c0_104 = arith.constant 0 : index
    %c0_105 = arith.constant 0 : index
    %116 = vector.load %arg6[%c0_103, %c0_104, %c0_105] : memref<1x1x64xf32, #tpu.memory_space<vmem>>, vector<1x1x64xf32>
    tpu.vector_store %arg6[%c0_103, %c0_104, %c0_105], %115 {strides = array<i32>} : memref<1x1x64xf32, #tpu.memory_space<vmem>>, vector<1x1x64xf32>,
    return
  }
  func.func @transform_0(%arg0: i32) -> (i32, i32, i32) {
    %c0_i32 = arith.constant 0 : i32
    %c0_i32_0 = arith.constant 0 : i32
    %c0_i32_1 = arith.constant 0 : i32
    return %arg0, %c0_i32, %c0_i32_0 : i32, i32, i32
  }
  func.func @transform_1(%arg0: i32) -> (i32, i32, i32) {
    %c0_i32 = arith.constant 0 : i32
    %c0_i32_0 = arith.constant 0 : i32
    %c0_i32_1 = arith.constant 0 : i32
    %c0_i32_2 = arith.constant 0 : i32
    return %c0_i32, %c0_i32_0, %c0_i32_1 : i32, i32, i32
  }
  func.func @transform_2(%arg0: i32) -> (i32, i32) {
    %c0_i32 = arith.constant 0 : i32
    %c0_i32_0 = arith.constant 0 : i32
    %c0_i32_1 = arith.constant 0 : i32
    return %c0_i32, %c0_i32_0 : i32, i32
  }
  func.func @transform_3(%arg0: i32) -> (i32, i32, i32, i32) {
    %c0_i32 = arith.constant 0 : i32
    %c0_i32_0 = arith.constant 0 : i32
    %c0_i32_1 = arith.constant 0 : i32
    %c0_i32_2 = arith.constant 0 : i32
    return %arg0, %c0_i32, %c0_i32_0, %c0_i32_1 : i32, i32, i32, i32
  }
  func.func @transform_4(%arg0: i32) -> (i32, i32, i32) {
    %c0_i32 = arith.constant 0 : i32
    %c0_i32_0 = arith.constant 0 : i32
    %c0_i32_1 = arith.constant 0 : i32
    return %arg0, %c0_i32, %c0_i32_0 : i32, i32, i32
  }
  func.func @transform_5(%arg0: i32) -> (i32, i32, i32) {
    %c0_i32 = arith.constant 0 : i32
    %c0_i32_0 = arith.constant 0 : i32
    %c0_i32_1 = arith.constant 0 : i32
    return %arg0, %c0_i32, %c0_i32_0 : i32, i32, i32
  }
}

module attributes {stable_mosaic.version = 11 : i64} {
  func.func @_bn_lrelu_kernel(%arg0: i32, %arg1: memref<8x64xf32, #tpu.memory_space<vmem>>, %arg2: memref<1x64xf32, #tpu.memory_space<vmem>>, %arg3: memref<1x64xf32, #tpu.memory_space<vmem>>, %arg4: memref<8x64xbf16, #tpu.memory_space<vmem>>) attributes {dimension_semantics = [#tpu.dimension_semantics<parallel>], iteration_bounds = array<i64: 1>, scalar_prefetch = 0 : i64, scratch_operands = 0 : i64, tpu.core_type = #tpu.core_type<tc>, window_params = [{transform_indices = @transform_0, window_bounds = array<i64: 8, 64>}, {pipeline_mode = #tpu.pipeline_mode<synchronous>, transform_indices = @transform_1, window_bounds = array<i64: 1, 64>}, {pipeline_mode = #tpu.pipeline_mode<synchronous>, transform_indices = @transform_2, window_bounds = array<i64: 1, 64>}, {transform_indices = @transform_3, window_bounds = array<i64: 8, 64>}]} {
    %c0 = arith.constant 0 : index
    %c0_0 = arith.constant 0 : index
    %0 = vector.load %arg1[%c0, %c0_0] : memref<8x64xf32, #tpu.memory_space<vmem>>, vector<8x64xf32>
    %c0_1 = arith.constant 0 : index
    %c0_2 = arith.constant 0 : index
    %1 = vector.load %arg2[%c0_1, %c0_2] : memref<1x64xf32, #tpu.memory_space<vmem>>, vector<1x64xf32>
    %2 = vector.broadcast %1 : vector<1x64xf32> to vector<8x64xf32>
    %3 = arith.mulf %0, %2 : vector<8x64xf32>
    %c0_3 = arith.constant 0 : index
    %c0_4 = arith.constant 0 : index
    %4 = vector.load %arg3[%c0_3, %c0_4] : memref<1x64xf32, #tpu.memory_space<vmem>>, vector<1x64xf32>
    %5 = vector.broadcast %4 : vector<1x64xf32> to vector<8x64xf32>
    %6 = arith.addf %3, %5 : vector<8x64xf32>
    %cst = arith.constant 0.000000e+00 : f32
    %7 = vector.broadcast %cst : f32 to vector<8x64xf32>
    %8 = arith.cmpf oge, %6, %7 : vector<8x64xf32>
    %cst_5 = arith.constant 2.000000e-01 : f32
    %9 = vector.broadcast %cst_5 : f32 to vector<8x64xf32>
    %10 = arith.mulf %9, %6 : vector<8x64xf32>
    %11 = arith.select %8, %6, %10 : vector<8x64xi1>, vector<8x64xf32>
    %12 = arith.truncf %11 : vector<8x64xf32> to vector<8x64xbf16>
    %c0_6 = arith.constant 0 : index
    %c0_7 = arith.constant 0 : index
    %13 = vector.load %arg4[%c0_6, %c0_7] : memref<8x64xbf16, #tpu.memory_space<vmem>>, vector<8x64xbf16>
    tpu.vector_store %arg4[%c0_6, %c0_7], %12 {strides = array<i32>} : memref<8x64xbf16, #tpu.memory_space<vmem>>, vector<8x64xbf16>,
    return
  }
  func.func @transform_0(%arg0: i32) -> (i32, i32) {
    %c0_i32 = arith.constant 0 : i32
    %c0_i32_0 = arith.constant 0 : i32
    return %arg0, %c0_i32 : i32, i32
  }
  func.func @transform_1(%arg0: i32) -> (i32, i32) {
    %c0_i32 = arith.constant 0 : i32
    %c0_i32_0 = arith.constant 0 : i32
    %c0_i32_1 = arith.constant 0 : i32
    return %c0_i32, %c0_i32_0 : i32, i32
  }
  func.func @transform_2(%arg0: i32) -> (i32, i32) {
    %c0_i32 = arith.constant 0 : i32
    %c0_i32_0 = arith.constant 0 : i32
    %c0_i32_1 = arith.constant 0 : i32
    return %c0_i32, %c0_i32_0 : i32, i32
  }
  func.func @transform_3(%arg0: i32) -> (i32, i32) {
    %c0_i32 = arith.constant 0 : i32
    %c0_i32_0 = arith.constant 0 : i32
    return %arg0, %c0_i32 : i32, i32
  }
}

module attributes {stable_mosaic.version = 11 : i64} {
  func.func @_conv_stats_kernel(%arg0: i32, %arg1: memref<1x20x64xbf16, #tpu.memory_space<vmem>>, %arg2: memref<16x64x1xbf16, #tpu.memory_space<vmem>>, %arg3: memref<4x1xf32, #tpu.memory_space<vmem>>, %arg4: memref<1x1x1x1xf32, #tpu.memory_space<vmem>>, %arg5: memref<1x1x1xf32, #tpu.memory_space<vmem>>, %arg6: memref<1x1x1xf32, #tpu.memory_space<vmem>>) attributes {dimension_semantics = [#tpu.dimension_semantics<parallel>], iteration_bounds = array<i64: 2>, scalar_prefetch = 0 : i64, scratch_operands = 0 : i64, tpu.core_type = #tpu.core_type<tc>, window_params = [{transform_indices = @transform_0, window_bounds = array<i64: 1, 20, 64>}, {pipeline_mode = #tpu.pipeline_mode<synchronous>, transform_indices = @transform_1, window_bounds = array<i64: 16, 64, 1>}, {pipeline_mode = #tpu.pipeline_mode<synchronous>, transform_indices = @transform_2, window_bounds = array<i64: 4, 1>}, {transform_indices = @transform_3, window_bounds = array<i64: 1, 1, 1, 1>}, {transform_indices = @transform_4, window_bounds = array<i64: 1, 1, 1>}, {transform_indices = @transform_5, window_bounds = array<i64: 1, 1, 1>}]} {
    %cst = arith.constant 0.000000e+00 : f32
    %0 = vector.broadcast %cst : f32 to vector<4x1xf32>
    %c0 = arith.constant 0 : index
    %c0_0 = arith.constant 0 : index
    %c0_1 = arith.constant 0 : index
    %1 = vector.load %arg1[%c0, %c0_0, %c0_1] : memref<1x20x64xbf16, #tpu.memory_space<vmem>>, vector<1x4x64xbf16>
    %2 = vector.shape_cast %1 : vector<1x4x64xbf16> to vector<4x64xbf16>
    %c0_2 = arith.constant 0 : index
    %c0_3 = arith.constant 0 : index
    %c0_4 = arith.constant 0 : index
    %3 = vector.load %arg2[%c0_2, %c0_3, %c0_4] : memref<16x64x1xbf16, #tpu.memory_space<vmem>>, vector<1x64x1xbf16>
    %4 = vector.shape_cast %3 : vector<1x64x1xbf16> to vector<64x1xbf16>
    %cst_5 = arith.constant dense<0.000000e+00> : vector<4x1xf32>
    %5 = tpu.matmul %2, %4, %cst_5 {dimension_numbers = #tpu.dot_dimension_numbers<[1], [0], [0], [1], [0, 0, 1, 1], [], []>} : vector<4x64xbf16>, vector<64x1xbf16>, vector<4x1xf32> -> vector<4x1xf32>
    %6 = arith.addf %0, %5 : vector<4x1xf32>
    %c0_6 = arith.constant 0 : index
    %c1 = arith.constant 1 : index
    %c0_7 = arith.constant 0 : index
    %7 = vector.load %arg1[%c0_6, %c1, %c0_7] : memref<1x20x64xbf16, #tpu.memory_space<vmem>>, vector<1x4x64xbf16>
    %8 = vector.shape_cast %7 : vector<1x4x64xbf16> to vector<4x64xbf16>
    %c1_8 = arith.constant 1 : index
    %c0_9 = arith.constant 0 : index
    %c0_10 = arith.constant 0 : index
    %9 = vector.load %arg2[%c1_8, %c0_9, %c0_10] : memref<16x64x1xbf16, #tpu.memory_space<vmem>>, vector<1x64x1xbf16>
    %10 = vector.shape_cast %9 : vector<1x64x1xbf16> to vector<64x1xbf16>
    %cst_11 = arith.constant dense<0.000000e+00> : vector<4x1xf32>
    %11 = tpu.matmul %8, %10, %cst_11 {dimension_numbers = #tpu.dot_dimension_numbers<[1], [0], [0], [1], [0, 0, 1, 1], [], []>} : vector<4x64xbf16>, vector<64x1xbf16>, vector<4x1xf32> -> vector<4x1xf32>
    %12 = arith.addf %6, %11 : vector<4x1xf32>
    %c0_12 = arith.constant 0 : index
    %c2 = arith.constant 2 : index
    %c0_13 = arith.constant 0 : index
    %13 = vector.load %arg1[%c0_12, %c2, %c0_13] : memref<1x20x64xbf16, #tpu.memory_space<vmem>>, vector<1x4x64xbf16>
    %14 = vector.shape_cast %13 : vector<1x4x64xbf16> to vector<4x64xbf16>
    %c2_14 = arith.constant 2 : index
    %c0_15 = arith.constant 0 : index
    %c0_16 = arith.constant 0 : index
    %15 = vector.load %arg2[%c2_14, %c0_15, %c0_16] : memref<16x64x1xbf16, #tpu.memory_space<vmem>>, vector<1x64x1xbf16>
    %16 = vector.shape_cast %15 : vector<1x64x1xbf16> to vector<64x1xbf16>
    %cst_17 = arith.constant dense<0.000000e+00> : vector<4x1xf32>
    %17 = tpu.matmul %14, %16, %cst_17 {dimension_numbers = #tpu.dot_dimension_numbers<[1], [0], [0], [1], [0, 0, 1, 1], [], []>} : vector<4x64xbf16>, vector<64x1xbf16>, vector<4x1xf32> -> vector<4x1xf32>
    %18 = arith.addf %12, %17 : vector<4x1xf32>
    %c0_18 = arith.constant 0 : index
    %c3 = arith.constant 3 : index
    %c0_19 = arith.constant 0 : index
    %19 = vector.load %arg1[%c0_18, %c3, %c0_19] : memref<1x20x64xbf16, #tpu.memory_space<vmem>>, vector<1x4x64xbf16>
    %20 = vector.shape_cast %19 : vector<1x4x64xbf16> to vector<4x64xbf16>
    %c3_20 = arith.constant 3 : index
    %c0_21 = arith.constant 0 : index
    %c0_22 = arith.constant 0 : index
    %21 = vector.load %arg2[%c3_20, %c0_21, %c0_22] : memref<16x64x1xbf16, #tpu.memory_space<vmem>>, vector<1x64x1xbf16>
    %22 = vector.shape_cast %21 : vector<1x64x1xbf16> to vector<64x1xbf16>
    %cst_23 = arith.constant dense<0.000000e+00> : vector<4x1xf32>
    %23 = tpu.matmul %20, %22, %cst_23 {dimension_numbers = #tpu.dot_dimension_numbers<[1], [0], [0], [1], [0, 0, 1, 1], [], []>} : vector<4x64xbf16>, vector<64x1xbf16>, vector<4x1xf32> -> vector<4x1xf32>
    %24 = arith.addf %18, %23 : vector<4x1xf32>
    %c0_24 = arith.constant 0 : index
    %c4 = arith.constant 4 : index
    %c0_25 = arith.constant 0 : index
    %25 = vector.load %arg1[%c0_24, %c4, %c0_25] : memref<1x20x64xbf16, #tpu.memory_space<vmem>>, vector<1x4x64xbf16>
    %26 = vector.shape_cast %25 : vector<1x4x64xbf16> to vector<4x64xbf16>
    %c4_26 = arith.constant 4 : index
    %c0_27 = arith.constant 0 : index
    %c0_28 = arith.constant 0 : index
    %27 = vector.load %arg2[%c4_26, %c0_27, %c0_28] : memref<16x64x1xbf16, #tpu.memory_space<vmem>>, vector<1x64x1xbf16>
    %28 = vector.shape_cast %27 : vector<1x64x1xbf16> to vector<64x1xbf16>
    %cst_29 = arith.constant dense<0.000000e+00> : vector<4x1xf32>
    %29 = tpu.matmul %26, %28, %cst_29 {dimension_numbers = #tpu.dot_dimension_numbers<[1], [0], [0], [1], [0, 0, 1, 1], [], []>} : vector<4x64xbf16>, vector<64x1xbf16>, vector<4x1xf32> -> vector<4x1xf32>
    %30 = arith.addf %24, %29 : vector<4x1xf32>
    %c0_30 = arith.constant 0 : index
    %c5 = arith.constant 5 : index
    %c0_31 = arith.constant 0 : index
    %31 = vector.load %arg1[%c0_30, %c5, %c0_31] : memref<1x20x64xbf16, #tpu.memory_space<vmem>>, vector<1x4x64xbf16>
    %32 = vector.shape_cast %31 : vector<1x4x64xbf16> to vector<4x64xbf16>
    %c5_32 = arith.constant 5 : index
    %c0_33 = arith.constant 0 : index
    %c0_34 = arith.constant 0 : index
    %33 = vector.load %arg2[%c5_32, %c0_33, %c0_34] : memref<16x64x1xbf16, #tpu.memory_space<vmem>>, vector<1x64x1xbf16>
    %34 = vector.shape_cast %33 : vector<1x64x1xbf16> to vector<64x1xbf16>
    %cst_35 = arith.constant dense<0.000000e+00> : vector<4x1xf32>
    %35 = tpu.matmul %32, %34, %cst_35 {dimension_numbers = #tpu.dot_dimension_numbers<[1], [0], [0], [1], [0, 0, 1, 1], [], []>} : vector<4x64xbf16>, vector<64x1xbf16>, vector<4x1xf32> -> vector<4x1xf32>
    %36 = arith.addf %30, %35 : vector<4x1xf32>
    %c0_36 = arith.constant 0 : index
    %c6 = arith.constant 6 : index
    %c0_37 = arith.constant 0 : index
    %37 = vector.load %arg1[%c0_36, %c6, %c0_37] : memref<1x20x64xbf16, #tpu.memory_space<vmem>>, vector<1x4x64xbf16>
    %38 = vector.shape_cast %37 : vector<1x4x64xbf16> to vector<4x64xbf16>
    %c6_38 = arith.constant 6 : index
    %c0_39 = arith.constant 0 : index
    %c0_40 = arith.constant 0 : index
    %39 = vector.load %arg2[%c6_38, %c0_39, %c0_40] : memref<16x64x1xbf16, #tpu.memory_space<vmem>>, vector<1x64x1xbf16>
    %40 = vector.shape_cast %39 : vector<1x64x1xbf16> to vector<64x1xbf16>
    %cst_41 = arith.constant dense<0.000000e+00> : vector<4x1xf32>
    %41 = tpu.matmul %38, %40, %cst_41 {dimension_numbers = #tpu.dot_dimension_numbers<[1], [0], [0], [1], [0, 0, 1, 1], [], []>} : vector<4x64xbf16>, vector<64x1xbf16>, vector<4x1xf32> -> vector<4x1xf32>
    %42 = arith.addf %36, %41 : vector<4x1xf32>
    %c0_42 = arith.constant 0 : index
    %c7 = arith.constant 7 : index
    %c0_43 = arith.constant 0 : index
    %43 = vector.load %arg1[%c0_42, %c7, %c0_43] : memref<1x20x64xbf16, #tpu.memory_space<vmem>>, vector<1x4x64xbf16>
    %44 = vector.shape_cast %43 : vector<1x4x64xbf16> to vector<4x64xbf16>
    %c7_44 = arith.constant 7 : index
    %c0_45 = arith.constant 0 : index
    %c0_46 = arith.constant 0 : index
    %45 = vector.load %arg2[%c7_44, %c0_45, %c0_46] : memref<16x64x1xbf16, #tpu.memory_space<vmem>>, vector<1x64x1xbf16>
    %46 = vector.shape_cast %45 : vector<1x64x1xbf16> to vector<64x1xbf16>
    %cst_47 = arith.constant dense<0.000000e+00> : vector<4x1xf32>
    %47 = tpu.matmul %44, %46, %cst_47 {dimension_numbers = #tpu.dot_dimension_numbers<[1], [0], [0], [1], [0, 0, 1, 1], [], []>} : vector<4x64xbf16>, vector<64x1xbf16>, vector<4x1xf32> -> vector<4x1xf32>
    %48 = arith.addf %42, %47 : vector<4x1xf32>
    %c0_48 = arith.constant 0 : index
    %c8 = arith.constant 8 : index
    %c0_49 = arith.constant 0 : index
    %49 = vector.load %arg1[%c0_48, %c8, %c0_49] : memref<1x20x64xbf16, #tpu.memory_space<vmem>>, vector<1x4x64xbf16>
    %50 = vector.shape_cast %49 : vector<1x4x64xbf16> to vector<4x64xbf16>
    %c8_50 = arith.constant 8 : index
    %c0_51 = arith.constant 0 : index
    %c0_52 = arith.constant 0 : index
    %51 = vector.load %arg2[%c8_50, %c0_51, %c0_52] : memref<16x64x1xbf16, #tpu.memory_space<vmem>>, vector<1x64x1xbf16>
    %52 = vector.shape_cast %51 : vector<1x64x1xbf16> to vector<64x1xbf16>
    %cst_53 = arith.constant dense<0.000000e+00> : vector<4x1xf32>
    %53 = tpu.matmul %50, %52, %cst_53 {dimension_numbers = #tpu.dot_dimension_numbers<[1], [0], [0], [1], [0, 0, 1, 1], [], []>} : vector<4x64xbf16>, vector<64x1xbf16>, vector<4x1xf32> -> vector<4x1xf32>
    %54 = arith.addf %48, %53 : vector<4x1xf32>
    %c0_54 = arith.constant 0 : index
    %c9 = arith.constant 9 : index
    %c0_55 = arith.constant 0 : index
    %55 = vector.load %arg1[%c0_54, %c9, %c0_55] : memref<1x20x64xbf16, #tpu.memory_space<vmem>>, vector<1x4x64xbf16>
    %56 = vector.shape_cast %55 : vector<1x4x64xbf16> to vector<4x64xbf16>
    %c9_56 = arith.constant 9 : index
    %c0_57 = arith.constant 0 : index
    %c0_58 = arith.constant 0 : index
    %57 = vector.load %arg2[%c9_56, %c0_57, %c0_58] : memref<16x64x1xbf16, #tpu.memory_space<vmem>>, vector<1x64x1xbf16>
    %58 = vector.shape_cast %57 : vector<1x64x1xbf16> to vector<64x1xbf16>
    %cst_59 = arith.constant dense<0.000000e+00> : vector<4x1xf32>
    %59 = tpu.matmul %56, %58, %cst_59 {dimension_numbers = #tpu.dot_dimension_numbers<[1], [0], [0], [1], [0, 0, 1, 1], [], []>} : vector<4x64xbf16>, vector<64x1xbf16>, vector<4x1xf32> -> vector<4x1xf32>
    %60 = arith.addf %54, %59 : vector<4x1xf32>
    %c0_60 = arith.constant 0 : index
    %c10 = arith.constant 10 : index
    %c0_61 = arith.constant 0 : index
    %61 = vector.load %arg1[%c0_60, %c10, %c0_61] : memref<1x20x64xbf16, #tpu.memory_space<vmem>>, vector<1x4x64xbf16>
    %62 = vector.shape_cast %61 : vector<1x4x64xbf16> to vector<4x64xbf16>
    %c10_62 = arith.constant 10 : index
    %c0_63 = arith.constant 0 : index
    %c0_64 = arith.constant 0 : index
    %63 = vector.load %arg2[%c10_62, %c0_63, %c0_64] : memref<16x64x1xbf16, #tpu.memory_space<vmem>>, vector<1x64x1xbf16>
    %64 = vector.shape_cast %63 : vector<1x64x1xbf16> to vector<64x1xbf16>
    %cst_65 = arith.constant dense<0.000000e+00> : vector<4x1xf32>
    %65 = tpu.matmul %62, %64, %cst_65 {dimension_numbers = #tpu.dot_dimension_numbers<[1], [0], [0], [1], [0, 0, 1, 1], [], []>} : vector<4x64xbf16>, vector<64x1xbf16>, vector<4x1xf32> -> vector<4x1xf32>
    %66 = arith.addf %60, %65 : vector<4x1xf32>
    %c0_66 = arith.constant 0 : index
    %c11 = arith.constant 11 : index
    %c0_67 = arith.constant 0 : index
    %67 = vector.load %arg1[%c0_66, %c11, %c0_67] : memref<1x20x64xbf16, #tpu.memory_space<vmem>>, vector<1x4x64xbf16>
    %68 = vector.shape_cast %67 : vector<1x4x64xbf16> to vector<4x64xbf16>
    %c11_68 = arith.constant 11 : index
    %c0_69 = arith.constant 0 : index
    %c0_70 = arith.constant 0 : index
    %69 = vector.load %arg2[%c11_68, %c0_69, %c0_70] : memref<16x64x1xbf16, #tpu.memory_space<vmem>>, vector<1x64x1xbf16>
    %70 = vector.shape_cast %69 : vector<1x64x1xbf16> to vector<64x1xbf16>
    %cst_71 = arith.constant dense<0.000000e+00> : vector<4x1xf32>
    %71 = tpu.matmul %68, %70, %cst_71 {dimension_numbers = #tpu.dot_dimension_numbers<[1], [0], [0], [1], [0, 0, 1, 1], [], []>} : vector<4x64xbf16>, vector<64x1xbf16>, vector<4x1xf32> -> vector<4x1xf32>
    %72 = arith.addf %66, %71 : vector<4x1xf32>
    %c0_72 = arith.constant 0 : index
    %c12 = arith.constant 12 : index
    %c0_73 = arith.constant 0 : index
    %73 = vector.load %arg1[%c0_72, %c12, %c0_73] : memref<1x20x64xbf16, #tpu.memory_space<vmem>>, vector<1x4x64xbf16>
    %74 = vector.shape_cast %73 : vector<1x4x64xbf16> to vector<4x64xbf16>
    %c12_74 = arith.constant 12 : index
    %c0_75 = arith.constant 0 : index
    %c0_76 = arith.constant 0 : index
    %75 = vector.load %arg2[%c12_74, %c0_75, %c0_76] : memref<16x64x1xbf16, #tpu.memory_space<vmem>>, vector<1x64x1xbf16>
    %76 = vector.shape_cast %75 : vector<1x64x1xbf16> to vector<64x1xbf16>
    %cst_77 = arith.constant dense<0.000000e+00> : vector<4x1xf32>
    %77 = tpu.matmul %74, %76, %cst_77 {dimension_numbers = #tpu.dot_dimension_numbers<[1], [0], [0], [1], [0, 0, 1, 1], [], []>} : vector<4x64xbf16>, vector<64x1xbf16>, vector<4x1xf32> -> vector<4x1xf32>
    %78 = arith.addf %72, %77 : vector<4x1xf32>
    %c0_78 = arith.constant 0 : index
    %c13 = arith.constant 13 : index
    %c0_79 = arith.constant 0 : index
    %79 = vector.load %arg1[%c0_78, %c13, %c0_79] : memref<1x20x64xbf16, #tpu.memory_space<vmem>>, vector<1x4x64xbf16>
    %80 = vector.shape_cast %79 : vector<1x4x64xbf16> to vector<4x64xbf16>
    %c13_80 = arith.constant 13 : index
    %c0_81 = arith.constant 0 : index
    %c0_82 = arith.constant 0 : index
    %81 = vector.load %arg2[%c13_80, %c0_81, %c0_82] : memref<16x64x1xbf16, #tpu.memory_space<vmem>>, vector<1x64x1xbf16>
    %82 = vector.shape_cast %81 : vector<1x64x1xbf16> to vector<64x1xbf16>
    %cst_83 = arith.constant dense<0.000000e+00> : vector<4x1xf32>
    %83 = tpu.matmul %80, %82, %cst_83 {dimension_numbers = #tpu.dot_dimension_numbers<[1], [0], [0], [1], [0, 0, 1, 1], [], []>} : vector<4x64xbf16>, vector<64x1xbf16>, vector<4x1xf32> -> vector<4x1xf32>
    %84 = arith.addf %78, %83 : vector<4x1xf32>
    %c0_84 = arith.constant 0 : index
    %c14 = arith.constant 14 : index
    %c0_85 = arith.constant 0 : index
    %85 = vector.load %arg1[%c0_84, %c14, %c0_85] : memref<1x20x64xbf16, #tpu.memory_space<vmem>>, vector<1x4x64xbf16>
    %86 = vector.shape_cast %85 : vector<1x4x64xbf16> to vector<4x64xbf16>
    %c14_86 = arith.constant 14 : index
    %c0_87 = arith.constant 0 : index
    %c0_88 = arith.constant 0 : index
    %87 = vector.load %arg2[%c14_86, %c0_87, %c0_88] : memref<16x64x1xbf16, #tpu.memory_space<vmem>>, vector<1x64x1xbf16>
    %88 = vector.shape_cast %87 : vector<1x64x1xbf16> to vector<64x1xbf16>
    %cst_89 = arith.constant dense<0.000000e+00> : vector<4x1xf32>
    %89 = tpu.matmul %86, %88, %cst_89 {dimension_numbers = #tpu.dot_dimension_numbers<[1], [0], [0], [1], [0, 0, 1, 1], [], []>} : vector<4x64xbf16>, vector<64x1xbf16>, vector<4x1xf32> -> vector<4x1xf32>
    %90 = arith.addf %84, %89 : vector<4x1xf32>
    %c0_90 = arith.constant 0 : index
    %c15 = arith.constant 15 : index
    %c0_91 = arith.constant 0 : index
    %91 = vector.load %arg1[%c0_90, %c15, %c0_91] : memref<1x20x64xbf16, #tpu.memory_space<vmem>>, vector<1x4x64xbf16>
    %92 = vector.shape_cast %91 : vector<1x4x64xbf16> to vector<4x64xbf16>
    %c15_92 = arith.constant 15 : index
    %c0_93 = arith.constant 0 : index
    %c0_94 = arith.constant 0 : index
    %93 = vector.load %arg2[%c15_92, %c0_93, %c0_94] : memref<16x64x1xbf16, #tpu.memory_space<vmem>>, vector<1x64x1xbf16>
    %94 = vector.shape_cast %93 : vector<1x64x1xbf16> to vector<64x1xbf16>
    %cst_95 = arith.constant dense<0.000000e+00> : vector<4x1xf32>
    %95 = tpu.matmul %92, %94, %cst_95 {dimension_numbers = #tpu.dot_dimension_numbers<[1], [0], [0], [1], [0, 0, 1, 1], [], []>} : vector<4x64xbf16>, vector<64x1xbf16>, vector<4x1xf32> -> vector<4x1xf32>
    %96 = arith.addf %90, %95 : vector<4x1xf32>
    %97 = vector.extract_strided_slice %96 {offsets = [0, 0], sizes = [1, 1], strides = [1, 1]} : vector<4x1xf32> to vector<1x1xf32>
    %c0_96 = arith.constant 0 : index
    %c0_97 = arith.constant 0 : index
    %c0_98 = arith.constant 0 : index
    %c0_99 = arith.constant 0 : index
    %98 = vector.load %arg4[%c0_96, %c0_97, %c0_98, %c0_99] : memref<1x1x1x1xf32, #tpu.memory_space<vmem>>, vector<1x1x1x1xf32>
    %99 = vector.shape_cast %98 : vector<1x1x1x1xf32> to vector<1x1xf32>
    %100 = vector.shape_cast %97 : vector<1x1xf32> to vector<1x1x1x1xf32>
    tpu.vector_store %arg4[%c0_96, %c0_97, %c0_98, %c0_99], %100 {strides = array<i32>} : memref<1x1x1x1xf32, #tpu.memory_space<vmem>>, vector<1x1x1x1xf32>,
    %c0_100 = arith.constant 0 : index
    %c0_101 = arith.constant 0 : index
    %101 = vector.load %arg3[%c0_100, %c0_101] : memref<4x1xf32, #tpu.memory_space<vmem>>, vector<4x1xf32>
    %102 = arith.mulf %96, %101 : vector<4x1xf32>
    %cst_102 = arith.constant dense<0.000000e+00> : vector<1xf32>
    %103 = vector.multi_reduction <add>, %102, %cst_102 [0] : vector<4x1xf32> to vector<1xf32>
    %104 = vector.shape_cast %103 : vector<1xf32> to vector<1x1xf32>
    %105 = vector.shape_cast %104 : vector<1x1xf32> to vector<1x1x1xf32>
    %c0_103 = arith.constant 0 : index
    %c0_104 = arith.constant 0 : index
    %c0_105 = arith.constant 0 : index
    %106 = vector.load %arg5[%c0_103, %c0_104, %c0_105] : memref<1x1x1xf32, #tpu.memory_space<vmem>>, vector<1x1x1xf32>
    tpu.vector_store %arg5[%c0_103, %c0_104, %c0_105], %105 {strides = array<i32>} : memref<1x1x1xf32, #tpu.memory_space<vmem>>, vector<1x1x1xf32>,
    %107 = arith.mulf %102, %96 : vector<4x1xf32>
    %cst_106 = arith.constant dense<0.000000e+00> : vector<1xf32>
    %108 = vector.multi_reduction <add>, %107, %cst_106 [0] : vector<4x1xf32> to vector<1xf32>
    %109 = vector.shape_cast %108 : vector<1xf32> to vector<1x1xf32>
    %110 = vector.shape_cast %109 : vector<1x1xf32> to vector<1x1x1xf32>
    %c0_107 = arith.constant 0 : index
    %c0_108 = arith.constant 0 : index
    %c0_109 = arith.constant 0 : index
    %111 = vector.load %arg6[%c0_107, %c0_108, %c0_109] : memref<1x1x1xf32, #tpu.memory_space<vmem>>, vector<1x1x1xf32>
    tpu.vector_store %arg6[%c0_107, %c0_108, %c0_109], %110 {strides = array<i32>} : memref<1x1x1xf32, #tpu.memory_space<vmem>>, vector<1x1x1xf32>,
    return
  }
  func.func @transform_0(%arg0: i32) -> (i32, i32, i32) {
    %c0_i32 = arith.constant 0 : i32
    %c0_i32_0 = arith.constant 0 : i32
    %c0_i32_1 = arith.constant 0 : i32
    return %arg0, %c0_i32, %c0_i32_0 : i32, i32, i32
  }
  func.func @transform_1(%arg0: i32) -> (i32, i32, i32) {
    %c0_i32 = arith.constant 0 : i32
    %c0_i32_0 = arith.constant 0 : i32
    %c0_i32_1 = arith.constant 0 : i32
    %c0_i32_2 = arith.constant 0 : i32
    return %c0_i32, %c0_i32_0, %c0_i32_1 : i32, i32, i32
  }
  func.func @transform_2(%arg0: i32) -> (i32, i32) {
    %c0_i32 = arith.constant 0 : i32
    %c0_i32_0 = arith.constant 0 : i32
    %c0_i32_1 = arith.constant 0 : i32
    return %c0_i32, %c0_i32_0 : i32, i32
  }
  func.func @transform_3(%arg0: i32) -> (i32, i32, i32, i32) {
    %c0_i32 = arith.constant 0 : i32
    %c0_i32_0 = arith.constant 0 : i32
    %c0_i32_1 = arith.constant 0 : i32
    %c0_i32_2 = arith.constant 0 : i32
    return %arg0, %c0_i32, %c0_i32_0, %c0_i32_1 : i32, i32, i32, i32
  }
  func.func @transform_4(%arg0: i32) -> (i32, i32, i32) {
    %c0_i32 = arith.constant 0 : i32
    %c0_i32_0 = arith.constant 0 : i32
    %c0_i32_1 = arith.constant 0 : i32
    return %arg0, %c0_i32, %c0_i32_0 : i32, i32, i32
  }
  func.func @transform_5(%arg0: i32) -> (i32, i32, i32) {
    %c0_i32 = arith.constant 0 : i32
    %c0_i32_0 = arith.constant 0 : i32
    %c0_i32_1 = arith.constant 0 : i32
    return %arg0, %c0_i32, %c0_i32_0 : i32, i32, i32
  }
}

module attributes {stable_mosaic.version = 11 : i64} {
  func.func @_bn_lrelu_kernel(%arg0: i32, %arg1: memref<2x1xf32, #tpu.memory_space<vmem>>, %arg2: memref<1x1xf32, #tpu.memory_space<vmem>>, %arg3: memref<1x1xf32, #tpu.memory_space<vmem>>, %arg4: memref<2x1xf32, #tpu.memory_space<vmem>>) attributes {dimension_semantics = [#tpu.dimension_semantics<parallel>], iteration_bounds = array<i64: 1>, scalar_prefetch = 0 : i64, scratch_operands = 0 : i64, tpu.core_type = #tpu.core_type<tc>, window_params = [{transform_indices = @transform_0, window_bounds = array<i64: 2, 1>}, {pipeline_mode = #tpu.pipeline_mode<synchronous>, transform_indices = @transform_1, window_bounds = array<i64: 1, 1>}, {pipeline_mode = #tpu.pipeline_mode<synchronous>, transform_indices = @transform_2, window_bounds = array<i64: 1, 1>}, {transform_indices = @transform_3, window_bounds = array<i64: 2, 1>}]} {
    %c0 = arith.constant 0 : index
    %c0_0 = arith.constant 0 : index
    %0 = vector.load %arg1[%c0, %c0_0] : memref<2x1xf32, #tpu.memory_space<vmem>>, vector<2x1xf32>
    %c0_1 = arith.constant 0 : index
    %c0_2 = arith.constant 0 : index
    %1 = vector.load %arg2[%c0_1, %c0_2] : memref<1x1xf32, #tpu.memory_space<vmem>>, vector<1x1xf32>
    %2 = vector.broadcast %1 : vector<1x1xf32> to vector<2x1xf32>
    %3 = arith.mulf %0, %2 : vector<2x1xf32>
    %c0_3 = arith.constant 0 : index
    %c0_4 = arith.constant 0 : index
    %4 = vector.load %arg3[%c0_3, %c0_4] : memref<1x1xf32, #tpu.memory_space<vmem>>, vector<1x1xf32>
    %5 = vector.broadcast %4 : vector<1x1xf32> to vector<2x1xf32>
    %6 = arith.addf %3, %5 : vector<2x1xf32>
    %cst = arith.constant 0.000000e+00 : f32
    %7 = vector.broadcast %cst : f32 to vector<2x1xf32>
    %8 = arith.cmpf oge, %6, %7 : vector<2x1xf32>
    %cst_5 = arith.constant 2.000000e-01 : f32
    %9 = vector.broadcast %cst_5 : f32 to vector<2x1xf32>
    %10 = arith.mulf %9, %6 : vector<2x1xf32>
    %11 = arith.select %8, %6, %10 : vector<2x1xi1>, vector<2x1xf32>
    %c0_6 = arith.constant 0 : index
    %c0_7 = arith.constant 0 : index
    %12 = vector.load %arg4[%c0_6, %c0_7] : memref<2x1xf32, #tpu.memory_space<vmem>>, vector<2x1xf32>
    tpu.vector_store %arg4[%c0_6, %c0_7], %11 {strides = array<i32>} : memref<2x1xf32, #tpu.memory_space<vmem>>, vector<2x1xf32>,
    return
  }
  func.func @transform_0(%arg0: i32) -> (i32, i32) {
    %c0_i32 = arith.constant 0 : i32
    %c0_i32_0 = arith.constant 0 : i32
    return %arg0, %c0_i32 : i32, i32
  }
  func.func @transform_1(%arg0: i32) -> (i32, i32) {
    %c0_i32 = arith.constant 0 : i32
    %c0_i32_0 = arith.constant 0 : i32
    %c0_i32_1 = arith.constant 0 : i32
    return %c0_i32, %c0_i32_0 : i32, i32
  }
  func.func @transform_2(%arg0: i32) -> (i32, i32) {
    %c0_i32 = arith.constant 0 : i32
    %c0_i32_0 = arith.constant 0 : i32
    %c0_i32_1 = arith.constant 0 : i32
    return %c0_i32, %c0_i32_0 : i32, i32
  }
  func.func @transform_3(%arg0: i32) -> (i32, i32) {
    %c0_i32 = arith.constant 0 : i32
    %c0_i32_0 = arith.constant 0 : i32
    return %arg0, %c0_i32 : i32, i32
  }
}

</mosaic_0001>

<llo_original>
// kernel: tile.19
$region0: #{tile.19}
  #allocation0 [shape = 's32[1]{0}', space=sflag, size = 0x4, scoped, tag = 'scoped memory for tile.19']
  %s0 = inlined_call_operand.vmem [shape: f32[9], index: 0, kind: input, shape index: {}]
  %s1 = inlined_call_operand.vmem [shape: f32[8,9], index: 1, kind: output, shape index: {}]
  // Predicated region
  $region2: #{tile.19} parent=0 // pred_check
    _
  $region3: #{tile.19} parent=0 // pred_check_branch
    %3 = sbr.rel (0) target = $region5
  $region4: #{tile.19} parent=0 // pred_region
    _
  $region5: #{tile.19} parent=0 // pred_fallthru
    _
  %v4 = vld [vmem:[%s0] ss:$0 sm:$0xff]
  %5 = vst [vmem:[%s1] sm:$0xff] %v4

// kernel: tile.0
$region0: #{tile.0}
  %s0 = inlined_call_operand.vmem [shape: f32[8,9], index: 0, kind: input, shape index: {}]
  %s1 = inlined_call_operand.vmem [shape: f32[72,1], index: 1, kind: output, shape index: {}]
  %v2 = vld [vmem:[%s0] sm:$0xff]
  %vm3 = vcmask 7168
  %4 = vst.msk [vmem:[%s1] ss:$9 sm:$0xff] %vm3, %v2
  %v5 = vld.sshfl [vmem:[%s0] sm:$0xff pattern:$0x36251407]
  %6 = vrot.lane.b32.xlu0 %v5, 127
  %v7 = vpop.permute.xlu0 %6
  %vm8 = vcmask 7168
  %s9 = scalar_lea.vmem %s1, 64
  %10 = vst.msk [vmem:[%s9] ss:$-63 sm:$0x3] %vm8, %v7
  %s11 = scalar_lea.vmem %s1, 91
  %12 = vst.msk [vmem:[%s11] ss:$-27 sm:$0xc] %vm8, %v7
  %s13 = scalar_lea.vmem %s1, 154
  %14 = vst.msk [vmem:[%s13] ss:$-27 sm:$0x30] %vm8, %v7
  %s15 = scalar_lea.vmem %s1, 217
  %16 = vst.msk [vmem:[%s15] ss:$-27 sm:$0xc0] %vm8, %v7
  %v17 = vld.sshfl [vmem:[%s0] sm:$0xff pattern:$0x36251407]
  %18 = vrot.lane.b32.xlu0 %v17, 126
  %v19 = vpop.permute.xlu0 %18
  %vm20 = vcmask 7168
  %s21 = scalar_lea.vmem %s1, 65
  %22 = vst.msk [vmem:[%s21] ss:$-63 sm:$0x3] %vm20, %v19
  %s23 = scalar_lea.vmem %s1, 92
  %24 = vst.msk [vmem:[%s23] ss:$-27 sm:$0xc] %vm20, %v19
  %s25 = scalar_lea.vmem %s1, 155
  %26 = vst.msk [vmem:[%s25] ss:$-27 sm:$0x30] %vm20, %v19
  %s27 = scalar_lea.vmem %s1, 218
  %28 = vst.msk [vmem:[%s27] ss:$-27 sm:$0xc0] %vm20, %v19
  %v29 = vld.sshfl [vmem:[%s0] sm:$0xff pattern:$0x36251407]
  %30 = vrot.lane.b32.xlu0 %v29, 125
  %v31 = vpop.permute.xlu0 %30
  %vm32 = vcmask 7168
  %s33 = scalar_lea.vmem %s1, 66
  %34 = vst.msk [vmem:[%s33] ss:$-63 sm:$0x3] %vm32, %v31
  %s35 = scalar_lea.vmem %s1, 93
  %36 = vst.msk [vmem:[%s35] ss:$-27 sm:$0xc] %vm32, %v31
  %s37 = scalar_lea.vmem %s1, 156
  %38 = vst.msk [vmem:[%s37] ss:$-27 sm:$0x30] %vm32, %v31
  %s39 = scalar_lea.vmem %s1, 219
  %40 = vst.msk [vmem:[%s39] ss:$-27 sm:$0xc0] %vm32, %v31
  %v41 = vld.sshfl [vmem:[%s0] sm:$0xff pattern:$0x36251407]
  %42 = vrot.lane.b32.xlu0 %v41, 124
  %v43 = vpop.permute.xlu0 %42
  %vm44 = vcmask 7168
  %s45 = scalar_lea.vmem %s1, 67
  %46 = vst.msk [vmem:[%s45] ss:$-63 sm:$0x3] %vm44, %v43
  %s47 = scalar_lea.vmem %s1, 94
  %48 = vst.msk [vmem:[%s47] ss:$-27 sm:$0xc] %vm44, %v43
  %s49 = scalar_lea.vmem %s1, 157
  %50 = vst.msk [vmem:[%s49] ss:$-27 sm:$0x30] %vm44, %v43
  %s51 = scalar_lea.vmem %s1, 220
  %52 = vst.msk [vmem:[%s51] ss:$-27 sm:$0xc0] %vm44, %v43
  %v53 = vld.sshfl [vmem:[%s0] sm:$0xff pattern:$0x62514073]
  %54 = vrot.lane.b32.xlu0 %v53, 123
  %v55 = vpop.permute.xlu0 %54
  %vm56 = vcmask 7168
  %s57 = scalar_lea.vmem %s1, 32
  %58 = vst.msk [vmem:[%s57] ss:$36 sm:$0x3] %vm56, %v55
  %s59 = scalar_lea.vmem %s1, 4294967229
  %60 = vst.msk [vmem:[%s59] ss:$36 sm:$0xc] %vm56, %v55
  %s61 = scalar_lea.vmem %s1, 4294967166
  %62 = vst.msk [vmem:[%s61] ss:$36 sm:$0x30] %vm56, %v55
  %s63 = scalar_lea.vmem %s1, 4294967103
  %64 = vst.msk [vmem:[%s63] ss:$36 sm:$0xc0] %vm56, %v55
  %v65 = vld.sshfl [vmem:[%s0] sm:$0xff pattern:$0x62514073]
  %66 = vrot.lane.b32.xlu0 %v65, 122
  %v67 = vpop.permute.xlu0 %66
  %vm68 = vcmask 7168
  %s69 = scalar_lea.vmem %s1, 33
  %70 = vst.msk [vmem:[%s69] ss:$36 sm:$0x3] %vm68, %v67
  %s71 = scalar_lea.vmem %s1, 4294967230
  %72 = vst.msk [vmem:[%s71] ss:$36 sm:$0xc] %vm68, %v67
  %s73 = scalar_lea.vmem %s1, 4294967167
  %74 = vst.msk [vmem:[%s73] ss:$36 sm:$0x30] %vm68, %v67
  %s75 = scalar_lea.vmem %s1, 4294967104
  %76 = vst.msk [vmem:[%s75] ss:$36 sm:$0xc0] %vm68, %v67
  %v77 = vld.sshfl [vmem:[%s0] sm:$0xff pattern:$0x62514073]
  %78 = vrot.lane.b32.xlu0 %v77, 121
  %v79 = vpop.permute.xlu0 %78
  %vm80 = vcmask 7168
  %s81 = scalar_lea.vmem %s1, 34
  %82 = vst.msk [vmem:[%s81] ss:$36 sm:$0x3] %vm80, %v79
  %s83 = scalar_lea.vmem %s1, 4294967231
  %84 = vst.msk [vmem:[%s83] ss:$36 sm:$0xc] %vm80, %v79
  %s85 = scalar_lea.vmem %s1, 4294967168
  %86 = vst.msk [vmem:[%s85] ss:$36 sm:$0x30] %vm80, %v79
  %s87 = scalar_lea.vmem %s1, 4294967105
  %88 = vst.msk [vmem:[%s87] ss:$36 sm:$0xc0] %vm80, %v79
  %v89 = vld.sshfl [vmem:[%s0] sm:$0xff pattern:$0x62514073]
  %90 = vrot.lane.b32.xlu0 %v89, 120
  %v91 = vpop.permute.xlu0 %90
  %vm92 = vcmask 7168
  %s93 = scalar_lea.vmem %s1, 35
  %94 = vst.msk [vmem:[%s93] ss:$36 sm:$0x3] %vm92, %v91
  %s95 = scalar_lea.vmem %s1, 4294967232
  %96 = vst.msk [vmem:[%s95] ss:$36 sm:$0xc] %vm92, %v91
  %s97 = scalar_lea.vmem %s1, 4294967169
  %98 = vst.msk [vmem:[%s97] ss:$36 sm:$0x30] %vm92, %v91
  %s99 = scalar_lea.vmem %s1, 4294967106
  %100 = vst.msk [vmem:[%s99] ss:$36 sm:$0xc0] %vm92, %v91

// kernel: discriminator_forward.9
$region0: #{discriminator_forward.9}
  #allocation0 [shape = 'u32[]', space=smem, size = 0x4, offset = 0x4, fixed_abs, tag = 'smem constant byte address 0x4 - core index']
  #allocation1 [shape = 'u32[144,128]{1,0:T(1,128)}', space=vmem, size = 0x12000, scoped, tag = 'internal scratch']
  %s0 = inlined_call_operand.vmem [shape: f32[128,16], index: 0, kind: input, shape index: {}]
  %s1 = inlined_call_operand.vmem [shape: f32[1,16], index: 1, kind: input, shape index: {}]
  %s2 = inlined_call_operand.vmem [shape: f32[1,16], index: 2, kind: input, shape index: {}]
  %s3 = inlined_call_operand.vmem [shape: bf16[128,16], index: 3, kind: output, shape index: {}]
  %s4 = sld [smem:[#allocation0]]
  $region45: #{discriminator_forward.9} parent=0
    _
  %s6 = ssub.s32 1, %s4
  %s7 = scalar_select 0, %s6, %s4
  loop: start=0, step=1, limit=4
  $region2: #{discriminator_forward.9} parent=0 // loop_pre_header
    _
  $region3: #{discriminator_forward.9} parent=0 // loop_header
    %s9 = sphi 0, %s13
    %p10 = scmp.ge.s32.totalorder %s9, 4
    %s19 = sphi 0, %s21
    %s22 = sphi 0, %s19
    %s23 = sphi 0, %s22
    %s39 = sphi 0, %s23
    %s43 = sphi 0, %s43
    %s45 = sphi 0, %s43
    %s46 = sphi 0, %s45
    %s60 = sphi 0, %s46
    %s64 = sphi 0, %s64
    %s66 = sphi 0, %s64
    %s67 = sphi 0, %s66
    %s81 = sphi 0, %s67
    %s87 = sphi 0, %s89
    %s90 = sphi 0, %s87
    %s91 = sphi 0, %s90
    %s107 = sphi 0, %s91
  $region4: #{discriminator_forward.9} parent=0 // loop_header_branch
    %12 = sbr.rel (%p10) target = $region8
  $region5: #{discriminator_forward.9} parent=0 // loop_body
    %s14 = ssub.s32 %s9, 1
    %s15 = ssub.s32 %s9, 2
    %s16 = sadd.s32 %s9, 1
    %s17 = ssub.s32 %s9, %s16
    %p18 = scmp.eq.s32.totalorder %s17, 0
    %s20 = sadd.s32 %s19, 1
    %s21 = scalar_select %p18, %s19, %s20
    %p24 = pneg %p18
    %p25 = scmp.eq.s32.totalorder %s9, 1
    %p26 = por %p24, %p25
    %p27 = scmp.ne.s32.totalorder %s19, %s22
    %p28 = scmp.eq.s32.totalorder %s9, 0
    %p29 = por %p27, %p28
    %p30 = scmp.ne.s32.totalorder %s19, %s22
    %p31 = scmp.eq.s32.totalorder %s14, 1
    %p32 = por %p30, %p31
    %p33 = scmp.ne.s32.totalorder %s22, %s23
    %p34 = scmp.eq.s32.totalorder %s14, 0
    %p35 = por %p33, %p34
    %p36 = scmp.ne.s32.totalorder %s22, %s23
    %p37 = scmp.eq.s32.totalorder %s15, 1
    %p38 = por %p36, %p37
    %p40 = scmp.ne.s32.totalorder %s23, %s39
    %p41 = scmp.eq.s32.totalorder %s15, 0
    %p42 = por %p40, %p41
    %s44 = sadd.s32 %s43, 1
    %p47 = scmp.eq.s32.totalorder %s9, 1
    %p48 = scmp.ne.s32.totalorder %s43, %s45
    %p49 = scmp.eq.s32.totalorder %s9, 0
    %p50 = por %p48, %p49
    %p51 = scmp.ne.s32.totalorder %s43, %s45
    %p52 = scmp.eq.s32.totalorder %s14, 1
    %p53 = por %p51, %p52
    %p54 = scmp.ne.s32.totalorder %s45, %s46
    %p55 = scmp.eq.s32.totalorder %s14, 0
    %p56 = por %p54, %p55
    %p57 = scmp.ne.s32.totalorder %s45, %s46
    %p58 = scmp.eq.s32.totalorder %s15, 1
    %p59 = por %p57, %p58
    %p61 = scmp.ne.s32.totalorder %s46, %s60
    %p62 = scmp.eq.s32.totalorder %s15, 0
    %p63 = por %p61, %p62
    %s65 = sadd.s32 %s64, 1
    %p68 = scmp.eq.s32.totalorder %s9, 1
    %p69 = scmp.ne.s32.totalorder %s64, %s66
    %p70 = scmp.eq.s32.totalorder %s9, 0
    %p71 = por %p69, %p70
    %p72 = scmp.ne.s32.totalorder %s64, %s66
    %p73 = scmp.eq.s32.totalorder %s14, 1
    %p74 = por %p72, %p73
    %p75 = scmp.ne.s32.totalorder %s66, %s67
    %p76 = scmp.eq.s32.totalorder %s14, 0
    %p77 = por %p75, %p76
    %p78 = scmp.ne.s32.totalorder %s66, %s67
    %p79 = scmp.eq.s32.totalorder %s15, 1
    %p80 = por %p78, %p79
    %p82 = scmp.ne.s32.totalorder %s67, %s81
    %p83 = scmp.eq.s32.totalorder %s15, 0
    %p84 = por %p82, %p83
    %s85 = ssub.s32 %s9, %s16
    %p86 = scmp.eq.s32.totalorder %s85, 0
    %s88 = sadd.s32 %s87, 1
    %s89 = scalar_select %p86, %s87, %s88
    %p92 = pneg %p86
    %p93 = scmp.eq.s32.totalorder %s9, 1
    %p94 = por %p92, %p93
    %p95 = scmp.ne.s32.totalorder %s87, %s90
    %p96 = scmp.eq.s32.totalorder %s9, 0
    %p97 = por %p95, %p96
    %p98 = scmp.ne.s32.totalorder %s87, %s90
    %p99 = scmp.eq.s32.totalorder %s14, 1
    %p100 = por %p98, %p99
    %p101 = scmp.ne.s32.totalorder %s90, %s91
    %p102 = scmp.eq.s32.totalorder %s14, 0
    %p103 = por %p101, %p102
    %p104 = scmp.ne.s32.totalorder %s90, %s91
    %p105 = scmp.eq.s32.totalorder %s15, 1
    %p106 = por %p104, %p105
    %p108 = scmp.ne.s32.totalorder %s91, %s107
    %p109 = scmp.eq.s32.totalorder %s15, 0
    %p110 = por %p108, %p109
    %p111 = scmp.le.s32.totalorder 1, %s9
    %p112 = scmp.lt.s32.totalorder %s9, 3
    %p113 = pnand %p111, %p112
    %p114 = pneg %p113
    // Predicated region
    $region9: #{discriminator_forward.9} parent=5 // pred_check
      _
    $region10: #{discriminator_forward.9} parent=5 // pred_check_branch
      %116 = sbr.rel (%p113) target = $region12
    $region11: #{discriminator_forward.9} parent=5 // pred_region
      %s117 = ssub.s32 %s9, 1
      // Predicated region
      $region13: #{discriminator_forward.9} parent=11 // pred_check
        %p118 = pneg %p56
      $region14: #{discriminator_forward.9} parent=11 // pred_check_branch
        %120 = sbr.rel (%p118) target = $region16
      $region15: #{discriminator_forward.9} parent=11 // pred_region
        _
      $region16: #{discriminator_forward.9} parent=11 // pred_fallthru
        _
      // Predicated region
      $region17: #{discriminator_forward.9} parent=11 // pred_check
        %p121 = pneg %p77
      $region18: #{discriminator_forward.9} parent=11 // pred_check_branch
        %123 = sbr.rel (%p121) target = $region20
      $region19: #{discriminator_forward.9} parent=11 // pred_region
        _
      $region20: #{discriminator_forward.9} parent=11 // pred_fallthru
        _
    $region12: #{discriminator_forward.9} parent=5 // pred_fallthru
      _
    %p124 = scmp.lt.s32.totalorder %s9, 2
    // Predicated region
    $region21: #{discriminator_forward.9} parent=5 // pred_check
      %p125 = pneg %p124
    $region22: #{discriminator_forward.9} parent=5 // pred_check_branch
      %127 = sbr.rel (%p125) target = $region24
    $region23: #{discriminator_forward.9} parent=5 // pred_region
      // Predicated region
      $region25: #{discriminator_forward.9} parent=23 // pred_check
        %p128 = pneg %p29
      $region26: #{discriminator_forward.9} parent=23 // pred_check_branch
        %130 = sbr.rel (%p128) target = $region28
      $region27: #{discriminator_forward.9} parent=23 // pred_region
        %s131 = smul.u32 8, %s9
        %p132 = scmp.lt.s32.totalorder %s131, 15
        %s133 = scalar_select %p132, %s131, 15
        %s134 = smul.addr %s133, 8
        %s135 = scalar_lea.vmem %s0, %s134
        %s136 = smul.u32 8, %s9
      $region28: #{discriminator_forward.9} parent=23 // pred_fallthru
        _
    $region24: #{discriminator_forward.9} parent=5 // pred_fallthru
      _
    %p137 = scmp.le.s32.totalorder 1, %s9
    %p138 = scmp.lt.s32.totalorder %s9, 3
    %p139 = pnand %p137, %p138
    %p140 = pneg %p139
    // Predicated region
    $region29: #{discriminator_forward.9} parent=5 // pred_check
      _
    $region30: #{discriminator_forward.9} parent=5 // pred_check_branch
      %142 = sbr.rel (%p139) target = $region32
    $region31: #{discriminator_forward.9} parent=5 // pred_region
      %s143 = ssub.s32 %s9, 1
      %s144 = smul.u32 8, %s14
      %p145 = scmp.lt.s32.totalorder %s144, 15
      %s146 = scalar_select %p145, %s144, 15
      %s147 = smul.addr %s146, 8
      %s148 = scalar_lea.vmem %s0, %s147
      %p149 = pneg %p35
      %p150 = pneg %p32
      %p151 = pneg %p56
      %p152 = pneg %p53
      %p153 = pneg %p77
      %p154 = pneg %p74
      %p155 = pneg %p103
      %p156 = pneg %p100
      %s157 = smul.u32 8, %s14
      %p158 = scmp.lt.s32.totalorder %s157, 15
      %s159 = scalar_select %p158, %s157, 15
      %s160 = smul.addr %s159, 4
      %s161 = scalar_lea.vmem %s3, %s160
      %s162 = smul.u32 8, %s14
      %p163 = scmp.lt.s32.totalorder %s162, 15
      %s164 = scalar_select %p163, %s162, 15
      %s165 = smul.addr %s164, 8
      %s166 = scalar_lea.vmem %s0, %s165
      %s167 = smul.u32 8, %s14
      %s168 = smul.u32 8, %s14
      %p169 = scmp.lt.s32.totalorder %s168, 15
      %s170 = scalar_select %p169, %s168, 15
      %s171 = smul.addr %s170, 4
      %s172 = scalar_lea.vmem %s3, %s171
      %s173 = smul.u32 8, %s14
      %v174 = vld [vmem:[%s166] sm:$0xff]
      %v175 = vld [vmem:[%s166 + $0x8] sm:$0xff]
      %v176 = vld [vmem:[%s166 + $0x10] sm:$0xff]
      %v177 = vld [vmem:[%s166 + $0x18] sm:$0xff]
      %v178 = vld [vmem:[%s166 + $0x20] sm:$0xff]
      %v179 = vld [vmem:[%s166 + $0x28] sm:$0xff]
      %v180 = vld [vmem:[%s166 + $0x30] sm:$0xff]
      %v181 = vld [vmem:[%s166 + $0x38] sm:$0xff]
      %v182 = vld [vmem:[%s1] sm:$0x1]
      %v184 = vlaneseq
      %v185 = vshrl.u32 %v184, 7
      %v186 = vsub.s32 0, %v185
      %v187 = vrot.slane %v182, %v186
      %v189 = vmul.f32 %v174, %v187
      %v190 = vmul.f32 %v175, %v187
      %v191 = vmul.f32 %v176, %v187
      %v192 = vmul.f32 %v177, %v187
      %v193 = vmul.f32 %v178, %v187
      %v194 = vmul.f32 %v179, %v187
      %v195 = vmul.f32 %v180, %v187
      %v196 = vmul.f32 %v181, %v187
      %v197 = vld [vmem:[%s2] sm:$0x1]
      %v199 = vlaneseq
      %v200 = vshrl.u32 %v199, 7
      %v201 = vsub.s32 0, %v200
      %v202 = vrot.slane %v197, %v201
      %v204 = vadd.f32 %v189, %v202
      %v205 = vadd.f32 %v190, %v202
      %v206 = vadd.f32 %v191, %v202
      %v207 = vadd.f32 %v192, %v202
      %v208 = vadd.f32 %v193, %v202
      %v209 = vadd.f32 %v194, %v202
      %v210 = vadd.f32 %v195, %v202
      %v211 = vadd.f32 %v196, %v202
      %vm212 = vcmp.ge.f32.partialorder %v204, 0.0
      %vm213 = vcmp.ge.f32.partialorder %v205, 0.0
      %vm214 = vcmp.ge.f32.partialorder %v206, 0.0
      %vm215 = vcmp.ge.f32.partialorder %v207, 0.0
      %vm216 = vcmp.ge.f32.partialorder %v208, 0.0
      %vm217 = vcmp.ge.f32.partialorder %v209, 0.0
      %vm218 = vcmp.ge.f32.partialorder %v210, 0.0
      %vm219 = vcmp.ge.f32.partialorder %v211, 0.0
      %v220 = vmul.f32 %v204, 0.2
      %v221 = vmul.f32 %v205, 0.2
      %v222 = vmul.f32 %v206, 0.2
      %v223 = vmul.f32 %v207, 0.2
      %v224 = vmul.f32 %v208, 0.2
      %v225 = vmul.f32 %v209, 0.2
      %v226 = vmul.f32 %v210, 0.2
      %v227 = vmul.f32 %v211, 0.2
      %v228 = vsel %vm212, %v204, %v220
      %v229 = vsel %vm213, %v205, %v221
      %v230 = vsel %vm214, %v206, %v222
      %v231 = vsel %vm215, %v207, %v223
      %v232 = vsel %vm216, %v208, %v224
      %v233 = vsel %vm217, %v209, %v225
      %v234 = vsel %vm218, %v210, %v226
      %v235 = vsel %vm219, %v211, %v227
      %v236 = vpack.c.bf16 %v229, %v228
      %v237 = vpack.c.bf16 %v231, %v230
      %v238 = vpack.c.bf16 %v233, %v232
      %v239 = vpack.c.bf16 %v235, %v234
      %v244 = vunpack.c.l.b16 %v236
      %v245 = vunpack.c.h.b16 %v236
      %v246 = vunpack.c.l.b16 %v237
      %v247 = vunpack.c.h.b16 %v237
      %v248 = vunpack.c.l.b16 %v238
      %v249 = vunpack.c.h.b16 %v238
      %v250 = vunpack.c.l.b16 %v239
      %v251 = vunpack.c.h.b16 %v239
      %v252 = vpack.c.b16 %v244, %v244
      %v253 = vpack.c.b16 %v245, %v245
      %v254 = vpack.c.b16 %v246, %v246
      %v255 = vpack.c.b16 %v247, %v247
      %v256 = vpack.c.b16 %v248, %v248
      %v257 = vpack.c.b16 %v249, %v249
      %v258 = vpack.c.b16 %v250, %v250
      %v259 = vpack.c.b16 %v251, %v251
      %vm268 = vcmask 125952
      %269 = vst.msk [vmem:[%s172] sm:$0xf] %vm268, %v252
      %270 = vst.msk [vmem:[%s172 + $0x4] sm:$0xf] %vm268, %v253
      %271 = vst.msk [vmem:[%s172 + $0x8] sm:$0xf] %vm268, %v254
      %272 = vst.msk [vmem:[%s172 + $0xc] sm:$0xf] %vm268, %v255
      %273 = vst.msk [vmem:[%s172 + $0x10] sm:$0xf] %vm268, %v256
      %274 = vst.msk [vmem:[%s172 + $0x14] sm:$0xf] %vm268, %v257
      %275 = vst.msk [vmem:[%s172 + $0x18] sm:$0xf] %vm268, %v258
      %276 = vst.msk [vmem:[%s172 + $0x1c] sm:$0xf] %vm268, %v259
      %s277 = smul.u32 8, %s14
      %p278 = scmp.lt.s32.totalorder %s277, 15
      %s279 = scalar_select %p278, %s277, 15
      %s280 = smul.addr %s279, 4
      %s281 = scalar_lea.vmem %s3, %s280
      // Predicated region
      $region33: #{discriminator_forward.9} parent=31 // pred_check
        %p282 = pneg %p100
      $region34: #{discriminator_forward.9} parent=31 // pred_check_branch
        %284 = sbr.rel (%p282) target = $region36
      $region35: #{discriminator_forward.9} parent=31 // pred_region
        %s285 = smul.u32 8, %s14
      $region36: #{discriminator_forward.9} parent=31 // pred_fallthru
        _
    $region32: #{discriminator_forward.9} parent=5 // pred_fallthru
      _
    %p286 = scmp.le.s32.totalorder 2, %s9
    // Predicated region
    $region37: #{discriminator_forward.9} parent=5 // pred_check
      %p287 = pneg %p286
    $region38: #{discriminator_forward.9} parent=5 // pred_check_branch
      %289 = sbr.rel (%p287) target = $region40
    $region39: #{discriminator_forward.9} parent=5 // pred_region
      %s290 = ssub.s32 %s9, 2
      // Predicated region
      $region41: #{discriminator_forward.9} parent=39 // pred_check
        %p291 = pneg %p106
      $region42: #{discriminator_forward.9} parent=39 // pred_check_branch
        %293 = sbr.rel (%p291) target = $region44
      $region43: #{discriminator_forward.9} parent=39 // pred_region
        %s294 = smul.u32 8, %s15
        %p295 = scmp.lt.s32.totalorder %s294, 15
        %s296 = scalar_select %p295, %s294, 15
        %s297 = smul.addr %s296, 4
        %s298 = scalar_lea.vmem %s3, %s297
      $region44: #{discriminator_forward.9} parent=39 // pred_fallthru
        _
    $region40: #{discriminator_forward.9} parent=5 // pred_fallthru
      _
  $region6: #{discriminator_forward.9} parent=0 // loop_footer
    %s13 = sadd.s32 1, %s9
  $region7: #{discriminator_forward.9} parent=0 // loop_footer_branch
    %8 = sbr.rel target = $region3
  $region8: #{discriminator_forward.9} parent=0 // loop_exit
    _

// kernel: discriminator_forward.8
$region0: #{discriminator_forward.8}
  #allocation0 [shape = 'u32[]', space=smem, size = 0x4, offset = 0x4, fixed_abs, tag = 'smem constant byte address 0x4 - core index']
  #allocation1 [shape = 'u32[144,128]{1,0:T(1,128)}', space=vmem, size = 0x12000, scoped, tag = 'internal scratch']
  %s0 = inlined_call_operand.vmem [shape: bf16[2,333,6], index: 0, kind: input, shape index: {}]
  %s1 = inlined_call_operand.vmem [shape: bf16[16,6,16], index: 1, kind: input, shape index: {}]
  %s2 = inlined_call_operand.vmem [shape: f32[72,1], index: 2, kind: input, shape index: {}]
  %s3 = inlined_call_operand.vmem [shape: f32[2,8,8,16], index: 3, kind: output, shape index: {0}]
  %s4 = inlined_call_operand.vmem [shape: f32[2,1,16], index: 4, kind: output, shape index: {1}]
  %s5 = inlined_call_operand.vmem [shape: f32[2,1,16], index: 5, kind: output, shape index: {2}]
  %6 = xla_tuple %s3, %s4, %s5
  %s7 = sld [smem:[#allocation0]]
  $region61: #{discriminator_forward.8} parent=0
    _
  %s9 = ssub.s32 1, %s7
  %s10 = scalar_select 0, %s9, %s7
  loop: start=0, step=1, limit=4
  $region2: #{discriminator_forward.8} parent=0 // loop_pre_header
    _
  $region3: #{discriminator_forward.8} parent=0 // loop_header
    %s12 = sphi 0, %s16
    %p13 = scmp.ge.s32.totalorder %s12, 4
    %s22 = sphi 0, %s24
    %s25 = sphi 0, %s22
    %s26 = sphi 0, %s25
    %s42 = sphi 0, %s26
    %s46 = sphi 0, %s46
    %s48 = sphi 0, %s46
    %s49 = sphi 0, %s48
    %s63 = sphi 0, %s49
    %s67 = sphi 0, %s67
    %s69 = sphi 0, %s67
    %s70 = sphi 0, %s69
    %s84 = sphi 0, %s70
    %s90 = sphi 0, %s92
    %s93 = sphi 0, %s90
    %s94 = sphi 0, %s93
    %s110 = sphi 0, %s94
    %s116 = sphi 0, %s118
    %s119 = sphi 0, %s116
    %s120 = sphi 0, %s119
    %s136 = sphi 0, %s120
    %s142 = sphi 0, %s144
    %s145 = sphi 0, %s142
    %s146 = sphi 0, %s145
    %s162 = sphi 0, %s146
  $region4: #{discriminator_forward.8} parent=0 // loop_header_branch
    %15 = sbr.rel (%p13) target = $region8
  $region5: #{discriminator_forward.8} parent=0 // loop_body
    %s17 = ssub.s32 %s12, 1
    %s18 = ssub.s32 %s12, 2
    %s19 = sadd.s32 %s12, 1
    %s20 = ssub.s32 %s12, %s19
    %p21 = scmp.eq.s32.totalorder %s20, 0
    %s23 = sadd.s32 %s22, 1
    %s24 = scalar_select %p21, %s22, %s23
    %p27 = pneg %p21
    %p28 = scmp.eq.s32.totalorder %s12, 1
    %p29 = por %p27, %p28
    %p30 = scmp.ne.s32.totalorder %s22, %s25
    %p31 = scmp.eq.s32.totalorder %s12, 0
    %p32 = por %p30, %p31
    %p33 = scmp.ne.s32.totalorder %s22, %s25
    %p34 = scmp.eq.s32.totalorder %s17, 1
    %p35 = por %p33, %p34
    %p36 = scmp.ne.s32.totalorder %s25, %s26
    %p37 = scmp.eq.s32.totalorder %s17, 0
    %p38 = por %p36, %p37
    %p39 = scmp.ne.s32.totalorder %s25, %s26
    %p40 = scmp.eq.s32.totalorder %s18, 1
    %p41 = por %p39, %p40
    %p43 = scmp.ne.s32.totalorder %s26, %s42
    %p44 = scmp.eq.s32.totalorder %s18, 0
    %p45 = por %p43, %p44
    %s47 = sadd.s32 %s46, 1
    %p50 = scmp.eq.s32.totalorder %s12, 1
    %p51 = scmp.ne.s32.totalorder %s46, %s48
    %p52 = scmp.eq.s32.totalorder %s12, 0
    %p53 = por %p51, %p52
    %p54 = scmp.ne.s32.totalorder %s46, %s48
    %p55 = scmp.eq.s32.totalorder %s17, 1
    %p56 = por %p54, %p55
    %p57 = scmp.ne.s32.totalorder %s48, %s49
    %p58 = scmp.eq.s32.totalorder %s17, 0
    %p59 = por %p57, %p58
    %p60 = scmp.ne.s32.totalorder %s48, %s49
    %p61 = scmp.eq.s32.totalorder %s18, 1
    %p62 = por %p60, %p61
    %p64 = scmp.ne.s32.totalorder %s49, %s63
    %p65 = scmp.eq.s32.totalorder %s18, 0
    %p66 = por %p64, %p65
    %s68 = sadd.s32 %s67, 1
    %p71 = scmp.eq.s32.totalorder %s12, 1
    %p72 = scmp.ne.s32.totalorder %s67, %s69
    %p73 = scmp.eq.s32.totalorder %s12, 0
    %p74 = por %p72, %p73
    %p75 = scmp.ne.s32.totalorder %s67, %s69
    %p76 = scmp.eq.s32.totalorder %s17, 1
    %p77 = por %p75, %p76
    %p78 = scmp.ne.s32.totalorder %s69, %s70
    %p79 = scmp.eq.s32.totalorder %s17, 0
    %p80 = por %p78, %p79
    %p81 = scmp.ne.s32.totalorder %s69, %s70
    %p82 = scmp.eq.s32.totalorder %s18, 1
    %p83 = por %p81, %p82
    %p85 = scmp.ne.s32.totalorder %s70, %s84
    %p86 = scmp.eq.s32.totalorder %s18, 0
    %p87 = por %p85, %p86
    %s88 = ssub.s32 %s12, %s19
    %p89 = scmp.eq.s32.totalorder %s88, 0
    %s91 = sadd.s32 %s90, 1
    %s92 = scalar_select %p89, %s90, %s91
    %p95 = pneg %p89
    %p96 = scmp.eq.s32.totalorder %s12, 1
    %p97 = por %p95, %p96
    %p98 = scmp.ne.s32.totalorder %s90, %s93
    %p99 = scmp.eq.s32.totalorder %s12, 0
    %p100 = por %p98, %p99
    %p101 = scmp.ne.s32.totalorder %s90, %s93
    %p102 = scmp.eq.s32.totalorder %s17, 1
    %p103 = por %p101, %p102
    %p104 = scmp.ne.s32.totalorder %s93, %s94
    %p105 = scmp.eq.s32.totalorder %s17, 0
    %p106 = por %p104, %p105
    %p107 = scmp.ne.s32.totalorder %s93, %s94
    %p108 = scmp.eq.s32.totalorder %s18, 1
    %p109 = por %p107, %p108
    %p111 = scmp.ne.s32.totalorder %s94, %s110
    %p112 = scmp.eq.s32.totalorder %s18, 0
    %p113 = por %p111, %p112
    %s114 = ssub.s32 %s12, %s19
    %p115 = scmp.eq.s32.totalorder %s114, 0
    %s117 = sadd.s32 %s116, 1
    %s118 = scalar_select %p115, %s116, %s117
    %p121 = pneg %p115
    %p122 = scmp.eq.s32.totalorder %s12, 1
    %p123 = por %p121, %p122
    %p124 = scmp.ne.s32.totalorder %s116, %s119
    %p125 = scmp.eq.s32.totalorder %s12, 0
    %p126 = por %p124, %p125
    %p127 = scmp.ne.s32.totalorder %s116, %s119
    %p128 = scmp.eq.s32.totalorder %s17, 1
    %p129 = por %p127, %p128
    %p130 = scmp.ne.s32.totalorder %s119, %s120
    %p131 = scmp.eq.s32.totalorder %s17, 0
    %p132 = por %p130, %p131
    %p133 = scmp.ne.s32.totalorder %s119, %s120
    %p134 = scmp.eq.s32.totalorder %s18, 1
    %p135 = por %p133, %p134
    %p137 = scmp.ne.s32.totalorder %s120, %s136
    %p138 = scmp.eq.s32.totalorder %s18, 0
    %p139 = por %p137, %p138
    %s140 = ssub.s32 %s12, %s19
    %p141 = scmp.eq.s32.totalorder %s140, 0
    %s143 = sadd.s32 %s142, 1
    %s144 = scalar_select %p141, %s142, %s143
    %p147 = pneg %p141
    %p148 = scmp.eq.s32.totalorder %s12, 1
    %p149 = por %p147, %p148
    %p150 = scmp.ne.s32.totalorder %s142, %s145
    %p151 = scmp.eq.s32.totalorder %s12, 0
    %p152 = por %p150, %p151
    %p153 = scmp.ne.s32.totalorder %s142, %s145
    %p154 = scmp.eq.s32.totalorder %s17, 1
    %p155 = por %p153, %p154
    %p156 = scmp.ne.s32.totalorder %s145, %s146
    %p157 = scmp.eq.s32.totalorder %s17, 0
    %p158 = por %p156, %p157
    %p159 = scmp.ne.s32.totalorder %s145, %s146
    %p160 = scmp.eq.s32.totalorder %s18, 1
    %p161 = por %p159, %p160
    %p163 = scmp.ne.s32.totalorder %s146, %s162
    %p164 = scmp.eq.s32.totalorder %s18, 0
    %p165 = por %p163, %p164
    %p166 = scmp.le.s32.totalorder 1, %s12
    %p167 = scmp.lt.s32.totalorder %s12, 3
    %p168 = pnand %p166, %p167
    %p169 = pneg %p168
    // Predicated region
    $region9: #{discriminator_forward.8} parent=5 // pred_check
      _
    $region10: #{discriminator_forward.8} parent=5 // pred_check_branch
      %171 = sbr.rel (%p168) target = $region12
    $region11: #{discriminator_forward.8} parent=5 // pred_region
      %s172 = ssub.s32 %s12, 1
      // Predicated region
      $region13: #{discriminator_forward.8} parent=11 // pred_check
        %p173 = pneg %p59
      $region14: #{discriminator_forward.8} parent=11 // pred_check_branch
        %175 = sbr.rel (%p173) target = $region16
      $region15: #{discriminator_forward.8} parent=11 // pred_region
        _
      $region16: #{discriminator_forward.8} parent=11 // pred_fallthru
        _
      // Predicated region
      $region17: #{discriminator_forward.8} parent=11 // pred_check
        %p176 = pneg %p80
      $region18: #{discriminator_forward.8} parent=11 // pred_check_branch
        %178 = sbr.rel (%p176) target = $region20
      $region19: #{discriminator_forward.8} parent=11 // pred_region
        _
      $region20: #{discriminator_forward.8} parent=11 // pred_fallthru
        _
    $region12: #{discriminator_forward.8} parent=5 // pred_fallthru
      _
    %p179 = scmp.lt.s32.totalorder %s12, 2
    // Predicated region
    $region21: #{discriminator_forward.8} parent=5 // pred_check
      %p180 = pneg %p179
    $region22: #{discriminator_forward.8} parent=5 // pred_check_branch
      %182 = sbr.rel (%p180) target = $region24
    $region23: #{discriminator_forward.8} parent=5 // pred_region
      // Predicated region
      $region25: #{discriminator_forward.8} parent=23 // pred_check
        %p183 = pneg %p32
      $region26: #{discriminator_forward.8} parent=23 // pred_check_branch
        %185 = sbr.rel (%p183) target = $region28
      $region27: #{discriminator_forward.8} parent=23 // pred_region
        %p186 = scmp.lt.s32.totalorder %s12, 1
        %s187 = scalar_select %p186, %s12, 1
        %s188 = smul.addr %s187, 42
        %s189 = smul.addr %s188, 4
        %s190 = scalar_lea.vmem %s0, %s189
      $region28: #{discriminator_forward.8} parent=23 // pred_fallthru
        _
    $region24: #{discriminator_forward.8} parent=5 // pred_fallthru
      _
    %p191 = scmp.le.s32.totalorder 1, %s12
    %p192 = scmp.lt.s32.totalorder %s12, 3
    %p193 = pnand %p191, %p192
    %p194 = pneg %p193
    // Predicated region
    $region29: #{discriminator_forward.8} parent=5 // pred_check
      _
    $region30: #{discriminator_forward.8} parent=5 // pred_check_branch
      %196 = sbr.rel (%p193) target = $region32
    $region31: #{discriminator_forward.8} parent=5 // pred_region
      %s197 = ssub.s32 %s12, 1
      %p198 = scmp.lt.s32.totalorder %s17, 1
      %s199 = scalar_select %p198, %s17, 1
      %s200 = smul.addr %s199, 42
      %s201 = smul.addr %s200, 4
      %s202 = scalar_lea.vmem %s0, %s201
      %p203 = pneg %p38
      %p204 = pneg %p35
      %p205 = pneg %p59
      %p206 = pneg %p56
      %p207 = pneg %p80
      %p208 = pneg %p77
      %p209 = pneg %p106
      %p210 = pneg %p103
      %p211 = scmp.lt.s32.totalorder %s17, 1
      %s212 = scalar_select %p211, %s17, 1
      %s213 = smul.addr %s212, 8
      %s214 = smul.addr %s213, 8
      %s215 = scalar_lea.vmem %s3, %s214
      %p216 = pneg %p132
      %p217 = pneg %p129
      %p218 = scmp.lt.s32.totalorder %s17, 1
      %s219 = scalar_select %p218, %s17, 1
      %s220 = scalar_lea.vmem %s4, %s219
      %p221 = pneg %p158
      %p222 = pneg %p155
      %p223 = scmp.lt.s32.totalorder %s17, 1
      %s224 = scalar_select %p223, %s17, 1
      %s225 = scalar_lea.vmem %s5, %s224
      %p226 = scmp.lt.s32.totalorder %s17, 1
      %s227 = scalar_select %p226, %s17, 1
      %s228 = smul.addr %s227, 42
      %s229 = smul.addr %s228, 4
      %s230 = scalar_lea.vmem %s0, %s229
      %p231 = scmp.lt.s32.totalorder %s17, 1
      %s232 = scalar_select %p231, %s17, 1
      %s233 = smul.addr %s232, 8
      %s234 = smul.addr %s233, 8
      %s235 = scalar_lea.vmem %s3, %s234
      %p236 = scmp.lt.s32.totalorder %s17, 1
      %s237 = scalar_select %p236, %s17, 1
      %s238 = scalar_lea.vmem %s4, %s237
      %p239 = scmp.lt.s32.totalorder %s17, 1
      %s240 = scalar_select %p239, %s17, 1
      %s241 = scalar_lea.vmem %s5, %s240
      %v243 = vld [vmem:[%s230] sm:$0xf]
      %v244 = vld [vmem:[%s230 + $0x4] sm:$0xf]
      %v245 = vld [vmem:[%s230 + $0x8] sm:$0xf]
      %v246 = vld [vmem:[%s230 + $0xc] sm:$0xf]
      %v247 = vld [vmem:[%s230 + $0x10] sm:$0xf]
      %v248 = vld [vmem:[%s230 + $0x14] sm:$0xf]
      %v249 = vld [vmem:[%s230 + $0x18] sm:$0xf]
      %v250 = vld [vmem:[%s230 + $0x1c] sm:$0xf]
      %v251 = vld [vmem:[%s230 + $0x20] sm:$0xf]
      %v252 = vld [vmem:[%s1] sm:$0x7]
      %v253 = vld [vmem:[%s230 + $0x28] sm:$0xf]
      %v254 = vld [vmem:[%s230 + $0x2c] sm:$0xf]
      %v255 = vld [vmem:[%s230 + $0x30] sm:$0xf]
      %v256 = vld [vmem:[%s230 + $0x34] sm:$0xf]
      %v257 = vld [vmem:[%s230 + $0x38] sm:$0xf]
      %v258 = vld [vmem:[%s230 + $0x3c] sm:$0xf]
      %v259 = vld [vmem:[%s230 + $0x40] sm:$0xf]
      %v260 = vld [vmem:[%s230 + $0x44] sm:$0xf]
      %v261 = vld [vmem:[%s230 + $0x48] sm:$0xf]
      %v262 = vld [vmem:[%s230 + $0x4c] sm:$0x1]
      %s263 = scalar_lea.vmem %s1, 4
      %v264 = vld [vmem:[%s263] sm:$0x7]
      %v275 = vunpack.c.l.b16 %v253
      %v276 = vunpack.c.l.b16 %v254
      %v277 = vunpack.c.l.b16 %v255
      %v278 = vunpack.c.l.b16 %v256
      %v279 = vunpack.c.l.b16 %v257
      %v280 = vunpack.c.l.b16 %v258
      %v281 = vunpack.c.l.b16 %v259
      %v282 = vunpack.c.l.b16 %v260
      %v283 = vunpack.c.l.b16 %v261
      %v284 = vunpack.c.l.b16 %v262
      %v285 = vpack.c.b16 %v276, %v275
      %v286 = vpack.c.b16 %v278, %v277
      %v287 = vpack.c.b16 %v280, %v279
      %v288 = vpack.c.b16 %v282, %v281
      %v289 = vpack.c.b16 %v284, %v283
      %vm290 = vsmask.f32 7424
      %v292 = vshrl.u32 %v285, 16
      %v294 = vshll.u32 %v285, 16
      %v296 = vrot.slane %v294, 1
      %v297 = vor.u32 %v292, %v296
      %v299 = vshll.u32 %v286, 16
      %v301 = vrot.slane %v299, 1
      %v302 = vsel %vm290, %v297, %v301
      %v303 = vshrl.u32 %v286, 16
      %v305 = vor.u32 %v303, %v301
      %v307 = vshll.u32 %v287, 16
      %v309 = vrot.slane %v307, 1
      %v310 = vsel %vm290, %v305, %v309
      %v311 = vshrl.u32 %v287, 16
      %v313 = vor.u32 %v311, %v309
      %v315 = vshll.u32 %v288, 16
      %v317 = vrot.slane %v315, 1
      %v318 = vsel %vm290, %v313, %v317
      %v319 = vshrl.u32 %v288, 16
      %v321 = vor.u32 %v319, %v317
      %v323 = vshll.u32 %v289, 16
      %v325 = vrot.slane %v323, 1
      %v326 = vsel %vm290, %v321, %v325
      %v327 = vshrl.u32 %v289, 16
      %v329 = vor.u32 %v327, %v325
      %vm330 = vcmask 48128
      %v332 = vsel %vm330, %v302, 0
      %v335 = vsel %vm330, %v310, 0
      %v338 = vsel %vm330, %v318, 0
      %v341 = vsel %vm330, %v326, 0
      %v344 = vsel %vm330, %v329, 0
      %vm346 = vcmask 1042432
      %v348 = vsel %vm346, %v264, 0
      %350 = vmatprep.subr.bf16.mxu0 0
      %351 = vmatpush1.bf16.msra.mxu0 %v348
      %352 = vmatprep.subr.bf16.mxu0 0
      %353 = vmatpush1.bf16.msra.mxu0 0
      %354 = vmatprep.subr.bf16.mxu0 0
      %355 = vmatpush1.bf16.msra.mxu0 0
      %356 = vmatprep.subr.bf16.mxu0 0
      %357 = vmatpush1.bf16.msra.mxu0 0
      %358 = vmatprep.subr.bf16.mxu0 0
      %359 = vmatpush1.bf16.msra.mxu0 0
      %360 = vmatprep.subr.bf16.mxu0 0
      %361 = vmatpush1.bf16.msra.mxu0 0
      %362 = vmatprep.subr.bf16.mxu0 0
      %363 = vmatpush1.bf16.msra.mxu0 0
      %364 = vmatprep.subr.bf16.mxu0 0
      %365 = vmatpush1.bf16.msra.mxu0 0
      %366 = vmatprep.subr.bf16.mxu0 0
      %367 = vmatpush1.bf16.msra.mxu0 0
      %368 = vmatprep.subr.bf16.mxu0 0
      %369 = vmatpush1.bf16.msra.mxu0 0
      %370 = vmatprep.subr.bf16.mxu0 0
      %371 = vmatpush1.bf16.msra.mxu0 0
      %372 = vmatprep.subr.bf16.mxu0 0
      %373 = vmatpush1.bf16.msra.mxu0 0
      %374 = vmatprep.subr.bf16.mxu0 0
      %375 = vmatpush1.bf16.msra.mxu0 0
      %376 = vmatprep.subr.bf16.mxu0 0
      %377 = vmatpush1.bf16.msra.mxu0 0
      %378 = vmatprep.subr.bf16.mxu0 0
      %379 = vmatpush1.bf16.msra.mxu0 0
      %380 = vmatprep.subr.bf16.mxu0 0
      %381 = vmatpush1.bf16.msra.mxu0 0
      %382 = vmatprep.mubr.bf16.mxu0 0
      %383 = vmatmul.mubr.bf16.gmra.mrb[0].mxu0 %v332
      %v384 = vpop.f32.mrb[0].mxu0
      %v385 = vadd.f32 0.0, %v384
      %v386 = vpop.f32.mrb[0].mxu0
      %v387 = vpop.f32.mrb[0].mxu0
      %v388 = vadd.f32 0.0, %v387
      %v389 = vpop.f32.mrb[0].mxu0
      %390 = vmatprep.mubr.bf16.mxu0 0
      %391 = vmatmul.mubr.bf16.gmra.mrb[0].mxu0 %v335
      %v392 = vpop.f32.mrb[0].mxu0
      %v393 = vadd.f32 0.0, %v392
      %v394 = vpop.f32.mrb[0].mxu0
      %v395 = vpop.f32.mrb[0].mxu0
      %v396 = vadd.f32 0.0, %v395
      %v397 = vpop.f32.mrb[0].mxu0
      %398 = vmatprep.mubr.bf16.mxu0 0
      %399 = vmatmul.mubr.bf16.gmra.mrb[0].mxu0 %v338
      %v400 = vpop.f32.mrb[0].mxu0
      %v401 = vadd.f32 0.0, %v400
      %v402 = vpop.f32.mrb[0].mxu0
      %v403 = vpop.f32.mrb[0].mxu0
      %v404 = vadd.f32 0.0, %v403
      %v405 = vpop.f32.mrb[0].mxu0
      %406 = vmatprep.mubr.bf16.mxu0 0
      %407 = vmatmul.mubr.bf16.gmra.mrb[0].mxu0 %v341
      %v408 = vpop.f32.mrb[0].mxu0
      %v409 = vadd.f32 0.0, %v408
      %v410 = vpop.f32.mrb[0].mxu0
      %v411 = vpop.f32.mrb[0].mxu0
      %v412 = vadd.f32 0.0, %v411
      %v413 = vpop.f32.mrb[0].mxu0
      %414 = vmatprep.mubr.bf16.mxu0 0
      %415 = vmatmul.mubr.bf16.gmra.mrb[0].mxu0 %v344
      %v416 = vpop.f32.mrb[0].mxu0
      %v417 = vadd.f32 0.0, %v416
      %v418 = vpop.f32.mrb[0].mxu0
      %v419 = vpop.f32.mrb[0].mxu0
      %v420 = vpop.f32.mrb[0].mxu0
      %421 = vdwg.mxu0
      %v431 = vunpack.c.l.b16 %v243
      %v432 = vunpack.c.l.b16 %v244
      %v433 = vunpack.c.l.b16 %v245
      %v434 = vunpack.c.l.b16 %v246
      %v435 = vunpack.c.l.b16 %v247
      %v436 = vunpack.c.l.b16 %v248
      %v437 = vunpack.c.l.b16 %v249
      %v438 = vunpack.c.l.b16 %v250
      %v439 = vunpack.c.l.b16 %v251
      %v440 = vpack.c.b16 %v432, %v431
      %v441 = vpack.c.b16 %v434, %v433
      %v442 = vpack.c.b16 %v436, %v435
      %v443 = vpack.c.b16 %v438, %v437
      %v444 = vpack.c.b16 %v439, %v439
      %v446 = vsel %vm330, %v440, 0
      %v449 = vsel %vm330, %v441, 0
      %v452 = vsel %vm330, %v442, 0
      %v455 = vsel %vm330, %v443, 0
      %v458 = vsel %vm330, %v444, 0
      %v461 = vsel %vm346, %v252, 0
      %463 = vmatprep.subr.bf16.mxu0 0
      %464 = vmatpush1.bf16.msra.mxu0 %v461
      %465 = vmatprep.subr.bf16.mxu0 0
      %466 = vmatpush1.bf16.msra.mxu0 0
      %467 = vmatprep.subr.bf16.mxu0 0
      %468 = vmatpush1.bf16.msra.mxu0 0
      %469 = vmatprep.subr.bf16.mxu0 0
      %470 = vmatpush1.bf16.msra.mxu0 0
      %471 = vmatprep.subr.bf16.mxu0 0
      %472 = vmatpush1.bf16.msra.mxu0 0
      %473 = vmatprep.subr.bf16.mxu0 0
      %474 = vmatpush1.bf16.msra.mxu0 0
      %475 = vmatprep.subr.bf16.mxu0 0
      %476 = vmatpush1.bf16.msra.mxu0 0
      %477 = vmatprep.subr.bf16.mxu0 0
      %478 = vmatpush1.bf16.msra.mxu0 0
      %479 = vmatprep.subr.bf16.mxu0 0
      %480 = vmatpush1.bf16.msra.mxu0 0
      %481 = vmatprep.subr.bf16.mxu0 0
      %482 = vmatpush1.bf16.msra.mxu0 0
      %483 = vmatprep.subr.bf16.mxu0 0
      %484 = vmatpush1.bf16.msra.mxu0 0
      %485 = vmatprep.subr.bf16.mxu0 0
      %486 = vmatpush1.bf16.msra.mxu0 0
      %487 = vmatprep.subr.bf16.mxu0 0
      %488 = vmatpush1.bf16.msra.mxu0 0
      %489 = vmatprep.subr.bf16.mxu0 0
      %490 = vmatpush1.bf16.msra.mxu0 0
      %491 = vmatprep.subr.bf16.mxu0 0
      %492 = vmatpush1.bf16.msra.mxu0 0
      %493 = vmatprep.subr.bf16.mxu0 0
      %494 = vmatpush1.bf16.msra.mxu0 0
      %495 = vmatprep.mubr.bf16.mxu0 0
      %496 = vmatmul.mubr.bf16.gmra.mrb[0].mxu0 %v446
      %v497 = vpop.f32.mrb[0].mxu0
      %v498 = vadd.f32 %v385, %v497
      %v499 = vpop.f32.mrb[0].mxu0
      %v500 = vpop.f32.mrb[0].mxu0
      %v501 = vadd.f32 %v388, %v500
      %v502 = vpop.f32.mrb[0].mxu0
      %503 = vmatprep.mubr.bf16.mxu0 0
      %504 = vmatmul.mubr.bf16.gmra.mrb[0].mxu0 %v449
      %v505 = vpop.f32.mrb[0].mxu0
      %v506 = vadd.f32 %v393, %v505
      %v507 = vpop.f32.mrb[0].mxu0
      %v508 = vpop.f32.mrb[0].mxu0
      %v509 = vadd.f32 %v396, %v508
      %v510 = vpop.f32.mrb[0].mxu0
      %511 = vmatprep.mubr.bf16.mxu0 0
      %512 = vmatmul.mubr.bf16.gmra.mrb[0].mxu0 %v452
      %v513 = vpop.f32.mrb[0].mxu0
      %v514 = vadd.f32 %v401, %v513
      %v515 = vpop.f32.mrb[0].mxu0
      %v516 = vpop.f32.mrb[0].mxu0
      %v517 = vadd.f32 %v404, %v516
      %v518 = vpop.f32.mrb[0].mxu0
      %519 = vmatprep.mubr.bf16.mxu0 0
      %520 = vmatmul.mubr.bf16.gmra.mrb[0].mxu0 %v455
      %v521 = vpop.f32.mrb[0].mxu0
      %v522 = vadd.f32 %v409, %v521
      %v523 = vpop.f32.mrb[0].mxu0
      %v524 = vpop.f32.mrb[0].mxu0
      %v525 = vadd.f32 %v412, %v524
      %v526 = vpop.f32.mrb[0].mxu0
      %527 = vmatprep.mubr.bf16.mxu0 0
      %528 = vmatmul.mubr.bf16.gmra.mrb[0].mxu0 %v458
      %v529 = vpop.f32.mrb[0].mxu0
      %v530 = vadd.f32 %v417, %v529
      %v531 = vpop.f32.mrb[0].mxu0
      %v532 = vpop.f32.mrb[0].mxu0
      %v533 = vpop.f32.mrb[0].mxu0
      %534 = vdwg.mxu0
      %v535 = vld [vmem:[%s230] sm:$0xf]
      %v536 = vld [vmem:[%s230 + $0x4] sm:$0xf]
      %v537 = vld [vmem:[%s230 + $0x8] sm:$0xf]
      %v538 = vld [vmem:[%s230 + $0xc] sm:$0xf]
      %v539 = vld [vmem:[%s230 + $0x10] sm:$0xf]
      %v540 = vld [vmem:[%s230 + $0x14] sm:$0xf]
      %v541 = vld [vmem:[%s230 + $0x18] sm:$0xf]
      %v542 = vld [vmem:[%s230 + $0x1c] sm:$0xf]
      %v543 = vld [vmem:[%s230 + $0x20] sm:$0xf]
      %v544 = vld [vmem:[%s230 + $0x24] sm:$0x1]
      %s545 = scalar_lea.vmem %s1, 8
      %v546 = vld [vmem:[%s545] sm:$0x7]
      %v557 = vunpack.c.l.b16 %v535
      %v558 = vunpack.c.l.b16 %v536
      %v559 = vunpack.c.l.b16 %v537
      %v560 = vunpack.c.l.b16 %v538
      %v561 = vunpack.c.l.b16 %v539
      %v562 = vunpack.c.l.b16 %v540
      %v563 = vunpack.c.l.b16 %v541
      %v564 = vunpack.c.l.b16 %v542
      %v565 = vunpack.c.l.b16 %v543
      %v566 = vunpack.c.l.b16 %v544
      %v567 = vpack.c.b16 %v558, %v557
      %v568 = vpack.c.b16 %v560, %v559
      %v569 = vpack.c.b16 %v562, %v561
      %v570 = vpack.c.b16 %v564, %v563
      %v571 = vpack.c.b16 %v566, %v565
      %v573 = vshrl.u32 %v567, 16
      %v575 = vshll.u32 %v567, 16
      %v577 = vrot.slane %v575, 1
      %v578 = vor.u32 %v573, %v577
      %v580 = vshll.u32 %v568, 16
      %v582 = vrot.slane %v580, 1
      %v583 = vsel %vm290, %v578, %v582
      %v584 = vshrl.u32 %v568, 16
      %v586 = vor.u32 %v584, %v582
      %v588 = vshll.u32 %v569, 16
      %v590 = vrot.slane %v588, 1
      %v591 = vsel %vm290, %v586, %v590
      %v592 = vshrl.u32 %v569, 16
      %v594 = vor.u32 %v592, %v590
      %v596 = vshll.u32 %v570, 16
      %v598 = vrot.slane %v596, 1
      %v599 = vsel %vm290, %v594, %v598
      %v600 = vshrl.u32 %v570, 16
      %v602 = vor.u32 %v600, %v598
      %v604 = vshll.u32 %v571, 16
      %v606 = vrot.slane %v604, 1
      %v607 = vsel %vm290, %v602, %v606
      %v608 = vshrl.u32 %v571, 16
      %v610 = vor.u32 %v608, %v606
      %v612 = vsel %vm330, %v583, 0
      %v615 = vsel %vm330, %v591, 0
      %v618 = vsel %vm330, %v599, 0
      %v621 = vsel %vm330, %v607, 0
      %v624 = vsel %vm330, %v610, 0
      %v627 = vsel %vm346, %v546, 0
      %629 = vmatprep.subr.bf16.mxu0 0
      %630 = vmatpush1.bf16.msra.mxu0 %v627
      %631 = vmatprep.subr.bf16.mxu0 0
      %632 = vmatpush1.bf16.msra.mxu0 0
      %633 = vmatprep.subr.bf16.mxu0 0
      %634 = vmatpush1.bf16.msra.mxu0 0
      %635 = vmatprep.subr.bf16.mxu0 0
      %636 = vmatpush1.bf16.msra.mxu0 0
      %637 = vmatprep.subr.bf16.mxu0 0
      %638 = vmatpush1.bf16.msra.mxu0 0
      %639 = vmatprep.subr.bf16.mxu0 0
      %640 = vmatpush1.bf16.msra.mxu0 0
      %641 = vmatprep.subr.bf16.mxu0 0
      %642 = vmatpush1.bf16.msra.mxu0 0
      %643 = vmatprep.subr.bf16.mxu0 0
      %644 = vmatpush1.bf16.msra.mxu0 0
      %645 = vmatprep.subr.bf16.mxu0 0
      %646 = vmatpush1.bf16.msra.mxu0 0
      %647 = vmatprep.subr.bf16.mxu0 0
      %648 = vmatpush1.bf16.msra.mxu0 0
      %649 = vmatprep.subr.bf16.mxu0 0
      %650 = vmatpush1.bf16.msra.mxu0 0
      %651 = vmatprep.subr.bf16.mxu0 0
      %652 = vmatpush1.bf16.msra.mxu0 0
      %653 = vmatprep.subr.bf16.mxu0 0
      %654 = vmatpush1.bf16.msra.mxu0 0
      %655 = vmatprep.subr.bf16.mxu0 0
      %656 = vmatpush1.bf16.msra.mxu0 0
      %657 = vmatprep.subr.bf16.mxu0 0
      %658 = vmatpush1.bf16.msra.mxu0 0
      %659 = vmatprep.subr.bf16.mxu0 0
      %660 = vmatpush1.bf16.msra.mxu0 0
      %661 = vmatprep.mubr.bf16.mxu0 0
      %662 = vmatmul.mubr.bf16.gmra.mrb[0].mxu0 %v612
      %v663 = vpop.f32.mrb[0].mxu0
      %v664 = vadd.f32 0.0, %v663
      %v665 = vpop.f32.mrb[0].mxu0
      %v666 = vpop.f32.mrb[0].mxu0
      %v667 = vadd.f32 0.0, %v666
      %v668 = vpop.f32.mrb[0].mxu0
      %669 = vmatprep.mubr.bf16.mxu0 0
      %670 = vmatmul.mubr.bf16.gmra.mrb[0].mxu0 %v615
      %v671 = vpop.f32.mrb[0].mxu0
      %v672 = vadd.f32 0.0, %v671
      %v673 = vpop.f32.mrb[0].mxu0
      %v674 = vpop.f32.mrb[0].mxu0
      %v675 = vadd.f32 0.0, %v674
      %v676 = vpop.f32.mrb[0].mxu0
      %677 = vmatprep.mubr.bf16.mxu0 0
      %678 = vmatmul.mubr.bf16.gmra.mrb[0].mxu0 %v618
      %v679 = vpop.f32.mrb[0].mxu0
      %v680 = vadd.f32 0.0, %v679
      %v681 = vpop.f32.mrb[0].mxu0
      %v682 = vpop.f32.mrb[0].mxu0
      %v683 = vadd.f32 0.0, %v682
      %v684 = vpop.f32.mrb[0].mxu0
      %685 = vmatprep.mubr.bf16.mxu0 0
      %686 = vmatmul.mubr.bf16.gmra.mrb[0].mxu0 %v621
      %v687 = vpop.f32.mrb[0].mxu0
      %v688 = vadd.f32 0.0, %v687
      %v689 = vpop.f32.mrb[0].mxu0
      %v690 = vpop.f32.mrb[0].mxu0
      %v691 = vadd.f32 0.0, %v690
      %v692 = vpop.f32.mrb[0].mxu0
      %693 = vmatprep.mubr.bf16.mxu0 0
      %694 = vmatmul.mubr.bf16.gmra.mrb[0].mxu0 %v624
      %v695 = vpop.f32.mrb[0].mxu0
      %v696 = vadd.f32 0.0, %v695
      %v697 = vpop.f32.mrb[0].mxu0
      %v698 = vpop.f32.mrb[0].mxu0
      %v699 = vpop.f32.mrb[0].mxu0
      %700 = vdwg.mxu0
      %v701 = vadd.f32 %v498, %v664
      %v702 = vadd.f32 %v501, %v667
      %v703 = vadd.f32 %v506, %v672
      %v704 = vadd.f32 %v509, %v675
      %v705 = vadd.f32 %v514, %v680
      %v706 = vadd.f32 %v517, %v683
      %v707 = vadd.f32 %v522, %v688
      %v708 = vadd.f32 %v525, %v691
      %v709 = vadd.f32 %v530, %v696
      %v710 = vld [vmem:[%s230 + $0x28] sm:$0xe]
      %s711 = scalar_lea.vmem %s1, 12
      %v712 = vld [vmem:[%s711] sm:$0x7]
      %v714 = vunpack.c.l.b16 %v710
      %v715 = vpack.c.b16 %v276, %v714
      %vm716 = vcmask 1046528
      %v717 = vrot.slane %v715, 1
      %v718 = vrot.slane %v286, 1
      %v719 = vsel %vm716, %v717, %v718
      %v720 = vrot.slane %v287, 1
      %v721 = vsel %vm716, %v718, %v720
      %v722 = vrot.slane %v288, 1
      %v723 = vsel %vm716, %v720, %v722
      %v724 = vrot.slane %v289, 1
      %v725 = vsel %vm716, %v722, %v724
      %v727 = vsel %vm330, %v719, 0
      %v730 = vsel %vm330, %v721, 0
      %v733 = vsel %vm330, %v723, 0
      %v736 = vsel %vm330, %v725, 0
      %v739 = vsel %vm330, %v724, 0
      %v742 = vsel %vm346, %v712, 0
      %744 = vmatprep.subr.bf16.mxu0 0
      %745 = vmatpush1.bf16.msra.mxu0 %v742
      %746 = vmatprep.subr.bf16.mxu0 0
      %747 = vmatpush1.bf16.msra.mxu0 0
      %748 = vmatprep.subr.bf16.mxu0 0
      %749 = vmatpush1.bf16.msra.mxu0 0
      %750 = vmatprep.subr.bf16.mxu0 0
      %751 = vmatpush1.bf16.msra.mxu0 0
      %752 = vmatprep.subr.bf16.mxu0 0
      %753 = vmatpush1.bf16.msra.mxu0 0
      %754 = vmatprep.subr.bf16.mxu0 0
      %755 = vmatpush1.bf16.msra.mxu0 0
      %756 = vmatprep.subr.bf16.mxu0 0
      %757 = vmatpush1.bf16.msra.mxu0 0
      %758 = vmatprep.subr.bf16.mxu0 0
      %759 = vmatpush1.bf16.msra.mxu0 0
      %760 = vmatprep.subr.bf16.mxu0 0
      %761 = vmatpush1.bf16.msra.mxu0 0
      %762 = vmatprep.subr.bf16.mxu0 0
      %763 = vmatpush1.bf16.msra.mxu0 0
      %764 = vmatprep.subr.bf16.mxu0 0
      %765 = vmatpush1.bf16.msra.mxu0 0
      %766 = vmatprep.subr.bf16.mxu0 0
      %767 = vmatpush1.bf16.msra.mxu0 0
      %768 = vmatprep.subr.bf16.mxu0 0
      %769 = vmatpush1.bf16.msra.mxu0 0
      %770 = vmatprep.subr.bf16.mxu0 0
      %771 = vmatpush1.bf16.msra.mxu0 0
      %772 = vmatprep.subr.bf16.mxu0 0
      %773 = vmatpush1.bf16.msra.mxu0 0
      %774 = vmatprep.subr.bf16.mxu0 0
      %775 = vmatpush1.bf16.msra.mxu0 0
      %776 = vmatprep.mubr.bf16.mxu0 0
      %777 = vmatmul.mubr.bf16.gmra.mrb[0].mxu0 %v727
      %v778 = vpop.f32.mrb[0].mxu0
      %v779 = vadd.f32 0.0, %v778
      %v780 = vpop.f32.mrb[0].mxu0
      %v781 = vpop.f32.mrb[0].mxu0
      %v782 = vadd.f32 0.0, %v781
      %v783 = vpop.f32.mrb[0].mxu0
      %784 = vmatprep.mubr.bf16.mxu0 0
      %785 = vmatmul.mubr.bf16.gmra.mrb[0].mxu0 %v730
      %v786 = vpop.f32.mrb[0].mxu0
      %v787 = vadd.f32 0.0, %v786
      %v788 = vpop.f32.mrb[0].mxu0
      %v789 = vpop.f32.mrb[0].mxu0
      %v790 = vadd.f32 0.0, %v789
      %v791 = vpop.f32.mrb[0].mxu0
      %792 = vmatprep.mubr.bf16.mxu0 0
      %793 = vmatmul.mubr.bf16.gmra.mrb[0].mxu0 %v733
      %v794 = vpop.f32.mrb[0].mxu0
      %v795 = vadd.f32 0.0, %v794
      %v796 = vpop.f32.mrb[0].mxu0
      %v797 = vpop.f32.mrb[0].mxu0
      %v798 = vadd.f32 0.0, %v797
      %v799 = vpop.f32.mrb[0].mxu0
      %800 = vmatprep.mubr.bf16.mxu0 0
      %801 = vmatmul.mubr.bf16.gmra.mrb[0].mxu0 %v736
      %v802 = vpop.f32.mrb[0].mxu0
      %v803 = vadd.f32 0.0, %v802
      %v804 = vpop.f32.mrb[0].mxu0
      %v805 = vpop.f32.mrb[0].mxu0
      %v806 = vadd.f32 0.0, %v805
      %v807 = vpop.f32.mrb[0].mxu0
      %808 = vmatprep.mubr.bf16.mxu0 0
      %809 = vmatmul.mubr.bf16.gmra.mrb[0].mxu0 %v739
      %v810 = vpop.f32.mrb[0].mxu0
      %v811 = vadd.f32 0.0, %v810
      %v812 = vpop.f32.mrb[0].mxu0
      %v813 = vpop.f32.mrb[0].mxu0
      %v814 = vpop.f32.mrb[0].mxu0
      %815 = vdwg.mxu0
      %v816 = vadd.f32 %v701, %v779
      %v817 = vadd.f32 %v702, %v782
      %v818 = vadd.f32 %v703, %v787
      %v819 = vadd.f32 %v704, %v790
      %v820 = vadd.f32 %v705, %v795
      %v821 = vadd.f32 %v706, %v798
      %v822 = vadd.f32 %v707, %v803
      %v823 = vadd.f32 %v708, %v806
      %v824 = vadd.f32 %v709, %v811
      %v825 = vld [vmem:[%s230 + $0x50] sm:$0xe]
      %v826 = vld [vmem:[%s230 + $0x54] sm:$0xf]
      %v827 = vld [vmem:[%s230 + $0x58] sm:$0xf]
      %v828 = vld [vmem:[%s230 + $0x5c] sm:$0xf]
      %v829 = vld [vmem:[%s230 + $0x60] sm:$0xf]
      %v830 = vld [vmem:[%s230 + $0x64] sm:$0xf]
      %v831 = vld [vmem:[%s230 + $0x68] sm:$0xf]
      %v832 = vld [vmem:[%s230 + $0x6c] sm:$0xf]
      %v833 = vld [vmem:[%s230 + $0x70] sm:$0xf]
      %v834 = vld [vmem:[%s230 + $0x74] sm:$0x1]
      %s835 = scalar_lea.vmem %s1, 16
      %v836 = vld [vmem:[%s835] sm:$0x7]
      %v847 = vunpack.c.l.b16 %v825
      %v848 = vunpack.c.l.b16 %v826
      %v849 = vunpack.c.l.b16 %v827
      %v850 = vunpack.c.l.b16 %v828
      %v851 = vunpack.c.l.b16 %v829
      %v852 = vunpack.c.l.b16 %v830
      %v853 = vunpack.c.l.b16 %v831
      %v854 = vunpack.c.l.b16 %v832
      %v855 = vunpack.c.l.b16 %v833
      %v856 = vunpack.c.l.b16 %v834
      %v857 = vpack.c.b16 %v848, %v847
      %v858 = vpack.c.b16 %v850, %v849
      %v859 = vpack.c.b16 %v852, %v851
      %v860 = vpack.c.b16 %v854, %v853
      %v861 = vpack.c.b16 %v856, %v855
      %v862 = vrot.slane %v857, 1
      %v863 = vrot.slane %v858, 1
      %v864 = vsel %vm716, %v862, %v863
      %v865 = vrot.slane %v859, 1
      %v866 = vsel %vm716, %v863, %v865
      %v867 = vrot.slane %v860, 1
      %v868 = vsel %vm716, %v865, %v867
      %v869 = vrot.slane %v861, 1
      %v870 = vsel %vm716, %v867, %v869
      %v872 = vsel %vm330, %v864, 0
      %v875 = vsel %vm330, %v866, 0
      %v878 = vsel %vm330, %v868, 0
      %v881 = vsel %vm330, %v870, 0
      %v884 = vsel %vm330, %v869, 0
      %v887 = vsel %vm346, %v836, 0
      %889 = vmatprep.subr.bf16.mxu0 0
      %890 = vmatpush1.bf16.msra.mxu0 %v887
      %891 = vmatprep.subr.bf16.mxu0 0
      %892 = vmatpush1.bf16.msra.mxu0 0
      %893 = vmatprep.subr.bf16.mxu0 0
      %894 = vmatpush1.bf16.msra.mxu0 0
      %895 = vmatprep.subr.bf16.mxu0 0
      %896 = vmatpush1.bf16.msra.mxu0 0
      %897 = vmatprep.subr.bf16.mxu0 0
      %898 = vmatpush1.bf16.msra.mxu0 0
      %899 = vmatprep.subr.bf16.mxu0 0
      %900 = vmatpush1.bf16.msra.mxu0 0
      %901 = vmatprep.subr.bf16.mxu0 0
      %902 = vmatpush1.bf16.msra.mxu0 0
      %903 = vmatprep.subr.bf16.mxu0 0
      %904 = vmatpush1.bf16.msra.mxu0 0
      %905 = vmatprep.subr.bf16.mxu0 0
      %906 = vmatpush1.bf16.msra.mxu0 0
      %907 = vmatprep.subr.bf16.mxu0 0
      %908 = vmatpush1.bf16.msra.mxu0 0
      %909 = vmatprep.subr.bf16.mxu0 0
      %910 = vmatpush1.bf16.msra.mxu0 0
      %911 = vmatprep.subr.bf16.mxu0 0
      %912 = vmatpush1.bf16.msra.mxu0 0
      %913 = vmatprep.subr.bf16.mxu0 0
      %914 = vmatpush1.bf16.msra.mxu0 0
      %915 = vmatprep.subr.bf16.mxu0 0
      %916 = vmatpush1.bf16.msra.mxu0 0
      %917 = vmatprep.subr.bf16.mxu0 0
      %918 = vmatpush1.bf16.msra.mxu0 0
      %919 = vmatprep.subr.bf16.mxu0 0
      %920 = vmatpush1.bf16.msra.mxu0 0
      %921 = vmatprep.mubr.bf16.mxu0 0
      %922 = vmatmul.mubr.bf16.gmra.mrb[0].mxu0 %v872
      %v923 = vpop.f32.mrb[0].mxu0
      %v924 = vadd.f32 0.0, %v923
      %v925 = vpop.f32.mrb[0].mxu0
      %v926 = vpop.f32.mrb[0].mxu0
      %v927 = vadd.f32 0.0, %v926
      %v928 = vpop.f32.mrb[0].mxu0
      %929 = vmatprep.mubr.bf16.mxu0 0
      %930 = vmatmul.mubr.bf16.gmra.mrb[0].mxu0 %v875
      %v931 = vpop.f32.mrb[0].mxu0
      %v932 = vadd.f32 0.0, %v931
      %v933 = vpop.f32.mrb[0].mxu0
      %v934 = vpop.f32.mrb[0].mxu0
      %v935 = vadd.f32 0.0, %v934
      %v936 = vpop.f32.mrb[0].mxu0
      %937 = vmatprep.mubr.bf16.mxu0 0
      %938 = vmatmul.mubr.bf16.gmra.mrb[0].mxu0 %v878
      %v939 = vpop.f32.mrb[0].mxu0
      %v940 = vadd.f32 0.0, %v939
      %v941 = vpop.f32.mrb[0].mxu0
      %v942 = vpop.f32.mrb[0].mxu0
      %v943 = vadd.f32 0.0, %v942
      %v944 = vpop.f32.mrb[0].mxu0
      %945 = vmatprep.mubr.bf16.mxu0 0
      %946 = vmatmul.mubr.bf16.gmra.mrb[0].mxu0 %v881
      %v947 = vpop.f32.mrb[0].mxu0
      %v948 = vadd.f32 0.0, %v947
      %v949 = vpop.f32.mrb[0].mxu0
      %v950 = vpop.f32.mrb[0].mxu0
      %v951 = vadd.f32 0.0, %v950
      %v952 = vpop.f32.mrb[0].mxu0
      %953 = vmatprep.mubr.bf16.mxu0 0
      %954 = vmatmul.mubr.bf16.gmra.mrb[0].mxu0 %v884
      %v955 = vpop.f32.mrb[0].mxu0
      %v956 = vadd.f32 0.0, %v955
      %v957 = vpop.f32.mrb[0].mxu0
      %v958 = vpop.f32.mrb[0].mxu0
      %v959 = vpop.f32.mrb[0].mxu0
      %960 = vdwg.mxu0
      %v961 = vadd.f32 %v816, %v924
      %v962 = vadd.f32 %v817, %v927
      %v963 = vadd.f32 %v818, %v932
      %v964 = vadd.f32 %v819, %v935
      %v965 = vadd.f32 %v820, %v940
      %v966 = vadd.f32 %v821, %v943
      %v967 = vadd.f32 %v822, %v948
      %v968 = vadd.f32 %v823, %v951
      %v969 = vadd.f32 %v824, %v956
      %v970 = vld [vmem:[%s230 + $0x78] sm:$0xe]
      %v971 = vld [vmem:[%s230 + $0x7c] sm:$0xf]
      %v972 = vld [vmem:[%s230 + $0x80] sm:$0xf]
      %v973 = vld [vmem:[%s230 + $0x84] sm:$0xf]
      %v974 = vld [vmem:[%s230 + $0x88] sm:$0xf]
      %v975 = vld [vmem:[%s230 + $0x8c] sm:$0xf]
      %v976 = vld [vmem:[%s230 + $0x90] sm:$0xf]
      %v977 = vld [vmem:[%s230 + $0x94] sm:$0xf]
      %v978 = vld [vmem:[%s230 + $0x98] sm:$0xf]
      %v979 = vld [vmem:[%s230 + $0x9c] sm:$0x3]
      %s980 = scalar_lea.vmem %s1, 20
      %v981 = vld [vmem:[%s980] sm:$0x7]
      %v992 = vunpack.c.l.b16 %v970
      %v993 = vunpack.c.l.b16 %v971
      %v994 = vunpack.c.l.b16 %v972
      %v995 = vunpack.c.l.b16 %v973
      %v996 = vunpack.c.l.b16 %v974
      %v997 = vunpack.c.l.b16 %v975
      %v998 = vunpack.c.l.b16 %v976
      %v999 = vunpack.c.l.b16 %v977
      %v1000 = vunpack.c.l.b16 %v978
      %v1001 = vunpack.c.l.b16 %v979
      %v1002 = vpack.c.b16 %v993, %v992
      %v1003 = vpack.c.b16 %v995, %v994
      %v1004 = vpack.c.b16 %v997, %v996
      %v1005 = vpack.c.b16 %v999, %v998
      %v1006 = vpack.c.b16 %v1001, %v1000
      %vm1007 = vsmask.f32 6400
      %v1009 = vshrl.u32 %v1002, 16
      %v1011 = vrot.slane %v1009, 1
      %v1012 = vshll.u32 %v1002, 16
      %v1014 = vrot.slane %v1012, 2
      %v1015 = vor.u32 %v1011, %v1014
      %v1017 = vshrl.u32 %v1003, 16
      %v1019 = vrot.slane %v1017, 1
      %v1020 = vshll.u32 %v1003, 16
      %v1022 = vrot.slane %v1020, 2
      %v1023 = vor.u32 %v1019, %v1022
      %v1024 = vsel %vm1007, %v1015, %v1023
      %v1026 = vshrl.u32 %v1004, 16
      %v1028 = vrot.slane %v1026, 1
      %v1029 = vshll.u32 %v1004, 16
      %v1031 = vrot.slane %v1029, 2
      %v1032 = vor.u32 %v1028, %v1031
      %v1033 = vsel %vm1007, %v1023, %v1032
      %v1035 = vshrl.u32 %v1005, 16
      %v1037 = vrot.slane %v1035, 1
      %v1038 = vshll.u32 %v1005, 16
      %v1040 = vrot.slane %v1038, 2
      %v1041 = vor.u32 %v1037, %v1040
      %v1042 = vsel %vm1007, %v1032, %v1041
      %v1044 = vshrl.u32 %v1006, 16
      %v1046 = vrot.slane %v1044, 1
      %v1047 = vshll.u32 %v1006, 16
      %v1049 = vrot.slane %v1047, 2
      %v1050 = vor.u32 %v1046, %v1049
      %v1051 = vsel %vm1007, %v1041, %v1050
      %v1053 = vsel %vm330, %v1024, 0
      %v1056 = vsel %vm330, %v1033, 0
      %v1059 = vsel %vm330, %v1042, 0
      %v1062 = vsel %vm330, %v1051, 0
      %v1065 = vsel %vm330, %v1050, 0
      %v1068 = vsel %vm346, %v981, 0
      %1070 = vmatprep.subr.bf16.mxu0 0
      %1071 = vmatpush1.bf16.msra.mxu0 %v1068
      %1072 = vmatprep.subr.bf16.mxu0 0
      %1073 = vmatpush1.bf16.msra.mxu0 0
      %1074 = vmatprep.subr.bf16.mxu0 0
      %1075 = vmatpush1.bf16.msra.mxu0 0
      %1076 = vmatprep.subr.bf16.mxu0 0
      %1077 = vmatpush1.bf16.msra.mxu0 0
      %1078 = vmatprep.subr.bf16.mxu0 0
      %1079 = vmatpush1.bf16.msra.mxu0 0
      %1080 = vmatprep.subr.bf16.mxu0 0
      %1081 = vmatpush1.bf16.msra.mxu0 0
      %1082 = vmatprep.subr.bf16.mxu0 0
      %1083 = vmatpush1.bf16.msra.mxu0 0
      %1084 = vmatprep.subr.bf16.mxu0 0
      %1085 = vmatpush1.bf16.msra.mxu0 0
      %1086 = vmatprep.subr.bf16.mxu0 0
      %1087 = vmatpush1.bf16.msra.mxu0 0
      %1088 = vmatprep.subr.bf16.mxu0 0
      %1089 = vmatpush1.bf16.msra.mxu0 0
      %1090 = vmatprep.subr.bf16.mxu0 0
      %1091 = vmatpush1.bf16.msra.mxu0 0
      %1092 = vmatprep.subr.bf16.mxu0 0
      %1093 = vmatpush1.bf16.msra.mxu0 0
      %1094 = vmatprep.subr.bf16.mxu0 0
      %1095 = vmatpush1.bf16.msra.mxu0 0
      %1096 = vmatprep.subr.bf16.mxu0 0
      %1097 = vmatpush1.bf16.msra.mxu0 0
      %1098 = vmatprep.subr.bf16.mxu0 0
      %1099 = vmatpush1.bf16.msra.mxu0 0
      %1100 = vmatprep.subr.bf16.mxu0 0
      %1101 = vmatpush1.bf16.msra.mxu0 0
      %1102 = vmatprep.mubr.bf16.mxu0 0
      %1103 = vmatmul.mubr.bf16.gmra.mrb[0].mxu0 %v1053
      %v1104 = vpop.f32.mrb[0].mxu0
      %v1105 = vadd.f32 0.0, %v1104
      %v1106 = vpop.f32.mrb[0].mxu0
      %v1107 = vpop.f32.mrb[0].mxu0
      %v1108 = vadd.f32 0.0, %v1107
      %v1109 = vpop.f32.mrb[0].mxu0
      %1110 = vmatprep.mubr.bf16.mxu0 0
      %1111 = vmatmul.mubr.bf16.gmra.mrb[0].mxu0 %v1056
      %v1112 = vpop.f32.mrb[0].mxu0
      %v1113 = vadd.f32 0.0, %v1112
      %v1114 = vpop.f32.mrb[0].mxu0
      %v1115 = vpop.f32.mrb[0].mxu0
      %v1116 = vadd.f32 0.0, %v1115
      %v1117 = vpop.f32.mrb[0].mxu0
      %1118 = vmatprep.mubr.bf16.mxu0 0
      %1119 = vmatmul.mubr.bf16.gmra.mrb[0].mxu0 %v1059
      %v1120 = vpop.f32.mrb[0].mxu0
      %v1121 = vadd.f32 0.0, %v1120
      %v1122 = vpop.f32.mrb[0].mxu0
      %v1123 = vpop.f32.mrb[0].mxu0
      %v1124 = vadd.f32 0.0, %v1123
      %v1125 = vpop.f32.mrb[0].mxu0
      %1126 = vmatprep.mubr.bf16.mxu0 0
      %1127 = vmatmul.mubr.bf16.gmra.mrb[0].mxu0 %v1062
      %v1128 = vpop.f32.mrb[0].mxu0
      %v1129 = vadd.f32 0.0, %v1128
      %v1130 = vpop.f32.mrb[0].mxu0
      %v1131 = vpop.f32.mrb[0].mxu0
      %v1132 = vadd.f32 0.0, %v1131
      %v1133 = vpop.f32.mrb[0].mxu0
      %1134 = vmatprep.mubr.bf16.mxu0 0
      %1135 = vmatmul.mubr.bf16.gmra.mrb[0].mxu0 %v1065
      %v1136 = vpop.f32.mrb[0].mxu0
      %v1137 = vadd.f32 0.0, %v1136
      %v1138 = vpop.f32.mrb[0].mxu0
      %v1139 = vpop.f32.mrb[0].mxu0
      %v1140 = vpop.f32.mrb[0].mxu0
      %1141 = vdwg.mxu0
      %v1142 = vadd.f32 %v961, %v1105
      %v1143 = vadd.f32 %v962, %v1108
      %v1144 = vadd.f32 %v963, %v1113
      %v1145 = vadd.f32 %v964, %v1116
      %v1146 = vadd.f32 %v965, %v1121
      %v1147 = vadd.f32 %v966, %v1124
      %v1148 = vadd.f32 %v967, %v1129
      %v1149 = vadd.f32 %v968, %v1132
      %v1150 = vadd.f32 %v969, %v1137
      %v1151 = vld [vmem:[%s230 + $0x74] sm:$0x3]
      %s1152 = scalar_lea.vmem %s1, 24
      %v1153 = vld [vmem:[%s1152] sm:$0x7]
      %v1155 = vunpack.c.l.b16 %v1151
      %v1156 = vpack.c.b16 %v1155, %v855
      %v1158 = vshrl.u32 %v857, 16
      %v1160 = vrot.slane %v1158, 1
      %v1161 = vshll.u32 %v857, 16
      %v1163 = vrot.slane %v1161, 2
      %v1164 = vor.u32 %v1160, %v1163
      %v1166 = vshrl.u32 %v858, 16
      %v1168 = vrot.slane %v1166, 1
      %v1169 = vshll.u32 %v858, 16
      %v1171 = vrot.slane %v1169, 2
      %v1172 = vor.u32 %v1168, %v1171
      %v1173 = vsel %vm1007, %v1164, %v1172
      %v1175 = vshrl.u32 %v859, 16
      %v1177 = vrot.slane %v1175, 1
      %v1178 = vshll.u32 %v859, 16
      %v1180 = vrot.slane %v1178, 2
      %v1181 = vor.u32 %v1177, %v1180
      %v1182 = vsel %vm1007, %v1172, %v1181
      %v1184 = vshrl.u32 %v860, 16
      %v1186 = vrot.slane %v1184, 1
      %v1187 = vshll.u32 %v860, 16
      %v1189 = vrot.slane %v1187, 2
      %v1190 = vor.u32 %v1186, %v1189
      %v1191 = vsel %vm1007, %v1181, %v1190
      %v1193 = vshrl.u32 %v1156, 16
      %v1195 = vrot.slane %v1193, 1
      %v1196 = vshll.u32 %v1156, 16
      %v1198 = vrot.slane %v1196, 2
      %v1199 = vor.u32 %v1195, %v1198
      %v1200 = vsel %vm1007, %v1190, %v1199
      %v1202 = vsel %vm330, %v1173, 0
      %v1205 = vsel %vm330, %v1182, 0
      %v1208 = vsel %vm330, %v1191, 0
      %v1211 = vsel %vm330, %v1200, 0
      %v1214 = vsel %vm330, %v1199, 0
      %v1217 = vsel %vm346, %v1153, 0
      %1219 = vmatprep.subr.bf16.mxu0 0
      %1220 = vmatpush1.bf16.msra.mxu0 %v1217
      %1221 = vmatprep.subr.bf16.mxu0 0
      %1222 = vmatpush1.bf16.msra.mxu0 0
      %1223 = vmatprep.subr.bf16.mxu0 0
      %1224 = vmatpush1.bf16.msra.mxu0 0
      %1225 = vmatprep.subr.bf16.mxu0 0
      %1226 = vmatpush1.bf16.msra.mxu0 0
      %1227 = vmatprep.subr.bf16.mxu0 0
      %1228 = vmatpush1.bf16.msra.mxu0 0
      %1229 = vmatprep.subr.bf16.mxu0 0
      %1230 = vmatpush1.bf16.msra.mxu0 0
      %1231 = vmatprep.subr.bf16.mxu0 0
      %1232 = vmatpush1.bf16.msra.mxu0 0
      %1233 = vmatprep.subr.bf16.mxu0 0
      %1234 = vmatpush1.bf16.msra.mxu0 0
      %1235 = vmatprep.subr.bf16.mxu0 0
      %1236 = vmatpush1.bf16.msra.mxu0 0
      %1237 = vmatprep.subr.bf16.mxu0 0
      %1238 = vmatpush1.bf16.msra.mxu0 0
      %1239 = vmatprep.subr.bf16.mxu0 0
      %1240 = vmatpush1.bf16.msra.mxu0 0
      %1241 = vmatprep.subr.bf16.mxu0 0
      %1242 = vmatpush1.bf16.msra.mxu0 0
      %1243 = vmatprep.subr.bf16.mxu0 0
      %1244 = vmatpush1.bf16.msra.mxu0 0
      %1245 = vmatprep.subr.bf16.mxu0 0
      %1246 = vmatpush1.bf16.msra.mxu0 0
      %1247 = vmatprep.subr.bf16.mxu0 0
      %1248 = vmatpush1.bf16.msra.mxu0 0
      %1249 = vmatprep.subr.bf16.mxu0 0
      %1250 = vmatpush1.bf16.msra.mxu0 0
      %1251 = vmatprep.mubr.bf16.mxu0 0
      %1252 = vmatmul.mubr.bf16.gmra.mrb[0].mxu0 %v1202
      %v1253 = vpop.f32.mrb[0].mxu0
      %v1254 = vadd.f32 0.0, %v1253
      %v1255 = vpop.f32.mrb[0].mxu0
      %v1256 = vpop.f32.mrb[0].mxu0
      %v1257 = vadd.f32 0.0, %v1256
      %v1258 = vpop.f32.mrb[0].mxu0
      %1259 = vmatprep.mubr.bf16.mxu0 0
      %1260 = vmatmul.mubr.bf16.gmra.mrb[0].mxu0 %v1205
      %v1261 = vpop.f32.mrb[0].mxu0
      %v1262 = vadd.f32 0.0, %v1261
      %v1263 = vpop.f32.mrb[0].mxu0
      %v1264 = vpop.f32.mrb[0].mxu0
      %v1265 = vadd.f32 0.0, %v1264
      %v1266 = vpop.f32.mrb[0].mxu0
      %1267 = vmatprep.mubr.bf16.mxu0 0
      %1268 = vmatmul.mubr.bf16.gmra.mrb[0].mxu0 %v1208
      %v1269 = vpop.f32.mrb[0].mxu0
      %v1270 = vadd.f32 0.0, %v1269
      %v1271 = vpop.f32.mrb[0].mxu0
      %v1272 = vpop.f32.mrb[0].mxu0
      %v1273 = vadd.f32 0.0, %v1272
      %v1274 = vpop.f32.mrb[0].mxu0
      %1275 = vmatprep.mubr.bf16.mxu0 0
      %1276 = vmatmul.mubr.bf16.gmra.mrb[0].mxu0 %v1211
      %v1277 = vpop.f32.mrb[0].mxu0
      %v1278 = vadd.f32 0.0, %v1277
      %v1279 = vpop.f32.mrb[0].mxu0
      %v1280 = vpop.f32.mrb[0].mxu0
      %v1281 = vadd.f32 0.0, %v1280
      %v1282 = vpop.f32.mrb[0].mxu0
      %1283 = vmatprep.mubr.bf16.mxu0 0
      %1284 = vmatmul.mubr.bf16.gmra.mrb[0].mxu0 %v1214
      %v1285 = vpop.f32.mrb[0].mxu0
      %v1286 = vadd.f32 0.0, %v1285
      %v1287 = vpop.f32.mrb[0].mxu0
      %v1288 = vpop.f32.mrb[0].mxu0
      %v1289 = vpop.f32.mrb[0].mxu0
      %1290 = vdwg.mxu0
      %v1291 = vadd.f32 %v1142, %v1254
      %v1292 = vadd.f32 %v1143, %v1257
      %v1293 = vadd.f32 %v1144, %v1262
      %v1294 = vadd.f32 %v1145, %v1265
      %v1295 = vadd.f32 %v1146, %v1270
      %v1296 = vadd.f32 %v1147, %v1273
      %v1297 = vadd.f32 %v1148, %v1278
      %v1298 = vadd.f32 %v1149, %v1281
      %v1299 = vadd.f32 %v1150, %v1286
      %v1300 = vld [vmem:[%s230 + $0x78] sm:$0xc]
      %s1301 = scalar_lea.vmem %s1, 28
      %v1302 = vld [vmem:[%s1301] sm:$0x7]
      %v1304 = vunpack.c.l.b16 %v1300
      %v1305 = vpack.c.b16 %v993, %v1304
      %vm1306 = vcmask 1045504
      %v1307 = vrot.slane %v1305, 2
      %v1308 = vrot.slane %v1003, 2
      %v1309 = vsel %vm1306, %v1307, %v1308
      %v1310 = vrot.slane %v1004, 2
      %v1311 = vsel %vm1306, %v1308, %v1310
      %v1312 = vrot.slane %v1005, 2
      %v1313 = vsel %vm1306, %v1310, %v1312
      %v1314 = vrot.slane %v1006, 2
      %v1315 = vsel %vm1306, %v1312, %v1314
      %v1317 = vsel %vm330, %v1309, 0
      %v1320 = vsel %vm330, %v1311, 0
      %v1323 = vsel %vm330, %v1313, 0
      %v1326 = vsel %vm330, %v1315, 0
      %v1329 = vsel %vm330, %v1314, 0
      %v1332 = vsel %vm346, %v1302, 0
      %1334 = vmatprep.subr.bf16.mxu0 0
      %1335 = vmatpush1.bf16.msra.mxu0 %v1332
      %1336 = vmatprep.subr.bf16.mxu0 0
      %1337 = vmatpush1.bf16.msra.mxu0 0
      %1338 = vmatprep.subr.bf16.mxu0 0
      %1339 = vmatpush1.bf16.msra.mxu0 0
      %1340 = vmatprep.subr.bf16.mxu0 0
      %1341 = vmatpush1.bf16.msra.mxu0 0
      %1342 = vmatprep.subr.bf16.mxu0 0
      %1343 = vmatpush1.bf16.msra.mxu0 0
      %1344 = vmatprep.subr.bf16.mxu0 0
      %1345 = vmatpush1.bf16.msra.mxu0 0
      %1346 = vmatprep.subr.bf16.mxu0 0
      %1347 = vmatpush1.bf16.msra.mxu0 0
      %1348 = vmatprep.subr.bf16.mxu0 0
      %1349 = vmatpush1.bf16.msra.mxu0 0
      %1350 = vmatprep.subr.bf16.mxu0 0
      %1351 = vmatpush1.bf16.msra.mxu0 0
      %1352 = vmatprep.subr.bf16.mxu0 0
      %1353 = vmatpush1.bf16.msra.mxu0 0
      %1354 = vmatprep.subr.bf16.mxu0 0
      %1355 = vmatpush1.bf16.msra.mxu0 0
      %1356 = vmatprep.subr.bf16.mxu0 0
      %1357 = vmatpush1.bf16.msra.mxu0 0
      %1358 = vmatprep.subr.bf16.mxu0 0
      %1359 = vmatpush1.bf16.msra.mxu0 0
      %1360 = vmatprep.subr.bf16.mxu0 0
      %1361 = vmatpush1.bf16.msra.mxu0 0
      %1362 = vmatprep.subr.bf16.mxu0 0
      %1363 = vmatpush1.bf16.msra.mxu0 0
      %1364 = vmatprep.subr.bf16.mxu0 0
      %1365 = vmatpush1.bf16.msra.mxu0 0
      %1366 = vmatprep.mubr.bf16.mxu0 0
      %1367 = vmatmul.mubr.bf16.gmra.mrb[0].mxu0 %v1317
      %v1368 = vpop.f32.mrb[0].mxu0
      %v1369 = vadd.f32 0.0, %v1368
      %v1370 = vpop.f32.mrb[0].mxu0
      %v1371 = vpop.f32.mrb[0].mxu0
      %v1372 = vadd.f32 0.0, %v1371
      %v1373 = vpop.f32.mrb[0].mxu0
      %1374 = vmatprep.mubr.bf16.mxu0 0
      %1375 = vmatmul.mubr.bf16.gmra.mrb[0].mxu0 %v1320
      %v1376 = vpop.f32.mrb[0].mxu0
      %v1377 = vadd.f32 0.0, %v1376
      %v1378 = vpop.f32.mrb[0].mxu0
      %v1379 = vpop.f32.mrb[0].mxu0
      %v1380 = vadd.f32 0.0, %v1379
      %v1381 = vpop.f32.mrb[0].mxu0
      %1382 = vmatprep.mubr.bf16.mxu0 0
      %1383 = vmatmul.mubr.bf16.gmra.mrb[0].mxu0 %v1323
      %v1384 = vpop.f32.mrb[0].mxu0
      %v1385 = vadd.f32 0.0, %v1384
      %v1386 = vpop.f32.mrb[0].mxu0
      %v1387 = vpop.f32.mrb[0].mxu0
      %v1388 = vadd.f32 0.0, %v1387
      %v1389 = vpop.f32.mrb[0].mxu0
      %1390 = vmatprep.mubr.bf16.mxu0 0
      %1391 = vmatmul.mubr.bf16.gmra.mrb[0].mxu0 %v1326
      %v1392 = vpop.f32.mrb[0].mxu0
      %v1393 = vadd.f32 0.0, %v1392
      %v1394 = vpop.f32.mrb[0].mxu0
      %v1395 = vpop.f32.mrb[0].mxu0
      %v1396 = vadd.f32 0.0, %v1395
      %v1397 = vpop.f32.mrb[0].mxu0
      %1398 = vmatprep.mubr.bf16.mxu0 0
      %1399 = vmatmul.mubr.bf16.gmra.mrb[0].mxu0 %v1329
      %v1400 = vpop.f32.mrb[0].mxu0
      %v1401 = vadd.f32 0.0, %v1400
      %v1402 = vpop.f32.mrb[0].mxu0
      %v1403 = vpop.f32.mrb[0].mxu0
      %v1404 = vpop.f32.mrb[0].mxu0
      %1405 = vdwg.mxu0
      %v1406 = vadd.f32 %v1291, %v1369
      %v1407 = vadd.f32 %v1292, %v1372
      %v1408 = vadd.f32 %v1293, %v1377
      %v1409 = vadd.f32 %v1294, %v1380
      %v1410 = vadd.f32 %v1295, %v1385
      %v1411 = vadd.f32 %v1296, %v1388
      %v1412 = vadd.f32 %v1297, %v1393
      %v1413 = vadd.f32 %v1298, %v1396
      %v1414 = vadd.f32 %v1299, %v1401
      %v1415 = vld [vmem:[%s230 + $0x4] sm:$0xf]
      %v1416 = vld [vmem:[%s230 + $0x8] sm:$0xf]
      %v1417 = vld [vmem:[%s230 + $0xc] sm:$0xf]
      %v1418 = vld [vmem:[%s230 + $0x10] sm:$0xf]
      %v1419 = vld [vmem:[%s230 + $0x14] sm:$0xf]
      %v1420 = vld [vmem:[%s230 + $0x18] sm:$0xf]
      %v1421 = vld [vmem:[%s230 + $0x1c] sm:$0xf]
      %v1422 = vld [vmem:[%s230 + $0x20] sm:$0xf]
      %v1423 = vld [vmem:[%s230 + $0x24] sm:$0xf]
      %v1424 = vld [vmem:[%s230 + $0x28] sm:$0x1]
      %s1425 = scalar_lea.vmem %s1, 32
      %v1426 = vld [vmem:[%s1425] sm:$0x7]
      %v1437 = vunpack.c.l.b16 %v1415
      %v1438 = vunpack.c.l.b16 %v1416
      %v1439 = vunpack.c.l.b16 %v1417
      %v1440 = vunpack.c.l.b16 %v1418
      %v1441 = vunpack.c.l.b16 %v1419
      %v1442 = vunpack.c.l.b16 %v1420
      %v1443 = vunpack.c.l.b16 %v1421
      %v1444 = vunpack.c.l.b16 %v1422
      %v1445 = vunpack.c.l.b16 %v1423
      %v1446 = vunpack.c.l.b16 %v1424
      %v1447 = vpack.c.b16 %v1438, %v1437
      %v1448 = vpack.c.b16 %v1440, %v1439
      %v1449 = vpack.c.b16 %v1442, %v1441
      %v1450 = vpack.c.b16 %v1444, %v1443
      %v1451 = vpack.c.b16 %v1446, %v1445
      %v1453 = vshrl.u32 %v1447, 16
      %v1455 = vshll.u32 %v1447, 16
      %v1457 = vrot.slane %v1455, 1
      %v1458 = vor.u32 %v1453, %v1457
      %v1460 = vshll.u32 %v1448, 16
      %v1462 = vrot.slane %v1460, 1
      %v1463 = vsel %vm290, %v1458, %v1462
      %v1464 = vshrl.u32 %v1448, 16
      %v1466 = vor.u32 %v1464, %v1462
      %v1468 = vshll.u32 %v1449, 16
      %v1470 = vrot.slane %v1468, 1
      %v1471 = vsel %vm290, %v1466, %v1470
      %v1472 = vshrl.u32 %v1449, 16
      %v1474 = vor.u32 %v1472, %v1470
      %v1476 = vshll.u32 %v1450, 16
      %v1478 = vrot.slane %v1476, 1
      %v1479 = vsel %vm290, %v1474, %v1478
      %v1480 = vshrl.u32 %v1450, 16
      %v1482 = vor.u32 %v1480, %v1478
      %v1484 = vshll.u32 %v1451, 16
      %v1486 = vrot.slane %v1484, 1
      %v1487 = vsel %vm290, %v1482, %v1486
      %v1488 = vshrl.u32 %v1451, 16
      %v1490 = vor.u32 %v1488, %v1486
      %v1492 = vsel %vm330, %v1463, 0
      %v1495 = vsel %vm330, %v1471, 0
      %v1498 = vsel %vm330, %v1479, 0
      %v1501 = vsel %vm330, %v1487, 0
      %v1504 = vsel %vm330, %v1490, 0
      %v1507 = vsel %vm346, %v1426, 0
      %1509 = vmatprep.subr.bf16.mxu0 0
      %1510 = vmatpush1.bf16.msra.mxu0 %v1507
      %1511 = vmatprep.subr.bf16.mxu0 0
      %1512 = vmatpush1.bf16.msra.mxu0 0
      %1513 = vmatprep.subr.bf16.mxu0 0
      %1514 = vmatpush1.bf16.msra.mxu0 0
      %1515 = vmatprep.subr.bf16.mxu0 0
      %1516 = vmatpush1.bf16.msra.mxu0 0
      %1517 = vmatprep.subr.bf16.mxu0 0
      %1518 = vmatpush1.bf16.msra.mxu0 0
      %1519 = vmatprep.subr.bf16.mxu0 0
      %1520 = vmatpush1.bf16.msra.mxu0 0
      %1521 = vmatprep.subr.bf16.mxu0 0
      %1522 = vmatpush1.bf16.msra.mxu0 0
      %1523 = vmatprep.subr.bf16.mxu0 0
      %1524 = vmatpush1.bf16.msra.mxu0 0
      %1525 = vmatprep.subr.bf16.mxu0 0
      %1526 = vmatpush1.bf16.msra.mxu0 0
      %1527 = vmatprep.subr.bf16.mxu0 0
      %1528 = vmatpush1.bf16.msra.mxu0 0
      %1529 = vmatprep.subr.bf16.mxu0 0
      %1530 = vmatpush1.bf16.msra.mxu0 0
      %1531 = vmatprep.subr.bf16.mxu0 0
      %1532 = vmatpush1.bf16.msra.mxu0 0
      %1533 = vmatprep.subr.bf16.mxu0 0
      %1534 = vmatpush1.bf16.msra.mxu0 0
      %1535 = vmatprep.subr.bf16.mxu0 0
      %1536 = vmatpush1.bf16.msra.mxu0 0
      %1537 = vmatprep.subr.bf16.mxu0 0
      %1538 = vmatpush1.bf16.msra.mxu0 0
      %1539 = vmatprep.subr.bf16.mxu0 0
      %1540 = vmatpush1.bf16.msra.mxu0 0
      %1541 = vmatprep.mubr.bf16.mxu0 0
      %1542 = vmatmul.mubr.bf16.gmra.mrb[0].mxu0 %v1492
      %v1543 = vpop.f32.mrb[0].mxu0
      %v1544 = vadd.f32 0.0, %v1543
      %v1545 = vpop.f32.mrb[0].mxu0
      %v1546 = vpop.f32.mrb[0].mxu0
      %v1547 = vadd.f32 0.0, %v1546
      %v1548 = vpop.f32.mrb[0].mxu0
      %1549 = vmatprep.mubr.bf16.mxu0 0
      %1550 = vmatmul.mubr.bf16.gmra.mrb[0].mxu0 %v1495
      %v1551 = vpop.f32.mrb[0].mxu0
      %v1552 = vadd.f32 0.0, %v1551
      %v1553 = vpop.f32.mrb[0].mxu0
      %v1554 = vpop.f32.mrb[0].mxu0
      %v1555 = vadd.f32 0.0, %v1554
      %v1556 = vpop.f32.mrb[0].mxu0
      %1557 = vmatprep.mubr.bf16.mxu0 0
      %1558 = vmatmul.mubr.bf16.gmra.mrb[0].mxu0 %v1498
      %v1559 = vpop.f32.mrb[0].mxu0
      %v1560 = vadd.f32 0.0, %v1559
      %v1561 = vpop.f32.mrb[0].mxu0
      %v1562 = vpop.f32.mrb[0].mxu0
      %v1563 = vadd.f32 0.0, %v1562
      %v1564 = vpop.f32.mrb[0].mxu0
      %1565 = vmatprep.mubr.bf16.mxu0 0
      %1566 = vmatmul.mubr.bf16.gmra.mrb[0].mxu0 %v1501
      %v1567 = vpop.f32.mrb[0].mxu0
      %v1568 = vadd.f32 0.0, %v1567
      %v1569 = vpop.f32.mrb[0].mxu0
      %v1570 = vpop.f32.mrb[0].mxu0
      %v1571 = vadd.f32 0.0, %v1570
      %v1572 = vpop.f32.mrb[0].mxu0
      %1573 = vmatprep.mubr.bf16.mxu0 0
      %1574 = vmatmul.mubr.bf16.gmra.mrb[0].mxu0 %v1504
      %v1575 = vpop.f32.mrb[0].mxu0
      %v1576 = vadd.f32 0.0, %v1575
      %v1577 = vpop.f32.mrb[0].mxu0
      %v1578 = vpop.f32.mrb[0].mxu0
      %v1579 = vpop.f32.mrb[0].mxu0
      %1580 = vdwg.mxu0
      %v1581 = vadd.f32 %v1406, %v1544
      %v1582 = vadd.f32 %v1407, %v1547
      %v1583 = vadd.f32 %v1408, %v1552
      %v1584 = vadd.f32 %v1409, %v1555
      %v1585 = vadd.f32 %v1410, %v1560
      %v1586 = vadd.f32 %v1411, %v1563
      %v1587 = vadd.f32 %v1412, %v1568
      %v1588 = vadd.f32 %v1413, %v1571
      %v1589 = vadd.f32 %v1414, %v1576
      %v1590 = vld [vmem:[%s230 + $0x2c] sm:$0xe]
      %v1591 = vld [vmem:[%s230 + $0x30] sm:$0xf]
      %v1592 = vld [vmem:[%s230 + $0x34] sm:$0xf]
      %v1593 = vld [vmem:[%s230 + $0x38] sm:$0xf]
      %v1594 = vld [vmem:[%s230 + $0x3c] sm:$0xf]
      %v1595 = vld [vmem:[%s230 + $0x40] sm:$0xf]
      %v1596 = vld [vmem:[%s230 + $0x44] sm:$0xf]
      %v1597 = vld [vmem:[%s230 + $0x48] sm:$0xf]
      %v1598 = vld [vmem:[%s230 + $0x4c] sm:$0xf]
      %v1599 = vld [vmem:[%s230 + $0x50] sm:$0x1]
      %s1600 = scalar_lea.vmem %s1, 36
      %v1601 = vld [vmem:[%s1600] sm:$0x7]
      %v1612 = vunpack.c.l.b16 %v1590
      %v1613 = vunpack.c.l.b16 %v1591
      %v1614 = vunpack.c.l.b16 %v1592
      %v1615 = vunpack.c.l.b16 %v1593
      %v1616 = vunpack.c.l.b16 %v1594
      %v1617 = vunpack.c.l.b16 %v1595
      %v1618 = vunpack.c.l.b16 %v1596
      %v1619 = vunpack.c.l.b16 %v1597
      %v1620 = vunpack.c.l.b16 %v1598
      %v1621 = vunpack.c.l.b16 %v1599
      %v1622 = vpack.c.b16 %v1613, %v1612
      %v1623 = vpack.c.b16 %v1615, %v1614
      %v1624 = vpack.c.b16 %v1617, %v1616
      %v1625 = vpack.c.b16 %v1619, %v1618
      %v1626 = vpack.c.b16 %v1621, %v1620
      %v1627 = vrot.slane %v1622, 1
      %v1628 = vrot.slane %v1623, 1
      %v1629 = vsel %vm716, %v1627, %v1628
      %v1630 = vrot.slane %v1624, 1
      %v1631 = vsel %vm716, %v1628, %v1630
      %v1632 = vrot.slane %v1625, 1
      %v1633 = vsel %vm716, %v1630, %v1632
      %v1634 = vrot.slane %v1626, 1
      %v1635 = vsel %vm716, %v1632, %v1634
      %v1637 = vsel %vm330, %v1629, 0
      %v1640 = vsel %vm330, %v1631, 0
      %v1643 = vsel %vm330, %v1633, 0
      %v1646 = vsel %vm330, %v1635, 0
      %v1649 = vsel %vm330, %v1634, 0
      %v1652 = vsel %vm346, %v1601, 0
      %1654 = vmatprep.subr.bf16.mxu0 0
      %1655 = vmatpush1.bf16.msra.mxu0 %v1652
      %1656 = vmatprep.subr.bf16.mxu0 0
      %1657 = vmatpush1.bf16.msra.mxu0 0
      %1658 = vmatprep.subr.bf16.mxu0 0
      %1659 = vmatpush1.bf16.msra.mxu0 0
      %1660 = vmatprep.subr.bf16.mxu0 0
      %1661 = vmatpush1.bf16.msra.mxu0 0
      %1662 = vmatprep.subr.bf16.mxu0 0
      %1663 = vmatpush1.bf16.msra.mxu0 0
      %1664 = vmatprep.subr.bf16.mxu0 0
      %1665 = vmatpush1.bf16.msra.mxu0 0
      %1666 = vmatprep.subr.bf16.mxu0 0
      %1667 = vmatpush1.bf16.msra.mxu0 0
      %1668 = vmatprep.subr.bf16.mxu0 0
      %1669 = vmatpush1.bf16.msra.mxu0 0
      %1670 = vmatprep.subr.bf16.mxu0 0
      %1671 = vmatpush1.bf16.msra.mxu0 0
      %1672 = vmatprep.subr.bf16.mxu0 0
      %1673 = vmatpush1.bf16.msra.mxu0 0
      %1674 = vmatprep.subr.bf16.mxu0 0
      %1675 = vmatpush1.bf16.msra.mxu0 0
      %1676 = vmatprep.subr.bf16.mxu0 0
      %1677 = vmatpush1.bf16.msra.mxu0 0
      %1678 = vmatprep.subr.bf16.mxu0 0
      %1679 = vmatpush1.bf16.msra.mxu0 0
      %1680 = vmatprep.subr.bf16.mxu0 0
      %1681 = vmatpush1.bf16.msra.mxu0 0
      %1682 = vmatprep.subr.bf16.mxu0 0
      %1683 = vmatpush1.bf16.msra.mxu0 0
      %1684 = vmatprep.subr.bf16.mxu0 0
      %1685 = vmatpush1.bf16.msra.mxu0 0
      %1686 = vmatprep.mubr.bf16.mxu0 0
      %1687 = vmatmul.mubr.bf16.gmra.mrb[0].mxu0 %v1637
      %v1688 = vpop.f32.mrb[0].mxu0
      %v1689 = vadd.f32 0.0, %v1688
      %v1690 = vpop.f32.mrb[0].mxu0
      %v1691 = vpop.f32.mrb[0].mxu0
      %v1692 = vadd.f32 0.0, %v1691
      %v1693 = vpop.f32.mrb[0].mxu0
      %1694 = vmatprep.mubr.bf16.mxu0 0
      %1695 = vmatmul.mubr.bf16.gmra.mrb[0].mxu0 %v1640
      %v1696 = vpop.f32.mrb[0].mxu0
      %v1697 = vadd.f32 0.0, %v1696
      %v1698 = vpop.f32.mrb[0].mxu0
      %v1699 = vpop.f32.mrb[0].mxu0
      %v1700 = vadd.f32 0.0, %v1699
      %v1701 = vpop.f32.mrb[0].mxu0
      %1702 = vmatprep.mubr.bf16.mxu0 0
      %1703 = vmatmul.mubr.bf16.gmra.mrb[0].mxu0 %v1643
      %v1704 = vpop.f32.mrb[0].mxu0
      %v1705 = vadd.f32 0.0, %v1704
      %v1706 = vpop.f32.mrb[0].mxu0
      %v1707 = vpop.f32.mrb[0].mxu0
      %v1708 = vadd.f32 0.0, %v1707
      %v1709 = vpop.f32.mrb[0].mxu0
      %1710 = vmatprep.mubr.bf16.mxu0 0
      %1711 = vmatmul.mubr.bf16.gmra.mrb[0].mxu0 %v1646
      %v1712 = vpop.f32.mrb[0].mxu0
      %v1713 = vadd.f32 0.0, %v1712
      %v1714 = vpop.f32.mrb[0].mxu0
      %v1715 = vpop.f32.mrb[0].mxu0
      %v1716 = vadd.f32 0.0, %v1715
      %v1717 = vpop.f32.mrb[0].mxu0
      %1718 = vmatprep.mubr.bf16.mxu0 0
      %1719 = vmatmul.mubr.bf16.gmra.mrb[0].mxu0 %v1649
      %v1720 = vpop.f32.mrb[0].mxu0
      %v1721 = vadd.f32 0.0, %v1720
      %v1722 = vpop.f32.mrb[0].mxu0
      %v1723 = vpop.f32.mrb[0].mxu0
      %v1724 = vpop.f32.mrb[0].mxu0
      %1725 = vdwg.mxu0
      %v1726 = vadd.f32 %v1581, %v1689
      %v1727 = vadd.f32 %v1582, %v1692
      %v1728 = vadd.f32 %v1583, %v1697
      %v1729 = vadd.f32 %v1584, %v1700
      %v1730 = vadd.f32 %v1585, %v1705
      %v1731 = vadd.f32 %v1586, %v1708
      %v1732 = vadd.f32 %v1587, %v1713
      %v1733 = vadd.f32 %v1588, %v1716
      %v1734 = vadd.f32 %v1589, %v1721
      %v1735 = vld [vmem:[%s230 + $0x4] sm:$0xe]
      %s1736 = scalar_lea.vmem %s1, 40
      %v1737 = vld [vmem:[%s1736] sm:$0x7]
      %v1739 = vunpack.c.l.b16 %v1735
      %v1740 = vpack.c.b16 %v1438, %v1739
      %v1741 = vrot.slane %v1740, 1
      %v1742 = vrot.slane %v1448, 1
      %v1743 = vsel %vm716, %v1741, %v1742
      %v1744 = vrot.slane %v1449, 1
      %v1745 = vsel %vm716, %v1742, %v1744
      %v1746 = vrot.slane %v1450, 1
      %v1747 = vsel %vm716, %v1744, %v1746
      %v1748 = vrot.slane %v1451, 1
      %v1749 = vsel %vm716, %v1746, %v1748
      %v1751 = vsel %vm330, %v1743, 0
      %v1754 = vsel %vm330, %v1745, 0
      %v1757 = vsel %vm330, %v1747, 0
      %v1760 = vsel %vm330, %v1749, 0
      %v1763 = vsel %vm330, %v1748, 0
      %v1766 = vsel %vm346, %v1737, 0
      %1768 = vmatprep.subr.bf16.mxu0 0
      %1769 = vmatpush1.bf16.msra.mxu0 %v1766
      %1770 = vmatprep.subr.bf16.mxu0 0
      %1771 = vmatpush1.bf16.msra.mxu0 0
      %1772 = vmatprep.subr.bf16.mxu0 0
      %1773 = vmatpush1.bf16.msra.mxu0 0
      %1774 = vmatprep.subr.bf16.mxu0 0
      %1775 = vmatpush1.bf16.msra.mxu0 0
      %1776 = vmatprep.subr.bf16.mxu0 0
      %1777 = vmatpush1.bf16.msra.mxu0 0
      %1778 = vmatprep.subr.bf16.mxu0 0
      %1779 = vmatpush1.bf16.msra.mxu0 0
      %1780 = vmatprep.subr.bf16.mxu0 0
      %1781 = vmatpush1.bf16.msra.mxu0 0
      %1782 = vmatprep.subr.bf16.mxu0 0
      %1783 = vmatpush1.bf16.msra.mxu0 0
      %1784 = vmatprep.subr.bf16.mxu0 0
      %1785 = vmatpush1.bf16.msra.mxu0 0
      %1786 = vmatprep.subr.bf16.mxu0 0
      %1787 = vmatpush1.bf16.msra.mxu0 0
      %1788 = vmatprep.subr.bf16.mxu0 0
      %1789 = vmatpush1.bf16.msra.mxu0 0
      %1790 = vmatprep.subr.bf16.mxu0 0
      %1791 = vmatpush1.bf16.msra.mxu0 0
      %1792 = vmatprep.subr.bf16.mxu0 0
      %1793 = vmatpush1.bf16.msra.mxu0 0
      %1794 = vmatprep.subr.bf16.mxu0 0
      %1795 = vmatpush1.bf16.msra.mxu0 0
      %1796 = vmatprep.subr.bf16.mxu0 0
      %1797 = vmatpush1.bf16.msra.mxu0 0
      %1798 = vmatprep.subr.bf16.mxu0 0
      %1799 = vmatpush1.bf16.msra.mxu0 0
      %1800 = vmatprep.mubr.bf16.mxu0 0
      %1801 = vmatmul.mubr.bf16.gmra.mrb[0].mxu0 %v1751
      %v1802 = vpop.f32.mrb[0].mxu0
      %v1803 = vadd.f32 0.0, %v1802
      %v1804 = vpop.f32.mrb[0].mxu0
      %v1805 = vpop.f32.mrb[0].mxu0
      %v1806 = vadd.f32 0.0, %v1805
      %v1807 = vpop.f32.mrb[0].mxu0
      %1808 = vmatprep.mubr.bf16.mxu0 0
      %1809 = vmatmul.mubr.bf16.gmra.mrb[0].mxu0 %v1754
      %v1810 = vpop.f32.mrb[0].mxu0
      %v1811 = vadd.f32 0.0, %v1810
      %v1812 = vpop.f32.mrb[0].mxu0
      %v1813 = vpop.f32.mrb[0].mxu0
      %v1814 = vadd.f32 0.0, %v1813
      %v1815 = vpop.f32.mrb[0].mxu0
      %1816 = vmatprep.mubr.bf16.mxu0 0
      %1817 = vmatmul.mubr.bf16.gmra.mrb[0].mxu0 %v1757
      %v1818 = vpop.f32.mrb[0].mxu0
      %v1819 = vadd.f32 0.0, %v1818
      %v1820 = vpop.f32.mrb[0].mxu0
      %v1821 = vpop.f32.mrb[0].mxu0
      %v1822 = vadd.f32 0.0, %v1821
      %v1823 = vpop.f32.mrb[0].mxu0
      %1824 = vmatprep.mubr.bf16.mxu0 0
      %1825 = vmatmul.mubr.bf16.gmra.mrb[0].mxu0 %v1760
      %v1826 = vpop.f32.mrb[0].mxu0
      %v1827 = vadd.f32 0.0, %v1826
      %v1828 = vpop.f32.mrb[0].mxu0
      %v1829 = vpop.f32.mrb[0].mxu0
      %v1830 = vadd.f32 0.0, %v1829
      %v1831 = vpop.f32.mrb[0].mxu0
      %1832 = vmatprep.mubr.bf16.mxu0 0
      %1833 = vmatmul.mubr.bf16.gmra.mrb[0].mxu0 %v1763
      %v1834 = vpop.f32.mrb[0].mxu0
      %v1835 = vadd.f32 0.0, %v1834
      %v1836 = vpop.f32.mrb[0].mxu0
      %v1837 = vpop.f32.mrb[0].mxu0
      %v1838 = vpop.f32.mrb[0].mxu0
      %1839 = vdwg.mxu0
      %v1840 = vadd.f32 %v1726, %v1803
      %v1841 = vadd.f32 %v1727, %v1806
      %v1842 = vadd.f32 %v1728, %v1811
      %v1843 = vadd.f32 %v1729, %v1814
      %v1844 = vadd.f32 %v1730, %v1819
      %v1845 = vadd.f32 %v1731, %v1822
      %v1846 = vadd.f32 %v1732, %v1827
      %v1847 = vadd.f32 %v1733, %v1830
      %v1848 = vadd.f32 %v1734, %v1835
      %v1849 = vld [vmem:[%s230 + $0x50] sm:$0x3]
      %s1850 = scalar_lea.vmem %s1, 44
      %v1851 = vld [vmem:[%s1850] sm:$0x7]
      %v1853 = vunpack.c.l.b16 %v1849
      %v1854 = vpack.c.b16 %v1853, %v1620
      %v1856 = vshrl.u32 %v1622, 16
      %v1858 = vrot.slane %v1856, 1
      %v1859 = vshll.u32 %v1622, 16
      %v1861 = vrot.slane %v1859, 2
      %v1862 = vor.u32 %v1858, %v1861
      %v1864 = vshrl.u32 %v1623, 16
      %v1866 = vrot.slane %v1864, 1
      %v1867 = vshll.u32 %v1623, 16
      %v1869 = vrot.slane %v1867, 2
      %v1870 = vor.u32 %v1866, %v1869
      %v1871 = vsel %vm1007, %v1862, %v1870
      %v1873 = vshrl.u32 %v1624, 16
      %v1875 = vrot.slane %v1873, 1
      %v1876 = vshll.u32 %v1624, 16
      %v1878 = vrot.slane %v1876, 2
      %v1879 = vor.u32 %v1875, %v1878
      %v1880 = vsel %vm1007, %v1870, %v1879
      %v1882 = vshrl.u32 %v1625, 16
      %v1884 = vrot.slane %v1882, 1
      %v1885 = vshll.u32 %v1625, 16
      %v1887 = vrot.slane %v1885, 2
      %v1888 = vor.u32 %v1884, %v1887
      %v1889 = vsel %vm1007, %v1879, %v1888
      %v1891 = vshrl.u32 %v1854, 16
      %v1893 = vrot.slane %v1891, 1
      %v1894 = vshll.u32 %v1854, 16
      %v1896 = vrot.slane %v1894, 2
      %v1897 = vor.u32 %v1893, %v1896
      %v1898 = vsel %vm1007, %v1888, %v1897
      %v1900 = vsel %vm330, %v1871, 0
      %v1903 = vsel %vm330, %v1880, 0
      %v1906 = vsel %vm330, %v1889, 0
      %v1909 = vsel %vm330, %v1898, 0
      %v1912 = vsel %vm330, %v1897, 0
      %v1915 = vsel %vm346, %v1851, 0
      %1917 = vmatprep.subr.bf16.mxu0 0
      %1918 = vmatpush1.bf16.msra.mxu0 %v1915
      %1919 = vmatprep.subr.bf16.mxu0 0
      %1920 = vmatpush1.bf16.msra.mxu0 0
      %1921 = vmatprep.subr.bf16.mxu0 0
      %1922 = vmatpush1.bf16.msra.mxu0 0
      %1923 = vmatprep.subr.bf16.mxu0 0
      %1924 = vmatpush1.bf16.msra.mxu0 0
      %1925 = vmatprep.subr.bf16.mxu0 0
      %1926 = vmatpush1.bf16.msra.mxu0 0
      %1927 = vmatprep.subr.bf16.mxu0 0
      %1928 = vmatpush1.bf16.msra.mxu0 0
      %1929 = vmatprep.subr.bf16.mxu0 0
      %1930 = vmatpush1.bf16.msra.mxu0 0
      %1931 = vmatprep.subr.bf16.mxu0 0
      %1932 = vmatpush1.bf16.msra.mxu0 0
      %1933 = vmatprep.subr.bf16.mxu0 0
      %1934 = vmatpush1.bf16.msra.mxu0 0
      %1935 = vmatprep.subr.bf16.mxu0 0
      %1936 = vmatpush1.bf16.msra.mxu0 0
      %1937 = vmatprep.subr.bf16.mxu0 0
      %1938 = vmatpush1.bf16.msra.mxu0 0
      %1939 = vmatprep.subr.bf16.mxu0 0
      %1940 = vmatpush1.bf16.msra.mxu0 0
      %1941 = vmatprep.subr.bf16.mxu0 0
      %1942 = vmatpush1.bf16.msra.mxu0 0
      %1943 = vmatprep.subr.bf16.mxu0 0
      %1944 = vmatpush1.bf16.msra.mxu0 0
      %1945 = vmatprep.subr.bf16.mxu0 0
      %1946 = vmatpush1.bf16.msra.mxu0 0
      %1947 = vmatprep.subr.bf16.mxu0 0
      %1948 = vmatpush1.bf16.msra.mxu0 0
      %1949 = vmatprep.mubr.bf16.mxu0 0
      %1950 = vmatmul.mubr.bf16.gmra.mrb[0].mxu0 %v1900
      %v1951 = vpop.f32.mrb[0].mxu0
      %v1952 = vadd.f32 0.0, %v1951
      %v1953 = vpop.f32.mrb[0].mxu0
      %v1954 = vpop.f32.mrb[0].mxu0
      %v1955 = vadd.f32 0.0, %v1954
      %v1956 = vpop.f32.mrb[0].mxu0
      %1957 = vmatprep.mubr.bf16.mxu0 0
      %1958 = vmatmul.mubr.bf16.gmra.mrb[0].mxu0 %v1903
      %v1959 = vpop.f32.mrb[0].mxu0
      %v1960 = vadd.f32 0.0, %v1959
      %v1961 = vpop.f32.mrb[0].mxu0
      %v1962 = vpop.f32.mrb[0].mxu0
      %v1963 = vadd.f32 0.0, %v1962
      %v1964 = vpop.f32.mrb[0].mxu0
      %1965 = vmatprep.mubr.bf16.mxu0 0
      %1966 = vmatmul.mubr.bf16.gmra.mrb[0].mxu0 %v1906
      %v1967 = vpop.f32.mrb[0].mxu0
      %v1968 = vadd.f32 0.0, %v1967
      %v1969 = vpop.f32.mrb[0].mxu0
      %v1970 = vpop.f32.mrb[0].mxu0
      %v1971 = vadd.f32 0.0, %v1970
      %v1972 = vpop.f32.mrb[0].mxu0
      %1973 = vmatprep.mubr.bf16.mxu0 0
      %1974 = vmatmul.mubr.bf16.gmra.mrb[0].mxu0 %v1909
      %v1975 = vpop.f32.mrb[0].mxu0
      %v1976 = vadd.f32 0.0, %v1975
      %v1977 = vpop.f32.mrb[0].mxu0
      %v1978 = vpop.f32.mrb[0].mxu0
      %v1979 = vadd.f32 0.0, %v1978
      %v1980 = vpop.f32.mrb[0].mxu0
      %1981 = vmatprep.mubr.bf16.mxu0 0
      %1982 = vmatmul.mubr.bf16.gmra.mrb[0].mxu0 %v1912
      %v1983 = vpop.f32.mrb[0].mxu0
      %v1984 = vadd.f32 0.0, %v1983
      %v1985 = vpop.f32.mrb[0].mxu0
      %v1986 = vpop.f32.mrb[0].mxu0
      %v1987 = vpop.f32.mrb[0].mxu0
      %1988 = vdwg.mxu0
      %v1989 = vadd.f32 %v1840, %v1952
      %v1990 = vadd.f32 %v1841, %v1955
      %v1991 = vadd.f32 %v1842, %v1960
      %v1992 = vadd.f32 %v1843, %v1963
      %v1993 = vadd.f32 %v1844, %v1968
      %v1994 = vadd.f32 %v1845, %v1971
      %v1995 = vadd.f32 %v1846, %v1976
      %v1996 = vadd.f32 %v1847, %v1979
      %v1997 = vadd.f32 %v1848, %v1984
      %v1998 = vld [vmem:[%s230 + $0x54] sm:$0xe]
      %v1999 = vld [vmem:[%s230 + $0x58] sm:$0xf]
      %v2000 = vld [vmem:[%s230 + $0x5c] sm:$0xf]
      %v2001 = vld [vmem:[%s230 + $0x60] sm:$0xf]
      %v2002 = vld [vmem:[%s230 + $0x64] sm:$0xf]
      %v2003 = vld [vmem:[%s230 + $0x68] sm:$0xf]
      %v2004 = vld [vmem:[%s230 + $0x6c] sm:$0xf]
      %v2005 = vld [vmem:[%s230 + $0x70] sm:$0xf]
      %v2006 = vld [vmem:[%s230 + $0x74] sm:$0xf]
      %v2007 = vld [vmem:[%s230 + $0x78] sm:$0x3]
      %s2008 = scalar_lea.vmem %s1, 48
      %v2009 = vld [vmem:[%s2008] sm:$0x7]
      %v2020 = vunpack.c.l.b16 %v1998
      %v2021 = vunpack.c.l.b16 %v1999
      %v2022 = vunpack.c.l.b16 %v2000
      %v2023 = vunpack.c.l.b16 %v2001
      %v2024 = vunpack.c.l.b16 %v2002
      %v2025 = vunpack.c.l.b16 %v2003
      %v2026 = vunpack.c.l.b16 %v2004
      %v2027 = vunpack.c.l.b16 %v2005
      %v2028 = vunpack.c.l.b16 %v2006
      %v2029 = vunpack.c.l.b16 %v2007
      %v2030 = vpack.c.b16 %v2021, %v2020
      %v2031 = vpack.c.b16 %v2023, %v2022
      %v2032 = vpack.c.b16 %v2025, %v2024
      %v2033 = vpack.c.b16 %v2027, %v2026
      %v2034 = vpack.c.b16 %v2029, %v2028
      %v2036 = vshrl.u32 %v2030, 16
      %v2038 = vrot.slane %v2036, 1
      %v2039 = vshll.u32 %v2030, 16
      %v2041 = vrot.slane %v2039, 2
      %v2042 = vor.u32 %v2038, %v2041
      %v2044 = vshrl.u32 %v2031, 16
      %v2046 = vrot.slane %v2044, 1
      %v2047 = vshll.u32 %v2031, 16
      %v2049 = vrot.slane %v2047, 2
      %v2050 = vor.u32 %v2046, %v2049
      %v2051 = vsel %vm1007, %v2042, %v2050
      %v2053 = vshrl.u32 %v2032, 16
      %v2055 = vrot.slane %v2053, 1
      %v2056 = vshll.u32 %v2032, 16
      %v2058 = vrot.slane %v2056, 2
      %v2059 = vor.u32 %v2055, %v2058
      %v2060 = vsel %vm1007, %v2050, %v2059
      %v2062 = vshrl.u32 %v2033, 16
      %v2064 = vrot.slane %v2062, 1
      %v2065 = vshll.u32 %v2033, 16
      %v2067 = vrot.slane %v2065, 2
      %v2068 = vor.u32 %v2064, %v2067
      %v2069 = vsel %vm1007, %v2059, %v2068
      %v2071 = vshrl.u32 %v2034, 16
      %v2073 = vrot.slane %v2071, 1
      %v2074 = vshll.u32 %v2034, 16
      %v2076 = vrot.slane %v2074, 2
      %v2077 = vor.u32 %v2073, %v2076
      %v2078 = vsel %vm1007, %v2068, %v2077
      %v2080 = vsel %vm330, %v2051, 0
      %v2083 = vsel %vm330, %v2060, 0
      %v2086 = vsel %vm330, %v2069, 0
      %v2089 = vsel %vm330, %v2078, 0
      %v2092 = vsel %vm330, %v2077, 0
      %v2095 = vsel %vm346, %v2009, 0
      %2097 = vmatprep.subr.bf16.mxu0 0
      %2098 = vmatpush1.bf16.msra.mxu0 %v2095
      %2099 = vmatprep.subr.bf16.mxu0 0
      %2100 = vmatpush1.bf16.msra.mxu0 0
      %2101 = vmatprep.subr.bf16.mxu0 0
      %2102 = vmatpush1.bf16.msra.mxu0 0
      %2103 = vmatprep.subr.bf16.mxu0 0
      %2104 = vmatpush1.bf16.msra.mxu0 0
      %2105 = vmatprep.subr.bf16.mxu0 0
      %2106 = vmatpush1.bf16.msra.mxu0 0
      %2107 = vmatprep.subr.bf16.mxu0 0
      %2108 = vmatpush1.bf16.msra.mxu0 0
      %2109 = vmatprep.subr.bf16.mxu0 0
      %2110 = vmatpush1.bf16.msra.mxu0 0
      %2111 = vmatprep.subr.bf16.mxu0 0
      %2112 = vmatpush1.bf16.msra.mxu0 0
      %2113 = vmatprep.subr.bf16.mxu0 0
      %2114 = vmatpush1.bf16.msra.mxu0 0
      %2115 = vmatprep.subr.bf16.mxu0 0
      %2116 = vmatpush1.bf16.msra.mxu0 0
      %2117 = vmatprep.subr.bf16.mxu0 0
      %2118 = vmatpush1.bf16.msra.mxu0 0
      %2119 = vmatprep.subr.bf16.mxu0 0
      %2120 = vmatpush1.bf16.msra.mxu0 0
      %2121 = vmatprep.subr.bf16.mxu0 0
      %2122 = vmatpush1.bf16.msra.mxu0 0
      %2123 = vmatprep.subr.bf16.mxu0 0
      %2124 = vmatpush1.bf16.msra.mxu0 0
      %2125 = vmatprep.subr.bf16.mxu0 0
      %2126 = vmatpush1.bf16.msra.mxu0 0
      %2127 = vmatprep.subr.bf16.mxu0 0
      %2128 = vmatpush1.bf16.msra.mxu0 0
      %2129 = vmatprep.mubr.bf16.mxu0 0
      %2130 = vmatmul.mubr.bf16.gmra.mrb[0].mxu0 %v2080
      %v2131 = vpop.f32.mrb[0].mxu0
      %v2132 = vadd.f32 0.0, %v2131
      %v2133 = vpop.f32.mrb[0].mxu0
      %v2134 = vpop.f32.mrb[0].mxu0
      %v2135 = vadd.f32 0.0, %v2134
      %v2136 = vpop.f32.mrb[0].mxu0
      %2137 = vmatprep.mubr.bf16.mxu0 0
      %2138 = vmatmul.mubr.bf16.gmra.mrb[0].mxu0 %v2083
      %v2139 = vpop.f32.mrb[0].mxu0
      %v2140 = vadd.f32 0.0, %v2139
      %v2141 = vpop.f32.mrb[0].mxu0
      %v2142 = vpop.f32.mrb[0].mxu0
      %v2143 = vadd.f32 0.0, %v2142
      %v2144 = vpop.f32.mrb[0].mxu0
      %2145 = vmatprep.mubr.bf16.mxu0 0
      %2146 = vmatmul.mubr.bf16.gmra.mrb[0].mxu0 %v2086
      %v2147 = vpop.f32.mrb[0].mxu0
      %v2148 = vadd.f32 0.0, %v2147
      %v2149 = vpop.f32.mrb[0].mxu0
      %v2150 = vpop.f32.mrb[0].mxu0
      %v2151 = vadd.f32 0.0, %v2150
      %v2152 = vpop.f32.mrb[0].mxu0
      %2153 = vmatprep.mubr.bf16.mxu0 0
      %2154 = vmatmul.mubr.bf16.gmra.mrb[0].mxu0 %v2089
      %v2155 = vpop.f32.mrb[0].mxu0
      %v2156 = vadd.f32 0.0, %v2155
      %v2157 = vpop.f32.mrb[0].mxu0
      %v2158 = vpop.f32.mrb[0].mxu0
      %v2159 = vadd.f32 0.0, %v2158
      %v2160 = vpop.f32.mrb[0].mxu0
      %2161 = vmatprep.mubr.bf16.mxu0 0
      %2162 = vmatmul.mubr.bf16.gmra.mrb[0].mxu0 %v2092
      %v2163 = vpop.f32.mrb[0].mxu0
      %v2164 = vadd.f32 0.0, %v2163
      %v2165 = vpop.f32.mrb[0].mxu0
      %v2166 = vpop.f32.mrb[0].mxu0
      %v2167 = vpop.f32.mrb[0].mxu0
      %2168 = vdwg.mxu0
      %v2169 = vadd.f32 %v1989, %v2132
      %v2170 = vadd.f32 %v1990, %v2135
      %v2171 = vadd.f32 %v1991, %v2140
      %v2172 = vadd.f32 %v1992, %v2143
      %v2173 = vadd.f32 %v1993, %v2148
      %v2174 = vadd.f32 %v1994, %v2151
      %v2175 = vadd.f32 %v1995, %v2156
      %v2176 = vadd.f32 %v1996, %v2159
      %v2177 = vadd.f32 %v1997, %v2164
      %v2178 = vld [vmem:[%s230 + $0x7c] sm:$0xc]
      %v2179 = vld [vmem:[%s230 + $0x80] sm:$0xf]
      %v2180 = vld [vmem:[%s230 + $0x84] sm:$0xf]
      %v2181 = vld [vmem:[%s230 + $0x88] sm:$0xf]
      %v2182 = vld [vmem:[%s230 + $0x8c] sm:$0xf]
      %v2183 = vld [vmem:[%s230 + $0x90] sm:$0xf]
      %v2184 = vld [vmem:[%s230 + $0x94] sm:$0xf]
      %v2185 = vld [vmem:[%s230 + $0x98] sm:$0xf]
      %v2186 = vld [vmem:[%s230 + $0x9c] sm:$0xf]
      %v2187 = vld [vmem:[%s230 + $0xa0] sm:$0x3]
      %s2188 = scalar_lea.vmem %s1, 52
      %v2189 = vld [vmem:[%s2188] sm:$0x7]
      %v2200 = vunpack.c.l.b16 %v2178
      %v2201 = vunpack.c.l.b16 %v2179
      %v2202 = vunpack.c.l.b16 %v2180
      %v2203 = vunpack.c.l.b16 %v2181
      %v2204 = vunpack.c.l.b16 %v2182
      %v2205 = vunpack.c.l.b16 %v2183
      %v2206 = vunpack.c.l.b16 %v2184
      %v2207 = vunpack.c.l.b16 %v2185
      %v2208 = vunpack.c.l.b16 %v2186
      %v2209 = vunpack.c.l.b16 %v2187
      %v2210 = vpack.c.b16 %v2201, %v2200
      %v2211 = vpack.c.b16 %v2203, %v2202
      %v2212 = vpack.c.b16 %v2205, %v2204
      %v2213 = vpack.c.b16 %v2207, %v2206
      %v2214 = vpack.c.b16 %v2209, %v2208
      %v2215 = vrot.slane %v2210, 2
      %v2216 = vrot.slane %v2211, 2
      %v2217 = vsel %vm1306, %v2215, %v2216
      %v2218 = vrot.slane %v2212, 2
      %v2219 = vsel %vm1306, %v2216, %v2218
      %v2220 = vrot.slane %v2213, 2
      %v2221 = vsel %vm1306, %v2218, %v2220
      %v2222 = vrot.slane %v2214, 2
      %v2223 = vsel %vm1306, %v2220, %v2222
      %v2225 = vsel %vm330, %v2217, 0
      %v2228 = vsel %vm330, %v2219, 0
      %v2231 = vsel %vm330, %v2221, 0
      %v2234 = vsel %vm330, %v2223, 0
      %v2237 = vsel %vm330, %v2222, 0
      %v2240 = vsel %vm346, %v2189, 0
      %2242 = vmatprep.subr.bf16.mxu0 0
      %2243 = vmatpush1.bf16.msra.mxu0 %v2240
      %2244 = vmatprep.subr.bf16.mxu0 0
      %2245 = vmatpush1.bf16.msra.mxu0 0
      %2246 = vmatprep.subr.bf16.mxu0 0
      %2247 = vmatpush1.bf16.msra.mxu0 0
      %2248 = vmatprep.subr.bf16.mxu0 0
      %2249 = vmatpush1.bf16.msra.mxu0 0
      %2250 = vmatprep.subr.bf16.mxu0 0
      %2251 = vmatpush1.bf16.msra.mxu0 0
      %2252 = vmatprep.subr.bf16.mxu0 0
      %2253 = vmatpush1.bf16.msra.mxu0 0
      %2254 = vmatprep.subr.bf16.mxu0 0
      %2255 = vmatpush1.bf16.msra.mxu0 0
      %2256 = vmatprep.subr.bf16.mxu0 0
      %2257 = vmatpush1.bf16.msra.mxu0 0
      %2258 = vmatprep.subr.bf16.mxu0 0
      %2259 = vmatpush1.bf16.msra.mxu0 0
      %2260 = vmatprep.subr.bf16.mxu0 0
      %2261 = vmatpush1.bf16.msra.mxu0 0
      %2262 = vmatprep.subr.bf16.mxu0 0
      %2263 = vmatpush1.bf16.msra.mxu0 0
      %2264 = vmatprep.subr.bf16.mxu0 0
      %2265 = vmatpush1.bf16.msra.mxu0 0
      %2266 = vmatprep.subr.bf16.mxu0 0
      %2267 = vmatpush1.bf16.msra.mxu0 0
      %2268 = vmatprep.subr.bf16.mxu0 0
      %2269 = vmatpush1.bf16.msra.mxu0 0
      %2270 = vmatprep.subr.bf16.mxu0 0
      %2271 = vmatpush1.bf16.msra.mxu0 0
      %2272 = vmatprep.subr.bf16.mxu0 0
      %2273 = vmatpush1.bf16.msra.mxu0 0
      %2274 = vmatprep.mubr.bf16.mxu0 0
      %2275 = vmatmul.mubr.bf16.gmra.mrb[0].mxu0 %v2225
      %v2276 = vpop.f32.mrb[0].mxu0
      %v2277 = vadd.f32 0.0, %v2276
      %v2278 = vpop.f32.mrb[0].mxu0
      %v2279 = vpop.f32.mrb[0].mxu0
      %v2280 = vadd.f32 0.0, %v2279
      %v2281 = vpop.f32.mrb[0].mxu0
      %2282 = vmatprep.mubr.bf16.mxu0 0
      %2283 = vmatmul.mubr.bf16.gmra.mrb[0].mxu0 %v2228
      %v2284 = vpop.f32.mrb[0].mxu0
      %v2285 = vadd.f32 0.0, %v2284
      %v2286 = vpop.f32.mrb[0].mxu0
      %v2287 = vpop.f32.mrb[0].mxu0
      %v2288 = vadd.f32 0.0, %v2287
      %v2289 = vpop.f32.mrb[0].mxu0
      %2290 = vmatprep.mubr.bf16.mxu0 0
      %2291 = vmatmul.mubr.bf16.gmra.mrb[0].mxu0 %v2231
      %v2292 = vpop.f32.mrb[0].mxu0
      %v2293 = vadd.f32 0.0, %v2292
      %v2294 = vpop.f32.mrb[0].mxu0
      %v2295 = vpop.f32.mrb[0].mxu0
      %v2296 = vadd.f32 0.0, %v2295
      %v2297 = vpop.f32.mrb[0].mxu0
      %2298 = vmatprep.mubr.bf16.mxu0 0
      %2299 = vmatmul.mubr.bf16.gmra.mrb[0].mxu0 %v2234
      %v2300 = vpop.f32.mrb[0].mxu0
      %v2301 = vadd.f32 0.0, %v2300
      %v2302 = vpop.f32.mrb[0].mxu0
      %v2303 = vpop.f32.mrb[0].mxu0
      %v2304 = vadd.f32 0.0, %v2303
      %v2305 = vpop.f32.mrb[0].mxu0
      %2306 = vmatprep.mubr.bf16.mxu0 0
      %2307 = vmatmul.mubr.bf16.gmra.mrb[0].mxu0 %v2237
      %v2308 = vpop.f32.mrb[0].mxu0
      %v2309 = vadd.f32 0.0, %v2308
      %v2310 = vpop.f32.mrb[0].mxu0
      %v2311 = vpop.f32.mrb[0].mxu0
      %v2312 = vpop.f32.mrb[0].mxu0
      %2313 = vdwg.mxu0
      %v2314 = vadd.f32 %v2169, %v2277
      %v2315 = vadd.f32 %v2170, %v2280
      %v2316 = vadd.f32 %v2171, %v2285
      %v2317 = vadd.f32 %v2172, %v2288
      %v2318 = vadd.f32 %v2173, %v2293
      %v2319 = vadd.f32 %v2174, %v2296
      %v2320 = vadd.f32 %v2175, %v2301
      %v2321 = vadd.f32 %v2176, %v2304
      %v2322 = vadd.f32 %v2177, %v2309
      %v2323 = vld [vmem:[%s230 + $0x54] sm:$0xc]
      %s2324 = scalar_lea.vmem %s1, 56
      %v2325 = vld [vmem:[%s2324] sm:$0x7]
      %v2327 = vunpack.c.l.b16 %v2323
      %v2328 = vpack.c.b16 %v2021, %v2327
      %v2329 = vrot.slane %v2328, 2
      %v2330 = vrot.slane %v2031, 2
      %v2331 = vsel %vm1306, %v2329, %v2330
      %v2332 = vrot.slane %v2032, 2
      %v2333 = vsel %vm1306, %v2330, %v2332
      %v2334 = vrot.slane %v2033, 2
      %v2335 = vsel %vm1306, %v2332, %v2334
      %v2336 = vrot.slane %v2034, 2
      %v2337 = vsel %vm1306, %v2334, %v2336
      %v2339 = vsel %vm330, %v2331, 0
      %v2342 = vsel %vm330, %v2333, 0
      %v2345 = vsel %vm330, %v2335, 0
      %v2348 = vsel %vm330, %v2337, 0
      %v2351 = vsel %vm330, %v2336, 0
      %v2354 = vsel %vm346, %v2325, 0
      %2356 = vmatprep.subr.bf16.mxu0 0
      %2357 = vmatpush1.bf16.msra.mxu0 %v2354
      %2358 = vmatprep.subr.bf16.mxu0 0
      %2359 = vmatpush1.bf16.msra.mxu0 0
      %2360 = vmatprep.subr.bf16.mxu0 0
      %2361 = vmatpush1.bf16.msra.mxu0 0
      %2362 = vmatprep.subr.bf16.mxu0 0
      %2363 = vmatpush1.bf16.msra.mxu0 0
      %2364 = vmatprep.subr.bf16.mxu0 0
      %2365 = vmatpush1.bf16.msra.mxu0 0
      %2366 = vmatprep.subr.bf16.mxu0 0
      %2367 = vmatpush1.bf16.msra.mxu0 0
      %2368 = vmatprep.subr.bf16.mxu0 0
      %2369 = vmatpush1.bf16.msra.mxu0 0
      %2370 = vmatprep.subr.bf16.mxu0 0
      %2371 = vmatpush1.bf16.msra.mxu0 0
      %2372 = vmatprep.subr.bf16.mxu0 0
      %2373 = vmatpush1.bf16.msra.mxu0 0
      %2374 = vmatprep.subr.bf16.mxu0 0
      %2375 = vmatpush1.bf16.msra.mxu0 0
      %2376 = vmatprep.subr.bf16.mxu0 0
      %2377 = vmatpush1.bf16.msra.mxu0 0
      %2378 = vmatprep.subr.bf16.mxu0 0
      %2379 = vmatpush1.bf16.msra.mxu0 0
      %2380 = vmatprep.subr.bf16.mxu0 0
      %2381 = vmatpush1.bf16.msra.mxu0 0
      %2382 = vmatprep.subr.bf16.mxu0 0
      %2383 = vmatpush1.bf16.msra.mxu0 0
      %2384 = vmatprep.subr.bf16.mxu0 0
      %2385 = vmatpush1.bf16.msra.mxu0 0
      %2386 = vmatprep.subr.bf16.mxu0 0
      %2387 = vmatpush1.bf16.msra.mxu0 0
      %2388 = vmatprep.mubr.bf16.mxu0 0
      %2389 = vmatmul.mubr.bf16.gmra.mrb[0].mxu0 %v2339
      %v2390 = vpop.f32.mrb[0].mxu0
      %v2391 = vadd.f32 0.0, %v2390
      %v2392 = vpop.f32.mrb[0].mxu0
      %v2393 = vpop.f32.mrb[0].mxu0
      %v2394 = vadd.f32 0.0, %v2393
      %v2395 = vpop.f32.mrb[0].mxu0
      %2396 = vmatprep.mubr.bf16.mxu0 0
      %2397 = vmatmul.mubr.bf16.gmra.mrb[0].mxu0 %v2342
      %v2398 = vpop.f32.mrb[0].mxu0
      %v2399 = vadd.f32 0.0, %v2398
      %v2400 = vpop.f32.mrb[0].mxu0
      %v2401 = vpop.f32.mrb[0].mxu0
      %v2402 = vadd.f32 0.0, %v2401
      %v2403 = vpop.f32.mrb[0].mxu0
      %2404 = vmatprep.mubr.bf16.mxu0 0
      %2405 = vmatmul.mubr.bf16.gmra.mrb[0].mxu0 %v2345
      %v2406 = vpop.f32.mrb[0].mxu0
      %v2407 = vadd.f32 0.0, %v2406
      %v2408 = vpop.f32.mrb[0].mxu0
      %v2409 = vpop.f32.mrb[0].mxu0
      %v2410 = vadd.f32 0.0, %v2409
      %v2411 = vpop.f32.mrb[0].mxu0
      %2412 = vmatprep.mubr.bf16.mxu0 0
      %2413 = vmatmul.mubr.bf16.gmra.mrb[0].mxu0 %v2348
      %v2414 = vpop.f32.mrb[0].mxu0
      %v2415 = vadd.f32 0.0, %v2414
      %v2416 = vpop.f32.mrb[0].mxu0
      %v2417 = vpop.f32.mrb[0].mxu0
      %v2418 = vadd.f32 0.0, %v2417
      %v2419 = vpop.f32.mrb[0].mxu0
      %2420 = vmatprep.mubr.bf16.mxu0 0
      %2421 = vmatmul.mubr.bf16.gmra.mrb[0].mxu0 %v2351
      %v2422 = vpop.f32.mrb[0].mxu0
      %v2423 = vadd.f32 0.0, %v2422
      %v2424 = vpop.f32.mrb[0].mxu0
      %v2425 = vpop.f32.mrb[0].mxu0
      %v2426 = vpop.f32.mrb[0].mxu0
      %2427 = vdwg.mxu0
      %v2428 = vadd.f32 %v2314, %v2391
      %v2429 = vadd.f32 %v2315, %v2394
      %v2430 = vadd.f32 %v2316, %v2399
      %v2431 = vadd.f32 %v2317, %v2402
      %v2432 = vadd.f32 %v2318, %v2407
      %v2433 = vadd.f32 %v2319, %v2410
      %v2434 = vadd.f32 %v2320, %v2415
      %v2435 = vadd.f32 %v2321, %v2418
      %v2436 = vadd.f32 %v2322, %v2423
      %v2437 = vld [vmem:[%s230 + $0xa0] sm:$0x7]
      %s2438 = scalar_lea.vmem %s1, 60
      %v2439 = vld [vmem:[%s2438] sm:$0x7]
      %v2441 = vunpack.c.l.b16 %v2437
      %v2442 = vpack.c.b16 %v2441, %v2208
      %vm2443 = vsmask.f32 5376
      %v2445 = vshrl.u32 %v2210, 16
      %v2447 = vrot.slane %v2445, 2
      %v2448 = vshll.u32 %v2210, 16
      %v2450 = vrot.slane %v2448, 3
      %v2451 = vor.u32 %v2447, %v2450
      %v2453 = vshrl.u32 %v2211, 16
      %v2455 = vrot.slane %v2453, 2
      %v2456 = vshll.u32 %v2211, 16
      %v2458 = vrot.slane %v2456, 3
      %v2459 = vor.u32 %v2455, %v2458
      %v2460 = vsel %vm2443, %v2451, %v2459
      %v2462 = vshrl.u32 %v2212, 16
      %v2464 = vrot.slane %v2462, 2
      %v2465 = vshll.u32 %v2212, 16
      %v2467 = vrot.slane %v2465, 3
      %v2468 = vor.u32 %v2464, %v2467
      %v2469 = vsel %vm2443, %v2459, %v2468
      %v2471 = vshrl.u32 %v2213, 16
      %v2473 = vrot.slane %v2471, 2
      %v2474 = vshll.u32 %v2213, 16
      %v2476 = vrot.slane %v2474, 3
      %v2477 = vor.u32 %v2473, %v2476
      %v2478 = vsel %vm2443, %v2468, %v2477
      %v2480 = vshrl.u32 %v2442, 16
      %v2482 = vrot.slane %v2480, 2
      %v2483 = vshll.u32 %v2442, 16
      %v2485 = vrot.slane %v2483, 3
      %v2486 = vor.u32 %v2482, %v2485
      %v2487 = vsel %vm2443, %v2477, %v2486
      %v2489 = vsel %vm330, %v2460, 0
      %v2492 = vsel %vm330, %v2469, 0
      %v2495 = vsel %vm330, %v2478, 0
      %v2498 = vsel %vm330, %v2487, 0
      %v2501 = vsel %vm330, %v2486, 0
      %v2504 = vsel %vm346, %v2439, 0
      %2506 = vmatprep.subr.bf16.mxu0 0
      %2507 = vmatpush1.bf16.msra.mxu0 %v2504
      %2508 = vmatprep.subr.bf16.mxu0 0
      %2509 = vmatpush1.bf16.msra.mxu0 0
      %2510 = vmatprep.subr.bf16.mxu0 0
      %2511 = vmatpush1.bf16.msra.mxu0 0
      %2512 = vmatprep.subr.bf16.mxu0 0
      %2513 = vmatpush1.bf16.msra.mxu0 0
      %2514 = vmatprep.subr.bf16.mxu0 0
      %2515 = vmatpush1.bf16.msra.mxu0 0
      %2516 = vmatprep.subr.bf16.mxu0 0
      %2517 = vmatpush1.bf16.msra.mxu0 0
      %2518 = vmatprep.subr.bf16.mxu0 0
      %2519 = vmatpush1.bf16.msra.mxu0 0
      %2520 = vmatprep.subr.bf16.mxu0 0
      %2521 = vmatpush1.bf16.msra.mxu0 0
      %2522 = vmatprep.subr.bf16.mxu0 0
      %2523 = vmatpush1.bf16.msra.mxu0 0
      %2524 = vmatprep.subr.bf16.mxu0 0
      %2525 = vmatpush1.bf16.msra.mxu0 0
      %2526 = vmatprep.subr.bf16.mxu0 0
      %2527 = vmatpush1.bf16.msra.mxu0 0
      %2528 = vmatprep.subr.bf16.mxu0 0
      %2529 = vmatpush1.bf16.msra.mxu0 0
      %2530 = vmatprep.subr.bf16.mxu0 0
      %2531 = vmatpush1.bf16.msra.mxu0 0
      %2532 = vmatprep.subr.bf16.mxu0 0
      %2533 = vmatpush1.bf16.msra.mxu0 0
      %2534 = vmatprep.subr.bf16.mxu0 0
      %2535 = vmatpush1.bf16.msra.mxu0 0
      %2536 = vmatprep.subr.bf16.mxu0 0
      %2537 = vmatpush1.bf16.msra.mxu0 0
      %2538 = vmatprep.mubr.bf16.mxu0 0
      %2539 = vmatmul.mubr.bf16.gmra.mrb[0].mxu0 %v2489
      %v2540 = vpop.f32.mrb[0].mxu0
      %v2541 = vadd.f32 0.0, %v2540
      %v2542 = vpop.f32.mrb[0].mxu0
      %v2543 = vpop.f32.mrb[0].mxu0
      %v2544 = vadd.f32 0.0, %v2543
      %v2545 = vpop.f32.mrb[0].mxu0
      %2546 = vmatprep.mubr.bf16.mxu0 0
      %2547 = vmatmul.mubr.bf16.gmra.mrb[0].mxu0 %v2492
      %v2548 = vpop.f32.mrb[0].mxu0
      %v2549 = vadd.f32 0.0, %v2548
      %v2550 = vpop.f32.mrb[0].mxu0
      %v2551 = vpop.f32.mrb[0].mxu0
      %v2552 = vadd.f32 0.0, %v2551
      %v2553 = vpop.f32.mrb[0].mxu0
      %2554 = vmatprep.mubr.bf16.mxu0 0
      %2555 = vmatmul.mubr.bf16.gmra.mrb[0].mxu0 %v2495
      %v2556 = vpop.f32.mrb[0].mxu0
      %v2557 = vadd.f32 0.0, %v2556
      %v2558 = vpop.f32.mrb[0].mxu0
      %v2559 = vpop.f32.mrb[0].mxu0
      %v2560 = vadd.f32 0.0, %v2559
      %v2561 = vpop.f32.mrb[0].mxu0
      %2562 = vmatprep.mubr.bf16.mxu0 0
      %2563 = vmatmul.mubr.bf16.gmra.mrb[0].mxu0 %v2498
      %v2564 = vpop.f32.mrb[0].mxu0
      %v2565 = vadd.f32 0.0, %v2564
      %v2566 = vpop.f32.mrb[0].mxu0
      %v2567 = vpop.f32.mrb[0].mxu0
      %v2568 = vadd.f32 0.0, %v2567
      %v2569 = vpop.f32.mrb[0].mxu0
      %2570 = vmatprep.mubr.bf16.mxu0 0
      %2571 = vmatmul.mubr.bf16.gmra.mrb[0].mxu0 %v2501
      %v2572 = vpop.f32.mrb[0].mxu0
      %v2573 = vadd.f32 0.0, %v2572
      %v2574 = vpop.f32.mrb[0].mxu0
      %v2575 = vpop.f32.mrb[0].mxu0
      %v2576 = vpop.f32.mrb[0].mxu0
      %2577 = vdwg.mxu0
      %v2578 = vadd.f32 %v2428, %v2541
      %v2579 = vadd.f32 %v2429, %v2544
      %v2580 = vadd.f32 %v2430, %v2549
      %v2581 = vadd.f32 %v2431, %v2552
      %v2582 = vadd.f32 %v2432, %v2557
      %v2583 = vadd.f32 %v2433, %v2560
      %v2584 = vadd.f32 %v2434, %v2565
      %v2585 = vadd.f32 %v2435, %v2568
      %v2586 = vadd.f32 %v2436, %v2573
      %vm2587 = vcmask 130048
      %2588 = vst.msk [vmem:[%s235] sm:$0xff] %vm2587, %v2578
      %s2589 = scalar_lea.vmem %s235, 8
      %vm2590 = vcmask 130049
      %2591 = vst.msk [vmem:[%s2589 - $0x1] sm:$0xfe] %vm2590, %v2579
      %vm2592 = vcmask 122880
      %2593 = vst.msk [vmem:[%s2589 + $0x7] sm:$0x1] %vm2592, %v2580
      %s2594 = scalar_lea.vmem %s235, 16
      %vm2595 = vcmask 130050
      %2596 = vst.msk [vmem:[%s2594 - $0x2] sm:$0xfc] %vm2595, %v2580
      %vm2597 = vcmask 123904
      %2598 = vst.msk [vmem:[%s2594 + $0x6] sm:$0x3] %vm2597, %v2581
      %s2599 = scalar_lea.vmem %s235, 24
      %vm2600 = vcmask 130051
      %2601 = vst.msk [vmem:[%s2599 - $0x3] sm:$0xf8] %vm2600, %v2581
      %vm2602 = vcmask 124928
      %2603 = vst.msk [vmem:[%s2599 + $0x5] sm:$0x7] %vm2602, %v2582
      %s2604 = scalar_lea.vmem %s235, 32
      %vm2605 = vcmask 130052
      %2606 = vst.msk [vmem:[%s2604 - $0x4] sm:$0xf0] %vm2605, %v2582
      %vm2607 = vcmask 125952
      %2608 = vst.msk [vmem:[%s2604 + $0x4] sm:$0xf] %vm2607, %v2583
      %s2609 = scalar_lea.vmem %s235, 40
      %vm2610 = vcmask 130053
      %2611 = vst.msk [vmem:[%s2609 - $0x5] sm:$0xe0] %vm2610, %v2583
      %vm2612 = vcmask 126976
      %2613 = vst.msk [vmem:[%s2609 + $0x3] sm:$0x1f] %vm2612, %v2584
      %s2614 = scalar_lea.vmem %s235, 48
      %vm2615 = vcmask 130054
      %2616 = vst.msk [vmem:[%s2614 - $0x6] sm:$0xc0] %vm2615, %v2584
      %vm2617 = vcmask 128000
      %2618 = vst.msk [vmem:[%s2614 + $0x2] sm:$0x3f] %vm2617, %v2585
      %s2619 = scalar_lea.vmem %s235, 56
      %vm2620 = vcmask 130055
      %2621 = vst.msk [vmem:[%s2619 - $0x7] sm:$0x80] %vm2620, %v2585
      %vm2622 = vcmask 129024
      %2623 = vst.msk [vmem:[%s2619 + $0x1] sm:$0x7f] %vm2622, %v2586
      %v2624 = vld [vmem:[%s2] sm:$0xff]
      %v2625 = vld [vmem:[%s2 + $0x8] sm:$0xff]
      %v2626 = vld [vmem:[%s2 + $0x10] sm:$0xff]
      %v2627 = vld [vmem:[%s2 + $0x18] sm:$0xff]
      %v2628 = vld [vmem:[%s2 + $0x20] sm:$0xff]
      %v2629 = vld [vmem:[%s2 + $0x28] sm:$0xff]
      %v2630 = vld [vmem:[%s2 + $0x30] sm:$0xff]
      %v2631 = vld [vmem:[%s2 + $0x38] sm:$0xff]
      %v2632 = vld [vmem:[%s2 + $0x40] sm:$0xff]
      %2634 = vset.pattern.permute.xlu0 0
      %2635 = vperm.xlu0 %2634, %v2624
      %v2636 = vpop.permute.xlu0 %2635
      %2639 = vset.pattern.permute.xlu0 0
      %2640 = vperm.xlu0 %2639, %v2625
      %v2641 = vpop.permute.xlu0 %2640
      %2644 = vset.pattern.permute.xlu0 0
      %2645 = vperm.xlu0 %2644, %v2626
      %v2646 = vpop.permute.xlu0 %2645
      %2649 = vset.pattern.permute.xlu0 0
      %2650 = vperm.xlu0 %2649, %v2627
      %v2651 = vpop.permute.xlu0 %2650
      %2654 = vset.pattern.permute.xlu0 0
      %2655 = vperm.xlu0 %2654, %v2628
      %v2656 = vpop.permute.xlu0 %2655
      %2659 = vset.pattern.permute.xlu0 0
      %2660 = vperm.xlu0 %2659, %v2629
      %v2661 = vpop.permute.xlu0 %2660
      %2664 = vset.pattern.permute.xlu0 0
      %2665 = vperm.xlu0 %2664, %v2630
      %v2666 = vpop.permute.xlu0 %2665
      %2669 = vset.pattern.permute.xlu0 0
      %2670 = vperm.xlu0 %2669, %v2631
      %v2671 = vpop.permute.xlu0 %2670
      %2674 = vset.pattern.permute.xlu0 0
      %2675 = vperm.xlu0 %2674, %v2632
      %v2676 = vpop.permute.xlu0 %2675
      %v2678 = vmul.f32 %v2578, %v2636
      %v2679 = vmul.f32 %v2579, %v2641
      %v2680 = vmul.f32 %v2580, %v2646
      %v2681 = vmul.f32 %v2581, %v2651
      %v2682 = vmul.f32 %v2582, %v2656
      %v2683 = vmul.f32 %v2583, %v2661
      %v2684 = vmul.f32 %v2584, %v2666
      %v2685 = vmul.f32 %v2585, %v2671
      %v2686 = vmul.f32 %v2586, %v2676
      %v2687 = vsel %vm2587, %v2678, 0.0
      %v2688 = vsel %vm2587, %v2679, 0.0
      %v2689 = vadd.f32 %v2687, %v2688
      %v2690 = vsel %vm2587, %v2680, 0.0
      %v2691 = vadd.f32 %v2689, %v2690
      %v2692 = vsel %vm2587, %v2681, 0.0
      %v2693 = vadd.f32 %v2691, %v2692
      %v2694 = vsel %vm2587, %v2682, 0.0
      %v2695 = vadd.f32 %v2693, %v2694
      %v2696 = vsel %vm2587, %v2683, 0.0
      %v2697 = vadd.f32 %v2695, %v2696
      %v2698 = vsel %vm2587, %v2684, 0.0
      %v2699 = vadd.f32 %v2697, %v2698
      %v2700 = vsel %vm2587, %v2685, 0.0
      %v2701 = vadd.f32 %v2699, %v2700
      %v2702 = vsel %vm2587, %v2686, 0.0
      %v2703 = vadd.f32 %v2701, %v2702
      %v2704 = vrot.slane %v2703, 4
      %v2705 = vadd.f32 %v2703, %v2704
      %v2706 = vrot.slane %v2705, 2
      %v2707 = vadd.f32 %v2705, %v2706
      %v2708 = vrot.slane %v2707, 1
      %v2709 = vadd.f32 %v2707, %v2708
      %2710 = vst.msk [vmem:[%s238] sm:$0x1] %vm2592, %v2709
      %v2711 = vmul.f32 %v2678, %v2578
      %v2712 = vmul.f32 %v2679, %v2579
      %v2713 = vmul.f32 %v2680, %v2580
      %v2714 = vmul.f32 %v2681, %v2581
      %v2715 = vmul.f32 %v2682, %v2582
      %v2716 = vmul.f32 %v2683, %v2583
      %v2717 = vmul.f32 %v2684, %v2584
      %v2718 = vmul.f32 %v2685, %v2585
      %v2719 = vmul.f32 %v2686, %v2586
      %v2720 = vsel %vm2587, %v2711, 0.0
      %v2721 = vsel %vm2587, %v2712, 0.0
      %v2722 = vadd.f32 %v2720, %v2721
      %v2723 = vsel %vm2587, %v2713, 0.0
      %v2724 = vadd.f32 %v2722, %v2723
      %v2725 = vsel %vm2587, %v2714, 0.0
      %v2726 = vadd.f32 %v2724, %v2725
      %v2727 = vsel %vm2587, %v2715, 0.0
      %v2728 = vadd.f32 %v2726, %v2727
      %v2729 = vsel %vm2587, %v2716, 0.0
      %v2730 = vadd.f32 %v2728, %v2729
      %v2731 = vsel %vm2587, %v2717, 0.0
      %v2732 = vadd.f32 %v2730, %v2731
      %v2733 = vsel %vm2587, %v2718, 0.0
      %v2734 = vadd.f32 %v2732, %v2733
      %v2735 = vsel %vm2587, %v2719, 0.0
      %v2736 = vadd.f32 %v2734, %v2735
      %v2737 = vrot.slane %v2736, 4
      %v2738 = vadd.f32 %v2736, %v2737
      %v2739 = vrot.slane %v2738, 2
      %v2740 = vadd.f32 %v2738, %v2739
      %v2741 = vrot.slane %v2740, 1
      %v2742 = vadd.f32 %v2740, %v2741
      %2743 = vst.msk [vmem:[%s241] sm:$0x1] %vm2592, %v2742
      %p2744 = scmp.lt.s32.totalorder %s17, 1
      %s2745 = scalar_select %p2744, %s17, 1
      %s2746 = smul.addr %s2745, 8
      %s2747 = smul.addr %s2746, 8
      %s2748 = scalar_lea.vmem %s3, %s2747
      %p2749 = scmp.lt.s32.totalorder %s17, 1
      %s2750 = scalar_select %p2749, %s17, 1
      %s2751 = scalar_lea.vmem %s4, %s2750
      %p2752 = scmp.lt.s32.totalorder %s17, 1
      %s2753 = scalar_select %p2752, %s17, 1
      %s2754 = scalar_lea.vmem %s5, %s2753
      // Predicated region
      $region33: #{discriminator_forward.8} parent=31 // pred_check
        %p2755 = pneg %p103
      $region34: #{discriminator_forward.8} parent=31 // pred_check_branch
        %2757 = sbr.rel (%p2755) target = $region36
      $region35: #{discriminator_forward.8} parent=31 // pred_region
        _
      $region36: #{discriminator_forward.8} parent=31 // pred_fallthru
        _
      // Predicated region
      $region37: #{discriminator_forward.8} parent=31 // pred_check
        %p2758 = pneg %p129
      $region38: #{discriminator_forward.8} parent=31 // pred_check_branch
        %2760 = sbr.rel (%p2758) target = $region40
      $region39: #{discriminator_forward.8} parent=31 // pred_region
        _
      $region40: #{discriminator_forward.8} parent=31 // pred_fallthru
        _
      // Predicated region
      $region41: #{discriminator_forward.8} parent=31 // pred_check
        %p2761 = pneg %p155
      $region42: #{discriminator_forward.8} parent=31 // pred_check_branch
        %2763 = sbr.rel (%p2761) target = $region44
      $region43: #{discriminator_forward.8} parent=31 // pred_region
        _
      $region44: #{discriminator_forward.8} parent=31 // pred_fallthru
        _
    $region32: #{discriminator_forward.8} parent=5 // pred_fallthru
      _
    %p2764 = scmp.le.s32.totalorder 2, %s12
    // Predicated region
    $region45: #{discriminator_forward.8} parent=5 // pred_check
      %p2765 = pneg %p2764
    $region46: #{discriminator_forward.8} parent=5 // pred_check_branch
      %2767 = sbr.rel (%p2765) target = $region48
    $region47: #{discriminator_forward.8} parent=5 // pred_region
      %s2768 = ssub.s32 %s12, 2
      // Predicated region
      $region49: #{discriminator_forward.8} parent=47 // pred_check
        %p2769 = pneg %p109
      $region50: #{discriminator_forward.8} parent=47 // pred_check_branch
        %2771 = sbr.rel (%p2769) target = $region52
      $region51: #{discriminator_forward.8} parent=47 // pred_region
        %p2772 = scmp.lt.s32.totalorder %s18, 1
        %s2773 = scalar_select %p2772, %s18, 1
        %s2774 = smul.addr %s2773, 8
        %s2775 = smul.addr %s2774, 8
        %s2776 = scalar_lea.vmem %s3, %s2775
      $region52: #{discriminator_forward.8} parent=47 // pred_fallthru
        _
      // Predicated region
      $region53: #{discriminator_forward.8} parent=47 // pred_check
        %p2777 = pneg %p135
      $region54: #{discriminator_forward.8} parent=47 // pred_check_branch
        %2779 = sbr.rel (%p2777) target = $region56
      $region55: #{discriminator_forward.8} parent=47 // pred_region
        %p2780 = scmp.lt.s32.totalorder %s18, 1
        %s2781 = scalar_select %p2780, %s18, 1
        %s2782 = scalar_lea.vmem %s4, %s2781
      $region56: #{discriminator_forward.8} parent=47 // pred_fallthru
        _
      // Predicated region
      $region57: #{discriminator_forward.8} parent=47 // pred_check
        %p2783 = pneg %p161
      $region58: #{discriminator_forward.8} parent=47 // pred_check_branch
        %2785 = sbr.rel (%p2783) target = $region60
      $region59: #{discriminator_forward.8} parent=47 // pred_region
        %p2786 = scmp.lt.s32.totalorder %s18, 1
        %s2787 = scalar_select %p2786, %s18, 1
        %s2788 = scalar_lea.vmem %s5, %s2787
      $region60: #{discriminator_forward.8} parent=47 // pred_fallthru
        _
    $region48: #{discriminator_forward.8} parent=5 // pred_fallthru
      _
  $region6: #{discriminator_forward.8} parent=0 // loop_footer
    %s16 = sadd.s32 1, %s12
  $region7: #{discriminator_forward.8} parent=0 // loop_footer_branch
    %11 = sbr.rel target = $region3
  $region8: #{discriminator_forward.8} parent=0 // loop_exit
    _

// kernel: tile.24
$region0: #{tile.24}
  #allocation0 [shape = 's32[1]{0}', space=sflag, size = 0x4, scoped, tag = 'scoped memory for tile.24']
  %s0 = inlined_call_operand.vmem [shape: f32[5], index: 0, kind: input, shape index: {}]
  %s1 = inlined_call_operand.vmem [shape: f32[4,5], index: 1, kind: output, shape index: {}]
  // Predicated region
  $region2: #{tile.24} parent=0 // pred_check
    _
  $region3: #{tile.24} parent=0 // pred_check_branch
    %3 = sbr.rel (0) target = $region5
  $region4: #{tile.24} parent=0 // pred_region
    _
  $region5: #{tile.24} parent=0 // pred_fallthru
    _
  %v4 = vld [vmem:[%s0] ss:$0 sm:$0xff]
  %5 = vst [vmem:[%s1] sm:$0xf] %v4

// kernel: tile.1
$region0: #{tile.1}
  %s0 = inlined_call_operand.vmem [shape: f32[4,5], index: 0, kind: input, shape index: {}]
  %s1 = inlined_call_operand.vmem [shape: f32[20,1], index: 1, kind: output, shape index: {}]
  $region1: #{tile.1} parent=0
    #allocation0 [shape = 'u8[4096]{0}', space=vmem, size = 0x1000, scoped, tag = 'scoped mem for input reshape']
    %s3 = sshllo.u32 0, 4
    %v4 = vld [vmem:[%s0] sm:%s3]
    %5 = vst [vmem:[#allocation0] sm:%s3] %v4
    %v6 = vld [vmem:[#allocation0] sm:$0xf]
    %vm7 = vcmask 7168
    %8 = vst.msk [vmem:[%s1] ss:$5 sm:$0xf] %vm7, %v6
    %v9 = vld [vmem:[#allocation0] sm:$0xf]
    %10 = vrot.lane.b32.xlu0 %v9, 127
    %v11 = vpop.permute.xlu0 %10
    %vm12 = vcmask 7168
    %s13 = scalar_lea.vmem %s1, 1
    %14 = vst.msk [vmem:[%s13] ss:$5 sm:$0xf] %vm12, %v11
    %v15 = vld [vmem:[#allocation0] sm:$0xf]
    %16 = vrot.lane.b32.xlu0 %v15, 126
    %v17 = vpop.permute.xlu0 %16
    %vm18 = vcmask 7168
    %s19 = scalar_lea.vmem %s1, 2
    %20 = vst.msk [vmem:[%s19] ss:$5 sm:$0xf] %vm18, %v17
    %v21 = vld [vmem:[#allocation0] sm:$0xf]
    %22 = vrot.lane.b32.xlu0 %v21, 125
    %v23 = vpop.permute.xlu0 %22
    %vm24 = vcmask 7168
    %s25 = scalar_lea.vmem %s1, 3
    %26 = vst.msk [vmem:[%s25] ss:$5 sm:$0xf] %vm24, %v23
    %v27 = vld [vmem:[#allocation0] sm:$0xf]
    %28 = vrot.lane.b32.xlu0 %v27, 124
    %v29 = vpop.permute.xlu0 %28
    %vm30 = vcmask 7168
    %s31 = scalar_lea.vmem %s1, 4
    %32 = vst.msk [vmem:[%s31] ss:$5 sm:$0xf] %vm30, %v29

// kernel: discriminator_forward.11
$region0: #{discriminator_forward.11}
  #allocation0 [shape = 'u32[]', space=smem, size = 0x4, offset = 0x4, fixed_abs, tag = 'smem constant byte address 0x4 - core index']
  #allocation1 [shape = 'u32[144,128]{1,0:T(1,128)}', space=vmem, size = 0x12000, scoped, tag = 'internal scratch']
  %s0 = inlined_call_operand.vmem [shape: f32[32,32], index: 0, kind: input, shape index: {}]
  %s1 = inlined_call_operand.vmem [shape: f32[1,32], index: 1, kind: input, shape index: {}]
  %s2 = inlined_call_operand.vmem [shape: f32[1,32], index: 2, kind: input, shape index: {}]
  %s3 = inlined_call_operand.vmem [shape: bf16[32,32], index: 3, kind: output, shape index: {}]
  %s4 = sld [smem:[#allocation0]]
  $region45: #{discriminator_forward.11} parent=0
    _
  %s6 = ssub.s32 1, %s4
  %s7 = scalar_select 0, %s6, %s4
  loop: start=0, step=1, limit=4
  $region2: #{discriminator_forward.11} parent=0 // loop_pre_header
    _
  $region3: #{discriminator_forward.11} parent=0 // loop_header
    %s9 = sphi 0, %s13
    %p10 = scmp.ge.s32.totalorder %s9, 4
    %s19 = sphi 0, %s21
    %s22 = sphi 0, %s19
    %s23 = sphi 0, %s22
    %s39 = sphi 0, %s23
    %s43 = sphi 0, %s43
    %s45 = sphi 0, %s43
    %s46 = sphi 0, %s45
    %s60 = sphi 0, %s46
    %s64 = sphi 0, %s64
    %s66 = sphi 0, %s64
    %s67 = sphi 0, %s66
    %s81 = sphi 0, %s67
    %s87 = sphi 0, %s89
    %s90 = sphi 0, %s87
    %s91 = sphi 0, %s90
    %s107 = sphi 0, %s91
  $region4: #{discriminator_forward.11} parent=0 // loop_header_branch
    %12 = sbr.rel (%p10) target = $region8
  $region5: #{discriminator_forward.11} parent=0 // loop_body
    %s14 = ssub.s32 %s9, 1
    %s15 = ssub.s32 %s9, 2
    %s16 = sadd.s32 %s9, 1
    %s17 = ssub.s32 %s9, %s16
    %p18 = scmp.eq.s32.totalorder %s17, 0
    %s20 = sadd.s32 %s19, 1
    %s21 = scalar_select %p18, %s19, %s20
    %p24 = pneg %p18
    %p25 = scmp.eq.s32.totalorder %s9, 1
    %p26 = por %p24, %p25
    %p27 = scmp.ne.s32.totalorder %s19, %s22
    %p28 = scmp.eq.s32.totalorder %s9, 0
    %p29 = por %p27, %p28
    %p30 = scmp.ne.s32.totalorder %s19, %s22
    %p31 = scmp.eq.s32.totalorder %s14, 1
    %p32 = por %p30, %p31
    %p33 = scmp.ne.s32.totalorder %s22, %s23
    %p34 = scmp.eq.s32.totalorder %s14, 0
    %p35 = por %p33, %p34
    %p36 = scmp.ne.s32.totalorder %s22, %s23
    %p37 = scmp.eq.s32.totalorder %s15, 1
    %p38 = por %p36, %p37
    %p40 = scmp.ne.s32.totalorder %s23, %s39
    %p41 = scmp.eq.s32.totalorder %s15, 0
    %p42 = por %p40, %p41
    %s44 = sadd.s32 %s43, 1
    %p47 = scmp.eq.s32.totalorder %s9, 1
    %p48 = scmp.ne.s32.totalorder %s43, %s45
    %p49 = scmp.eq.s32.totalorder %s9, 0
    %p50 = por %p48, %p49
    %p51 = scmp.ne.s32.totalorder %s43, %s45
    %p52 = scmp.eq.s32.totalorder %s14, 1
    %p53 = por %p51, %p52
    %p54 = scmp.ne.s32.totalorder %s45, %s46
    %p55 = scmp.eq.s32.totalorder %s14, 0
    %p56 = por %p54, %p55
    %p57 = scmp.ne.s32.totalorder %s45, %s46
    %p58 = scmp.eq.s32.totalorder %s15, 1
    %p59 = por %p57, %p58
    %p61 = scmp.ne.s32.totalorder %s46, %s60
    %p62 = scmp.eq.s32.totalorder %s15, 0
    %p63 = por %p61, %p62
    %s65 = sadd.s32 %s64, 1
    %p68 = scmp.eq.s32.totalorder %s9, 1
    %p69 = scmp.ne.s32.totalorder %s64, %s66
    %p70 = scmp.eq.s32.totalorder %s9, 0
    %p71 = por %p69, %p70
    %p72 = scmp.ne.s32.totalorder %s64, %s66
    %p73 = scmp.eq.s32.totalorder %s14, 1
    %p74 = por %p72, %p73
    %p75 = scmp.ne.s32.totalorder %s66, %s67
    %p76 = scmp.eq.s32.totalorder %s14, 0
    %p77 = por %p75, %p76
    %p78 = scmp.ne.s32.totalorder %s66, %s67
    %p79 = scmp.eq.s32.totalorder %s15, 1
    %p80 = por %p78, %p79
    %p82 = scmp.ne.s32.totalorder %s67, %s81
    %p83 = scmp.eq.s32.totalorder %s15, 0
    %p84 = por %p82, %p83
    %s85 = ssub.s32 %s9, %s16
    %p86 = scmp.eq.s32.totalorder %s85, 0
    %s88 = sadd.s32 %s87, 1
    %s89 = scalar_select %p86, %s87, %s88
    %p92 = pneg %p86
    %p93 = scmp.eq.s32.totalorder %s9, 1
    %p94 = por %p92, %p93
    %p95 = scmp.ne.s32.totalorder %s87, %s90
    %p96 = scmp.eq.s32.totalorder %s9, 0
    %p97 = por %p95, %p96
    %p98 = scmp.ne.s32.totalorder %s87, %s90
    %p99 = scmp.eq.s32.totalorder %s14, 1
    %p100 = por %p98, %p99
    %p101 = scmp.ne.s32.totalorder %s90, %s91
    %p102 = scmp.eq.s32.totalorder %s14, 0
    %p103 = por %p101, %p102
    %p104 = scmp.ne.s32.totalorder %s90, %s91
    %p105 = scmp.eq.s32.totalorder %s15, 1
    %p106 = por %p104, %p105
    %p108 = scmp.ne.s32.totalorder %s91, %s107
    %p109 = scmp.eq.s32.totalorder %s15, 0
    %p110 = por %p108, %p109
    %p111 = scmp.le.s32.totalorder 1, %s9
    %p112 = scmp.lt.s32.totalorder %s9, 3
    %p113 = pnand %p111, %p112
    %p114 = pneg %p113
    // Predicated region
    $region9: #{discriminator_forward.11} parent=5 // pred_check
      _
    $region10: #{discriminator_forward.11} parent=5 // pred_check_branch
      %116 = sbr.rel (%p113) target = $region12
    $region11: #{discriminator_forward.11} parent=5 // pred_region
      %s117 = ssub.s32 %s9, 1
      // Predicated region
      $region13: #{discriminator_forward.11} parent=11 // pred_check
        %p118 = pneg %p56
      $region14: #{discriminator_forward.11} parent=11 // pred_check_branch
        %120 = sbr.rel (%p118) target = $region16
      $region15: #{discriminator_forward.11} parent=11 // pred_region
        _
      $region16: #{discriminator_forward.11} parent=11 // pred_fallthru
        _
      // Predicated region
      $region17: #{discriminator_forward.11} parent=11 // pred_check
        %p121 = pneg %p77
      $region18: #{discriminator_forward.11} parent=11 // pred_check_branch
        %123 = sbr.rel (%p121) target = $region20
      $region19: #{discriminator_forward.11} parent=11 // pred_region
        _
      $region20: #{discriminator_forward.11} parent=11 // pred_fallthru
        _
    $region12: #{discriminator_forward.11} parent=5 // pred_fallthru
      _
    %p124 = scmp.lt.s32.totalorder %s9, 2
    // Predicated region
    $region21: #{discriminator_forward.11} parent=5 // pred_check
      %p125 = pneg %p124
    $region22: #{discriminator_forward.11} parent=5 // pred_check_branch
      %127 = sbr.rel (%p125) target = $region24
    $region23: #{discriminator_forward.11} parent=5 // pred_region
      // Predicated region
      $region25: #{discriminator_forward.11} parent=23 // pred_check
        %p128 = pneg %p29
      $region26: #{discriminator_forward.11} parent=23 // pred_check_branch
        %130 = sbr.rel (%p128) target = $region28
      $region27: #{discriminator_forward.11} parent=23 // pred_region
        %s131 = smul.u32 2, %s9
        %p132 = scmp.lt.s32.totalorder %s131, 3
        %s133 = scalar_select %p132, %s131, 3
        %s134 = smul.addr %s133, 8
        %s135 = scalar_lea.vmem %s0, %s134
        %s136 = smul.u32 2, %s9
      $region28: #{discriminator_forward.11} parent=23 // pred_fallthru
        _
    $region24: #{discriminator_forward.11} parent=5 // pred_fallthru
      _
    %p137 = scmp.le.s32.totalorder 1, %s9
    %p138 = scmp.lt.s32.totalorder %s9, 3
    %p139 = pnand %p137, %p138
    %p140 = pneg %p139
    // Predicated region
    $region29: #{discriminator_forward.11} parent=5 // pred_check
      _
    $region30: #{discriminator_forward.11} parent=5 // pred_check_branch
      %142 = sbr.rel (%p139) target = $region32
    $region31: #{discriminator_forward.11} parent=5 // pred_region
      %s143 = ssub.s32 %s9, 1
      %s144 = smul.u32 2, %s14
      %p145 = scmp.lt.s32.totalorder %s144, 3
      %s146 = scalar_select %p145, %s144, 3
      %s147 = smul.addr %s146, 8
      %s148 = scalar_lea.vmem %s0, %s147
      %p149 = pneg %p35
      %p150 = pneg %p32
      %p151 = pneg %p56
      %p152 = pneg %p53
      %p153 = pneg %p77
      %p154 = pneg %p74
      %p155 = pneg %p103
      %p156 = pneg %p100
      %s157 = smul.u32 2, %s14
      %p158 = scmp.lt.s32.totalorder %s157, 3
      %s159 = scalar_select %p158, %s157, 3
      %s160 = smul.addr %s159, 4
      %s161 = scalar_lea.vmem %s3, %s160
      %s162 = smul.u32 2, %s14
      %p163 = scmp.lt.s32.totalorder %s162, 3
      %s164 = scalar_select %p163, %s162, 3
      %s165 = smul.addr %s164, 8
      %s166 = scalar_lea.vmem %s0, %s165
      %s167 = smul.u32 2, %s14
      %s168 = smul.u32 2, %s14
      %p169 = scmp.lt.s32.totalorder %s168, 3
      %s170 = scalar_select %p169, %s168, 3
      %s171 = smul.addr %s170, 4
      %s172 = scalar_lea.vmem %s3, %s171
      %s173 = smul.u32 2, %s14
      %v174 = vld [vmem:[%s166] sm:$0xff]
      %v175 = vld [vmem:[%s166 + $0x8] sm:$0xff]
      %v176 = vld [vmem:[%s1] sm:$0x1]
      %v178 = vlaneseq
      %v179 = vshrl.u32 %v178, 7
      %v180 = vsub.s32 0, %v179
      %v181 = vrot.slane %v176, %v180
      %v183 = vmul.f32 %v174, %v181
      %v184 = vmul.f32 %v175, %v181
      %v185 = vld [vmem:[%s2] sm:$0x1]
      %v187 = vlaneseq
      %v188 = vshrl.u32 %v187, 7
      %v189 = vsub.s32 0, %v188
      %v190 = vrot.slane %v185, %v189
      %v192 = vadd.f32 %v183, %v190
      %v193 = vadd.f32 %v184, %v190
      %vm194 = vcmp.ge.f32.partialorder %v192, 0.0
      %vm195 = vcmp.ge.f32.partialorder %v193, 0.0
      %v196 = vmul.f32 %v192, 0.2
      %v197 = vmul.f32 %v193, 0.2
      %v198 = vsel %vm194, %v192, %v196
      %v199 = vsel %vm195, %v193, %v197
      %v200 = vpack.c.bf16 %v199, %v198
      %v202 = vunpack.c.l.b16 %v200
      %v203 = vunpack.c.h.b16 %v200
      %v204 = vpack.c.b16 %v202, %v202
      %v205 = vpack.c.b16 %v203, %v203
      %vm208 = vcmask 257024
      %209 = vst.msk [vmem:[%s172] sm:$0xf] %vm208, %v204
      %210 = vst.msk [vmem:[%s172 + $0x4] sm:$0xf] %vm208, %v205
      %s211 = smul.u32 2, %s14
      %p212 = scmp.lt.s32.totalorder %s211, 3
      %s213 = scalar_select %p212, %s211, 3
      %s214 = smul.addr %s213, 4
      %s215 = scalar_lea.vmem %s3, %s214
      // Predicated region
      $region33: #{discriminator_forward.11} parent=31 // pred_check
        %p216 = pneg %p100
      $region34: #{discriminator_forward.11} parent=31 // pred_check_branch
        %218 = sbr.rel (%p216) target = $region36
      $region35: #{discriminator_forward.11} parent=31 // pred_region
        %s219 = smul.u32 2, %s14
      $region36: #{discriminator_forward.11} parent=31 // pred_fallthru
        _
    $region32: #{discriminator_forward.11} parent=5 // pred_fallthru
      _
    %p220 = scmp.le.s32.totalorder 2, %s9
    // Predicated region
    $region37: #{discriminator_forward.11} parent=5 // pred_check
      %p221 = pneg %p220
    $region38: #{discriminator_forward.11} parent=5 // pred_check_branch
      %223 = sbr.rel (%p221) target = $region40
    $region39: #{discriminator_forward.11} parent=5 // pred_region
      %s224 = ssub.s32 %s9, 2
      // Predicated region
      $region41: #{discriminator_forward.11} parent=39 // pred_check
        %p225 = pneg %p106
      $region42: #{discriminator_forward.11} parent=39 // pred_check_branch
        %227 = sbr.rel (%p225) target = $region44
      $region43: #{discriminator_forward.11} parent=39 // pred_region
        %s228 = smul.u32 2, %s15
        %p229 = scmp.lt.s32.totalorder %s228, 3
        %s230 = scalar_select %p229, %s228, 3
        %s231 = smul.addr %s230, 4
        %s232 = scalar_lea.vmem %s3, %s231
      $region44: #{discriminator_forward.11} parent=39 // pred_fallthru
        _
    $region40: #{discriminator_forward.11} parent=5 // pred_fallthru
      _
  $region6: #{discriminator_forward.11} parent=0 // loop_footer
    %s13 = sadd.s32 1, %s9
  $region7: #{discriminator_forward.11} parent=0 // loop_footer_branch
    %8 = sbr.rel target = $region3
  $region8: #{discriminator_forward.11} parent=0 // loop_exit
    _

// kernel: tile.29
$region0: #{tile.29}
  #allocation0 [shape = 's32[1]{0}', space=sflag, size = 0x4, scoped, tag = 'scoped memory for tile.29']
  %s0 = inlined_call_operand.vmem [shape: f32[3], index: 0, kind: input, shape index: {}]
  %s1 = inlined_call_operand.vmem [shape: f32[2,3], index: 1, kind: output, shape index: {}]
  // Predicated region
  $region2: #{tile.29} parent=0 // pred_check
    _
  $region3: #{tile.29} parent=0 // pred_check_branch
    %3 = sbr.rel (0) target = $region5
  $region4: #{tile.29} parent=0 // pred_region
    _
  $region5: #{tile.29} parent=0 // pred_fallthru
    _
  %v4 = vld [vmem:[%s0] ss:$0 sm:$0xff]
  %5 = vst [vmem:[%s1] sm:$0x3] %v4

// kernel: tile.2
$region0: #{tile.2}
  %s0 = inlined_call_operand.vmem [shape: f32[2,3], index: 0, kind: input, shape index: {}]
  %s1 = inlined_call_operand.vmem [shape: f32[6,1], index: 1, kind: output, shape index: {}]
  $region1: #{tile.2} parent=0
    #allocation0 [shape = 'u8[4096]{0}', space=vmem, size = 0x1000, scoped, tag = 'scoped mem for input reshape']
    %s3 = sshllo.u32 0, 2
    %v4 = vld [vmem:[%s0] sm:%s3]
    %5 = vst [vmem:[#allocation0] sm:%s3] %v4
    %v6 = vld [vmem:[#allocation0] sm:$0x3]
    %vm7 = vcmask 7168
    %8 = vst.msk [vmem:[%s1] ss:$3 sm:$0x3] %vm7, %v6
    %v9 = vld [vmem:[#allocation0] sm:$0x3]
    %10 = vrot.lane.b32.xlu0 %v9, 127
    %v11 = vpop.permute.xlu0 %10
    %vm12 = vcmask 7168
    %s13 = scalar_lea.vmem %s1, 1
    %14 = vst.msk [vmem:[%s13] ss:$3 sm:$0x3] %vm12, %v11
    %v15 = vld [vmem:[#allocation0] sm:$0x3]
    %16 = vrot.lane.b32.xlu0 %v15, 126
    %v17 = vpop.permute.xlu0 %16
    %vm18 = vcmask 7168
    %s19 = scalar_lea.vmem %s1, 2
    %20 = vst.msk [vmem:[%s19] ss:$3 sm:$0x3] %vm18, %v17

// kernel: discriminator_forward.10
$region0: #{discriminator_forward.10}
  #allocation0 [shape = 'u32[]', space=smem, size = 0x4, offset = 0x4, fixed_abs, tag = 'smem constant byte address 0x4 - core index']
  #allocation1 [shape = 'u32[144,128]{1,0:T(1,128)}', space=vmem, size = 0x12000, scoped, tag = 'internal scratch']
  %s0 = inlined_call_operand.vmem [shape: bf16[2,105,16], index: 0, kind: input, shape index: {}]
  %s1 = inlined_call_operand.vmem [shape: bf16[16,16,32], index: 1, kind: input, shape index: {}]
  %s2 = inlined_call_operand.vmem [shape: f32[20,1], index: 2, kind: input, shape index: {}]
  %s3 = inlined_call_operand.vmem [shape: f32[2,4,4,32], index: 3, kind: output, shape index: {0}]
  %s4 = inlined_call_operand.vmem [shape: f32[2,1,32], index: 4, kind: output, shape index: {1}]
  %s5 = inlined_call_operand.vmem [shape: f32[2,1,32], index: 5, kind: output, shape index: {2}]
  %6 = xla_tuple %s3, %s4, %s5
  %s7 = sld [smem:[#allocation0]]
  $region61: #{discriminator_forward.10} parent=0
    _
  %s9 = ssub.s32 1, %s7
  %s10 = scalar_select 0, %s9, %s7
  loop: start=0, step=1, limit=4
  $region2: #{discriminator_forward.10} parent=0 // loop_pre_header
    _
  $region3: #{discriminator_forward.10} parent=0 // loop_header
    %s12 = sphi 0, %s16
    %p13 = scmp.ge.s32.totalorder %s12, 4
    %s22 = sphi 0, %s24
    %s25 = sphi 0, %s22
    %s26 = sphi 0, %s25
    %s42 = sphi 0, %s26
    %s46 = sphi 0, %s46
    %s48 = sphi 0, %s46
    %s49 = sphi 0, %s48
    %s63 = sphi 0, %s49
    %s67 = sphi 0, %s67
    %s69 = sphi 0, %s67
    %s70 = sphi 0, %s69
    %s84 = sphi 0, %s70
    %s90 = sphi 0, %s92
    %s93 = sphi 0, %s90
    %s94 = sphi 0, %s93
    %s110 = sphi 0, %s94
    %s116 = sphi 0, %s118
    %s119 = sphi 0, %s116
    %s120 = sphi 0, %s119
    %s136 = sphi 0, %s120
    %s142 = sphi 0, %s144
    %s145 = sphi 0, %s142
    %s146 = sphi 0, %s145
    %s162 = sphi 0, %s146
  $region4: #{discriminator_forward.10} parent=0 // loop_header_branch
    %15 = sbr.rel (%p13) target = $region8
  $region5: #{discriminator_forward.10} parent=0 // loop_body
    %s17 = ssub.s32 %s12, 1
    %s18 = ssub.s32 %s12, 2
    %s19 = sadd.s32 %s12, 1
    %s20 = ssub.s32 %s12, %s19
    %p21 = scmp.eq.s32.totalorder %s20, 0
    %s23 = sadd.s32 %s22, 1
    %s24 = scalar_select %p21, %s22, %s23
    %p27 = pneg %p21
    %p28 = scmp.eq.s32.totalorder %s12, 1
    %p29 = por %p27, %p28
    %p30 = scmp.ne.s32.totalorder %s22, %s25
    %p31 = scmp.eq.s32.totalorder %s12, 0
    %p32 = por %p30, %p31
    %p33 = scmp.ne.s32.totalorder %s22, %s25
    %p34 = scmp.eq.s32.totalorder %s17, 1
    %p35 = por %p33, %p34
    %p36 = scmp.ne.s32.totalorder %s25, %s26
    %p37 = scmp.eq.s32.totalorder %s17, 0
    %p38 = por %p36, %p37
    %p39 = scmp.ne.s32.totalorder %s25, %s26
    %p40 = scmp.eq.s32.totalorder %s18, 1
    %p41 = por %p39, %p40
    %p43 = scmp.ne.s32.totalorder %s26, %s42
    %p44 = scmp.eq.s32.totalorder %s18, 0
    %p45 = por %p43, %p44
    %s47 = sadd.s32 %s46, 1
    %p50 = scmp.eq.s32.totalorder %s12, 1
    %p51 = scmp.ne.s32.totalorder %s46, %s48
    %p52 = scmp.eq.s32.totalorder %s12, 0
    %p53 = por %p51, %p52
    %p54 = scmp.ne.s32.totalorder %s46, %s48
    %p55 = scmp.eq.s32.totalorder %s17, 1
    %p56 = por %p54, %p55
    %p57 = scmp.ne.s32.totalorder %s48, %s49
    %p58 = scmp.eq.s32.totalorder %s17, 0
    %p59 = por %p57, %p58
    %p60 = scmp.ne.s32.totalorder %s48, %s49
    %p61 = scmp.eq.s32.totalorder %s18, 1
    %p62 = por %p60, %p61
    %p64 = scmp.ne.s32.totalorder %s49, %s63
    %p65 = scmp.eq.s32.totalorder %s18, 0
    %p66 = por %p64, %p65
    %s68 = sadd.s32 %s67, 1
    %p71 = scmp.eq.s32.totalorder %s12, 1
    %p72 = scmp.ne.s32.totalorder %s67, %s69
    %p73 = scmp.eq.s32.totalorder %s12, 0
    %p74 = por %p72, %p73
    %p75 = scmp.ne.s32.totalorder %s67, %s69
    %p76 = scmp.eq.s32.totalorder %s17, 1
    %p77 = por %p75, %p76
    %p78 = scmp.ne.s32.totalorder %s69, %s70
    %p79 = scmp.eq.s32.totalorder %s17, 0
    %p80 = por %p78, %p79
    %p81 = scmp.ne.s32.totalorder %s69, %s70
    %p82 = scmp.eq.s32.totalorder %s18, 1
    %p83 = por %p81, %p82
    %p85 = scmp.ne.s32.totalorder %s70, %s84
    %p86 = scmp.eq.s32.totalorder %s18, 0
    %p87 = por %p85, %p86
    %s88 = ssub.s32 %s12, %s19
    %p89 = scmp.eq.s32.totalorder %s88, 0
    %s91 = sadd.s32 %s90, 1
    %s92 = scalar_select %p89, %s90, %s91
    %p95 = pneg %p89
    %p96 = scmp.eq.s32.totalorder %s12, 1
    %p97 = por %p95, %p96
    %p98 = scmp.ne.s32.totalorder %s90, %s93
    %p99 = scmp.eq.s32.totalorder %s12, 0
    %p100 = por %p98, %p99
    %p101 = scmp.ne.s32.totalorder %s90, %s93
    %p102 = scmp.eq.s32.totalorder %s17, 1
    %p103 = por %p101, %p102
    %p104 = scmp.ne.s32.totalorder %s93, %s94
    %p105 = scmp.eq.s32.totalorder %s17, 0
    %p106 = por %p104, %p105
    %p107 = scmp.ne.s32.totalorder %s93, %s94
    %p108 = scmp.eq.s32.totalorder %s18, 1
    %p109 = por %p107, %p108
    %p111 = scmp.ne.s32.totalorder %s94, %s110
    %p112 = scmp.eq.s32.totalorder %s18, 0
    %p113 = por %p111, %p112
    %s114 = ssub.s32 %s12, %s19
    %p115 = scmp.eq.s32.totalorder %s114, 0
    %s117 = sadd.s32 %s116, 1
    %s118 = scalar_select %p115, %s116, %s117
    %p121 = pneg %p115
    %p122 = scmp.eq.s32.totalorder %s12, 1
    %p123 = por %p121, %p122
    %p124 = scmp.ne.s32.totalorder %s116, %s119
    %p125 = scmp.eq.s32.totalorder %s12, 0
    %p126 = por %p124, %p125
    %p127 = scmp.ne.s32.totalorder %s116, %s119
    %p128 = scmp.eq.s32.totalorder %s17, 1
    %p129 = por %p127, %p128
    %p130 = scmp.ne.s32.totalorder %s119, %s120
    %p131 = scmp.eq.s32.totalorder %s17, 0
    %p132 = por %p130, %p131
    %p133 = scmp.ne.s32.totalorder %s119, %s120
    %p134 = scmp.eq.s32.totalorder %s18, 1
    %p135 = por %p133, %p134
    %p137 = scmp.ne.s32.totalorder %s120, %s136
    %p138 = scmp.eq.s32.totalorder %s18, 0
    %p139 = por %p137, %p138
    %s140 = ssub.s32 %s12, %s19
    %p141 = scmp.eq.s32.totalorder %s140, 0
    %s143 = sadd.s32 %s142, 1
    %s144 = scalar_select %p141, %s142, %s143
    %p147 = pneg %p141
    %p148 = scmp.eq.s32.totalorder %s12, 1
    %p149 = por %p147, %p148
    %p150 = scmp.ne.s32.totalorder %s142, %s145
    %p151 = scmp.eq.s32.totalorder %s12, 0
    %p152 = por %p150, %p151
    %p153 = scmp.ne.s32.totalorder %s142, %s145
    %p154 = scmp.eq.s32.totalorder %s17, 1
    %p155 = por %p153, %p154
    %p156 = scmp.ne.s32.totalorder %s145, %s146
    %p157 = scmp.eq.s32.totalorder %s17, 0
    %p158 = por %p156, %p157
    %p159 = scmp.ne.s32.totalorder %s145, %s146
    %p160 = scmp.eq.s32.totalorder %s18, 1
    %p161 = por %p159, %p160
    %p163 = scmp.ne.s32.totalorder %s146, %s162
    %p164 = scmp.eq.s32.totalorder %s18, 0
    %p165 = por %p163, %p164
    %p166 = scmp.le.s32.totalorder 1, %s12
    %p167 = scmp.lt.s32.totalorder %s12, 3
    %p168 = pnand %p166, %p167
    %p169 = pneg %p168
    // Predicated region
    $region9: #{discriminator_forward.10} parent=5 // pred_check
      _
    $region10: #{discriminator_forward.10} parent=5 // pred_check_branch
      %171 = sbr.rel (%p168) target = $region12
    $region11: #{discriminator_forward.10} parent=5 // pred_region
      %s172 = ssub.s32 %s12, 1
      // Predicated region
      $region13: #{discriminator_forward.10} parent=11 // pred_check
        %p173 = pneg %p59
      $region14: #{discriminator_forward.10} parent=11 // pred_check_branch
        %175 = sbr.rel (%p173) target = $region16
      $region15: #{discriminator_forward.10} parent=11 // pred_region
        _
      $region16: #{discriminator_forward.10} parent=11 // pred_fallthru
        _
      // Predicated region
      $region17: #{discriminator_forward.10} parent=11 // pred_check
        %p176 = pneg %p80
      $region18: #{discriminator_forward.10} parent=11 // pred_check_branch
        %178 = sbr.rel (%p176) target = $region20
      $region19: #{discriminator_forward.10} parent=11 // pred_region
        _
      $region20: #{discriminator_forward.10} parent=11 // pred_fallthru
        _
    $region12: #{discriminator_forward.10} parent=5 // pred_fallthru
      _
    %p179 = scmp.lt.s32.totalorder %s12, 2
    // Predicated region
    $region21: #{discriminator_forward.10} parent=5 // pred_check
      %p180 = pneg %p179
    $region22: #{discriminator_forward.10} parent=5 // pred_check_branch
      %182 = sbr.rel (%p180) target = $region24
    $region23: #{discriminator_forward.10} parent=5 // pred_region
      // Predicated region
      $region25: #{discriminator_forward.10} parent=23 // pred_check
        %p183 = pneg %p32
      $region26: #{discriminator_forward.10} parent=23 // pred_check_branch
        %185 = sbr.rel (%p183) target = $region28
      $region27: #{discriminator_forward.10} parent=23 // pred_region
        %p186 = scmp.lt.s32.totalorder %s12, 1
        %s187 = scalar_select %p186, %s12, 1
        %s188 = smul.addr %s187, 14
        %s189 = smul.addr %s188, 4
        %s190 = scalar_lea.vmem %s0, %s189
      $region28: #{discriminator_forward.10} parent=23 // pred_fallthru
        _
    $region24: #{discriminator_forward.10} parent=5 // pred_fallthru
      _
    %p191 = scmp.le.s32.totalorder 1, %s12
    %p192 = scmp.lt.s32.totalorder %s12, 3
    %p193 = pnand %p191, %p192
    %p194 = pneg %p193
    // Predicated region
    $region29: #{discriminator_forward.10} parent=5 // pred_check
      _
    $region30: #{discriminator_forward.10} parent=5 // pred_check_branch
      %196 = sbr.rel (%p193) target = $region32
    $region31: #{discriminator_forward.10} parent=5 // pred_region
      %s197 = ssub.s32 %s12, 1
      %p198 = scmp.lt.s32.totalorder %s17, 1
      %s199 = scalar_select %p198, %s17, 1
      %s200 = smul.addr %s199, 14
      %s201 = smul.addr %s200, 4
      %s202 = scalar_lea.vmem %s0, %s201
      %p203 = pneg %p38
      %p204 = pneg %p35
      %p205 = pneg %p59
      %p206 = pneg %p56
      %p207 = pneg %p80
      %p208 = pneg %p77
      %p209 = pneg %p106
      %p210 = pneg %p103
      %p211 = scmp.lt.s32.totalorder %s17, 1
      %s212 = scalar_select %p211, %s17, 1
      %s213 = smul.addr %s212, 4
      %s214 = smul.addr %s213, 4
      %s215 = scalar_lea.vmem %s3, %s214
      %p216 = pneg %p132
      %p217 = pneg %p129
      %p218 = scmp.lt.s32.totalorder %s17, 1
      %s219 = scalar_select %p218, %s17, 1
      %s220 = scalar_lea.vmem %s4, %s219
      %p221 = pneg %p158
      %p222 = pneg %p155
      %p223 = scmp.lt.s32.totalorder %s17, 1
      %s224 = scalar_select %p223, %s17, 1
      %s225 = scalar_lea.vmem %s5, %s224
      %p226 = scmp.lt.s32.totalorder %s17, 1
      %s227 = scalar_select %p226, %s17, 1
      %s228 = smul.addr %s227, 14
      %s229 = smul.addr %s228, 4
      %s230 = scalar_lea.vmem %s0, %s229
      %p231 = scmp.lt.s32.totalorder %s17, 1
      %s232 = scalar_select %p231, %s17, 1
      %s233 = smul.addr %s232, 4
      %s234 = smul.addr %s233, 4
      %s235 = scalar_lea.vmem %s3, %s234
      %p236 = scmp.lt.s32.totalorder %s17, 1
      %s237 = scalar_select %p236, %s17, 1
      %s238 = scalar_lea.vmem %s4, %s237
      %p239 = scmp.lt.s32.totalorder %s17, 1
      %s240 = scalar_select %p239, %s17, 1
      %s241 = scalar_lea.vmem %s5, %s240
      %v243 = vld [vmem:[%s230] sm:$0xf]
      %v244 = vld [vmem:[%s230 + $0x4] sm:$0xf]
      %v245 = vld [vmem:[%s230 + $0x8] sm:$0x3]
      %v246 = vld [vmem:[%s1] sm:$0xf]
      %v247 = vld [vmem:[%s1 + $0x4] sm:$0xf]
      %v248 = vld [vmem:[%s230 + $0xc] sm:$0xf]
      %v249 = vld [vmem:[%s230 + $0x10] sm:$0xf]
      %v250 = vld [vmem:[%s230 + $0x14] sm:$0x7]
      %s251 = scalar_lea.vmem %s1, 8
      %v252 = vld [vmem:[%s251] sm:$0xf]
      %v253 = vld [vmem:[%s251 + $0x4] sm:$0xf]
      %v257 = vunpack.c.l.b16 %v248
      %v258 = vunpack.c.l.b16 %v249
      %v259 = vunpack.c.l.b16 %v250
      %v260 = vpack.c.b16 %v258, %v257
      %v261 = vpack.c.b16 %v259, %v259
      %vm262 = vsmask.f32 7424
      %v264 = vshrl.u32 %v260, 16
      %v266 = vshll.u32 %v260, 16
      %v268 = vrot.slane %v266, 1
      %v269 = vor.u32 %v264, %v268
      %v271 = vshll.u32 %v261, 16
      %v273 = vrot.slane %v271, 1
      %v274 = vsel %vm262, %v269, %v273
      %v275 = vshrl.u32 %v261, 16
      %v277 = vor.u32 %v275, %v273
      %v280 = vunpack.c.l.b16 %v252
      %v281 = vunpack.c.l.b16 %v253
      %v282 = vpack.c.b16 %v281, %v280
      %vm284 = vcmask 130048
      %v286 = vsel %vm284, %v274, 0
      %v289 = vsel %vm284, %v277, 0
      %291 = vmatprep.subr.bf16.mxu0 0
      %292 = vmatpush1.bf16.msra.mxu0 %v282
      %293 = vmatprep.subr.bf16.mxu0 0
      %294 = vmatpush1.bf16.msra.mxu0 0
      %295 = vmatprep.subr.bf16.mxu0 0
      %296 = vmatpush1.bf16.msra.mxu0 0
      %297 = vmatprep.subr.bf16.mxu0 0
      %298 = vmatpush1.bf16.msra.mxu0 0
      %299 = vmatprep.subr.bf16.mxu0 0
      %300 = vmatpush1.bf16.msra.mxu0 0
      %301 = vmatprep.subr.bf16.mxu0 0
      %302 = vmatpush1.bf16.msra.mxu0 0
      %303 = vmatprep.subr.bf16.mxu0 0
      %304 = vmatpush1.bf16.msra.mxu0 0
      %305 = vmatprep.subr.bf16.mxu0 0
      %306 = vmatpush1.bf16.msra.mxu0 0
      %307 = vmatprep.subr.bf16.mxu0 0
      %308 = vmatpush1.bf16.msra.mxu0 0
      %309 = vmatprep.subr.bf16.mxu0 0
      %310 = vmatpush1.bf16.msra.mxu0 0
      %311 = vmatprep.subr.bf16.mxu0 0
      %312 = vmatpush1.bf16.msra.mxu0 0
      %313 = vmatprep.subr.bf16.mxu0 0
      %314 = vmatpush1.bf16.msra.mxu0 0
      %315 = vmatprep.subr.bf16.mxu0 0
      %316 = vmatpush1.bf16.msra.mxu0 0
      %317 = vmatprep.subr.bf16.mxu0 0
      %318 = vmatpush1.bf16.msra.mxu0 0
      %319 = vmatprep.subr.bf16.mxu0 0
      %320 = vmatpush1.bf16.msra.mxu0 0
      %321 = vmatprep.subr.bf16.mxu0 0
      %322 = vmatpush1.bf16.msra.mxu0 0
      %323 = vmatprep.mubr.bf16.mxu0 0
      %324 = vmatmul.mubr.bf16.gmra.mrb[0].mxu0 %v286
      %v325 = vpop.f32.mrb[0].mxu0
      %v326 = vadd.f32 0.0, %v325
      %v327 = vpop.f32.mrb[0].mxu0
      %v328 = vpop.f32.mrb[0].mxu0
      %v329 = vadd.f32 0.0, %v328
      %v330 = vpop.f32.mrb[0].mxu0
      %331 = vmatprep.mubr.bf16.mxu0 0
      %332 = vmatmul.mubr.bf16.gmra.mrb[0].mxu0 %v289
      %v333 = vpop.f32.mrb[0].mxu0
      %v334 = vadd.f32 0.0, %v333
      %v335 = vpop.f32.mrb[0].mxu0
      %v336 = vpop.f32.mrb[0].mxu0
      %v337 = vpop.f32.mrb[0].mxu0
      %338 = vdwg.mxu0
      %v342 = vunpack.c.l.b16 %v243
      %v343 = vunpack.c.l.b16 %v244
      %v344 = vunpack.c.l.b16 %v245
      %v345 = vpack.c.b16 %v343, %v342
      %v346 = vpack.c.b16 %v344, %v344
      %v349 = vunpack.c.l.b16 %v246
      %v350 = vunpack.c.l.b16 %v247
      %v351 = vpack.c.b16 %v350, %v349
      %v354 = vsel %vm284, %v345, 0
      %v357 = vsel %vm284, %v346, 0
      %359 = vmatprep.subr.bf16.mxu0 0
      %360 = vmatpush1.bf16.msra.mxu0 %v351
      %361 = vmatprep.subr.bf16.mxu0 0
      %362 = vmatpush1.bf16.msra.mxu0 0
      %363 = vmatprep.subr.bf16.mxu0 0
      %364 = vmatpush1.bf16.msra.mxu0 0
      %365 = vmatprep.subr.bf16.mxu0 0
      %366 = vmatpush1.bf16.msra.mxu0 0
      %367 = vmatprep.subr.bf16.mxu0 0
      %368 = vmatpush1.bf16.msra.mxu0 0
      %369 = vmatprep.subr.bf16.mxu0 0
      %370 = vmatpush1.bf16.msra.mxu0 0
      %371 = vmatprep.subr.bf16.mxu0 0
      %372 = vmatpush1.bf16.msra.mxu0 0
      %373 = vmatprep.subr.bf16.mxu0 0
      %374 = vmatpush1.bf16.msra.mxu0 0
      %375 = vmatprep.subr.bf16.mxu0 0
      %376 = vmatpush1.bf16.msra.mxu0 0
      %377 = vmatprep.subr.bf16.mxu0 0
      %378 = vmatpush1.bf16.msra.mxu0 0
      %379 = vmatprep.subr.bf16.mxu0 0
      %380 = vmatpush1.bf16.msra.mxu0 0
      %381 = vmatprep.subr.bf16.mxu0 0
      %382 = vmatpush1.bf16.msra.mxu0 0
      %383 = vmatprep.subr.bf16.mxu0 0
      %384 = vmatpush1.bf16.msra.mxu0 0
      %385 = vmatprep.subr.bf16.mxu0 0
      %386 = vmatpush1.bf16.msra.mxu0 0
      %387 = vmatprep.subr.bf16.mxu0 0
      %388 = vmatpush1.bf16.msra.mxu0 0
      %389 = vmatprep.subr.bf16.mxu0 0
      %390 = vmatpush1.bf16.msra.mxu0 0
      %391 = vmatprep.mubr.bf16.mxu0 0
      %392 = vmatmul.mubr.bf16.gmra.mrb[0].mxu0 %v354
      %v393 = vpop.f32.mrb[0].mxu0
      %v394 = vadd.f32 %v326, %v393
      %v395 = vpop.f32.mrb[0].mxu0
      %v396 = vpop.f32.mrb[0].mxu0
      %v397 = vadd.f32 %v329, %v396
      %v398 = vpop.f32.mrb[0].mxu0
      %399 = vmatprep.mubr.bf16.mxu0 0
      %400 = vmatmul.mubr.bf16.gmra.mrb[0].mxu0 %v357
      %v401 = vpop.f32.mrb[0].mxu0
      %v402 = vadd.f32 %v334, %v401
      %v403 = vpop.f32.mrb[0].mxu0
      %v404 = vpop.f32.mrb[0].mxu0
      %v405 = vpop.f32.mrb[0].mxu0
      %406 = vdwg.mxu0
      %v407 = vld [vmem:[%s230 + $0x8] sm:$0x7]
      %s408 = scalar_lea.vmem %s1, 16
      %v409 = vld [vmem:[%s408] sm:$0xf]
      %v410 = vld [vmem:[%s408 + $0x4] sm:$0xf]
      %v412 = vunpack.c.l.b16 %v407
      %v413 = vpack.c.b16 %v412, %v412
      %v414 = vshrl.u32 %v345, 16
      %v416 = vshll.u32 %v345, 16
      %v418 = vrot.slane %v416, 1
      %v419 = vor.u32 %v414, %v418
      %v421 = vshll.u32 %v413, 16
      %v423 = vrot.slane %v421, 1
      %v424 = vsel %vm262, %v419, %v423
      %v425 = vshrl.u32 %v413, 16
      %v427 = vor.u32 %v425, %v423
      %v430 = vunpack.c.l.b16 %v409
      %v431 = vunpack.c.l.b16 %v410
      %v432 = vpack.c.b16 %v431, %v430
      %v435 = vsel %vm284, %v424, 0
      %v438 = vsel %vm284, %v427, 0
      %440 = vmatprep.subr.bf16.mxu0 0
      %441 = vmatpush1.bf16.msra.mxu0 %v432
      %442 = vmatprep.subr.bf16.mxu0 0
      %443 = vmatpush1.bf16.msra.mxu0 0
      %444 = vmatprep.subr.bf16.mxu0 0
      %445 = vmatpush1.bf16.msra.mxu0 0
      %446 = vmatprep.subr.bf16.mxu0 0
      %447 = vmatpush1.bf16.msra.mxu0 0
      %448 = vmatprep.subr.bf16.mxu0 0
      %449 = vmatpush1.bf16.msra.mxu0 0
      %450 = vmatprep.subr.bf16.mxu0 0
      %451 = vmatpush1.bf16.msra.mxu0 0
      %452 = vmatprep.subr.bf16.mxu0 0
      %453 = vmatpush1.bf16.msra.mxu0 0
      %454 = vmatprep.subr.bf16.mxu0 0
      %455 = vmatpush1.bf16.msra.mxu0 0
      %456 = vmatprep.subr.bf16.mxu0 0
      %457 = vmatpush1.bf16.msra.mxu0 0
      %458 = vmatprep.subr.bf16.mxu0 0
      %459 = vmatpush1.bf16.msra.mxu0 0
      %460 = vmatprep.subr.bf16.mxu0 0
      %461 = vmatpush1.bf16.msra.mxu0 0
      %462 = vmatprep.subr.bf16.mxu0 0
      %463 = vmatpush1.bf16.msra.mxu0 0
      %464 = vmatprep.subr.bf16.mxu0 0
      %465 = vmatpush1.bf16.msra.mxu0 0
      %466 = vmatprep.subr.bf16.mxu0 0
      %467 = vmatpush1.bf16.msra.mxu0 0
      %468 = vmatprep.subr.bf16.mxu0 0
      %469 = vmatpush1.bf16.msra.mxu0 0
      %470 = vmatprep.subr.bf16.mxu0 0
      %471 = vmatpush1.bf16.msra.mxu0 0
      %472 = vmatprep.mubr.bf16.mxu0 0
      %473 = vmatmul.mubr.bf16.gmra.mrb[0].mxu0 %v435
      %v474 = vpop.f32.mrb[0].mxu0
      %v475 = vadd.f32 0.0, %v474
      %v476 = vpop.f32.mrb[0].mxu0
      %v477 = vpop.f32.mrb[0].mxu0
      %v478 = vadd.f32 0.0, %v477
      %v479 = vpop.f32.mrb[0].mxu0
      %480 = vmatprep.mubr.bf16.mxu0 0
      %481 = vmatmul.mubr.bf16.gmra.mrb[0].mxu0 %v438
      %v482 = vpop.f32.mrb[0].mxu0
      %v483 = vadd.f32 0.0, %v482
      %v484 = vpop.f32.mrb[0].mxu0
      %v485 = vpop.f32.mrb[0].mxu0
      %v486 = vpop.f32.mrb[0].mxu0
      %487 = vdwg.mxu0
      %v488 = vadd.f32 %v394, %v475
      %v489 = vadd.f32 %v397, %v478
      %v490 = vadd.f32 %v402, %v483
      %v491 = vld [vmem:[%s230 + $0xc] sm:$0xe]
      %s492 = scalar_lea.vmem %s1, 24
      %v493 = vld [vmem:[%s492] sm:$0xf]
      %v494 = vld [vmem:[%s492 + $0x4] sm:$0xf]
      %v496 = vunpack.c.l.b16 %v491
      %v497 = vpack.c.b16 %v258, %v496
      %vm498 = vcmask 1046528
      %v499 = vrot.slane %v497, 1
      %v500 = vrot.slane %v261, 1
      %v501 = vsel %vm498, %v499, %v500
      %v504 = vunpack.c.l.b16 %v493
      %v505 = vunpack.c.l.b16 %v494
      %v506 = vpack.c.b16 %v505, %v504
      %v509 = vsel %vm284, %v501, 0
      %v512 = vsel %vm284, %v500, 0
      %514 = vmatprep.subr.bf16.mxu0 0
      %515 = vmatpush1.bf16.msra.mxu0 %v506
      %516 = vmatprep.subr.bf16.mxu0 0
      %517 = vmatpush1.bf16.msra.mxu0 0
      %518 = vmatprep.subr.bf16.mxu0 0
      %519 = vmatpush1.bf16.msra.mxu0 0
      %520 = vmatprep.subr.bf16.mxu0 0
      %521 = vmatpush1.bf16.msra.mxu0 0
      %522 = vmatprep.subr.bf16.mxu0 0
      %523 = vmatpush1.bf16.msra.mxu0 0
      %524 = vmatprep.subr.bf16.mxu0 0
      %525 = vmatpush1.bf16.msra.mxu0 0
      %526 = vmatprep.subr.bf16.mxu0 0
      %527 = vmatpush1.bf16.msra.mxu0 0
      %528 = vmatprep.subr.bf16.mxu0 0
      %529 = vmatpush1.bf16.msra.mxu0 0
      %530 = vmatprep.subr.bf16.mxu0 0
      %531 = vmatpush1.bf16.msra.mxu0 0
      %532 = vmatprep.subr.bf16.mxu0 0
      %533 = vmatpush1.bf16.msra.mxu0 0
      %534 = vmatprep.subr.bf16.mxu0 0
      %535 = vmatpush1.bf16.msra.mxu0 0
      %536 = vmatprep.subr.bf16.mxu0 0
      %537 = vmatpush1.bf16.msra.mxu0 0
      %538 = vmatprep.subr.bf16.mxu0 0
      %539 = vmatpush1.bf16.msra.mxu0 0
      %540 = vmatprep.subr.bf16.mxu0 0
      %541 = vmatpush1.bf16.msra.mxu0 0
      %542 = vmatprep.subr.bf16.mxu0 0
      %543 = vmatpush1.bf16.msra.mxu0 0
      %544 = vmatprep.subr.bf16.mxu0 0
      %545 = vmatpush1.bf16.msra.mxu0 0
      %546 = vmatprep.mubr.bf16.mxu0 0
      %547 = vmatmul.mubr.bf16.gmra.mrb[0].mxu0 %v509
      %v548 = vpop.f32.mrb[0].mxu0
      %v549 = vadd.f32 0.0, %v548
      %v550 = vpop.f32.mrb[0].mxu0
      %v551 = vpop.f32.mrb[0].mxu0
      %v552 = vadd.f32 0.0, %v551
      %v553 = vpop.f32.mrb[0].mxu0
      %554 = vmatprep.mubr.bf16.mxu0 0
      %555 = vmatmul.mubr.bf16.gmra.mrb[0].mxu0 %v512
      %v556 = vpop.f32.mrb[0].mxu0
      %v557 = vadd.f32 0.0, %v556
      %v558 = vpop.f32.mrb[0].mxu0
      %v559 = vpop.f32.mrb[0].mxu0
      %v560 = vpop.f32.mrb[0].mxu0
      %561 = vdwg.mxu0
      %v562 = vadd.f32 %v488, %v549
      %v563 = vadd.f32 %v489, %v552
      %v564 = vadd.f32 %v490, %v557
      %v565 = vld [vmem:[%s230 + $0x18] sm:$0xe]
      %v566 = vld [vmem:[%s230 + $0x1c] sm:$0xf]
      %v567 = vld [vmem:[%s230 + $0x20] sm:$0x7]
      %s568 = scalar_lea.vmem %s1, 32
      %v569 = vld [vmem:[%s568] sm:$0xf]
      %v570 = vld [vmem:[%s568 + $0x4] sm:$0xf]
      %v574 = vunpack.c.l.b16 %v565
      %v575 = vunpack.c.l.b16 %v566
      %v576 = vunpack.c.l.b16 %v567
      %v577 = vpack.c.b16 %v575, %v574
      %v578 = vpack.c.b16 %v576, %v576
      %v579 = vrot.slane %v577, 1
      %v580 = vrot.slane %v578, 1
      %v581 = vsel %vm498, %v579, %v580
      %v584 = vunpack.c.l.b16 %v569
      %v585 = vunpack.c.l.b16 %v570
      %v586 = vpack.c.b16 %v585, %v584
      %v589 = vsel %vm284, %v581, 0
      %v592 = vsel %vm284, %v580, 0
      %594 = vmatprep.subr.bf16.mxu0 0
      %595 = vmatpush1.bf16.msra.mxu0 %v586
      %596 = vmatprep.subr.bf16.mxu0 0
      %597 = vmatpush1.bf16.msra.mxu0 0
      %598 = vmatprep.subr.bf16.mxu0 0
      %599 = vmatpush1.bf16.msra.mxu0 0
      %600 = vmatprep.subr.bf16.mxu0 0
      %601 = vmatpush1.bf16.msra.mxu0 0
      %602 = vmatprep.subr.bf16.mxu0 0
      %603 = vmatpush1.bf16.msra.mxu0 0
      %604 = vmatprep.subr.bf16.mxu0 0
      %605 = vmatpush1.bf16.msra.mxu0 0
      %606 = vmatprep.subr.bf16.mxu0 0
      %607 = vmatpush1.bf16.msra.mxu0 0
      %608 = vmatprep.subr.bf16.mxu0 0
      %609 = vmatpush1.bf16.msra.mxu0 0
      %610 = vmatprep.subr.bf16.mxu0 0
      %611 = vmatpush1.bf16.msra.mxu0 0
      %612 = vmatprep.subr.bf16.mxu0 0
      %613 = vmatpush1.bf16.msra.mxu0 0
      %614 = vmatprep.subr.bf16.mxu0 0
      %615 = vmatpush1.bf16.msra.mxu0 0
      %616 = vmatprep.subr.bf16.mxu0 0
      %617 = vmatpush1.bf16.msra.mxu0 0
      %618 = vmatprep.subr.bf16.mxu0 0
      %619 = vmatpush1.bf16.msra.mxu0 0
      %620 = vmatprep.subr.bf16.mxu0 0
      %621 = vmatpush1.bf16.msra.mxu0 0
      %622 = vmatprep.subr.bf16.mxu0 0
      %623 = vmatpush1.bf16.msra.mxu0 0
      %624 = vmatprep.subr.bf16.mxu0 0
      %625 = vmatpush1.bf16.msra.mxu0 0
      %626 = vmatprep.mubr.bf16.mxu0 0
      %627 = vmatmul.mubr.bf16.gmra.mrb[0].mxu0 %v589
      %v628 = vpop.f32.mrb[0].mxu0
      %v629 = vadd.f32 0.0, %v628
      %v630 = vpop.f32.mrb[0].mxu0
      %v631 = vpop.f32.mrb[0].mxu0
      %v632 = vadd.f32 0.0, %v631
      %v633 = vpop.f32.mrb[0].mxu0
      %634 = vmatprep.mubr.bf16.mxu0 0
      %635 = vmatmul.mubr.bf16.gmra.mrb[0].mxu0 %v592
      %v636 = vpop.f32.mrb[0].mxu0
      %v637 = vadd.f32 0.0, %v636
      %v638 = vpop.f32.mrb[0].mxu0
      %v639 = vpop.f32.mrb[0].mxu0
      %v640 = vpop.f32.mrb[0].mxu0
      %641 = vdwg.mxu0
      %v642 = vadd.f32 %v562, %v629
      %v643 = vadd.f32 %v563, %v632
      %v644 = vadd.f32 %v564, %v637
      %v645 = vld [vmem:[%s230 + $0x24] sm:$0xe]
      %v646 = vld [vmem:[%s230 + $0x28] sm:$0xf]
      %v647 = vld [vmem:[%s230 + $0x2c] sm:$0xf]
      %s648 = scalar_lea.vmem %s1, 40
      %v649 = vld [vmem:[%s648] sm:$0xf]
      %v650 = vld [vmem:[%s648 + $0x4] sm:$0xf]
      %v654 = vunpack.c.l.b16 %v645
      %v655 = vunpack.c.l.b16 %v646
      %v656 = vunpack.c.l.b16 %v647
      %v657 = vpack.c.b16 %v655, %v654
      %v658 = vpack.c.b16 %v656, %v656
      %vm659 = vsmask.f32 6400
      %v661 = vshrl.u32 %v657, 16
      %v663 = vrot.slane %v661, 1
      %v664 = vshll.u32 %v657, 16
      %v666 = vrot.slane %v664, 2
      %v667 = vor.u32 %v663, %v666
      %v669 = vshrl.u32 %v658, 16
      %v671 = vrot.slane %v669, 1
      %v672 = vshll.u32 %v658, 16
      %v674 = vrot.slane %v672, 2
      %v675 = vor.u32 %v671, %v674
      %v676 = vsel %vm659, %v667, %v675
      %v679 = vunpack.c.l.b16 %v649
      %v680 = vunpack.c.l.b16 %v650
      %v681 = vpack.c.b16 %v680, %v679
      %v684 = vsel %vm284, %v676, 0
      %v687 = vsel %vm284, %v675, 0
      %689 = vmatprep.subr.bf16.mxu0 0
      %690 = vmatpush1.bf16.msra.mxu0 %v681
      %691 = vmatprep.subr.bf16.mxu0 0
      %692 = vmatpush1.bf16.msra.mxu0 0
      %693 = vmatprep.subr.bf16.mxu0 0
      %694 = vmatpush1.bf16.msra.mxu0 0
      %695 = vmatprep.subr.bf16.mxu0 0
      %696 = vmatpush1.bf16.msra.mxu0 0
      %697 = vmatprep.subr.bf16.mxu0 0
      %698 = vmatpush1.bf16.msra.mxu0 0
      %699 = vmatprep.subr.bf16.mxu0 0
      %700 = vmatpush1.bf16.msra.mxu0 0
      %701 = vmatprep.subr.bf16.mxu0 0
      %702 = vmatpush1.bf16.msra.mxu0 0
      %703 = vmatprep.subr.bf16.mxu0 0
      %704 = vmatpush1.bf16.msra.mxu0 0
      %705 = vmatprep.subr.bf16.mxu0 0
      %706 = vmatpush1.bf16.msra.mxu0 0
      %707 = vmatprep.subr.bf16.mxu0 0
      %708 = vmatpush1.bf16.msra.mxu0 0
      %709 = vmatprep.subr.bf16.mxu0 0
      %710 = vmatpush1.bf16.msra.mxu0 0
      %711 = vmatprep.subr.bf16.mxu0 0
      %712 = vmatpush1.bf16.msra.mxu0 0
      %713 = vmatprep.subr.bf16.mxu0 0
      %714 = vmatpush1.bf16.msra.mxu0 0
      %715 = vmatprep.subr.bf16.mxu0 0
      %716 = vmatpush1.bf16.msra.mxu0 0
      %717 = vmatprep.subr.bf16.mxu0 0
      %718 = vmatpush1.bf16.msra.mxu0 0
      %719 = vmatprep.subr.bf16.mxu0 0
      %720 = vmatpush1.bf16.msra.mxu0 0
      %721 = vmatprep.mubr.bf16.mxu0 0
      %722 = vmatmul.mubr.bf16.gmra.mrb[0].mxu0 %v684
      %v723 = vpop.f32.mrb[0].mxu0
      %v724 = vadd.f32 0.0, %v723
      %v725 = vpop.f32.mrb[0].mxu0
      %v726 = vpop.f32.mrb[0].mxu0
      %v727 = vadd.f32 0.0, %v726
      %v728 = vpop.f32.mrb[0].mxu0
      %729 = vmatprep.mubr.bf16.mxu0 0
      %730 = vmatmul.mubr.bf16.gmra.mrb[0].mxu0 %v687
      %v731 = vpop.f32.mrb[0].mxu0
      %v732 = vadd.f32 0.0, %v731
      %v733 = vpop.f32.mrb[0].mxu0
      %v734 = vpop.f32.mrb[0].mxu0
      %v735 = vpop.f32.mrb[0].mxu0
      %736 = vdwg.mxu0
      %v737 = vadd.f32 %v642, %v724
      %v738 = vadd.f32 %v643, %v727
      %v739 = vadd.f32 %v644, %v732
      %v740 = vld [vmem:[%s230 + $0x20] sm:$0xf]
      %s741 = scalar_lea.vmem %s1, 48
      %v742 = vld [vmem:[%s741] sm:$0xf]
      %v743 = vld [vmem:[%s741 + $0x4] sm:$0xf]
      %v745 = vunpack.c.l.b16 %v740
      %v746 = vpack.c.b16 %v745, %v745
      %v748 = vshrl.u32 %v577, 16
      %v750 = vrot.slane %v748, 1
      %v751 = vshll.u32 %v577, 16
      %v753 = vrot.slane %v751, 2
      %v754 = vor.u32 %v750, %v753
      %v756 = vshrl.u32 %v746, 16
      %v758 = vrot.slane %v756, 1
      %v759 = vshll.u32 %v746, 16
      %v761 = vrot.slane %v759, 2
      %v762 = vor.u32 %v758, %v761
      %v763 = vsel %vm659, %v754, %v762
      %v766 = vunpack.c.l.b16 %v742
      %v767 = vunpack.c.l.b16 %v743
      %v768 = vpack.c.b16 %v767, %v766
      %v771 = vsel %vm284, %v763, 0
      %v774 = vsel %vm284, %v762, 0
      %776 = vmatprep.subr.bf16.mxu0 0
      %777 = vmatpush1.bf16.msra.mxu0 %v768
      %778 = vmatprep.subr.bf16.mxu0 0
      %779 = vmatpush1.bf16.msra.mxu0 0
      %780 = vmatprep.subr.bf16.mxu0 0
      %781 = vmatpush1.bf16.msra.mxu0 0
      %782 = vmatprep.subr.bf16.mxu0 0
      %783 = vmatpush1.bf16.msra.mxu0 0
      %784 = vmatprep.subr.bf16.mxu0 0
      %785 = vmatpush1.bf16.msra.mxu0 0
      %786 = vmatprep.subr.bf16.mxu0 0
      %787 = vmatpush1.bf16.msra.mxu0 0
      %788 = vmatprep.subr.bf16.mxu0 0
      %789 = vmatpush1.bf16.msra.mxu0 0
      %790 = vmatprep.subr.bf16.mxu0 0
      %791 = vmatpush1.bf16.msra.mxu0 0
      %792 = vmatprep.subr.bf16.mxu0 0
      %793 = vmatpush1.bf16.msra.mxu0 0
      %794 = vmatprep.subr.bf16.mxu0 0
      %795 = vmatpush1.bf16.msra.mxu0 0
      %796 = vmatprep.subr.bf16.mxu0 0
      %797 = vmatpush1.bf16.msra.mxu0 0
      %798 = vmatprep.subr.bf16.mxu0 0
      %799 = vmatpush1.bf16.msra.mxu0 0
      %800 = vmatprep.subr.bf16.mxu0 0
      %801 = vmatpush1.bf16.msra.mxu0 0
      %802 = vmatprep.subr.bf16.mxu0 0
      %803 = vmatpush1.bf16.msra.mxu0 0
      %804 = vmatprep.subr.bf16.mxu0 0
      %805 = vmatpush1.bf16.msra.mxu0 0
      %806 = vmatprep.subr.bf16.mxu0 0
      %807 = vmatpush1.bf16.msra.mxu0 0
      %808 = vmatprep.mubr.bf16.mxu0 0
      %809 = vmatmul.mubr.bf16.gmra.mrb[0].mxu0 %v771
      %v810 = vpop.f32.mrb[0].mxu0
      %v811 = vadd.f32 0.0, %v810
      %v812 = vpop.f32.mrb[0].mxu0
      %v813 = vpop.f32.mrb[0].mxu0
      %v814 = vadd.f32 0.0, %v813
      %v815 = vpop.f32.mrb[0].mxu0
      %816 = vmatprep.mubr.bf16.mxu0 0
      %817 = vmatmul.mubr.bf16.gmra.mrb[0].mxu0 %v774
      %v818 = vpop.f32.mrb[0].mxu0
      %v819 = vadd.f32 0.0, %v818
      %v820 = vpop.f32.mrb[0].mxu0
      %v821 = vpop.f32.mrb[0].mxu0
      %v822 = vpop.f32.mrb[0].mxu0
      %823 = vdwg.mxu0
      %v824 = vadd.f32 %v737, %v811
      %v825 = vadd.f32 %v738, %v814
      %v826 = vadd.f32 %v739, %v819
      %v827 = vld [vmem:[%s230 + $0x24] sm:$0xc]
      %s828 = scalar_lea.vmem %s1, 56
      %v829 = vld [vmem:[%s828] sm:$0xf]
      %v830 = vld [vmem:[%s828 + $0x4] sm:$0xf]
      %v832 = vunpack.c.l.b16 %v827
      %v833 = vpack.c.b16 %v655, %v832
      %vm834 = vcmask 1045504
      %v835 = vrot.slane %v833, 2
      %v836 = vrot.slane %v658, 2
      %v837 = vsel %vm834, %v835, %v836
      %v840 = vunpack.c.l.b16 %v829
      %v841 = vunpack.c.l.b16 %v830
      %v842 = vpack.c.b16 %v841, %v840
      %v845 = vsel %vm284, %v837, 0
      %v848 = vsel %vm284, %v836, 0
      %850 = vmatprep.subr.bf16.mxu0 0
      %851 = vmatpush1.bf16.msra.mxu0 %v842
      %852 = vmatprep.subr.bf16.mxu0 0
      %853 = vmatpush1.bf16.msra.mxu0 0
      %854 = vmatprep.subr.bf16.mxu0 0
      %855 = vmatpush1.bf16.msra.mxu0 0
      %856 = vmatprep.subr.bf16.mxu0 0
      %857 = vmatpush1.bf16.msra.mxu0 0
      %858 = vmatprep.subr.bf16.mxu0 0
      %859 = vmatpush1.bf16.msra.mxu0 0
      %860 = vmatprep.subr.bf16.mxu0 0
      %861 = vmatpush1.bf16.msra.mxu0 0
      %862 = vmatprep.subr.bf16.mxu0 0
      %863 = vmatpush1.bf16.msra.mxu0 0
      %864 = vmatprep.subr.bf16.mxu0 0
      %865 = vmatpush1.bf16.msra.mxu0 0
      %866 = vmatprep.subr.bf16.mxu0 0
      %867 = vmatpush1.bf16.msra.mxu0 0
      %868 = vmatprep.subr.bf16.mxu0 0
      %869 = vmatpush1.bf16.msra.mxu0 0
      %870 = vmatprep.subr.bf16.mxu0 0
      %871 = vmatpush1.bf16.msra.mxu0 0
      %872 = vmatprep.subr.bf16.mxu0 0
      %873 = vmatpush1.bf16.msra.mxu0 0
      %874 = vmatprep.subr.bf16.mxu0 0
      %875 = vmatpush1.bf16.msra.mxu0 0
      %876 = vmatprep.subr.bf16.mxu0 0
      %877 = vmatpush1.bf16.msra.mxu0 0
      %878 = vmatprep.subr.bf16.mxu0 0
      %879 = vmatpush1.bf16.msra.mxu0 0
      %880 = vmatprep.subr.bf16.mxu0 0
      %881 = vmatpush1.bf16.msra.mxu0 0
      %882 = vmatprep.mubr.bf16.mxu0 0
      %883 = vmatmul.mubr.bf16.gmra.mrb[0].mxu0 %v845
      %v884 = vpop.f32.mrb[0].mxu0
      %v885 = vadd.f32 0.0, %v884
      %v886 = vpop.f32.mrb[0].mxu0
      %v887 = vpop.f32.mrb[0].mxu0
      %v888 = vadd.f32 0.0, %v887
      %v889 = vpop.f32.mrb[0].mxu0
      %890 = vmatprep.mubr.bf16.mxu0 0
      %891 = vmatmul.mubr.bf16.gmra.mrb[0].mxu0 %v848
      %v892 = vpop.f32.mrb[0].mxu0
      %v893 = vadd.f32 0.0, %v892
      %v894 = vpop.f32.mrb[0].mxu0
      %v895 = vpop.f32.mrb[0].mxu0
      %v896 = vpop.f32.mrb[0].mxu0
      %897 = vdwg.mxu0
      %v898 = vadd.f32 %v824, %v885
      %v899 = vadd.f32 %v825, %v888
      %v900 = vadd.f32 %v826, %v893
      %v901 = vld [vmem:[%s230] sm:$0xc]
      %v902 = vld [vmem:[%s230 + $0x4] sm:$0xf]
      %v903 = vld [vmem:[%s230 + $0x8] sm:$0xf]
      %v904 = vld [vmem:[%s230 + $0xc] sm:$0x1]
      %s905 = scalar_lea.vmem %s1, 64
      %v906 = vld [vmem:[%s905] sm:$0xf]
      %v907 = vld [vmem:[%s905 + $0x4] sm:$0xf]
      %v912 = vunpack.c.l.b16 %v901
      %v913 = vunpack.c.l.b16 %v902
      %v914 = vunpack.c.l.b16 %v903
      %v915 = vunpack.c.l.b16 %v904
      %v916 = vpack.c.b16 %v913, %v912
      %v917 = vpack.c.b16 %v915, %v914
      %vm918 = vsmask.f32 5376
      %v920 = vshrl.u32 %v916, 16
      %v922 = vrot.slane %v920, 2
      %v923 = vshll.u32 %v916, 16
      %v925 = vrot.slane %v923, 3
      %v926 = vor.u32 %v922, %v925
      %v928 = vshrl.u32 %v917, 16
      %v930 = vrot.slane %v928, 2
      %v931 = vshll.u32 %v917, 16
      %v933 = vrot.slane %v931, 3
      %v934 = vor.u32 %v930, %v933
      %v935 = vsel %vm918, %v926, %v934
      %v938 = vunpack.c.l.b16 %v906
      %v939 = vunpack.c.l.b16 %v907
      %v940 = vpack.c.b16 %v939, %v938
      %v943 = vsel %vm284, %v935, 0
      %v946 = vsel %vm284, %v934, 0
      %948 = vmatprep.subr.bf16.mxu0 0
      %949 = vmatpush1.bf16.msra.mxu0 %v940
      %950 = vmatprep.subr.bf16.mxu0 0
      %951 = vmatpush1.bf16.msra.mxu0 0
      %952 = vmatprep.subr.bf16.mxu0 0
      %953 = vmatpush1.bf16.msra.mxu0 0
      %954 = vmatprep.subr.bf16.mxu0 0
      %955 = vmatpush1.bf16.msra.mxu0 0
      %956 = vmatprep.subr.bf16.mxu0 0
      %957 = vmatpush1.bf16.msra.mxu0 0
      %958 = vmatprep.subr.bf16.mxu0 0
      %959 = vmatpush1.bf16.msra.mxu0 0
      %960 = vmatprep.subr.bf16.mxu0 0
      %961 = vmatpush1.bf16.msra.mxu0 0
      %962 = vmatprep.subr.bf16.mxu0 0
      %963 = vmatpush1.bf16.msra.mxu0 0
      %964 = vmatprep.subr.bf16.mxu0 0
      %965 = vmatpush1.bf16.msra.mxu0 0
      %966 = vmatprep.subr.bf16.mxu0 0
      %967 = vmatpush1.bf16.msra.mxu0 0
      %968 = vmatprep.subr.bf16.mxu0 0
      %969 = vmatpush1.bf16.msra.mxu0 0
      %970 = vmatprep.subr.bf16.mxu0 0
      %971 = vmatpush1.bf16.msra.mxu0 0
      %972 = vmatprep.subr.bf16.mxu0 0
      %973 = vmatpush1.bf16.msra.mxu0 0
      %974 = vmatprep.subr.bf16.mxu0 0
      %975 = vmatpush1.bf16.msra.mxu0 0
      %976 = vmatprep.subr.bf16.mxu0 0
      %977 = vmatpush1.bf16.msra.mxu0 0
      %978 = vmatprep.subr.bf16.mxu0 0
      %979 = vmatpush1.bf16.msra.mxu0 0
      %980 = vmatprep.mubr.bf16.mxu0 0
      %981 = vmatmul.mubr.bf16.gmra.mrb[0].mxu0 %v943
      %v982 = vpop.f32.mrb[0].mxu0
      %v983 = vadd.f32 0.0, %v982
      %v984 = vpop.f32.mrb[0].mxu0
      %v985 = vpop.f32.mrb[0].mxu0
      %v986 = vadd.f32 0.0, %v985
      %v987 = vpop.f32.mrb[0].mxu0
      %988 = vmatprep.mubr.bf16.mxu0 0
      %989 = vmatmul.mubr.bf16.gmra.mrb[0].mxu0 %v946
      %v990 = vpop.f32.mrb[0].mxu0
      %v991 = vadd.f32 0.0, %v990
      %v992 = vpop.f32.mrb[0].mxu0
      %v993 = vpop.f32.mrb[0].mxu0
      %v994 = vpop.f32.mrb[0].mxu0
      %995 = vdwg.mxu0
      %v996 = vadd.f32 %v898, %v983
      %v997 = vadd.f32 %v899, %v986
      %v998 = vadd.f32 %v900, %v991
      %v999 = vld [vmem:[%s230 + $0xc] sm:$0x8]
      %v1000 = vld [vmem:[%s230 + $0x10] sm:$0xf]
      %v1001 = vld [vmem:[%s230 + $0x14] sm:$0xf]
      %v1002 = vld [vmem:[%s230 + $0x18] sm:$0x1]
      %s1003 = scalar_lea.vmem %s1, 72
      %v1004 = vld [vmem:[%s1003] sm:$0xf]
      %v1005 = vld [vmem:[%s1003 + $0x4] sm:$0xf]
      %v1010 = vunpack.c.l.b16 %v999
      %v1011 = vunpack.c.l.b16 %v1000
      %v1012 = vunpack.c.l.b16 %v1001
      %v1013 = vunpack.c.l.b16 %v1002
      %v1014 = vpack.c.b16 %v1011, %v1010
      %v1015 = vpack.c.b16 %v1013, %v1012
      %vm1016 = vcmask 1044480
      %v1017 = vrot.slane %v1014, 3
      %v1018 = vrot.slane %v1015, 3
      %v1019 = vsel %vm1016, %v1017, %v1018
      %v1022 = vunpack.c.l.b16 %v1004
      %v1023 = vunpack.c.l.b16 %v1005
      %v1024 = vpack.c.b16 %v1023, %v1022
      %v1027 = vsel %vm284, %v1019, 0
      %v1030 = vsel %vm284, %v1018, 0
      %1032 = vmatprep.subr.bf16.mxu0 0
      %1033 = vmatpush1.bf16.msra.mxu0 %v1024
      %1034 = vmatprep.subr.bf16.mxu0 0
      %1035 = vmatpush1.bf16.msra.mxu0 0
      %1036 = vmatprep.subr.bf16.mxu0 0
      %1037 = vmatpush1.bf16.msra.mxu0 0
      %1038 = vmatprep.subr.bf16.mxu0 0
      %1039 = vmatpush1.bf16.msra.mxu0 0
      %1040 = vmatprep.subr.bf16.mxu0 0
      %1041 = vmatpush1.bf16.msra.mxu0 0
      %1042 = vmatprep.subr.bf16.mxu0 0
      %1043 = vmatpush1.bf16.msra.mxu0 0
      %1044 = vmatprep.subr.bf16.mxu0 0
      %1045 = vmatpush1.bf16.msra.mxu0 0
      %1046 = vmatprep.subr.bf16.mxu0 0
      %1047 = vmatpush1.bf16.msra.mxu0 0
      %1048 = vmatprep.subr.bf16.mxu0 0
      %1049 = vmatpush1.bf16.msra.mxu0 0
      %1050 = vmatprep.subr.bf16.mxu0 0
      %1051 = vmatpush1.bf16.msra.mxu0 0
      %1052 = vmatprep.subr.bf16.mxu0 0
      %1053 = vmatpush1.bf16.msra.mxu0 0
      %1054 = vmatprep.subr.bf16.mxu0 0
      %1055 = vmatpush1.bf16.msra.mxu0 0
      %1056 = vmatprep.subr.bf16.mxu0 0
      %1057 = vmatpush1.bf16.msra.mxu0 0
      %1058 = vmatprep.subr.bf16.mxu0 0
      %1059 = vmatpush1.bf16.msra.mxu0 0
      %1060 = vmatprep.subr.bf16.mxu0 0
      %1061 = vmatpush1.bf16.msra.mxu0 0
      %1062 = vmatprep.subr.bf16.mxu0 0
      %1063 = vmatpush1.bf16.msra.mxu0 0
      %1064 = vmatprep.mubr.bf16.mxu0 0
      %1065 = vmatmul.mubr.bf16.gmra.mrb[0].mxu0 %v1027
      %v1066 = vpop.f32.mrb[0].mxu0
      %v1067 = vadd.f32 0.0, %v1066
      %v1068 = vpop.f32.mrb[0].mxu0
      %v1069 = vpop.f32.mrb[0].mxu0
      %v1070 = vadd.f32 0.0, %v1069
      %v1071 = vpop.f32.mrb[0].mxu0
      %1072 = vmatprep.mubr.bf16.mxu0 0
      %1073 = vmatmul.mubr.bf16.gmra.mrb[0].mxu0 %v1030
      %v1074 = vpop.f32.mrb[0].mxu0
      %v1075 = vadd.f32 0.0, %v1074
      %v1076 = vpop.f32.mrb[0].mxu0
      %v1077 = vpop.f32.mrb[0].mxu0
      %v1078 = vpop.f32.mrb[0].mxu0
      %1079 = vdwg.mxu0
      %v1080 = vadd.f32 %v996, %v1067
      %v1081 = vadd.f32 %v997, %v1070
      %v1082 = vadd.f32 %v998, %v1075
      %v1083 = vld [vmem:[%s230] sm:$0x8]
      %s1084 = scalar_lea.vmem %s1, 80
      %v1085 = vld [vmem:[%s1084] sm:$0xf]
      %v1086 = vld [vmem:[%s1084 + $0x4] sm:$0xf]
      %v1088 = vunpack.c.l.b16 %v1083
      %v1089 = vpack.c.b16 %v913, %v1088
      %v1090 = vrot.slane %v1089, 3
      %v1091 = vrot.slane %v917, 3
      %v1092 = vsel %vm1016, %v1090, %v1091
      %v1095 = vunpack.c.l.b16 %v1085
      %v1096 = vunpack.c.l.b16 %v1086
      %v1097 = vpack.c.b16 %v1096, %v1095
      %v1100 = vsel %vm284, %v1092, 0
      %v1103 = vsel %vm284, %v1091, 0
      %1105 = vmatprep.subr.bf16.mxu0 0
      %1106 = vmatpush1.bf16.msra.mxu0 %v1097
      %1107 = vmatprep.subr.bf16.mxu0 0
      %1108 = vmatpush1.bf16.msra.mxu0 0
      %1109 = vmatprep.subr.bf16.mxu0 0
      %1110 = vmatpush1.bf16.msra.mxu0 0
      %1111 = vmatprep.subr.bf16.mxu0 0
      %1112 = vmatpush1.bf16.msra.mxu0 0
      %1113 = vmatprep.subr.bf16.mxu0 0
      %1114 = vmatpush1.bf16.msra.mxu0 0
      %1115 = vmatprep.subr.bf16.mxu0 0
      %1116 = vmatpush1.bf16.msra.mxu0 0
      %1117 = vmatprep.subr.bf16.mxu0 0
      %1118 = vmatpush1.bf16.msra.mxu0 0
      %1119 = vmatprep.subr.bf16.mxu0 0
      %1120 = vmatpush1.bf16.msra.mxu0 0
      %1121 = vmatprep.subr.bf16.mxu0 0
      %1122 = vmatpush1.bf16.msra.mxu0 0
      %1123 = vmatprep.subr.bf16.mxu0 0
      %1124 = vmatpush1.bf16.msra.mxu0 0
      %1125 = vmatprep.subr.bf16.mxu0 0
      %1126 = vmatpush1.bf16.msra.mxu0 0
      %1127 = vmatprep.subr.bf16.mxu0 0
      %1128 = vmatpush1.bf16.msra.mxu0 0
      %1129 = vmatprep.subr.bf16.mxu0 0
      %1130 = vmatpush1.bf16.msra.mxu0 0
      %1131 = vmatprep.subr.bf16.mxu0 0
      %1132 = vmatpush1.bf16.msra.mxu0 0
      %1133 = vmatprep.subr.bf16.mxu0 0
      %1134 = vmatpush1.bf16.msra.mxu0 0
      %1135 = vmatprep.subr.bf16.mxu0 0
      %1136 = vmatpush1.bf16.msra.mxu0 0
      %1137 = vmatprep.mubr.bf16.mxu0 0
      %1138 = vmatmul.mubr.bf16.gmra.mrb[0].mxu0 %v1100
      %v1139 = vpop.f32.mrb[0].mxu0
      %v1140 = vadd.f32 0.0, %v1139
      %v1141 = vpop.f32.mrb[0].mxu0
      %v1142 = vpop.f32.mrb[0].mxu0
      %v1143 = vadd.f32 0.0, %v1142
      %v1144 = vpop.f32.mrb[0].mxu0
      %1145 = vmatprep.mubr.bf16.mxu0 0
      %1146 = vmatmul.mubr.bf16.gmra.mrb[0].mxu0 %v1103
      %v1147 = vpop.f32.mrb[0].mxu0
      %v1148 = vadd.f32 0.0, %v1147
      %v1149 = vpop.f32.mrb[0].mxu0
      %v1150 = vpop.f32.mrb[0].mxu0
      %v1151 = vpop.f32.mrb[0].mxu0
      %1152 = vdwg.mxu0
      %v1153 = vadd.f32 %v1080, %v1140
      %v1154 = vadd.f32 %v1081, %v1143
      %v1155 = vadd.f32 %v1082, %v1148
      %v1156 = vld [vmem:[%s230 + $0x18] sm:$0x3]
      %s1157 = scalar_lea.vmem %s1, 88
      %v1158 = vld [vmem:[%s1157] sm:$0xf]
      %v1159 = vld [vmem:[%s1157 + $0x4] sm:$0xf]
      %v1161 = vunpack.c.l.b16 %v1156
      %v1162 = vpack.c.b16 %v1161, %v1012
      %vm1163 = vsmask.f32 4352
      %v1165 = vshrl.u32 %v1014, 16
      %v1167 = vrot.slane %v1165, 3
      %v1168 = vshll.u32 %v1014, 16
      %v1170 = vrot.slane %v1168, 4
      %v1171 = vor.u32 %v1167, %v1170
      %v1173 = vshrl.u32 %v1162, 16
      %v1175 = vrot.slane %v1173, 3
      %v1176 = vshll.u32 %v1162, 16
      %v1178 = vrot.slane %v1176, 4
      %v1179 = vor.u32 %v1175, %v1178
      %v1180 = vsel %vm1163, %v1171, %v1179
      %v1183 = vunpack.c.l.b16 %v1158
      %v1184 = vunpack.c.l.b16 %v1159
      %v1185 = vpack.c.b16 %v1184, %v1183
      %v1188 = vsel %vm284, %v1180, 0
      %v1191 = vsel %vm284, %v1179, 0
      %1193 = vmatprep.subr.bf16.mxu0 0
      %1194 = vmatpush1.bf16.msra.mxu0 %v1185
      %1195 = vmatprep.subr.bf16.mxu0 0
      %1196 = vmatpush1.bf16.msra.mxu0 0
      %1197 = vmatprep.subr.bf16.mxu0 0
      %1198 = vmatpush1.bf16.msra.mxu0 0
      %1199 = vmatprep.subr.bf16.mxu0 0
      %1200 = vmatpush1.bf16.msra.mxu0 0
      %1201 = vmatprep.subr.bf16.mxu0 0
      %1202 = vmatpush1.bf16.msra.mxu0 0
      %1203 = vmatprep.subr.bf16.mxu0 0
      %1204 = vmatpush1.bf16.msra.mxu0 0
      %1205 = vmatprep.subr.bf16.mxu0 0
      %1206 = vmatpush1.bf16.msra.mxu0 0
      %1207 = vmatprep.subr.bf16.mxu0 0
      %1208 = vmatpush1.bf16.msra.mxu0 0
      %1209 = vmatprep.subr.bf16.mxu0 0
      %1210 = vmatpush1.bf16.msra.mxu0 0
      %1211 = vmatprep.subr.bf16.mxu0 0
      %1212 = vmatpush1.bf16.msra.mxu0 0
      %1213 = vmatprep.subr.bf16.mxu0 0
      %1214 = vmatpush1.bf16.msra.mxu0 0
      %1215 = vmatprep.subr.bf16.mxu0 0
      %1216 = vmatpush1.bf16.msra.mxu0 0
      %1217 = vmatprep.subr.bf16.mxu0 0
      %1218 = vmatpush1.bf16.msra.mxu0 0
      %1219 = vmatprep.subr.bf16.mxu0 0
      %1220 = vmatpush1.bf16.msra.mxu0 0
      %1221 = vmatprep.subr.bf16.mxu0 0
      %1222 = vmatpush1.bf16.msra.mxu0 0
      %1223 = vmatprep.subr.bf16.mxu0 0
      %1224 = vmatpush1.bf16.msra.mxu0 0
      %1225 = vmatprep.mubr.bf16.mxu0 0
      %1226 = vmatmul.mubr.bf16.gmra.mrb[0].mxu0 %v1188
      %v1227 = vpop.f32.mrb[0].mxu0
      %v1228 = vadd.f32 0.0, %v1227
      %v1229 = vpop.f32.mrb[0].mxu0
      %v1230 = vpop.f32.mrb[0].mxu0
      %v1231 = vadd.f32 0.0, %v1230
      %v1232 = vpop.f32.mrb[0].mxu0
      %1233 = vmatprep.mubr.bf16.mxu0 0
      %1234 = vmatmul.mubr.bf16.gmra.mrb[0].mxu0 %v1191
      %v1235 = vpop.f32.mrb[0].mxu0
      %v1236 = vadd.f32 0.0, %v1235
      %v1237 = vpop.f32.mrb[0].mxu0
      %v1238 = vpop.f32.mrb[0].mxu0
      %v1239 = vpop.f32.mrb[0].mxu0
      %1240 = vdwg.mxu0
      %v1241 = vadd.f32 %v1153, %v1228
      %v1242 = vadd.f32 %v1154, %v1231
      %v1243 = vadd.f32 %v1155, %v1236
      %v1244 = vld [vmem:[%s230 + $0x18] sm:$0x8]
      %v1245 = vld [vmem:[%s230 + $0x1c] sm:$0xf]
      %v1246 = vld [vmem:[%s230 + $0x20] sm:$0xf]
      %v1247 = vld [vmem:[%s230 + $0x24] sm:$0x3]
      %s1248 = scalar_lea.vmem %s1, 96
      %v1249 = vld [vmem:[%s1248] sm:$0xf]
      %v1250 = vld [vmem:[%s1248 + $0x4] sm:$0xf]
      %v1255 = vunpack.c.l.b16 %v1244
      %v1256 = vunpack.c.l.b16 %v1245
      %v1257 = vunpack.c.l.b16 %v1246
      %v1258 = vunpack.c.l.b16 %v1247
      %v1259 = vpack.c.b16 %v1256, %v1255
      %v1260 = vpack.c.b16 %v1258, %v1257
      %v1262 = vshrl.u32 %v1259, 16
      %v1264 = vrot.slane %v1262, 3
      %v1265 = vshll.u32 %v1259, 16
      %v1267 = vrot.slane %v1265, 4
      %v1268 = vor.u32 %v1264, %v1267
      %v1270 = vshrl.u32 %v1260, 16
      %v1272 = vrot.slane %v1270, 3
      %v1273 = vshll.u32 %v1260, 16
      %v1275 = vrot.slane %v1273, 4
      %v1276 = vor.u32 %v1272, %v1275
      %v1277 = vsel %vm1163, %v1268, %v1276
      %v1280 = vunpack.c.l.b16 %v1249
      %v1281 = vunpack.c.l.b16 %v1250
      %v1282 = vpack.c.b16 %v1281, %v1280
      %v1285 = vsel %vm284, %v1277, 0
      %v1288 = vsel %vm284, %v1276, 0
      %1290 = vmatprep.subr.bf16.mxu0 0
      %1291 = vmatpush1.bf16.msra.mxu0 %v1282
      %1292 = vmatprep.subr.bf16.mxu0 0
      %1293 = vmatpush1.bf16.msra.mxu0 0
      %1294 = vmatprep.subr.bf16.mxu0 0
      %1295 = vmatpush1.bf16.msra.mxu0 0
      %1296 = vmatprep.subr.bf16.mxu0 0
      %1297 = vmatpush1.bf16.msra.mxu0 0
      %1298 = vmatprep.subr.bf16.mxu0 0
      %1299 = vmatpush1.bf16.msra.mxu0 0
      %1300 = vmatprep.subr.bf16.mxu0 0
      %1301 = vmatpush1.bf16.msra.mxu0 0
      %1302 = vmatprep.subr.bf16.mxu0 0
      %1303 = vmatpush1.bf16.msra.mxu0 0
      %1304 = vmatprep.subr.bf16.mxu0 0
      %1305 = vmatpush1.bf16.msra.mxu0 0
      %1306 = vmatprep.subr.bf16.mxu0 0
      %1307 = vmatpush1.bf16.msra.mxu0 0
      %1308 = vmatprep.subr.bf16.mxu0 0
      %1309 = vmatpush1.bf16.msra.mxu0 0
      %1310 = vmatprep.subr.bf16.mxu0 0
      %1311 = vmatpush1.bf16.msra.mxu0 0
      %1312 = vmatprep.subr.bf16.mxu0 0
      %1313 = vmatpush1.bf16.msra.mxu0 0
      %1314 = vmatprep.subr.bf16.mxu0 0
      %1315 = vmatpush1.bf16.msra.mxu0 0
      %1316 = vmatprep.subr.bf16.mxu0 0
      %1317 = vmatpush1.bf16.msra.mxu0 0
      %1318 = vmatprep.subr.bf16.mxu0 0
      %1319 = vmatpush1.bf16.msra.mxu0 0
      %1320 = vmatprep.subr.bf16.mxu0 0
      %1321 = vmatpush1.bf16.msra.mxu0 0
      %1322 = vmatprep.mubr.bf16.mxu0 0
      %1323 = vmatmul.mubr.bf16.gmra.mrb[0].mxu0 %v1285
      %v1324 = vpop.f32.mrb[0].mxu0
      %v1325 = vadd.f32 0.0, %v1324
      %v1326 = vpop.f32.mrb[0].mxu0
      %v1327 = vpop.f32.mrb[0].mxu0
      %v1328 = vadd.f32 0.0, %v1327
      %v1329 = vpop.f32.mrb[0].mxu0
      %1330 = vmatprep.mubr.bf16.mxu0 0
      %1331 = vmatmul.mubr.bf16.gmra.mrb[0].mxu0 %v1288
      %v1332 = vpop.f32.mrb[0].mxu0
      %v1333 = vadd.f32 0.0, %v1332
      %v1334 = vpop.f32.mrb[0].mxu0
      %v1335 = vpop.f32.mrb[0].mxu0
      %v1336 = vpop.f32.mrb[0].mxu0
      %1337 = vdwg.mxu0
      %v1338 = vadd.f32 %v1241, %v1325
      %v1339 = vadd.f32 %v1242, %v1328
      %v1340 = vadd.f32 %v1243, %v1333
      %v1341 = vld [vmem:[%s230 + $0x28] sm:$0xf]
      %v1342 = vld [vmem:[%s230 + $0x2c] sm:$0xf]
      %v1343 = vld [vmem:[%s230 + $0x30] sm:$0x3]
      %s1344 = scalar_lea.vmem %s1, 104
      %v1345 = vld [vmem:[%s1344] sm:$0xf]
      %v1346 = vld [vmem:[%s1344 + $0x4] sm:$0xf]
      %v1350 = vunpack.c.l.b16 %v1341
      %v1351 = vunpack.c.l.b16 %v1342
      %v1352 = vunpack.c.l.b16 %v1343
      %v1353 = vpack.c.b16 %v1351, %v1350
      %v1354 = vpack.c.b16 %v1352, %v1352
      %v1357 = vunpack.c.l.b16 %v1345
      %v1358 = vunpack.c.l.b16 %v1346
      %v1359 = vpack.c.b16 %v1358, %v1357
      %v1362 = vsel %vm284, %v1353, 0
      %v1365 = vsel %vm284, %v1354, 0
      %1367 = vmatprep.subr.bf16.mxu0 0
      %1368 = vmatpush1.bf16.msra.mxu0 %v1359
      %1369 = vmatprep.subr.bf16.mxu0 0
      %1370 = vmatpush1.bf16.msra.mxu0 0
      %1371 = vmatprep.subr.bf16.mxu0 0
      %1372 = vmatpush1.bf16.msra.mxu0 0
      %1373 = vmatprep.subr.bf16.mxu0 0
      %1374 = vmatpush1.bf16.msra.mxu0 0
      %1375 = vmatprep.subr.bf16.mxu0 0
      %1376 = vmatpush1.bf16.msra.mxu0 0
      %1377 = vmatprep.subr.bf16.mxu0 0
      %1378 = vmatpush1.bf16.msra.mxu0 0
      %1379 = vmatprep.subr.bf16.mxu0 0
      %1380 = vmatpush1.bf16.msra.mxu0 0
      %1381 = vmatprep.subr.bf16.mxu0 0
      %1382 = vmatpush1.bf16.msra.mxu0 0
      %1383 = vmatprep.subr.bf16.mxu0 0
      %1384 = vmatpush1.bf16.msra.mxu0 0
      %1385 = vmatprep.subr.bf16.mxu0 0
      %1386 = vmatpush1.bf16.msra.mxu0 0
      %1387 = vmatprep.subr.bf16.mxu0 0
      %1388 = vmatpush1.bf16.msra.mxu0 0
      %1389 = vmatprep.subr.bf16.mxu0 0
      %1390 = vmatpush1.bf16.msra.mxu0 0
      %1391 = vmatprep.subr.bf16.mxu0 0
      %1392 = vmatpush1.bf16.msra.mxu0 0
      %1393 = vmatprep.subr.bf16.mxu0 0
      %1394 = vmatpush1.bf16.msra.mxu0 0
      %1395 = vmatprep.subr.bf16.mxu0 0
      %1396 = vmatpush1.bf16.msra.mxu0 0
      %1397 = vmatprep.subr.bf16.mxu0 0
      %1398 = vmatpush1.bf16.msra.mxu0 0
      %1399 = vmatprep.mubr.bf16.mxu0 0
      %1400 = vmatmul.mubr.bf16.gmra.mrb[0].mxu0 %v1362
      %v1401 = vpop.f32.mrb[0].mxu0
      %v1402 = vadd.f32 0.0, %v1401
      %v1403 = vpop.f32.mrb[0].mxu0
      %v1404 = vpop.f32.mrb[0].mxu0
      %v1405 = vadd.f32 0.0, %v1404
      %v1406 = vpop.f32.mrb[0].mxu0
      %1407 = vmatprep.mubr.bf16.mxu0 0
      %1408 = vmatmul.mubr.bf16.gmra.mrb[0].mxu0 %v1365
      %v1409 = vpop.f32.mrb[0].mxu0
      %v1410 = vadd.f32 0.0, %v1409
      %v1411 = vpop.f32.mrb[0].mxu0
      %v1412 = vpop.f32.mrb[0].mxu0
      %v1413 = vpop.f32.mrb[0].mxu0
      %1414 = vdwg.mxu0
      %v1415 = vadd.f32 %v1338, %v1402
      %v1416 = vadd.f32 %v1339, %v1405
      %v1417 = vadd.f32 %v1340, %v1410
      %s1418 = scalar_lea.vmem %s1, 112
      %v1419 = vld [vmem:[%s1418] sm:$0xf]
      %v1420 = vld [vmem:[%s1418 + $0x4] sm:$0xf]
      %v1421 = vpack.c.b16 %v1257, %v1256
      %v1422 = vpack.c.b16 %v1258, %v1258
      %v1425 = vunpack.c.l.b16 %v1419
      %v1426 = vunpack.c.l.b16 %v1420
      %v1427 = vpack.c.b16 %v1426, %v1425
      %v1430 = vsel %vm284, %v1421, 0
      %v1433 = vsel %vm284, %v1422, 0
      %1435 = vmatprep.subr.bf16.mxu0 0
      %1436 = vmatpush1.bf16.msra.mxu0 %v1427
      %1437 = vmatprep.subr.bf16.mxu0 0
      %1438 = vmatpush1.bf16.msra.mxu0 0
      %1439 = vmatprep.subr.bf16.mxu0 0
      %1440 = vmatpush1.bf16.msra.mxu0 0
      %1441 = vmatprep.subr.bf16.mxu0 0
      %1442 = vmatpush1.bf16.msra.mxu0 0
      %1443 = vmatprep.subr.bf16.mxu0 0
      %1444 = vmatpush1.bf16.msra.mxu0 0
      %1445 = vmatprep.subr.bf16.mxu0 0
      %1446 = vmatpush1.bf16.msra.mxu0 0
      %1447 = vmatprep.subr.bf16.mxu0 0
      %1448 = vmatpush1.bf16.msra.mxu0 0
      %1449 = vmatprep.subr.bf16.mxu0 0
      %1450 = vmatpush1.bf16.msra.mxu0 0
      %1451 = vmatprep.subr.bf16.mxu0 0
      %1452 = vmatpush1.bf16.msra.mxu0 0
      %1453 = vmatprep.subr.bf16.mxu0 0
      %1454 = vmatpush1.bf16.msra.mxu0 0
      %1455 = vmatprep.subr.bf16.mxu0 0
      %1456 = vmatpush1.bf16.msra.mxu0 0
      %1457 = vmatprep.subr.bf16.mxu0 0
      %1458 = vmatpush1.bf16.msra.mxu0 0
      %1459 = vmatprep.subr.bf16.mxu0 0
      %1460 = vmatpush1.bf16.msra.mxu0 0
      %1461 = vmatprep.subr.bf16.mxu0 0
      %1462 = vmatpush1.bf16.msra.mxu0 0
      %1463 = vmatprep.subr.bf16.mxu0 0
      %1464 = vmatpush1.bf16.msra.mxu0 0
      %1465 = vmatprep.subr.bf16.mxu0 0
      %1466 = vmatpush1.bf16.msra.mxu0 0
      %1467 = vmatprep.mubr.bf16.mxu0 0
      %1468 = vmatmul.mubr.bf16.gmra.mrb[0].mxu0 %v1430
      %v1469 = vpop.f32.mrb[0].mxu0
      %v1470 = vadd.f32 0.0, %v1469
      %v1471 = vpop.f32.mrb[0].mxu0
      %v1472 = vpop.f32.mrb[0].mxu0
      %v1473 = vadd.f32 0.0, %v1472
      %v1474 = vpop.f32.mrb[0].mxu0
      %1475 = vmatprep.mubr.bf16.mxu0 0
      %1476 = vmatmul.mubr.bf16.gmra.mrb[0].mxu0 %v1433
      %v1477 = vpop.f32.mrb[0].mxu0
      %v1478 = vadd.f32 0.0, %v1477
      %v1479 = vpop.f32.mrb[0].mxu0
      %v1480 = vpop.f32.mrb[0].mxu0
      %v1481 = vpop.f32.mrb[0].mxu0
      %1482 = vdwg.mxu0
      %v1483 = vadd.f32 %v1415, %v1470
      %v1484 = vadd.f32 %v1416, %v1473
      %v1485 = vadd.f32 %v1417, %v1478
      %v1486 = vld [vmem:[%s230 + $0x30] sm:$0x7]
      %s1487 = scalar_lea.vmem %s1, 120
      %v1488 = vld [vmem:[%s1487] sm:$0xf]
      %v1489 = vld [vmem:[%s1487 + $0x4] sm:$0xf]
      %v1491 = vunpack.c.l.b16 %v1486
      %v1492 = vpack.c.b16 %v1491, %v1491
      %v1493 = vshrl.u32 %v1353, 16
      %v1495 = vshll.u32 %v1353, 16
      %v1497 = vrot.slane %v1495, 1
      %v1498 = vor.u32 %v1493, %v1497
      %v1500 = vshll.u32 %v1492, 16
      %v1502 = vrot.slane %v1500, 1
      %v1503 = vsel %vm262, %v1498, %v1502
      %v1504 = vshrl.u32 %v1492, 16
      %v1506 = vor.u32 %v1504, %v1502
      %v1509 = vunpack.c.l.b16 %v1488
      %v1510 = vunpack.c.l.b16 %v1489
      %v1511 = vpack.c.b16 %v1510, %v1509
      %v1514 = vsel %vm284, %v1503, 0
      %v1517 = vsel %vm284, %v1506, 0
      %1519 = vmatprep.subr.bf16.mxu0 0
      %1520 = vmatpush1.bf16.msra.mxu0 %v1511
      %1521 = vmatprep.subr.bf16.mxu0 0
      %1522 = vmatpush1.bf16.msra.mxu0 0
      %1523 = vmatprep.subr.bf16.mxu0 0
      %1524 = vmatpush1.bf16.msra.mxu0 0
      %1525 = vmatprep.subr.bf16.mxu0 0
      %1526 = vmatpush1.bf16.msra.mxu0 0
      %1527 = vmatprep.subr.bf16.mxu0 0
      %1528 = vmatpush1.bf16.msra.mxu0 0
      %1529 = vmatprep.subr.bf16.mxu0 0
      %1530 = vmatpush1.bf16.msra.mxu0 0
      %1531 = vmatprep.subr.bf16.mxu0 0
      %1532 = vmatpush1.bf16.msra.mxu0 0
      %1533 = vmatprep.subr.bf16.mxu0 0
      %1534 = vmatpush1.bf16.msra.mxu0 0
      %1535 = vmatprep.subr.bf16.mxu0 0
      %1536 = vmatpush1.bf16.msra.mxu0 0
      %1537 = vmatprep.subr.bf16.mxu0 0
      %1538 = vmatpush1.bf16.msra.mxu0 0
      %1539 = vmatprep.subr.bf16.mxu0 0
      %1540 = vmatpush1.bf16.msra.mxu0 0
      %1541 = vmatprep.subr.bf16.mxu0 0
      %1542 = vmatpush1.bf16.msra.mxu0 0
      %1543 = vmatprep.subr.bf16.mxu0 0
      %1544 = vmatpush1.bf16.msra.mxu0 0
      %1545 = vmatprep.subr.bf16.mxu0 0
      %1546 = vmatpush1.bf16.msra.mxu0 0
      %1547 = vmatprep.subr.bf16.mxu0 0
      %1548 = vmatpush1.bf16.msra.mxu0 0
      %1549 = vmatprep.subr.bf16.mxu0 0
      %1550 = vmatpush1.bf16.msra.mxu0 0
      %1551 = vmatprep.mubr.bf16.mxu0 0
      %1552 = vmatmul.mubr.bf16.gmra.mrb[0].mxu0 %v1514
      %v1553 = vpop.f32.mrb[0].mxu0
      %v1554 = vadd.f32 0.0, %v1553
      %v1555 = vpop.f32.mrb[0].mxu0
      %v1556 = vpop.f32.mrb[0].mxu0
      %v1557 = vadd.f32 0.0, %v1556
      %v1558 = vpop.f32.mrb[0].mxu0
      %1559 = vmatprep.mubr.bf16.mxu0 0
      %1560 = vmatmul.mubr.bf16.gmra.mrb[0].mxu0 %v1517
      %v1561 = vpop.f32.mrb[0].mxu0
      %v1562 = vadd.f32 0.0, %v1561
      %v1563 = vpop.f32.mrb[0].mxu0
      %v1564 = vpop.f32.mrb[0].mxu0
      %v1565 = vpop.f32.mrb[0].mxu0
      %1566 = vdwg.mxu0
      %v1567 = vadd.f32 %v1483, %v1554
      %v1568 = vadd.f32 %v1484, %v1557
      %v1569 = vadd.f32 %v1485, %v1562
      %vm1570 = vcmask 257024
      %1571 = vst.msk [vmem:[%s235] sm:$0xf] %vm1570, %v1567
      %s1572 = scalar_lea.vmem %s235, 4
      %vm1573 = vcmask 261125
      %1574 = vst.msk [vmem:[%s1572 - $0x5] sm:$0xe0] %vm1573, %v1567
      %vm1575 = vcmask 253952
      %1576 = vst.msk [vmem:[%s1572 + $0x3] sm:$0x1] %vm1575, %v1568
      %s1577 = scalar_lea.vmem %s235, 8
      %vm1578 = vcmask 259074
      %1579 = vst.msk [vmem:[%s1577 - $0x2] sm:$0x3c] %vm1578, %v1568
      %s1580 = scalar_lea.vmem %s235, 12
      %vm1581 = vcmask 261127
      %1582 = vst.msk [vmem:[%s1580 - $0x7] sm:$0x80] %vm1581, %v1568
      %vm1583 = vcmask 256000
      %1584 = vst.msk [vmem:[%s1580 + $0x1] sm:$0x7] %vm1583, %v1569
      %v1585 = vld [vmem:[%s2] sm:$0xff]
      %v1586 = vld [vmem:[%s2 + $0x8] sm:$0xff]
      %v1587 = vld [vmem:[%s2 + $0x10] sm:$0xf]
      %1589 = vset.pattern.permute.xlu0 0
      %1590 = vperm.xlu0 %1589, %v1585
      %v1591 = vpop.permute.xlu0 %1590
      %1594 = vset.pattern.permute.xlu0 0
      %1595 = vperm.xlu0 %1594, %v1586
      %v1596 = vpop.permute.xlu0 %1595
      %1599 = vset.pattern.permute.xlu0 0
      %1600 = vperm.xlu0 %1599, %v1587
      %v1601 = vpop.permute.xlu0 %1600
      %v1603 = vmul.f32 %v1567, %v1591
      %v1604 = vmul.f32 %v1568, %v1596
      %v1605 = vmul.f32 %v1569, %v1601
      %vm1606 = vcmask 261120
      %v1607 = vsel %vm1606, %v1603, 0.0
      %v1608 = vsel %vm1606, %v1604, 0.0
      %v1609 = vadd.f32 %v1607, %v1608
      %v1610 = vsel %vm1570, %v1605, 0.0
      %v1611 = vadd.f32 %v1609, %v1610
      %v1612 = vrot.slane %v1611, 4
      %v1613 = vadd.f32 %v1611, %v1612
      %v1614 = vrot.slane %v1613, 2
      %v1615 = vadd.f32 %v1613, %v1614
      %v1616 = vrot.slane %v1615, 1
      %v1617 = vadd.f32 %v1615, %v1616
      %1618 = vst.msk [vmem:[%s238] sm:$0x1] %vm1575, %v1617
      %v1619 = vmul.f32 %v1603, %v1567
      %v1620 = vmul.f32 %v1604, %v1568
      %v1621 = vmul.f32 %v1605, %v1569
      %v1622 = vsel %vm1606, %v1619, 0.0
      %v1623 = vsel %vm1606, %v1620, 0.0
      %v1624 = vadd.f32 %v1622, %v1623
      %v1625 = vsel %vm1570, %v1621, 0.0
      %v1626 = vadd.f32 %v1624, %v1625
      %v1627 = vrot.slane %v1626, 4
      %v1628 = vadd.f32 %v1626, %v1627
      %v1629 = vrot.slane %v1628, 2
      %v1630 = vadd.f32 %v1628, %v1629
      %v1631 = vrot.slane %v1630, 1
      %v1632 = vadd.f32 %v1630, %v1631
      %1633 = vst.msk [vmem:[%s241] sm:$0x1] %vm1575, %v1632
      %p1634 = scmp.lt.s32.totalorder %s17, 1
      %s1635 = scalar_select %p1634, %s17, 1
      %s1636 = smul.addr %s1635, 4
      %s1637 = smul.addr %s1636, 4
      %s1638 = scalar_lea.vmem %s3, %s1637
      %p1639 = scmp.lt.s32.totalorder %s17, 1
      %s1640 = scalar_select %p1639, %s17, 1
      %s1641 = scalar_lea.vmem %s4, %s1640
      %p1642 = scmp.lt.s32.totalorder %s17, 1
      %s1643 = scalar_select %p1642, %s17, 1
      %s1644 = scalar_lea.vmem %s5, %s1643
      // Predicated region
      $region33: #{discriminator_forward.10} parent=31 // pred_check
        %p1645 = pneg %p103
      $region34: #{discriminator_forward.10} parent=31 // pred_check_branch
        %1647 = sbr.rel (%p1645) target = $region36
      $region35: #{discriminator_forward.10} parent=31 // pred_region
        _
      $region36: #{discriminator_forward.10} parent=31 // pred_fallthru
        _
      // Predicated region
      $region37: #{discriminator_forward.10} parent=31 // pred_check
        %p1648 = pneg %p129
      $region38: #{discriminator_forward.10} parent=31 // pred_check_branch
        %1650 = sbr.rel (%p1648) target = $region40
      $region39: #{discriminator_forward.10} parent=31 // pred_region
        _
      $region40: #{discriminator_forward.10} parent=31 // pred_fallthru
        _
      // Predicated region
      $region41: #{discriminator_forward.10} parent=31 // pred_check
        %p1651 = pneg %p155
      $region42: #{discriminator_forward.10} parent=31 // pred_check_branch
        %1653 = sbr.rel (%p1651) target = $region44
      $region43: #{discriminator_forward.10} parent=31 // pred_region
        _
      $region44: #{discriminator_forward.10} parent=31 // pred_fallthru
        _
    $region32: #{discriminator_forward.10} parent=5 // pred_fallthru
      _
    %p1654 = scmp.le.s32.totalorder 2, %s12
    // Predicated region
    $region45: #{discriminator_forward.10} parent=5 // pred_check
      %p1655 = pneg %p1654
    $region46: #{discriminator_forward.10} parent=5 // pred_check_branch
      %1657 = sbr.rel (%p1655) target = $region48
    $region47: #{discriminator_forward.10} parent=5 // pred_region
      %s1658 = ssub.s32 %s12, 2
      // Predicated region
      $region49: #{discriminator_forward.10} parent=47 // pred_check
        %p1659 = pneg %p109
      $region50: #{discriminator_forward.10} parent=47 // pred_check_branch
        %1661 = sbr.rel (%p1659) target = $region52
      $region51: #{discriminator_forward.10} parent=47 // pred_region
        %p1662 = scmp.lt.s32.totalorder %s18, 1
        %s1663 = scalar_select %p1662, %s18, 1
        %s1664 = smul.addr %s1663, 4
        %s1665 = smul.addr %s1664, 4
        %s1666 = scalar_lea.vmem %s3, %s1665
      $region52: #{discriminator_forward.10} parent=47 // pred_fallthru
        _
      // Predicated region
      $region53: #{discriminator_forward.10} parent=47 // pred_check
        %p1667 = pneg %p135
      $region54: #{discriminator_forward.10} parent=47 // pred_check_branch
        %1669 = sbr.rel (%p1667) target = $region56
      $region55: #{discriminator_forward.10} parent=47 // pred_region
        %p1670 = scmp.lt.s32.totalorder %s18, 1
        %s1671 = scalar_select %p1670, %s18, 1
        %s1672 = scalar_lea.vmem %s4, %s1671
      $region56: #{discriminator_forward.10} parent=47 // pred_fallthru
        _
      // Predicated region
      $region57: #{discriminator_forward.10} parent=47 // pred_check
        %p1673 = pneg %p161
      $region58: #{discriminator_forward.10} parent=47 // pred_check_branch
        %1675 = sbr.rel (%p1673) target = $region60
      $region59: #{discriminator_forward.10} parent=47 // pred_region
        %p1676 = scmp.lt.s32.totalorder %s18, 1
        %s1677 = scalar_select %p1676, %s18, 1
        %s1678 = scalar_lea.vmem %s5, %s1677
      $region60: #{discriminator_forward.10} parent=47 // pred_fallthru
        _
    $region48: #{discriminator_forward.10} parent=5 // pred_fallthru
      _
  $region6: #{discriminator_forward.10} parent=0 // loop_footer
    %s16 = sadd.s32 1, %s12
  $region7: #{discriminator_forward.10} parent=0 // loop_footer_branch
    %11 = sbr.rel target = $region3
  $region8: #{discriminator_forward.10} parent=0 // loop_exit
    _

// kernel: discriminator_forward.13
$region0: #{discriminator_forward.13}
  #allocation0 [shape = 'u32[]', space=smem, size = 0x4, offset = 0x4, fixed_abs, tag = 'smem constant byte address 0x4 - core index']
  #allocation1 [shape = 'u32[144,128]{1,0:T(1,128)}', space=vmem, size = 0x12000, scoped, tag = 'internal scratch']
  %s0 = inlined_call_operand.vmem [shape: f32[8,64], index: 0, kind: input, shape index: {}]
  %s1 = inlined_call_operand.vmem [shape: f32[1,64], index: 1, kind: input, shape index: {}]
  %s2 = inlined_call_operand.vmem [shape: f32[1,64], index: 2, kind: input, shape index: {}]
  %s3 = inlined_call_operand.vmem [shape: bf16[8,64], index: 3, kind: output, shape index: {}]
  %s4 = sld [smem:[#allocation0]]
  $region22: #{discriminator_forward.13} parent=0
    _
  %s6 = ssub.s32 1, %s4
  %s7 = scalar_select 0, %s6, %s4
  // Predicated region
  $region2: #{discriminator_forward.13} parent=0 // pred_check
    _
  $region3: #{discriminator_forward.13} parent=0 // pred_check_branch
    %9 = sbr.rel (0) target = $region5
  $region4: #{discriminator_forward.13} parent=0 // pred_region
    _
  $region5: #{discriminator_forward.13} parent=0 // pred_fallthru
    _
  // Predicated region
  $region6: #{discriminator_forward.13} parent=0 // pred_check
    _
  $region7: #{discriminator_forward.13} parent=0 // pred_check_branch
    %11 = sbr.rel (0) target = $region9
  $region8: #{discriminator_forward.13} parent=0 // pred_region
    _
  $region9: #{discriminator_forward.13} parent=0 // pred_fallthru
    _
  // Predicated region
  $region10: #{discriminator_forward.13} parent=0 // pred_check
    _
  $region11: #{discriminator_forward.13} parent=0 // pred_check_branch
    %13 = sbr.rel (0) target = $region13
  $region12: #{discriminator_forward.13} parent=0 // pred_region
    _
  $region13: #{discriminator_forward.13} parent=0 // pred_fallthru
    _
  %v14 = vld [vmem:[%s0] sm:$0xff]
  %v15 = vld [vmem:[%s1] sm:$0x1]
  %v17 = vlaneseq
  %v18 = vshrl.u32 %v17, 7
  %v19 = vsub.s32 0, %v18
  %v20 = vrot.slane %v15, %v19
  %v22 = vmul.f32 %v14, %v20
  %v23 = vld [vmem:[%s2] sm:$0x1]
  %v25 = vlaneseq
  %v26 = vshrl.u32 %v25, 7
  %v27 = vsub.s32 0, %v26
  %v28 = vrot.slane %v23, %v27
  %v30 = vadd.f32 %v22, %v28
  %vm31 = vcmp.ge.f32.partialorder %v30, 0.0
  %v32 = vmul.f32 %v30, 0.2
  %v33 = vsel %vm31, %v30, %v32
  %v34 = vpack.c.bf16 %v33, %v33
  %vm35 = vcmask 519168
  %36 = vst.msk [vmem:[%s3] sm:$0xf] %vm35, %v34
  // Predicated region
  $region14: #{discriminator_forward.13} parent=0 // pred_check
    _
  $region15: #{discriminator_forward.13} parent=0 // pred_check_branch
    %38 = sbr.rel (0) target = $region17
  $region16: #{discriminator_forward.13} parent=0 // pred_region
    _
  $region17: #{discriminator_forward.13} parent=0 // pred_fallthru
    _
  // Predicated region
  $region18: #{discriminator_forward.13} parent=0 // pred_check
    _
  $region19: #{discriminator_forward.13} parent=0 // pred_check_branch
    %40 = sbr.rel (0) target = $region21
  $region20: #{discriminator_forward.13} parent=0 // pred_region
    _
  $region21: #{discriminator_forward.13} parent=0 // pred_fallthru
    _

// kernel: discriminator_forward.12
$region0: #{discriminator_forward.12}
  #allocation0 [shape = 'u32[]', space=smem, size = 0x4, offset = 0x4, fixed_abs, tag = 'smem constant byte address 0x4 - core index']
  #allocation1 [shape = 'u32[144,128]{1,0:T(1,128)}', space=vmem, size = 0x12000, scoped, tag = 'internal scratch']
  %s0 = inlined_call_operand.vmem [shape: bf16[2,39,32], index: 0, kind: input, shape index: {}]
  %s1 = inlined_call_operand.vmem [shape: bf16[16,32,64], index: 1, kind: input, shape index: {}]
  %s2 = inlined_call_operand.vmem [shape: f32[6,1], index: 2, kind: input, shape index: {}]
  %s3 = inlined_call_operand.vmem [shape: f32[2,2,2,64], index: 3, kind: output, shape index: {0}]
  %s4 = inlined_call_operand.vmem [shape: f32[2,1,64], index: 4, kind: output, shape index: {1}]
  %s5 = inlined_call_operand.vmem [shape: f32[2,1,64], index: 5, kind: output, shape index: {2}]
  %6 = xla_tuple %s3, %s4, %s5
  %s7 = sld [smem:[#allocation0]]
  $region61: #{discriminator_forward.12} parent=0
    _
  %s9 = ssub.s32 1, %s7
  %s10 = scalar_select 0, %s9, %s7
  loop: start=0, step=1, limit=4
  $region2: #{discriminator_forward.12} parent=0 // loop_pre_header
    _
  $region3: #{discriminator_forward.12} parent=0 // loop_header
    %s12 = sphi 0, %s16
    %p13 = scmp.ge.s32.totalorder %s12, 4
    %s22 = sphi 0, %s24
    %s25 = sphi 0, %s22
    %s26 = sphi 0, %s25
    %s42 = sphi 0, %s26
    %s46 = sphi 0, %s46
    %s48 = sphi 0, %s46
    %s49 = sphi 0, %s48
    %s63 = sphi 0, %s49
    %s67 = sphi 0, %s67
    %s69 = sphi 0, %s67
    %s70 = sphi 0, %s69
    %s84 = sphi 0, %s70
    %s90 = sphi 0, %s92
    %s93 = sphi 0, %s90
    %s94 = sphi 0, %s93
    %s110 = sphi 0, %s94
    %s116 = sphi 0, %s118
    %s119 = sphi 0, %s116
    %s120 = sphi 0, %s119
    %s136 = sphi 0, %s120
    %s142 = sphi 0, %s144
    %s145 = sphi 0, %s142
    %s146 = sphi 0, %s145
    %s162 = sphi 0, %s146
  $region4: #{discriminator_forward.12} parent=0 // loop_header_branch
    %15 = sbr.rel (%p13) target = $region8
  $region5: #{discriminator_forward.12} parent=0 // loop_body
    %s17 = ssub.s32 %s12, 1
    %s18 = ssub.s32 %s12, 2
    %s19 = sadd.s32 %s12, 1
    %s20 = ssub.s32 %s12, %s19
    %p21 = scmp.eq.s32.totalorder %s20, 0
    %s23 = sadd.s32 %s22, 1
    %s24 = scalar_select %p21, %s22, %s23
    %p27 = pneg %p21
    %p28 = scmp.eq.s32.totalorder %s12, 1
    %p29 = por %p27, %p28
    %p30 = scmp.ne.s32.totalorder %s22, %s25
    %p31 = scmp.eq.s32.totalorder %s12, 0
    %p32 = por %p30, %p31
    %p33 = scmp.ne.s32.totalorder %s22, %s25
    %p34 = scmp.eq.s32.totalorder %s17, 1
    %p35 = por %p33, %p34
    %p36 = scmp.ne.s32.totalorder %s25, %s26
    %p37 = scmp.eq.s32.totalorder %s17, 0
    %p38 = por %p36, %p37
    %p39 = scmp.ne.s32.totalorder %s25, %s26
    %p40 = scmp.eq.s32.totalorder %s18, 1
    %p41 = por %p39, %p40
    %p43 = scmp.ne.s32.totalorder %s26, %s42
    %p44 = scmp.eq.s32.totalorder %s18, 0
    %p45 = por %p43, %p44
    %s47 = sadd.s32 %s46, 1
    %p50 = scmp.eq.s32.totalorder %s12, 1
    %p51 = scmp.ne.s32.totalorder %s46, %s48
    %p52 = scmp.eq.s32.totalorder %s12, 0
    %p53 = por %p51, %p52
    %p54 = scmp.ne.s32.totalorder %s46, %s48
    %p55 = scmp.eq.s32.totalorder %s17, 1
    %p56 = por %p54, %p55
    %p57 = scmp.ne.s32.totalorder %s48, %s49
    %p58 = scmp.eq.s32.totalorder %s17, 0
    %p59 = por %p57, %p58
    %p60 = scmp.ne.s32.totalorder %s48, %s49
    %p61 = scmp.eq.s32.totalorder %s18, 1
    %p62 = por %p60, %p61
    %p64 = scmp.ne.s32.totalorder %s49, %s63
    %p65 = scmp.eq.s32.totalorder %s18, 0
    %p66 = por %p64, %p65
    %s68 = sadd.s32 %s67, 1
    %p71 = scmp.eq.s32.totalorder %s12, 1
    %p72 = scmp.ne.s32.totalorder %s67, %s69
    %p73 = scmp.eq.s32.totalorder %s12, 0
    %p74 = por %p72, %p73
    %p75 = scmp.ne.s32.totalorder %s67, %s69
    %p76 = scmp.eq.s32.totalorder %s17, 1
    %p77 = por %p75, %p76
    %p78 = scmp.ne.s32.totalorder %s69, %s70
    %p79 = scmp.eq.s32.totalorder %s17, 0
    %p80 = por %p78, %p79
    %p81 = scmp.ne.s32.totalorder %s69, %s70
    %p82 = scmp.eq.s32.totalorder %s18, 1
    %p83 = por %p81, %p82
    %p85 = scmp.ne.s32.totalorder %s70, %s84
    %p86 = scmp.eq.s32.totalorder %s18, 0
    %p87 = por %p85, %p86
    %s88 = ssub.s32 %s12, %s19
    %p89 = scmp.eq.s32.totalorder %s88, 0
    %s91 = sadd.s32 %s90, 1
    %s92 = scalar_select %p89, %s90, %s91
    %p95 = pneg %p89
    %p96 = scmp.eq.s32.totalorder %s12, 1
    %p97 = por %p95, %p96
    %p98 = scmp.ne.s32.totalorder %s90, %s93
    %p99 = scmp.eq.s32.totalorder %s12, 0
    %p100 = por %p98, %p99
    %p101 = scmp.ne.s32.totalorder %s90, %s93
    %p102 = scmp.eq.s32.totalorder %s17, 1
    %p103 = por %p101, %p102
    %p104 = scmp.ne.s32.totalorder %s93, %s94
    %p105 = scmp.eq.s32.totalorder %s17, 0
    %p106 = por %p104, %p105
    %p107 = scmp.ne.s32.totalorder %s93, %s94
    %p108 = scmp.eq.s32.totalorder %s18, 1
    %p109 = por %p107, %p108
    %p111 = scmp.ne.s32.totalorder %s94, %s110
    %p112 = scmp.eq.s32.totalorder %s18, 0
    %p113 = por %p111, %p112
    %s114 = ssub.s32 %s12, %s19
    %p115 = scmp.eq.s32.totalorder %s114, 0
    %s117 = sadd.s32 %s116, 1
    %s118 = scalar_select %p115, %s116, %s117
    %p121 = pneg %p115
    %p122 = scmp.eq.s32.totalorder %s12, 1
    %p123 = por %p121, %p122
    %p124 = scmp.ne.s32.totalorder %s116, %s119
    %p125 = scmp.eq.s32.totalorder %s12, 0
    %p126 = por %p124, %p125
    %p127 = scmp.ne.s32.totalorder %s116, %s119
    %p128 = scmp.eq.s32.totalorder %s17, 1
    %p129 = por %p127, %p128
    %p130 = scmp.ne.s32.totalorder %s119, %s120
    %p131 = scmp.eq.s32.totalorder %s17, 0
    %p132 = por %p130, %p131
    %p133 = scmp.ne.s32.totalorder %s119, %s120
    %p134 = scmp.eq.s32.totalorder %s18, 1
    %p135 = por %p133, %p134
    %p137 = scmp.ne.s32.totalorder %s120, %s136
    %p138 = scmp.eq.s32.totalorder %s18, 0
    %p139 = por %p137, %p138
    %s140 = ssub.s32 %s12, %s19
    %p141 = scmp.eq.s32.totalorder %s140, 0
    %s143 = sadd.s32 %s142, 1
    %s144 = scalar_select %p141, %s142, %s143
    %p147 = pneg %p141
    %p148 = scmp.eq.s32.totalorder %s12, 1
    %p149 = por %p147, %p148
    %p150 = scmp.ne.s32.totalorder %s142, %s145
    %p151 = scmp.eq.s32.totalorder %s12, 0
    %p152 = por %p150, %p151
    %p153 = scmp.ne.s32.totalorder %s142, %s145
    %p154 = scmp.eq.s32.totalorder %s17, 1
    %p155 = por %p153, %p154
    %p156 = scmp.ne.s32.totalorder %s145, %s146
    %p157 = scmp.eq.s32.totalorder %s17, 0
    %p158 = por %p156, %p157
    %p159 = scmp.ne.s32.totalorder %s145, %s146
    %p160 = scmp.eq.s32.totalorder %s18, 1
    %p161 = por %p159, %p160
    %p163 = scmp.ne.s32.totalorder %s146, %s162
    %p164 = scmp.eq.s32.totalorder %s18, 0
    %p165 = por %p163, %p164
    %p166 = scmp.le.s32.totalorder 1, %s12
    %p167 = scmp.lt.s32.totalorder %s12, 3
    %p168 = pnand %p166, %p167
    %p169 = pneg %p168
    // Predicated region
    $region9: #{discriminator_forward.12} parent=5 // pred_check
      _
    $region10: #{discriminator_forward.12} parent=5 // pred_check_branch
      %171 = sbr.rel (%p168) target = $region12
    $region11: #{discriminator_forward.12} parent=5 // pred_region
      %s172 = ssub.s32 %s12, 1
      // Predicated region
      $region13: #{discriminator_forward.12} parent=11 // pred_check
        %p173 = pneg %p59
      $region14: #{discriminator_forward.12} parent=11 // pred_check_branch
        %175 = sbr.rel (%p173) target = $region16
      $region15: #{discriminator_forward.12} parent=11 // pred_region
        _
      $region16: #{discriminator_forward.12} parent=11 // pred_fallthru
        _
      // Predicated region
      $region17: #{discriminator_forward.12} parent=11 // pred_check
        %p176 = pneg %p80
      $region18: #{discriminator_forward.12} parent=11 // pred_check_branch
        %178 = sbr.rel (%p176) target = $region20
      $region19: #{discriminator_forward.12} parent=11 // pred_region
        _
      $region20: #{discriminator_forward.12} parent=11 // pred_fallthru
        _
    $region12: #{discriminator_forward.12} parent=5 // pred_fallthru
      _
    %p179 = scmp.lt.s32.totalorder %s12, 2
    // Predicated region
    $region21: #{discriminator_forward.12} parent=5 // pred_check
      %p180 = pneg %p179
    $region22: #{discriminator_forward.12} parent=5 // pred_check_branch
      %182 = sbr.rel (%p180) target = $region24
    $region23: #{discriminator_forward.12} parent=5 // pred_region
      // Predicated region
      $region25: #{discriminator_forward.12} parent=23 // pred_check
        %p183 = pneg %p32
      $region26: #{discriminator_forward.12} parent=23 // pred_check_branch
        %185 = sbr.rel (%p183) target = $region28
      $region27: #{discriminator_forward.12} parent=23 // pred_region
        %p186 = scmp.lt.s32.totalorder %s12, 1
        %s187 = scalar_select %p186, %s12, 1
        %s188 = smul.addr %s187, 5
        %s189 = smul.addr %s188, 4
        %s190 = scalar_lea.vmem %s0, %s189
      $region28: #{discriminator_forward.12} parent=23 // pred_fallthru
        _
    $region24: #{discriminator_forward.12} parent=5 // pred_fallthru
      _
    %p191 = scmp.le.s32.totalorder 1, %s12
    %p192 = scmp.lt.s32.totalorder %s12, 3
    %p193 = pnand %p191, %p192
    %p194 = pneg %p193
    // Predicated region
    $region29: #{discriminator_forward.12} parent=5 // pred_check
      _
    $region30: #{discriminator_forward.12} parent=5 // pred_check_branch
      %196 = sbr.rel (%p193) target = $region32
    $region31: #{discriminator_forward.12} parent=5 // pred_region
      %s197 = ssub.s32 %s12, 1
      %p198 = scmp.lt.s32.totalorder %s17, 1
      %s199 = scalar_select %p198, %s17, 1
      %s200 = smul.addr %s199, 5
      %s201 = smul.addr %s200, 4
      %s202 = scalar_lea.vmem %s0, %s201
      %p203 = pneg %p38
      %p204 = pneg %p35
      %p205 = pneg %p59
      %p206 = pneg %p56
      %p207 = pneg %p80
      %p208 = pneg %p77
      %p209 = pneg %p106
      %p210 = pneg %p103
      %p211 = scmp.lt.s32.totalorder %s17, 1
      %s212 = scalar_select %p211, %s17, 1
      %s213 = smul.addr %s212, 2
      %s214 = smul.addr %s213, 2
      %s215 = scalar_lea.vmem %s3, %s214
      %p216 = pneg %p132
      %p217 = pneg %p129
      %p218 = scmp.lt.s32.totalorder %s17, 1
      %s219 = scalar_select %p218, %s17, 1
      %s220 = scalar_lea.vmem %s4, %s219
      %p221 = pneg %p158
      %p222 = pneg %p155
      %p223 = scmp.lt.s32.totalorder %s17, 1
      %s224 = scalar_select %p223, %s17, 1
      %s225 = scalar_lea.vmem %s5, %s224
      %p226 = scmp.lt.s32.totalorder %s17, 1
      %s227 = scalar_select %p226, %s17, 1
      %s228 = smul.addr %s227, 5
      %s229 = smul.addr %s228, 4
      %s230 = scalar_lea.vmem %s0, %s229
      %p231 = scmp.lt.s32.totalorder %s17, 1
      %s232 = scalar_select %p231, %s17, 1
      %s233 = smul.addr %s232, 2
      %s234 = smul.addr %s233, 2
      %s235 = scalar_lea.vmem %s3, %s234
      %p236 = scmp.lt.s32.totalorder %s17, 1
      %s237 = scalar_select %p236, %s17, 1
      %s238 = scalar_lea.vmem %s4, %s237
      %p239 = scmp.lt.s32.totalorder %s17, 1
      %s240 = scalar_select %p239, %s17, 1
      %s241 = scalar_lea.vmem %s5, %s240
      %v243 = vld [vmem:[%s230] sm:$0x7]
      %v244 = vld [vmem:[%s1] sm:$0xf]
      %v245 = vld [vmem:[%s1 + $0x4] sm:$0xf]
      %v246 = vld [vmem:[%s1 + $0x8] sm:$0xf]
      %v247 = vld [vmem:[%s1 + $0xc] sm:$0xf]
      %v248 = vld [vmem:[%s230 + $0x4] sm:$0xf]
      %s249 = scalar_lea.vmem %s1, 16
      %v250 = vld [vmem:[%s249] sm:$0xf]
      %v251 = vld [vmem:[%s249 + $0x4] sm:$0xf]
      %v252 = vld [vmem:[%s249 + $0x8] sm:$0xf]
      %v253 = vld [vmem:[%s249 + $0xc] sm:$0xf]
      %v255 = vunpack.c.l.b16 %v248
      %v256 = vpack.c.b16 %v255, %v255
      %v258 = vshrl.u32 %v256, 16
      %v260 = vshll.u32 %v256, 16
      %v262 = vrot.slane %v260, 1
      %v263 = vor.u32 %v258, %v262
      %v268 = vunpack.c.l.b16 %v250
      %v269 = vunpack.c.l.b16 %v251
      %v270 = vunpack.c.l.b16 %v252
      %v271 = vunpack.c.l.b16 %v253
      %v272 = vpack.c.b16 %v269, %v268
      %v273 = vpack.c.b16 %v271, %v270
      %vm276 = vcmask 261120
      %v278 = vsel %vm276, %v263, 0
      %280 = vmatprep.subr.bf16.mxu0 0
      %281 = vmatpush1.bf16.msra.mxu0 %v272
      %282 = vmatprep.subr.bf16.mxu0 0
      %283 = vmatpush1.bf16.msra.mxu0 %v273
      %284 = vmatprep.subr.bf16.mxu0 0
      %285 = vmatpush1.bf16.msra.mxu0 0
      %286 = vmatprep.subr.bf16.mxu0 0
      %287 = vmatpush1.bf16.msra.mxu0 0
      %288 = vmatprep.subr.bf16.mxu0 0
      %289 = vmatpush1.bf16.msra.mxu0 0
      %290 = vmatprep.subr.bf16.mxu0 0
      %291 = vmatpush1.bf16.msra.mxu0 0
      %292 = vmatprep.subr.bf16.mxu0 0
      %293 = vmatpush1.bf16.msra.mxu0 0
      %294 = vmatprep.subr.bf16.mxu0 0
      %295 = vmatpush1.bf16.msra.mxu0 0
      %296 = vmatprep.subr.bf16.mxu0 0
      %297 = vmatpush1.bf16.msra.mxu0 0
      %298 = vmatprep.subr.bf16.mxu0 0
      %299 = vmatpush1.bf16.msra.mxu0 0
      %300 = vmatprep.subr.bf16.mxu0 0
      %301 = vmatpush1.bf16.msra.mxu0 0
      %302 = vmatprep.subr.bf16.mxu0 0
      %303 = vmatpush1.bf16.msra.mxu0 0
      %304 = vmatprep.subr.bf16.mxu0 0
      %305 = vmatpush1.bf16.msra.mxu0 0
      %306 = vmatprep.subr.bf16.mxu0 0
      %307 = vmatpush1.bf16.msra.mxu0 0
      %308 = vmatprep.subr.bf16.mxu0 0
      %309 = vmatpush1.bf16.msra.mxu0 0
      %310 = vmatprep.subr.bf16.mxu0 0
      %311 = vmatpush1.bf16.msra.mxu0 0
      %312 = vmatprep.mubr.bf16.mxu0 0
      %313 = vmatmul.mubr.bf16.gmra.mrb[0].mxu0 %v278
      %v314 = vpop.f32.mrb[0].mxu0
      %v315 = vadd.f32 0.0, %v314
      %v316 = vpop.f32.mrb[0].mxu0
      %v317 = vpop.f32.mrb[0].mxu0
      %v318 = vpop.f32.mrb[0].mxu0
      %319 = vdwg.mxu0
      %v324 = vunpack.c.l.b16 %v244
      %v325 = vunpack.c.l.b16 %v245
      %v326 = vunpack.c.l.b16 %v246
      %v327 = vunpack.c.l.b16 %v247
      %v328 = vpack.c.b16 %v325, %v324
      %v329 = vpack.c.b16 %v327, %v326
      %v333 = vsel %vm276, %v243, 0
      %335 = vmatprep.subr.bf16.mxu0 0
      %336 = vmatpush1.bf16.msra.mxu0 %v328
      %337 = vmatprep.subr.bf16.mxu0 0
      %338 = vmatpush1.bf16.msra.mxu0 %v329
      %339 = vmatprep.subr.bf16.mxu0 0
      %340 = vmatpush1.bf16.msra.mxu0 0
      %341 = vmatprep.subr.bf16.mxu0 0
      %342 = vmatpush1.bf16.msra.mxu0 0
      %343 = vmatprep.subr.bf16.mxu0 0
      %344 = vmatpush1.bf16.msra.mxu0 0
      %345 = vmatprep.subr.bf16.mxu0 0
      %346 = vmatpush1.bf16.msra.mxu0 0
      %347 = vmatprep.subr.bf16.mxu0 0
      %348 = vmatpush1.bf16.msra.mxu0 0
      %349 = vmatprep.subr.bf16.mxu0 0
      %350 = vmatpush1.bf16.msra.mxu0 0
      %351 = vmatprep.subr.bf16.mxu0 0
      %352 = vmatpush1.bf16.msra.mxu0 0
      %353 = vmatprep.subr.bf16.mxu0 0
      %354 = vmatpush1.bf16.msra.mxu0 0
      %355 = vmatprep.subr.bf16.mxu0 0
      %356 = vmatpush1.bf16.msra.mxu0 0
      %357 = vmatprep.subr.bf16.mxu0 0
      %358 = vmatpush1.bf16.msra.mxu0 0
      %359 = vmatprep.subr.bf16.mxu0 0
      %360 = vmatpush1.bf16.msra.mxu0 0
      %361 = vmatprep.subr.bf16.mxu0 0
      %362 = vmatpush1.bf16.msra.mxu0 0
      %363 = vmatprep.subr.bf16.mxu0 0
      %364 = vmatpush1.bf16.msra.mxu0 0
      %365 = vmatprep.subr.bf16.mxu0 0
      %366 = vmatpush1.bf16.msra.mxu0 0
      %367 = vmatprep.mubr.bf16.mxu0 0
      %368 = vmatmul.mubr.bf16.gmra.mrb[0].mxu0 %v333
      %v369 = vpop.f32.mrb[0].mxu0
      %v370 = vadd.f32 %v315, %v369
      %v371 = vpop.f32.mrb[0].mxu0
      %v372 = vpop.f32.mrb[0].mxu0
      %v373 = vpop.f32.mrb[0].mxu0
      %374 = vdwg.mxu0
      %v375 = vld [vmem:[%s230] sm:$0xf]
      %s376 = scalar_lea.vmem %s1, 32
      %v377 = vld [vmem:[%s376] sm:$0xf]
      %v378 = vld [vmem:[%s376 + $0x4] sm:$0xf]
      %v379 = vld [vmem:[%s376 + $0x8] sm:$0xf]
      %v380 = vld [vmem:[%s376 + $0xc] sm:$0xf]
      %v382 = vunpack.c.l.b16 %v375
      %v383 = vpack.c.b16 %v382, %v382
      %v385 = vshrl.u32 %v383, 16
      %v387 = vshll.u32 %v383, 16
      %v389 = vrot.slane %v387, 1
      %v390 = vor.u32 %v385, %v389
      %v395 = vunpack.c.l.b16 %v377
      %v396 = vunpack.c.l.b16 %v378
      %v397 = vunpack.c.l.b16 %v379
      %v398 = vunpack.c.l.b16 %v380
      %v399 = vpack.c.b16 %v396, %v395
      %v400 = vpack.c.b16 %v398, %v397
      %v404 = vsel %vm276, %v390, 0
      %406 = vmatprep.subr.bf16.mxu0 0
      %407 = vmatpush1.bf16.msra.mxu0 %v399
      %408 = vmatprep.subr.bf16.mxu0 0
      %409 = vmatpush1.bf16.msra.mxu0 %v400
      %410 = vmatprep.subr.bf16.mxu0 0
      %411 = vmatpush1.bf16.msra.mxu0 0
      %412 = vmatprep.subr.bf16.mxu0 0
      %413 = vmatpush1.bf16.msra.mxu0 0
      %414 = vmatprep.subr.bf16.mxu0 0
      %415 = vmatpush1.bf16.msra.mxu0 0
      %416 = vmatprep.subr.bf16.mxu0 0
      %417 = vmatpush1.bf16.msra.mxu0 0
      %418 = vmatprep.subr.bf16.mxu0 0
      %419 = vmatpush1.bf16.msra.mxu0 0
      %420 = vmatprep.subr.bf16.mxu0 0
      %421 = vmatpush1.bf16.msra.mxu0 0
      %422 = vmatprep.subr.bf16.mxu0 0
      %423 = vmatpush1.bf16.msra.mxu0 0
      %424 = vmatprep.subr.bf16.mxu0 0
      %425 = vmatpush1.bf16.msra.mxu0 0
      %426 = vmatprep.subr.bf16.mxu0 0
      %427 = vmatpush1.bf16.msra.mxu0 0
      %428 = vmatprep.subr.bf16.mxu0 0
      %429 = vmatpush1.bf16.msra.mxu0 0
      %430 = vmatprep.subr.bf16.mxu0 0
      %431 = vmatpush1.bf16.msra.mxu0 0
      %432 = vmatprep.subr.bf16.mxu0 0
      %433 = vmatpush1.bf16.msra.mxu0 0
      %434 = vmatprep.subr.bf16.mxu0 0
      %435 = vmatpush1.bf16.msra.mxu0 0
      %436 = vmatprep.subr.bf16.mxu0 0
      %437 = vmatpush1.bf16.msra.mxu0 0
      %438 = vmatprep.mubr.bf16.mxu0 0
      %439 = vmatmul.mubr.bf16.gmra.mrb[0].mxu0 %v404
      %v440 = vpop.f32.mrb[0].mxu0
      %v441 = vadd.f32 0.0, %v440
      %v442 = vpop.f32.mrb[0].mxu0
      %v443 = vpop.f32.mrb[0].mxu0
      %v444 = vpop.f32.mrb[0].mxu0
      %445 = vdwg.mxu0
      %v446 = vadd.f32 %v370, %v441
      %v447 = vld [vmem:[%s230 + $0x4] sm:$0xe]
      %s448 = scalar_lea.vmem %s1, 48
      %v449 = vld [vmem:[%s448] sm:$0xf]
      %v450 = vld [vmem:[%s448 + $0x4] sm:$0xf]
      %v451 = vld [vmem:[%s448 + $0x8] sm:$0xf]
      %v452 = vld [vmem:[%s448 + $0xc] sm:$0xf]
      %v454 = vunpack.c.l.b16 %v447
      %v455 = vpack.c.b16 %v454, %v454
      %v456 = vrot.slane %v455, 1
      %v461 = vunpack.c.l.b16 %v449
      %v462 = vunpack.c.l.b16 %v450
      %v463 = vunpack.c.l.b16 %v451
      %v464 = vunpack.c.l.b16 %v452
      %v465 = vpack.c.b16 %v462, %v461
      %v466 = vpack.c.b16 %v464, %v463
      %v470 = vsel %vm276, %v456, 0
      %472 = vmatprep.subr.bf16.mxu0 0
      %473 = vmatpush1.bf16.msra.mxu0 %v465
      %474 = vmatprep.subr.bf16.mxu0 0
      %475 = vmatpush1.bf16.msra.mxu0 %v466
      %476 = vmatprep.subr.bf16.mxu0 0
      %477 = vmatpush1.bf16.msra.mxu0 0
      %478 = vmatprep.subr.bf16.mxu0 0
      %479 = vmatpush1.bf16.msra.mxu0 0
      %480 = vmatprep.subr.bf16.mxu0 0
      %481 = vmatpush1.bf16.msra.mxu0 0
      %482 = vmatprep.subr.bf16.mxu0 0
      %483 = vmatpush1.bf16.msra.mxu0 0
      %484 = vmatprep.subr.bf16.mxu0 0
      %485 = vmatpush1.bf16.msra.mxu0 0
      %486 = vmatprep.subr.bf16.mxu0 0
      %487 = vmatpush1.bf16.msra.mxu0 0
      %488 = vmatprep.subr.bf16.mxu0 0
      %489 = vmatpush1.bf16.msra.mxu0 0
      %490 = vmatprep.subr.bf16.mxu0 0
      %491 = vmatpush1.bf16.msra.mxu0 0
      %492 = vmatprep.subr.bf16.mxu0 0
      %493 = vmatpush1.bf16.msra.mxu0 0
      %494 = vmatprep.subr.bf16.mxu0 0
      %495 = vmatpush1.bf16.msra.mxu0 0
      %496 = vmatprep.subr.bf16.mxu0 0
      %497 = vmatpush1.bf16.msra.mxu0 0
      %498 = vmatprep.subr.bf16.mxu0 0
      %499 = vmatpush1.bf16.msra.mxu0 0
      %500 = vmatprep.subr.bf16.mxu0 0
      %501 = vmatpush1.bf16.msra.mxu0 0
      %502 = vmatprep.subr.bf16.mxu0 0
      %503 = vmatpush1.bf16.msra.mxu0 0
      %504 = vmatprep.mubr.bf16.mxu0 0
      %505 = vmatmul.mubr.bf16.gmra.mrb[0].mxu0 %v470
      %v506 = vpop.f32.mrb[0].mxu0
      %v507 = vadd.f32 0.0, %v506
      %v508 = vpop.f32.mrb[0].mxu0
      %v509 = vpop.f32.mrb[0].mxu0
      %v510 = vpop.f32.mrb[0].mxu0
      %511 = vdwg.mxu0
      %v512 = vadd.f32 %v446, %v507
      %v513 = vld [vmem:[%s230 + $0x8] sm:$0xe]
      %s514 = scalar_lea.vmem %s1, 64
      %v515 = vld [vmem:[%s514] sm:$0xf]
      %v516 = vld [vmem:[%s514 + $0x4] sm:$0xf]
      %v517 = vld [vmem:[%s514 + $0x8] sm:$0xf]
      %v518 = vld [vmem:[%s514 + $0xc] sm:$0xf]
      %v520 = vunpack.c.l.b16 %v513
      %v521 = vpack.c.b16 %v520, %v520
      %v522 = vrot.slane %v521, 1
      %v527 = vunpack.c.l.b16 %v515
      %v528 = vunpack.c.l.b16 %v516
      %v529 = vunpack.c.l.b16 %v517
      %v530 = vunpack.c.l.b16 %v518
      %v531 = vpack.c.b16 %v528, %v527
      %v532 = vpack.c.b16 %v530, %v529
      %v536 = vsel %vm276, %v522, 0
      %538 = vmatprep.subr.bf16.mxu0 0
      %539 = vmatpush1.bf16.msra.mxu0 %v531
      %540 = vmatprep.subr.bf16.mxu0 0
      %541 = vmatpush1.bf16.msra.mxu0 %v532
      %542 = vmatprep.subr.bf16.mxu0 0
      %543 = vmatpush1.bf16.msra.mxu0 0
      %544 = vmatprep.subr.bf16.mxu0 0
      %545 = vmatpush1.bf16.msra.mxu0 0
      %546 = vmatprep.subr.bf16.mxu0 0
      %547 = vmatpush1.bf16.msra.mxu0 0
      %548 = vmatprep.subr.bf16.mxu0 0
      %549 = vmatpush1.bf16.msra.mxu0 0
      %550 = vmatprep.subr.bf16.mxu0 0
      %551 = vmatpush1.bf16.msra.mxu0 0
      %552 = vmatprep.subr.bf16.mxu0 0
      %553 = vmatpush1.bf16.msra.mxu0 0
      %554 = vmatprep.subr.bf16.mxu0 0
      %555 = vmatpush1.bf16.msra.mxu0 0
      %556 = vmatprep.subr.bf16.mxu0 0
      %557 = vmatpush1.bf16.msra.mxu0 0
      %558 = vmatprep.subr.bf16.mxu0 0
      %559 = vmatpush1.bf16.msra.mxu0 0
      %560 = vmatprep.subr.bf16.mxu0 0
      %561 = vmatpush1.bf16.msra.mxu0 0
      %562 = vmatprep.subr.bf16.mxu0 0
      %563 = vmatpush1.bf16.msra.mxu0 0
      %564 = vmatprep.subr.bf16.mxu0 0
      %565 = vmatpush1.bf16.msra.mxu0 0
      %566 = vmatprep.subr.bf16.mxu0 0
      %567 = vmatpush1.bf16.msra.mxu0 0
      %568 = vmatprep.subr.bf16.mxu0 0
      %569 = vmatpush1.bf16.msra.mxu0 0
      %570 = vmatprep.mubr.bf16.mxu0 0
      %571 = vmatmul.mubr.bf16.gmra.mrb[0].mxu0 %v536
      %v572 = vpop.f32.mrb[0].mxu0
      %v573 = vadd.f32 0.0, %v572
      %v574 = vpop.f32.mrb[0].mxu0
      %v575 = vpop.f32.mrb[0].mxu0
      %v576 = vpop.f32.mrb[0].mxu0
      %577 = vdwg.mxu0
      %v578 = vadd.f32 %v512, %v573
      %v579 = vld [vmem:[%s230 + $0xc] sm:$0xe]
      %v580 = vld [vmem:[%s230 + $0x10] sm:$0x1]
      %s581 = scalar_lea.vmem %s1, 80
      %v582 = vld [vmem:[%s581] sm:$0xf]
      %v583 = vld [vmem:[%s581 + $0x4] sm:$0xf]
      %v584 = vld [vmem:[%s581 + $0x8] sm:$0xf]
      %v585 = vld [vmem:[%s581 + $0xc] sm:$0xf]
      %v588 = vunpack.c.l.b16 %v579
      %v589 = vunpack.c.l.b16 %v580
      %v590 = vpack.c.b16 %v589, %v588
      %v592 = vshrl.u32 %v590, 16
      %v594 = vrot.slane %v592, 1
      %v595 = vshll.u32 %v590, 16
      %v597 = vrot.slane %v595, 2
      %v598 = vor.u32 %v594, %v597
      %v603 = vunpack.c.l.b16 %v582
      %v604 = vunpack.c.l.b16 %v583
      %v605 = vunpack.c.l.b16 %v584
      %v606 = vunpack.c.l.b16 %v585
      %v607 = vpack.c.b16 %v604, %v603
      %v608 = vpack.c.b16 %v606, %v605
      %v612 = vsel %vm276, %v598, 0
      %614 = vmatprep.subr.bf16.mxu0 0
      %615 = vmatpush1.bf16.msra.mxu0 %v607
      %616 = vmatprep.subr.bf16.mxu0 0
      %617 = vmatpush1.bf16.msra.mxu0 %v608
      %618 = vmatprep.subr.bf16.mxu0 0
      %619 = vmatpush1.bf16.msra.mxu0 0
      %620 = vmatprep.subr.bf16.mxu0 0
      %621 = vmatpush1.bf16.msra.mxu0 0
      %622 = vmatprep.subr.bf16.mxu0 0
      %623 = vmatpush1.bf16.msra.mxu0 0
      %624 = vmatprep.subr.bf16.mxu0 0
      %625 = vmatpush1.bf16.msra.mxu0 0
      %626 = vmatprep.subr.bf16.mxu0 0
      %627 = vmatpush1.bf16.msra.mxu0 0
      %628 = vmatprep.subr.bf16.mxu0 0
      %629 = vmatpush1.bf16.msra.mxu0 0
      %630 = vmatprep.subr.bf16.mxu0 0
      %631 = vmatpush1.bf16.msra.mxu0 0
      %632 = vmatprep.subr.bf16.mxu0 0
      %633 = vmatpush1.bf16.msra.mxu0 0
      %634 = vmatprep.subr.bf16.mxu0 0
      %635 = vmatpush1.bf16.msra.mxu0 0
      %636 = vmatprep.subr.bf16.mxu0 0
      %637 = vmatpush1.bf16.msra.mxu0 0
      %638 = vmatprep.subr.bf16.mxu0 0
      %639 = vmatpush1.bf16.msra.mxu0 0
      %640 = vmatprep.subr.bf16.mxu0 0
      %641 = vmatpush1.bf16.msra.mxu0 0
      %642 = vmatprep.subr.bf16.mxu0 0
      %643 = vmatpush1.bf16.msra.mxu0 0
      %644 = vmatprep.subr.bf16.mxu0 0
      %645 = vmatpush1.bf16.msra.mxu0 0
      %646 = vmatprep.mubr.bf16.mxu0 0
      %647 = vmatmul.mubr.bf16.gmra.mrb[0].mxu0 %v612
      %v648 = vpop.f32.mrb[0].mxu0
      %v649 = vadd.f32 0.0, %v648
      %v650 = vpop.f32.mrb[0].mxu0
      %v651 = vpop.f32.mrb[0].mxu0
      %v652 = vpop.f32.mrb[0].mxu0
      %653 = vdwg.mxu0
      %v654 = vadd.f32 %v578, %v649
      %v655 = vld [vmem:[%s230 + $0x8] sm:$0xe]
      %v656 = vld [vmem:[%s230 + $0xc] sm:$0x1]
      %s657 = scalar_lea.vmem %s1, 96
      %v658 = vld [vmem:[%s657] sm:$0xf]
      %v659 = vld [vmem:[%s657 + $0x4] sm:$0xf]
      %v660 = vld [vmem:[%s657 + $0x8] sm:$0xf]
      %v661 = vld [vmem:[%s657 + $0xc] sm:$0xf]
      %v664 = vunpack.c.l.b16 %v655
      %v665 = vunpack.c.l.b16 %v656
      %v666 = vpack.c.b16 %v665, %v664
      %v668 = vshrl.u32 %v666, 16
      %v670 = vrot.slane %v668, 1
      %v671 = vshll.u32 %v666, 16
      %v673 = vrot.slane %v671, 2
      %v674 = vor.u32 %v670, %v673
      %v679 = vunpack.c.l.b16 %v658
      %v680 = vunpack.c.l.b16 %v659
      %v681 = vunpack.c.l.b16 %v660
      %v682 = vunpack.c.l.b16 %v661
      %v683 = vpack.c.b16 %v680, %v679
      %v684 = vpack.c.b16 %v682, %v681
      %v688 = vsel %vm276, %v674, 0
      %690 = vmatprep.subr.bf16.mxu0 0
      %691 = vmatpush1.bf16.msra.mxu0 %v683
      %692 = vmatprep.subr.bf16.mxu0 0
      %693 = vmatpush1.bf16.msra.mxu0 %v684
      %694 = vmatprep.subr.bf16.mxu0 0
      %695 = vmatpush1.bf16.msra.mxu0 0
      %696 = vmatprep.subr.bf16.mxu0 0
      %697 = vmatpush1.bf16.msra.mxu0 0
      %698 = vmatprep.subr.bf16.mxu0 0
      %699 = vmatpush1.bf16.msra.mxu0 0
      %700 = vmatprep.subr.bf16.mxu0 0
      %701 = vmatpush1.bf16.msra.mxu0 0
      %702 = vmatprep.subr.bf16.mxu0 0
      %703 = vmatpush1.bf16.msra.mxu0 0
      %704 = vmatprep.subr.bf16.mxu0 0
      %705 = vmatpush1.bf16.msra.mxu0 0
      %706 = vmatprep.subr.bf16.mxu0 0
      %707 = vmatpush1.bf16.msra.mxu0 0
      %708 = vmatprep.subr.bf16.mxu0 0
      %709 = vmatpush1.bf16.msra.mxu0 0
      %710 = vmatprep.subr.bf16.mxu0 0
      %711 = vmatpush1.bf16.msra.mxu0 0
      %712 = vmatprep.subr.bf16.mxu0 0
      %713 = vmatpush1.bf16.msra.mxu0 0
      %714 = vmatprep.subr.bf16.mxu0 0
      %715 = vmatpush1.bf16.msra.mxu0 0
      %716 = vmatprep.subr.bf16.mxu0 0
      %717 = vmatpush1.bf16.msra.mxu0 0
      %718 = vmatprep.subr.bf16.mxu0 0
      %719 = vmatpush1.bf16.msra.mxu0 0
      %720 = vmatprep.subr.bf16.mxu0 0
      %721 = vmatpush1.bf16.msra.mxu0 0
      %722 = vmatprep.mubr.bf16.mxu0 0
      %723 = vmatmul.mubr.bf16.gmra.mrb[0].mxu0 %v688
      %v724 = vpop.f32.mrb[0].mxu0
      %v725 = vadd.f32 0.0, %v724
      %v726 = vpop.f32.mrb[0].mxu0
      %v727 = vpop.f32.mrb[0].mxu0
      %v728 = vpop.f32.mrb[0].mxu0
      %729 = vdwg.mxu0
      %v730 = vadd.f32 %v654, %v725
      %v731 = vld [vmem:[%s230 + $0xc] sm:$0xc]
      %s732 = scalar_lea.vmem %s1, 112
      %v733 = vld [vmem:[%s732] sm:$0xf]
      %v734 = vld [vmem:[%s732 + $0x4] sm:$0xf]
      %v735 = vld [vmem:[%s732 + $0x8] sm:$0xf]
      %v736 = vld [vmem:[%s732 + $0xc] sm:$0xf]
      %v738 = vunpack.c.l.b16 %v731
      %v739 = vpack.c.b16 %v589, %v738
      %v740 = vrot.slane %v739, 2
      %v745 = vunpack.c.l.b16 %v733
      %v746 = vunpack.c.l.b16 %v734
      %v747 = vunpack.c.l.b16 %v735
      %v748 = vunpack.c.l.b16 %v736
      %v749 = vpack.c.b16 %v746, %v745
      %v750 = vpack.c.b16 %v748, %v747
      %v754 = vsel %vm276, %v740, 0
      %756 = vmatprep.subr.bf16.mxu0 0
      %757 = vmatpush1.bf16.msra.mxu0 %v749
      %758 = vmatprep.subr.bf16.mxu0 0
      %759 = vmatpush1.bf16.msra.mxu0 %v750
      %760 = vmatprep.subr.bf16.mxu0 0
      %761 = vmatpush1.bf16.msra.mxu0 0
      %762 = vmatprep.subr.bf16.mxu0 0
      %763 = vmatpush1.bf16.msra.mxu0 0
      %764 = vmatprep.subr.bf16.mxu0 0
      %765 = vmatpush1.bf16.msra.mxu0 0
      %766 = vmatprep.subr.bf16.mxu0 0
      %767 = vmatpush1.bf16.msra.mxu0 0
      %768 = vmatprep.subr.bf16.mxu0 0
      %769 = vmatpush1.bf16.msra.mxu0 0
      %770 = vmatprep.subr.bf16.mxu0 0
      %771 = vmatpush1.bf16.msra.mxu0 0
      %772 = vmatprep.subr.bf16.mxu0 0
      %773 = vmatpush1.bf16.msra.mxu0 0
      %774 = vmatprep.subr.bf16.mxu0 0
      %775 = vmatpush1.bf16.msra.mxu0 0
      %776 = vmatprep.subr.bf16.mxu0 0
      %777 = vmatpush1.bf16.msra.mxu0 0
      %778 = vmatprep.subr.bf16.mxu0 0
      %779 = vmatpush1.bf16.msra.mxu0 0
      %780 = vmatprep.subr.bf16.mxu0 0
      %781 = vmatpush1.bf16.msra.mxu0 0
      %782 = vmatprep.subr.bf16.mxu0 0
      %783 = vmatpush1.bf16.msra.mxu0 0
      %784 = vmatprep.subr.bf16.mxu0 0
      %785 = vmatpush1.bf16.msra.mxu0 0
      %786 = vmatprep.subr.bf16.mxu0 0
      %787 = vmatpush1.bf16.msra.mxu0 0
      %788 = vmatprep.mubr.bf16.mxu0 0
      %789 = vmatmul.mubr.bf16.gmra.mrb[0].mxu0 %v754
      %v790 = vpop.f32.mrb[0].mxu0
      %v791 = vadd.f32 0.0, %v790
      %v792 = vpop.f32.mrb[0].mxu0
      %v793 = vpop.f32.mrb[0].mxu0
      %v794 = vpop.f32.mrb[0].mxu0
      %795 = vdwg.mxu0
      %v796 = vadd.f32 %v730, %v791
      %v797 = vld [vmem:[%s230] sm:$0xe]
      %v798 = vld [vmem:[%s230 + $0x4] sm:$0x1]
      %s799 = scalar_lea.vmem %s1, 128
      %v800 = vld [vmem:[%s799] sm:$0xf]
      %v801 = vld [vmem:[%s799 + $0x4] sm:$0xf]
      %v802 = vld [vmem:[%s799 + $0x8] sm:$0xf]
      %v803 = vld [vmem:[%s799 + $0xc] sm:$0xf]
      %v806 = vunpack.c.l.b16 %v797
      %v807 = vunpack.c.l.b16 %v798
      %v808 = vpack.c.b16 %v807, %v806
      %v810 = vshrl.u32 %v808, 16
      %v812 = vrot.slane %v810, 1
      %v813 = vshll.u32 %v808, 16
      %v815 = vrot.slane %v813, 2
      %v816 = vor.u32 %v812, %v815
      %v821 = vunpack.c.l.b16 %v800
      %v822 = vunpack.c.l.b16 %v801
      %v823 = vunpack.c.l.b16 %v802
      %v824 = vunpack.c.l.b16 %v803
      %v825 = vpack.c.b16 %v822, %v821
      %v826 = vpack.c.b16 %v824, %v823
      %v830 = vsel %vm276, %v816, 0
      %832 = vmatprep.subr.bf16.mxu0 0
      %833 = vmatpush1.bf16.msra.mxu0 %v825
      %834 = vmatprep.subr.bf16.mxu0 0
      %835 = vmatpush1.bf16.msra.mxu0 %v826
      %836 = vmatprep.subr.bf16.mxu0 0
      %837 = vmatpush1.bf16.msra.mxu0 0
      %838 = vmatprep.subr.bf16.mxu0 0
      %839 = vmatpush1.bf16.msra.mxu0 0
      %840 = vmatprep.subr.bf16.mxu0 0
      %841 = vmatpush1.bf16.msra.mxu0 0
      %842 = vmatprep.subr.bf16.mxu0 0
      %843 = vmatpush1.bf16.msra.mxu0 0
      %844 = vmatprep.subr.bf16.mxu0 0
      %845 = vmatpush1.bf16.msra.mxu0 0
      %846 = vmatprep.subr.bf16.mxu0 0
      %847 = vmatpush1.bf16.msra.mxu0 0
      %848 = vmatprep.subr.bf16.mxu0 0
      %849 = vmatpush1.bf16.msra.mxu0 0
      %850 = vmatprep.subr.bf16.mxu0 0
      %851 = vmatpush1.bf16.msra.mxu0 0
      %852 = vmatprep.subr.bf16.mxu0 0
      %853 = vmatpush1.bf16.msra.mxu0 0
      %854 = vmatprep.subr.bf16.mxu0 0
      %855 = vmatpush1.bf16.msra.mxu0 0
      %856 = vmatprep.subr.bf16.mxu0 0
      %857 = vmatpush1.bf16.msra.mxu0 0
      %858 = vmatprep.subr.bf16.mxu0 0
      %859 = vmatpush1.bf16.msra.mxu0 0
      %860 = vmatprep.subr.bf16.mxu0 0
      %861 = vmatpush1.bf16.msra.mxu0 0
      %862 = vmatprep.subr.bf16.mxu0 0
      %863 = vmatpush1.bf16.msra.mxu0 0
      %864 = vmatprep.mubr.bf16.mxu0 0
      %865 = vmatmul.mubr.bf16.gmra.mrb[0].mxu0 %v830
      %v866 = vpop.f32.mrb[0].mxu0
      %v867 = vadd.f32 0.0, %v866
      %v868 = vpop.f32.mrb[0].mxu0
      %v869 = vpop.f32.mrb[0].mxu0
      %v870 = vpop.f32.mrb[0].mxu0
      %871 = vdwg.mxu0
      %v872 = vadd.f32 %v796, %v867
      %v873 = vld [vmem:[%s230 + $0x4] sm:$0xc]
      %v874 = vld [vmem:[%s230 + $0x8] sm:$0x1]
      %s875 = scalar_lea.vmem %s1, 144
      %v876 = vld [vmem:[%s875] sm:$0xf]
      %v877 = vld [vmem:[%s875 + $0x4] sm:$0xf]
      %v878 = vld [vmem:[%s875 + $0x8] sm:$0xf]
      %v879 = vld [vmem:[%s875 + $0xc] sm:$0xf]
      %v882 = vunpack.c.l.b16 %v873
      %v883 = vunpack.c.l.b16 %v874
      %v884 = vpack.c.b16 %v883, %v882
      %v885 = vrot.slane %v884, 2
      %v890 = vunpack.c.l.b16 %v876
      %v891 = vunpack.c.l.b16 %v877
      %v892 = vunpack.c.l.b16 %v878
      %v893 = vunpack.c.l.b16 %v879
      %v894 = vpack.c.b16 %v891, %v890
      %v895 = vpack.c.b16 %v893, %v892
      %v899 = vsel %vm276, %v885, 0
      %901 = vmatprep.subr.bf16.mxu0 0
      %902 = vmatpush1.bf16.msra.mxu0 %v894
      %903 = vmatprep.subr.bf16.mxu0 0
      %904 = vmatpush1.bf16.msra.mxu0 %v895
      %905 = vmatprep.subr.bf16.mxu0 0
      %906 = vmatpush1.bf16.msra.mxu0 0
      %907 = vmatprep.subr.bf16.mxu0 0
      %908 = vmatpush1.bf16.msra.mxu0 0
      %909 = vmatprep.subr.bf16.mxu0 0
      %910 = vmatpush1.bf16.msra.mxu0 0
      %911 = vmatprep.subr.bf16.mxu0 0
      %912 = vmatpush1.bf16.msra.mxu0 0
      %913 = vmatprep.subr.bf16.mxu0 0
      %914 = vmatpush1.bf16.msra.mxu0 0
      %915 = vmatprep.subr.bf16.mxu0 0
      %916 = vmatpush1.bf16.msra.mxu0 0
      %917 = vmatprep.subr.bf16.mxu0 0
      %918 = vmatpush1.bf16.msra.mxu0 0
      %919 = vmatprep.subr.bf16.mxu0 0
      %920 = vmatpush1.bf16.msra.mxu0 0
      %921 = vmatprep.subr.bf16.mxu0 0
      %922 = vmatpush1.bf16.msra.mxu0 0
      %923 = vmatprep.subr.bf16.mxu0 0
      %924 = vmatpush1.bf16.msra.mxu0 0
      %925 = vmatprep.subr.bf16.mxu0 0
      %926 = vmatpush1.bf16.msra.mxu0 0
      %927 = vmatprep.subr.bf16.mxu0 0
      %928 = vmatpush1.bf16.msra.mxu0 0
      %929 = vmatprep.subr.bf16.mxu0 0
      %930 = vmatpush1.bf16.msra.mxu0 0
      %931 = vmatprep.subr.bf16.mxu0 0
      %932 = vmatpush1.bf16.msra.mxu0 0
      %933 = vmatprep.mubr.bf16.mxu0 0
      %934 = vmatmul.mubr.bf16.gmra.mrb[0].mxu0 %v899
      %v935 = vpop.f32.mrb[0].mxu0
      %v936 = vadd.f32 0.0, %v935
      %v937 = vpop.f32.mrb[0].mxu0
      %v938 = vpop.f32.mrb[0].mxu0
      %v939 = vpop.f32.mrb[0].mxu0
      %940 = vdwg.mxu0
      %v941 = vadd.f32 %v872, %v936
      %v942 = vld [vmem:[%s230] sm:$0xc]
      %s943 = scalar_lea.vmem %s1, 160
      %v944 = vld [vmem:[%s943] sm:$0xf]
      %v945 = vld [vmem:[%s943 + $0x4] sm:$0xf]
      %v946 = vld [vmem:[%s943 + $0x8] sm:$0xf]
      %v947 = vld [vmem:[%s943 + $0xc] sm:$0xf]
      %v949 = vunpack.c.l.b16 %v942
      %v950 = vpack.c.b16 %v807, %v949
      %v951 = vrot.slane %v950, 2
      %v956 = vunpack.c.l.b16 %v944
      %v957 = vunpack.c.l.b16 %v945
      %v958 = vunpack.c.l.b16 %v946
      %v959 = vunpack.c.l.b16 %v947
      %v960 = vpack.c.b16 %v957, %v956
      %v961 = vpack.c.b16 %v959, %v958
      %v965 = vsel %vm276, %v951, 0
      %967 = vmatprep.subr.bf16.mxu0 0
      %968 = vmatpush1.bf16.msra.mxu0 %v960
      %969 = vmatprep.subr.bf16.mxu0 0
      %970 = vmatpush1.bf16.msra.mxu0 %v961
      %971 = vmatprep.subr.bf16.mxu0 0
      %972 = vmatpush1.bf16.msra.mxu0 0
      %973 = vmatprep.subr.bf16.mxu0 0
      %974 = vmatpush1.bf16.msra.mxu0 0
      %975 = vmatprep.subr.bf16.mxu0 0
      %976 = vmatpush1.bf16.msra.mxu0 0
      %977 = vmatprep.subr.bf16.mxu0 0
      %978 = vmatpush1.bf16.msra.mxu0 0
      %979 = vmatprep.subr.bf16.mxu0 0
      %980 = vmatpush1.bf16.msra.mxu0 0
      %981 = vmatprep.subr.bf16.mxu0 0
      %982 = vmatpush1.bf16.msra.mxu0 0
      %983 = vmatprep.subr.bf16.mxu0 0
      %984 = vmatpush1.bf16.msra.mxu0 0
      %985 = vmatprep.subr.bf16.mxu0 0
      %986 = vmatpush1.bf16.msra.mxu0 0
      %987 = vmatprep.subr.bf16.mxu0 0
      %988 = vmatpush1.bf16.msra.mxu0 0
      %989 = vmatprep.subr.bf16.mxu0 0
      %990 = vmatpush1.bf16.msra.mxu0 0
      %991 = vmatprep.subr.bf16.mxu0 0
      %992 = vmatpush1.bf16.msra.mxu0 0
      %993 = vmatprep.subr.bf16.mxu0 0
      %994 = vmatpush1.bf16.msra.mxu0 0
      %995 = vmatprep.subr.bf16.mxu0 0
      %996 = vmatpush1.bf16.msra.mxu0 0
      %997 = vmatprep.subr.bf16.mxu0 0
      %998 = vmatpush1.bf16.msra.mxu0 0
      %999 = vmatprep.mubr.bf16.mxu0 0
      %1000 = vmatmul.mubr.bf16.gmra.mrb[0].mxu0 %v965
      %v1001 = vpop.f32.mrb[0].mxu0
      %v1002 = vadd.f32 0.0, %v1001
      %v1003 = vpop.f32.mrb[0].mxu0
      %v1004 = vpop.f32.mrb[0].mxu0
      %v1005 = vpop.f32.mrb[0].mxu0
      %1006 = vdwg.mxu0
      %v1007 = vadd.f32 %v941, %v1002
      %v1008 = vld [vmem:[%s230 + $0x8] sm:$0x3]
      %s1009 = scalar_lea.vmem %s1, 176
      %v1010 = vld [vmem:[%s1009] sm:$0xf]
      %v1011 = vld [vmem:[%s1009 + $0x4] sm:$0xf]
      %v1012 = vld [vmem:[%s1009 + $0x8] sm:$0xf]
      %v1013 = vld [vmem:[%s1009 + $0xc] sm:$0xf]
      %v1015 = vunpack.c.l.b16 %v1008
      %v1016 = vpack.c.b16 %v1015, %v882
      %v1018 = vshrl.u32 %v1016, 16
      %v1020 = vrot.slane %v1018, 2
      %v1021 = vshll.u32 %v1016, 16
      %v1023 = vrot.slane %v1021, 3
      %v1024 = vor.u32 %v1020, %v1023
      %v1029 = vunpack.c.l.b16 %v1010
      %v1030 = vunpack.c.l.b16 %v1011
      %v1031 = vunpack.c.l.b16 %v1012
      %v1032 = vunpack.c.l.b16 %v1013
      %v1033 = vpack.c.b16 %v1030, %v1029
      %v1034 = vpack.c.b16 %v1032, %v1031
      %v1038 = vsel %vm276, %v1024, 0
      %1040 = vmatprep.subr.bf16.mxu0 0
      %1041 = vmatpush1.bf16.msra.mxu0 %v1033
      %1042 = vmatprep.subr.bf16.mxu0 0
      %1043 = vmatpush1.bf16.msra.mxu0 %v1034
      %1044 = vmatprep.subr.bf16.mxu0 0
      %1045 = vmatpush1.bf16.msra.mxu0 0
      %1046 = vmatprep.subr.bf16.mxu0 0
      %1047 = vmatpush1.bf16.msra.mxu0 0
      %1048 = vmatprep.subr.bf16.mxu0 0
      %1049 = vmatpush1.bf16.msra.mxu0 0
      %1050 = vmatprep.subr.bf16.mxu0 0
      %1051 = vmatpush1.bf16.msra.mxu0 0
      %1052 = vmatprep.subr.bf16.mxu0 0
      %1053 = vmatpush1.bf16.msra.mxu0 0
      %1054 = vmatprep.subr.bf16.mxu0 0
      %1055 = vmatpush1.bf16.msra.mxu0 0
      %1056 = vmatprep.subr.bf16.mxu0 0
      %1057 = vmatpush1.bf16.msra.mxu0 0
      %1058 = vmatprep.subr.bf16.mxu0 0
      %1059 = vmatpush1.bf16.msra.mxu0 0
      %1060 = vmatprep.subr.bf16.mxu0 0
      %1061 = vmatpush1.bf16.msra.mxu0 0
      %1062 = vmatprep.subr.bf16.mxu0 0
      %1063 = vmatpush1.bf16.msra.mxu0 0
      %1064 = vmatprep.subr.bf16.mxu0 0
      %1065 = vmatpush1.bf16.msra.mxu0 0
      %1066 = vmatprep.subr.bf16.mxu0 0
      %1067 = vmatpush1.bf16.msra.mxu0 0
      %1068 = vmatprep.subr.bf16.mxu0 0
      %1069 = vmatpush1.bf16.msra.mxu0 0
      %1070 = vmatprep.subr.bf16.mxu0 0
      %1071 = vmatpush1.bf16.msra.mxu0 0
      %1072 = vmatprep.mubr.bf16.mxu0 0
      %1073 = vmatmul.mubr.bf16.gmra.mrb[0].mxu0 %v1038
      %v1074 = vpop.f32.mrb[0].mxu0
      %v1075 = vadd.f32 0.0, %v1074
      %v1076 = vpop.f32.mrb[0].mxu0
      %v1077 = vpop.f32.mrb[0].mxu0
      %v1078 = vpop.f32.mrb[0].mxu0
      %1079 = vdwg.mxu0
      %v1080 = vadd.f32 %v1007, %v1075
      %v1081 = vld [vmem:[%s230 + $0x8] sm:$0xc]
      %v1082 = vld [vmem:[%s230 + $0xc] sm:$0x3]
      %s1083 = scalar_lea.vmem %s1, 192
      %v1084 = vld [vmem:[%s1083] sm:$0xf]
      %v1085 = vld [vmem:[%s1083 + $0x4] sm:$0xf]
      %v1086 = vld [vmem:[%s1083 + $0x8] sm:$0xf]
      %v1087 = vld [vmem:[%s1083 + $0xc] sm:$0xf]
      %v1090 = vunpack.c.l.b16 %v1081
      %v1091 = vunpack.c.l.b16 %v1082
      %v1092 = vpack.c.b16 %v1091, %v1090
      %v1094 = vshrl.u32 %v1092, 16
      %v1096 = vrot.slane %v1094, 2
      %v1097 = vshll.u32 %v1092, 16
      %v1099 = vrot.slane %v1097, 3
      %v1100 = vor.u32 %v1096, %v1099
      %v1105 = vunpack.c.l.b16 %v1084
      %v1106 = vunpack.c.l.b16 %v1085
      %v1107 = vunpack.c.l.b16 %v1086
      %v1108 = vunpack.c.l.b16 %v1087
      %v1109 = vpack.c.b16 %v1106, %v1105
      %v1110 = vpack.c.b16 %v1108, %v1107
      %v1114 = vsel %vm276, %v1100, 0
      %1116 = vmatprep.subr.bf16.mxu0 0
      %1117 = vmatpush1.bf16.msra.mxu0 %v1109
      %1118 = vmatprep.subr.bf16.mxu0 0
      %1119 = vmatpush1.bf16.msra.mxu0 %v1110
      %1120 = vmatprep.subr.bf16.mxu0 0
      %1121 = vmatpush1.bf16.msra.mxu0 0
      %1122 = vmatprep.subr.bf16.mxu0 0
      %1123 = vmatpush1.bf16.msra.mxu0 0
      %1124 = vmatprep.subr.bf16.mxu0 0
      %1125 = vmatpush1.bf16.msra.mxu0 0
      %1126 = vmatprep.subr.bf16.mxu0 0
      %1127 = vmatpush1.bf16.msra.mxu0 0
      %1128 = vmatprep.subr.bf16.mxu0 0
      %1129 = vmatpush1.bf16.msra.mxu0 0
      %1130 = vmatprep.subr.bf16.mxu0 0
      %1131 = vmatpush1.bf16.msra.mxu0 0
      %1132 = vmatprep.subr.bf16.mxu0 0
      %1133 = vmatpush1.bf16.msra.mxu0 0
      %1134 = vmatprep.subr.bf16.mxu0 0
      %1135 = vmatpush1.bf16.msra.mxu0 0
      %1136 = vmatprep.subr.bf16.mxu0 0
      %1137 = vmatpush1.bf16.msra.mxu0 0
      %1138 = vmatprep.subr.bf16.mxu0 0
      %1139 = vmatpush1.bf16.msra.mxu0 0
      %1140 = vmatprep.subr.bf16.mxu0 0
      %1141 = vmatpush1.bf16.msra.mxu0 0
      %1142 = vmatprep.subr.bf16.mxu0 0
      %1143 = vmatpush1.bf16.msra.mxu0 0
      %1144 = vmatprep.subr.bf16.mxu0 0
      %1145 = vmatpush1.bf16.msra.mxu0 0
      %1146 = vmatprep.subr.bf16.mxu0 0
      %1147 = vmatpush1.bf16.msra.mxu0 0
      %1148 = vmatprep.mubr.bf16.mxu0 0
      %1149 = vmatmul.mubr.bf16.gmra.mrb[0].mxu0 %v1114
      %v1150 = vpop.f32.mrb[0].mxu0
      %v1151 = vadd.f32 0.0, %v1150
      %v1152 = vpop.f32.mrb[0].mxu0
      %v1153 = vpop.f32.mrb[0].mxu0
      %v1154 = vpop.f32.mrb[0].mxu0
      %1155 = vdwg.mxu0
      %v1156 = vadd.f32 %v1080, %v1151
      %v1157 = vld [vmem:[%s230 + $0xc] sm:$0x8]
      %v1158 = vld [vmem:[%s230 + $0x10] sm:$0x3]
      %s1159 = scalar_lea.vmem %s1, 208
      %v1160 = vld [vmem:[%s1159] sm:$0xf]
      %v1161 = vld [vmem:[%s1159 + $0x4] sm:$0xf]
      %v1162 = vld [vmem:[%s1159 + $0x8] sm:$0xf]
      %v1163 = vld [vmem:[%s1159 + $0xc] sm:$0xf]
      %v1166 = vunpack.c.l.b16 %v1157
      %v1167 = vunpack.c.l.b16 %v1158
      %v1168 = vpack.c.b16 %v1167, %v1166
      %v1169 = vrot.slane %v1168, 3
      %v1174 = vunpack.c.l.b16 %v1160
      %v1175 = vunpack.c.l.b16 %v1161
      %v1176 = vunpack.c.l.b16 %v1162
      %v1177 = vunpack.c.l.b16 %v1163
      %v1178 = vpack.c.b16 %v1175, %v1174
      %v1179 = vpack.c.b16 %v1177, %v1176
      %v1183 = vsel %vm276, %v1169, 0
      %1185 = vmatprep.subr.bf16.mxu0 0
      %1186 = vmatpush1.bf16.msra.mxu0 %v1178
      %1187 = vmatprep.subr.bf16.mxu0 0
      %1188 = vmatpush1.bf16.msra.mxu0 %v1179
      %1189 = vmatprep.subr.bf16.mxu0 0
      %1190 = vmatpush1.bf16.msra.mxu0 0
      %1191 = vmatprep.subr.bf16.mxu0 0
      %1192 = vmatpush1.bf16.msra.mxu0 0
      %1193 = vmatprep.subr.bf16.mxu0 0
      %1194 = vmatpush1.bf16.msra.mxu0 0
      %1195 = vmatprep.subr.bf16.mxu0 0
      %1196 = vmatpush1.bf16.msra.mxu0 0
      %1197 = vmatprep.subr.bf16.mxu0 0
      %1198 = vmatpush1.bf16.msra.mxu0 0
      %1199 = vmatprep.subr.bf16.mxu0 0
      %1200 = vmatpush1.bf16.msra.mxu0 0
      %1201 = vmatprep.subr.bf16.mxu0 0
      %1202 = vmatpush1.bf16.msra.mxu0 0
      %1203 = vmatprep.subr.bf16.mxu0 0
      %1204 = vmatpush1.bf16.msra.mxu0 0
      %1205 = vmatprep.subr.bf16.mxu0 0
      %1206 = vmatpush1.bf16.msra.mxu0 0
      %1207 = vmatprep.subr.bf16.mxu0 0
      %1208 = vmatpush1.bf16.msra.mxu0 0
      %1209 = vmatprep.subr.bf16.mxu0 0
      %1210 = vmatpush1.bf16.msra.mxu0 0
      %1211 = vmatprep.subr.bf16.mxu0 0
      %1212 = vmatpush1.bf16.msra.mxu0 0
      %1213 = vmatprep.subr.bf16.mxu0 0
      %1214 = vmatpush1.bf16.msra.mxu0 0
      %1215 = vmatprep.subr.bf16.mxu0 0
      %1216 = vmatpush1.bf16.msra.mxu0 0
      %1217 = vmatprep.mubr.bf16.mxu0 0
      %1218 = vmatmul.mubr.bf16.gmra.mrb[0].mxu0 %v1183
      %v1219 = vpop.f32.mrb[0].mxu0
      %v1220 = vadd.f32 0.0, %v1219
      %v1221 = vpop.f32.mrb[0].mxu0
      %v1222 = vpop.f32.mrb[0].mxu0
      %v1223 = vpop.f32.mrb[0].mxu0
      %1224 = vdwg.mxu0
      %v1225 = vadd.f32 %v1156, %v1220
      %v1226 = vld [vmem:[%s230 + $0x8] sm:$0x8]
      %s1227 = scalar_lea.vmem %s1, 224
      %v1228 = vld [vmem:[%s1227] sm:$0xf]
      %v1229 = vld [vmem:[%s1227 + $0x4] sm:$0xf]
      %v1230 = vld [vmem:[%s1227 + $0x8] sm:$0xf]
      %v1231 = vld [vmem:[%s1227 + $0xc] sm:$0xf]
      %v1233 = vunpack.c.l.b16 %v1226
      %v1234 = vpack.c.b16 %v1091, %v1233
      %v1235 = vrot.slane %v1234, 3
      %v1240 = vunpack.c.l.b16 %v1228
      %v1241 = vunpack.c.l.b16 %v1229
      %v1242 = vunpack.c.l.b16 %v1230
      %v1243 = vunpack.c.l.b16 %v1231
      %v1244 = vpack.c.b16 %v1241, %v1240
      %v1245 = vpack.c.b16 %v1243, %v1242
      %v1249 = vsel %vm276, %v1235, 0
      %1251 = vmatprep.subr.bf16.mxu0 0
      %1252 = vmatpush1.bf16.msra.mxu0 %v1244
      %1253 = vmatprep.subr.bf16.mxu0 0
      %1254 = vmatpush1.bf16.msra.mxu0 %v1245
      %1255 = vmatprep.subr.bf16.mxu0 0
      %1256 = vmatpush1.bf16.msra.mxu0 0
      %1257 = vmatprep.subr.bf16.mxu0 0
      %1258 = vmatpush1.bf16.msra.mxu0 0
      %1259 = vmatprep.subr.bf16.mxu0 0
      %1260 = vmatpush1.bf16.msra.mxu0 0
      %1261 = vmatprep.subr.bf16.mxu0 0
      %1262 = vmatpush1.bf16.msra.mxu0 0
      %1263 = vmatprep.subr.bf16.mxu0 0
      %1264 = vmatpush1.bf16.msra.mxu0 0
      %1265 = vmatprep.subr.bf16.mxu0 0
      %1266 = vmatpush1.bf16.msra.mxu0 0
      %1267 = vmatprep.subr.bf16.mxu0 0
      %1268 = vmatpush1.bf16.msra.mxu0 0
      %1269 = vmatprep.subr.bf16.mxu0 0
      %1270 = vmatpush1.bf16.msra.mxu0 0
      %1271 = vmatprep.subr.bf16.mxu0 0
      %1272 = vmatpush1.bf16.msra.mxu0 0
      %1273 = vmatprep.subr.bf16.mxu0 0
      %1274 = vmatpush1.bf16.msra.mxu0 0
      %1275 = vmatprep.subr.bf16.mxu0 0
      %1276 = vmatpush1.bf16.msra.mxu0 0
      %1277 = vmatprep.subr.bf16.mxu0 0
      %1278 = vmatpush1.bf16.msra.mxu0 0
      %1279 = vmatprep.subr.bf16.mxu0 0
      %1280 = vmatpush1.bf16.msra.mxu0 0
      %1281 = vmatprep.subr.bf16.mxu0 0
      %1282 = vmatpush1.bf16.msra.mxu0 0
      %1283 = vmatprep.mubr.bf16.mxu0 0
      %1284 = vmatmul.mubr.bf16.gmra.mrb[0].mxu0 %v1249
      %v1285 = vpop.f32.mrb[0].mxu0
      %v1286 = vadd.f32 0.0, %v1285
      %v1287 = vpop.f32.mrb[0].mxu0
      %v1288 = vpop.f32.mrb[0].mxu0
      %v1289 = vpop.f32.mrb[0].mxu0
      %1290 = vdwg.mxu0
      %v1291 = vadd.f32 %v1225, %v1286
      %v1292 = vld [vmem:[%s230 + $0x10] sm:$0x7]
      %s1293 = scalar_lea.vmem %s1, 240
      %v1294 = vld [vmem:[%s1293] sm:$0xf]
      %v1295 = vld [vmem:[%s1293 + $0x4] sm:$0xf]
      %v1296 = vld [vmem:[%s1293 + $0x8] sm:$0xf]
      %v1297 = vld [vmem:[%s1293 + $0xc] sm:$0xf]
      %v1299 = vunpack.c.l.b16 %v1292
      %v1300 = vpack.c.b16 %v1299, %v1166
      %v1302 = vshrl.u32 %v1300, 16
      %v1304 = vrot.slane %v1302, 3
      %v1305 = vshll.u32 %v1300, 16
      %v1307 = vrot.slane %v1305, 4
      %v1308 = vor.u32 %v1304, %v1307
      %v1313 = vunpack.c.l.b16 %v1294
      %v1314 = vunpack.c.l.b16 %v1295
      %v1315 = vunpack.c.l.b16 %v1296
      %v1316 = vunpack.c.l.b16 %v1297
      %v1317 = vpack.c.b16 %v1314, %v1313
      %v1318 = vpack.c.b16 %v1316, %v1315
      %v1322 = vsel %vm276, %v1308, 0
      %1324 = vmatprep.subr.bf16.mxu0 0
      %1325 = vmatpush1.bf16.msra.mxu0 %v1317
      %1326 = vmatprep.subr.bf16.mxu0 0
      %1327 = vmatpush1.bf16.msra.mxu0 %v1318
      %1328 = vmatprep.subr.bf16.mxu0 0
      %1329 = vmatpush1.bf16.msra.mxu0 0
      %1330 = vmatprep.subr.bf16.mxu0 0
      %1331 = vmatpush1.bf16.msra.mxu0 0
      %1332 = vmatprep.subr.bf16.mxu0 0
      %1333 = vmatpush1.bf16.msra.mxu0 0
      %1334 = vmatprep.subr.bf16.mxu0 0
      %1335 = vmatpush1.bf16.msra.mxu0 0
      %1336 = vmatprep.subr.bf16.mxu0 0
      %1337 = vmatpush1.bf16.msra.mxu0 0
      %1338 = vmatprep.subr.bf16.mxu0 0
      %1339 = vmatpush1.bf16.msra.mxu0 0
      %1340 = vmatprep.subr.bf16.mxu0 0
      %1341 = vmatpush1.bf16.msra.mxu0 0
      %1342 = vmatprep.subr.bf16.mxu0 0
      %1343 = vmatpush1.bf16.msra.mxu0 0
      %1344 = vmatprep.subr.bf16.mxu0 0
      %1345 = vmatpush1.bf16.msra.mxu0 0
      %1346 = vmatprep.subr.bf16.mxu0 0
      %1347 = vmatpush1.bf16.msra.mxu0 0
      %1348 = vmatprep.subr.bf16.mxu0 0
      %1349 = vmatpush1.bf16.msra.mxu0 0
      %1350 = vmatprep.subr.bf16.mxu0 0
      %1351 = vmatpush1.bf16.msra.mxu0 0
      %1352 = vmatprep.subr.bf16.mxu0 0
      %1353 = vmatpush1.bf16.msra.mxu0 0
      %1354 = vmatprep.subr.bf16.mxu0 0
      %1355 = vmatpush1.bf16.msra.mxu0 0
      %1356 = vmatprep.mubr.bf16.mxu0 0
      %1357 = vmatmul.mubr.bf16.gmra.mrb[0].mxu0 %v1322
      %v1358 = vpop.f32.mrb[0].mxu0
      %v1359 = vadd.f32 0.0, %v1358
      %v1360 = vpop.f32.mrb[0].mxu0
      %v1361 = vpop.f32.mrb[0].mxu0
      %v1362 = vpop.f32.mrb[0].mxu0
      %1363 = vdwg.mxu0
      %v1364 = vadd.f32 %v1291, %v1359
      %vm1365 = vcmask 517120
      %1366 = vst.msk [vmem:[%s235] sm:$0x3] %vm1365, %v1364
      %s1367 = scalar_lea.vmem %s235, 2
      %vm1368 = vcmask 520195
      %1369 = vst.msk [vmem:[%s1367 - $0x3] sm:$0x18] %vm1368, %v1364
      %v1370 = vld [vmem:[%s2] sm:$0x3f]
      %1372 = vset.pattern.permute.xlu0 0
      %1373 = vperm.xlu0 %1372, %v1370
      %v1374 = vpop.permute.xlu0 %1373
      %v1376 = vmul.f32 %v1364, %v1374
      %vm1377 = vcmask 521216
      %v1378 = vsel %vm1377, %v1376, 0.0
      %v1379 = vrot.slane %v1378, 4
      %v1380 = vadd.f32 %v1378, %v1379
      %v1381 = vrot.slane %v1380, 2
      %v1382 = vadd.f32 %v1380, %v1381
      %v1383 = vrot.slane %v1382, 1
      %v1384 = vadd.f32 %v1382, %v1383
      %vm1385 = vcmask 516096
      %1386 = vst.msk [vmem:[%s238] sm:$0x1] %vm1385, %v1384
      %v1387 = vmul.f32 %v1376, %v1364
      %v1388 = vsel %vm1377, %v1387, 0.0
      %v1389 = vrot.slane %v1388, 4
      %v1390 = vadd.f32 %v1388, %v1389
      %v1391 = vrot.slane %v1390, 2
      %v1392 = vadd.f32 %v1390, %v1391
      %v1393 = vrot.slane %v1392, 1
      %v1394 = vadd.f32 %v1392, %v1393
      %1395 = vst.msk [vmem:[%s241] sm:$0x1] %vm1385, %v1394
      %p1396 = scmp.lt.s32.totalorder %s17, 1
      %s1397 = scalar_select %p1396, %s17, 1
      %s1398 = smul.addr %s1397, 2
      %s1399 = smul.addr %s1398, 2
      %s1400 = scalar_lea.vmem %s3, %s1399
      %p1401 = scmp.lt.s32.totalorder %s17, 1
      %s1402 = scalar_select %p1401, %s17, 1
      %s1403 = scalar_lea.vmem %s4, %s1402
      %p1404 = scmp.lt.s32.totalorder %s17, 1
      %s1405 = scalar_select %p1404, %s17, 1
      %s1406 = scalar_lea.vmem %s5, %s1405
      // Predicated region
      $region33: #{discriminator_forward.12} parent=31 // pred_check
        %p1407 = pneg %p103
      $region34: #{discriminator_forward.12} parent=31 // pred_check_branch
        %1409 = sbr.rel (%p1407) target = $region36
      $region35: #{discriminator_forward.12} parent=31 // pred_region
        _
      $region36: #{discriminator_forward.12} parent=31 // pred_fallthru
        _
      // Predicated region
      $region37: #{discriminator_forward.12} parent=31 // pred_check
        %p1410 = pneg %p129
      $region38: #{discriminator_forward.12} parent=31 // pred_check_branch
        %1412 = sbr.rel (%p1410) target = $region40
      $region39: #{discriminator_forward.12} parent=31 // pred_region
        _
      $region40: #{discriminator_forward.12} parent=31 // pred_fallthru
        _
      // Predicated region
      $region41: #{discriminator_forward.12} parent=31 // pred_check
        %p1413 = pneg %p155
      $region42: #{discriminator_forward.12} parent=31 // pred_check_branch
        %1415 = sbr.rel (%p1413) target = $region44
      $region43: #{discriminator_forward.12} parent=31 // pred_region
        _
      $region44: #{discriminator_forward.12} parent=31 // pred_fallthru
        _
    $region32: #{discriminator_forward.12} parent=5 // pred_fallthru
      _
    %p1416 = scmp.le.s32.totalorder 2, %s12
    // Predicated region
    $region45: #{discriminator_forward.12} parent=5 // pred_check
      %p1417 = pneg %p1416
    $region46: #{discriminator_forward.12} parent=5 // pred_check_branch
      %1419 = sbr.rel (%p1417) target = $region48
    $region47: #{discriminator_forward.12} parent=5 // pred_region
      %s1420 = ssub.s32 %s12, 2
      // Predicated region
      $region49: #{discriminator_forward.12} parent=47 // pred_check
        %p1421 = pneg %p109
      $region50: #{discriminator_forward.12} parent=47 // pred_check_branch
        %1423 = sbr.rel (%p1421) target = $region52
      $region51: #{discriminator_forward.12} parent=47 // pred_region
        %p1424 = scmp.lt.s32.totalorder %s18, 1
        %s1425 = scalar_select %p1424, %s18, 1
        %s1426 = smul.addr %s1425, 2
        %s1427 = smul.addr %s1426, 2
        %s1428 = scalar_lea.vmem %s3, %s1427
      $region52: #{discriminator_forward.12} parent=47 // pred_fallthru
        _
      // Predicated region
      $region53: #{discriminator_forward.12} parent=47 // pred_check
        %p1429 = pneg %p135
      $region54: #{discriminator_forward.12} parent=47 // pred_check_branch
        %1431 = sbr.rel (%p1429) target = $region56
      $region55: #{discriminator_forward.12} parent=47 // pred_region
        %p1432 = scmp.lt.s32.totalorder %s18, 1
        %s1433 = scalar_select %p1432, %s18, 1
        %s1434 = scalar_lea.vmem %s4, %s1433
      $region56: #{discriminator_forward.12} parent=47 // pred_fallthru
        _
      // Predicated region
      $region57: #{discriminator_forward.12} parent=47 // pred_check
        %p1435 = pneg %p161
      $region58: #{discriminator_forward.12} parent=47 // pred_check_branch
        %1437 = sbr.rel (%p1435) target = $region60
      $region59: #{discriminator_forward.12} parent=47 // pred_region
        %p1438 = scmp.lt.s32.totalorder %s18, 1
        %s1439 = scalar_select %p1438, %s18, 1
        %s1440 = scalar_lea.vmem %s5, %s1439
      $region60: #{discriminator_forward.12} parent=47 // pred_fallthru
        _
    $region48: #{discriminator_forward.12} parent=5 // pred_fallthru
      _
  $region6: #{discriminator_forward.12} parent=0 // loop_footer
    %s16 = sadd.s32 1, %s12
  $region7: #{discriminator_forward.12} parent=0 // loop_footer_branch
    %11 = sbr.rel target = $region3
  $region8: #{discriminator_forward.12} parent=0 // loop_exit
    _

// kernel: discriminator_forward.15
$region0: #{discriminator_forward.15}
  #allocation0 [shape = 'u32[]', space=smem, size = 0x4, offset = 0x4, fixed_abs, tag = 'smem constant byte address 0x4 - core index']
  #allocation1 [shape = 'u32[144,128]{1,0:T(1,128)}', space=vmem, size = 0x12000, scoped, tag = 'internal scratch']
  #allocation2 [shape = 'f32[1,1]{1,0:T(1,128)S(1)}', space=vmem, size = 0x200, scoped, tag = 'scoped memory for discriminator_forward.15']
  #allocation3 [shape = 'f32[1,1]{1,0:T(1,128)S(1)}', space=vmem, size = 0x200, scoped, tag = 'scoped memory for discriminator_forward.15']
  %s0 = inlined_call_operand.vmem [shape: f32[2,1], index: 0, kind: input, shape index: {}]
  %s1 = inlined_call_operand.<no memory space> [shape: f32[1,1], index: 1, kind: input, shape index: {}]
  %s2 = inlined_call_operand.<no memory space> [shape: f32[1,1], index: 2, kind: input, shape index: {}]
  %s3 = inlined_call_operand.vmem [shape: f32[2,1], index: 3, kind: output, shape index: {}]
  %s4 = sld [smem:[#allocation0]]
  $region22: #{discriminator_forward.15} parent=0
    _
  %s6 = ssub.s32 1, %s4
  %s7 = scalar_select 0, %s6, %s4
  %v8 = vstv %s1
  %9 = vst [vmem:[#allocation2] sm:$0x1] %v8
  %v10 = vstv %s2
  %11 = vst [vmem:[#allocation3] sm:$0x1] %v10
  // Predicated region
  $region2: #{discriminator_forward.15} parent=0 // pred_check
    _
  $region3: #{discriminator_forward.15} parent=0 // pred_check_branch
    %13 = sbr.rel (0) target = $region5
  $region4: #{discriminator_forward.15} parent=0 // pred_region
    _
  $region5: #{discriminator_forward.15} parent=0 // pred_fallthru
    _
  // Predicated region
  $region6: #{discriminator_forward.15} parent=0 // pred_check
    _
  $region7: #{discriminator_forward.15} parent=0 // pred_check_branch
    %15 = sbr.rel (0) target = $region9
  $region8: #{discriminator_forward.15} parent=0 // pred_region
    _
  $region9: #{discriminator_forward.15} parent=0 // pred_fallthru
    _
  // Predicated region
  $region10: #{discriminator_forward.15} parent=0 // pred_check
    _
  $region11: #{discriminator_forward.15} parent=0 // pred_check_branch
    %17 = sbr.rel (0) target = $region13
  $region12: #{discriminator_forward.15} parent=0 // pred_region
    _
  $region13: #{discriminator_forward.15} parent=0 // pred_fallthru
    _
  %v18 = vld [vmem:[%s0] sm:$0x3]
  %v19 = vld [vmem:[#allocation2] sm:$0x1]
  %v21 = vlaneseq
  %v22 = vshrl.u32 %v21, 7
  %v23 = vsub.s32 0, %v22
  %v24 = vrot.slane %v19, %v23
  %v26 = vmul.f32 %v18, %v24
  %v27 = vld [vmem:[#allocation3] sm:$0x1]
  %v29 = vlaneseq
  %v30 = vshrl.u32 %v29, 7
  %v31 = vsub.s32 0, %v30
  %v32 = vrot.slane %v27, %v31
  %v34 = vadd.f32 %v26, %v32
  %vm35 = vcmp.ge.f32.partialorder %v34, 0.0
  %v36 = vmul.f32 %v34, 0.2
  %v37 = vsel %vm35, %v34, %v36
  %vm38 = vcmask 1024
  %39 = vst.msk [vmem:[%s3] sm:$0x3] %vm38, %v37
  // Predicated region
  $region14: #{discriminator_forward.15} parent=0 // pred_check
    _
  $region15: #{discriminator_forward.15} parent=0 // pred_check_branch
    %41 = sbr.rel (0) target = $region17
  $region16: #{discriminator_forward.15} parent=0 // pred_region
    _
  $region17: #{discriminator_forward.15} parent=0 // pred_fallthru
    _
  // Predicated region
  $region18: #{discriminator_forward.15} parent=0 // pred_check
    _
  $region19: #{discriminator_forward.15} parent=0 // pred_check_branch
    %43 = sbr.rel (0) target = $region21
  $region20: #{discriminator_forward.15} parent=0 // pred_region
    _
  $region21: #{discriminator_forward.15} parent=0 // pred_fallthru
    _

// kernel: discriminator_forward.14
$region0: #{discriminator_forward.14}
  #allocation0 [shape = 'u32[]', space=smem, size = 0x4, offset = 0x4, fixed_abs, tag = 'smem constant byte address 0x4 - core index']
  #allocation1 [shape = 'u32[144,128]{1,0:T(1,128)}', space=vmem, size = 0x12000, scoped, tag = 'internal scratch']
  %s0 = inlined_call_operand.vmem [shape: bf16[2,20,64], index: 0, kind: input, shape index: {}]
  %s1 = inlined_call_operand.vmem [shape: bf16[16,64,1], index: 1, kind: input, shape index: {}]
  %s2 = inlined_call_operand.vmem [shape: f32[4,1], index: 2, kind: input, shape index: {}]
  %s3 = inlined_call_operand.vmem [shape: f32[2,1,1,1], index: 3, kind: output, shape index: {0}]
  %s4 = inlined_call_operand.vmem [shape: f32[2,1,1], index: 4, kind: output, shape index: {1}]
  %s5 = inlined_call_operand.vmem [shape: f32[2,1,1], index: 5, kind: output, shape index: {2}]
  %6 = xla_tuple %s3, %s4, %s5
  %s7 = sld [smem:[#allocation0]]
  $region61: #{discriminator_forward.14} parent=0
    _
  %s9 = ssub.s32 1, %s7
  %s10 = scalar_select 0, %s9, %s7
  loop: start=0, step=1, limit=4
  $region2: #{discriminator_forward.14} parent=0 // loop_pre_header
    _
  $region3: #{discriminator_forward.14} parent=0 // loop_header
    %s12 = sphi 0, %s16
    %p13 = scmp.ge.s32.totalorder %s12, 4
    %s22 = sphi 0, %s24
    %s25 = sphi 0, %s22
    %s26 = sphi 0, %s25
    %s42 = sphi 0, %s26
    %s46 = sphi 0, %s46
    %s48 = sphi 0, %s46
    %s49 = sphi 0, %s48
    %s63 = sphi 0, %s49
    %s67 = sphi 0, %s67
    %s69 = sphi 0, %s67
    %s70 = sphi 0, %s69
    %s84 = sphi 0, %s70
    %s90 = sphi 0, %s92
    %s93 = sphi 0, %s90
    %s94 = sphi 0, %s93
    %s110 = sphi 0, %s94
    %s116 = sphi 0, %s118
    %s119 = sphi 0, %s116
    %s120 = sphi 0, %s119
    %s136 = sphi 0, %s120
    %s142 = sphi 0, %s144
    %s145 = sphi 0, %s142
    %s146 = sphi 0, %s145
    %s162 = sphi 0, %s146
  $region4: #{discriminator_forward.14} parent=0 // loop_header_branch
    %15 = sbr.rel (%p13) target = $region8
  $region5: #{discriminator_forward.14} parent=0 // loop_body
    %s17 = ssub.s32 %s12, 1
    %s18 = ssub.s32 %s12, 2
    %s19 = sadd.s32 %s12, 1
    %s20 = ssub.s32 %s12, %s19
    %p21 = scmp.eq.s32.totalorder %s20, 0
    %s23 = sadd.s32 %s22, 1
    %s24 = scalar_select %p21, %s22, %s23
    %p27 = pneg %p21
    %p28 = scmp.eq.s32.totalorder %s12, 1
    %p29 = por %p27, %p28
    %p30 = scmp.ne.s32.totalorder %s22, %s25
    %p31 = scmp.eq.s32.totalorder %s12, 0
    %p32 = por %p30, %p31
    %p33 = scmp.ne.s32.totalorder %s22, %s25
    %p34 = scmp.eq.s32.totalorder %s17, 1
    %p35 = por %p33, %p34
    %p36 = scmp.ne.s32.totalorder %s25, %s26
    %p37 = scmp.eq.s32.totalorder %s17, 0
    %p38 = por %p36, %p37
    %p39 = scmp.ne.s32.totalorder %s25, %s26
    %p40 = scmp.eq.s32.totalorder %s18, 1
    %p41 = por %p39, %p40
    %p43 = scmp.ne.s32.totalorder %s26, %s42
    %p44 = scmp.eq.s32.totalorder %s18, 0
    %p45 = por %p43, %p44
    %s47 = sadd.s32 %s46, 1
    %p50 = scmp.eq.s32.totalorder %s12, 1
    %p51 = scmp.ne.s32.totalorder %s46, %s48
    %p52 = scmp.eq.s32.totalorder %s12, 0
    %p53 = por %p51, %p52
    %p54 = scmp.ne.s32.totalorder %s46, %s48
    %p55 = scmp.eq.s32.totalorder %s17, 1
    %p56 = por %p54, %p55
    %p57 = scmp.ne.s32.totalorder %s48, %s49
    %p58 = scmp.eq.s32.totalorder %s17, 0
    %p59 = por %p57, %p58
    %p60 = scmp.ne.s32.totalorder %s48, %s49
    %p61 = scmp.eq.s32.totalorder %s18, 1
    %p62 = por %p60, %p61
    %p64 = scmp.ne.s32.totalorder %s49, %s63
    %p65 = scmp.eq.s32.totalorder %s18, 0
    %p66 = por %p64, %p65
    %s68 = sadd.s32 %s67, 1
    %p71 = scmp.eq.s32.totalorder %s12, 1
    %p72 = scmp.ne.s32.totalorder %s67, %s69
    %p73 = scmp.eq.s32.totalorder %s12, 0
    %p74 = por %p72, %p73
    %p75 = scmp.ne.s32.totalorder %s67, %s69
    %p76 = scmp.eq.s32.totalorder %s17, 1
    %p77 = por %p75, %p76
    %p78 = scmp.ne.s32.totalorder %s69, %s70
    %p79 = scmp.eq.s32.totalorder %s17, 0
    %p80 = por %p78, %p79
    %p81 = scmp.ne.s32.totalorder %s69, %s70
    %p82 = scmp.eq.s32.totalorder %s18, 1
    %p83 = por %p81, %p82
    %p85 = scmp.ne.s32.totalorder %s70, %s84
    %p86 = scmp.eq.s32.totalorder %s18, 0
    %p87 = por %p85, %p86
    %s88 = ssub.s32 %s12, %s19
    %p89 = scmp.eq.s32.totalorder %s88, 0
    %s91 = sadd.s32 %s90, 1
    %s92 = scalar_select %p89, %s90, %s91
    %p95 = pneg %p89
    %p96 = scmp.eq.s32.totalorder %s12, 1
    %p97 = por %p95, %p96
    %p98 = scmp.ne.s32.totalorder %s90, %s93
    %p99 = scmp.eq.s32.totalorder %s12, 0
    %p100 = por %p98, %p99
    %p101 = scmp.ne.s32.totalorder %s90, %s93
    %p102 = scmp.eq.s32.totalorder %s17, 1
    %p103 = por %p101, %p102
    %p104 = scmp.ne.s32.totalorder %s93, %s94
    %p105 = scmp.eq.s32.totalorder %s17, 0
    %p106 = por %p104, %p105
    %p107 = scmp.ne.s32.totalorder %s93, %s94
    %p108 = scmp.eq.s32.totalorder %s18, 1
    %p109 = por %p107, %p108
    %p111 = scmp.ne.s32.totalorder %s94, %s110
    %p112 = scmp.eq.s32.totalorder %s18, 0
    %p113 = por %p111, %p112
    %s114 = ssub.s32 %s12, %s19
    %p115 = scmp.eq.s32.totalorder %s114, 0
    %s117 = sadd.s32 %s116, 1
    %s118 = scalar_select %p115, %s116, %s117
    %p121 = pneg %p115
    %p122 = scmp.eq.s32.totalorder %s12, 1
    %p123 = por %p121, %p122
    %p124 = scmp.ne.s32.totalorder %s116, %s119
    %p125 = scmp.eq.s32.totalorder %s12, 0
    %p126 = por %p124, %p125
    %p127 = scmp.ne.s32.totalorder %s116, %s119
    %p128 = scmp.eq.s32.totalorder %s17, 1
    %p129 = por %p127, %p128
    %p130 = scmp.ne.s32.totalorder %s119, %s120
    %p131 = scmp.eq.s32.totalorder %s17, 0
    %p132 = por %p130, %p131
    %p133 = scmp.ne.s32.totalorder %s119, %s120
    %p134 = scmp.eq.s32.totalorder %s18, 1
    %p135 = por %p133, %p134
    %p137 = scmp.ne.s32.totalorder %s120, %s136
    %p138 = scmp.eq.s32.totalorder %s18, 0
    %p139 = por %p137, %p138
    %s140 = ssub.s32 %s12, %s19
    %p141 = scmp.eq.s32.totalorder %s140, 0
    %s143 = sadd.s32 %s142, 1
    %s144 = scalar_select %p141, %s142, %s143
    %p147 = pneg %p141
    %p148 = scmp.eq.s32.totalorder %s12, 1
    %p149 = por %p147, %p148
    %p150 = scmp.ne.s32.totalorder %s142, %s145
    %p151 = scmp.eq.s32.totalorder %s12, 0
    %p152 = por %p150, %p151
    %p153 = scmp.ne.s32.totalorder %s142, %s145
    %p154 = scmp.eq.s32.totalorder %s17, 1
    %p155 = por %p153, %p154
    %p156 = scmp.ne.s32.totalorder %s145, %s146
    %p157 = scmp.eq.s32.totalorder %s17, 0
    %p158 = por %p156, %p157
    %p159 = scmp.ne.s32.totalorder %s145, %s146
    %p160 = scmp.eq.s32.totalorder %s18, 1
    %p161 = por %p159, %p160
    %p163 = scmp.ne.s32.totalorder %s146, %s162
    %p164 = scmp.eq.s32.totalorder %s18, 0
    %p165 = por %p163, %p164
    %p166 = scmp.le.s32.totalorder 1, %s12
    %p167 = scmp.lt.s32.totalorder %s12, 3
    %p168 = pnand %p166, %p167
    %p169 = pneg %p168
    // Predicated region
    $region9: #{discriminator_forward.14} parent=5 // pred_check
      _
    $region10: #{discriminator_forward.14} parent=5 // pred_check_branch
      %171 = sbr.rel (%p168) target = $region12
    $region11: #{discriminator_forward.14} parent=5 // pred_region
      %s172 = ssub.s32 %s12, 1
      // Predicated region
      $region13: #{discriminator_forward.14} parent=11 // pred_check
        %p173 = pneg %p59
      $region14: #{discriminator_forward.14} parent=11 // pred_check_branch
        %175 = sbr.rel (%p173) target = $region16
      $region15: #{discriminator_forward.14} parent=11 // pred_region
        _
      $region16: #{discriminator_forward.14} parent=11 // pred_fallthru
        _
      // Predicated region
      $region17: #{discriminator_forward.14} parent=11 // pred_check
        %p176 = pneg %p80
      $region18: #{discriminator_forward.14} parent=11 // pred_check_branch
        %178 = sbr.rel (%p176) target = $region20
      $region19: #{discriminator_forward.14} parent=11 // pred_region
        _
      $region20: #{discriminator_forward.14} parent=11 // pred_fallthru
        _
    $region12: #{discriminator_forward.14} parent=5 // pred_fallthru
      _
    %p179 = scmp.lt.s32.totalorder %s12, 2
    // Predicated region
    $region21: #{discriminator_forward.14} parent=5 // pred_check
      %p180 = pneg %p179
    $region22: #{discriminator_forward.14} parent=5 // pred_check_branch
      %182 = sbr.rel (%p180) target = $region24
    $region23: #{discriminator_forward.14} parent=5 // pred_region
      // Predicated region
      $region25: #{discriminator_forward.14} parent=23 // pred_check
        %p183 = pneg %p32
      $region26: #{discriminator_forward.14} parent=23 // pred_check_branch
        %185 = sbr.rel (%p183) target = $region28
      $region27: #{discriminator_forward.14} parent=23 // pred_region
        %p186 = scmp.lt.s32.totalorder %s12, 1
        %s187 = scalar_select %p186, %s12, 1
        %s188 = smul.addr %s187, 3
        %s189 = smul.addr %s188, 4
        %s190 = scalar_lea.vmem %s0, %s189
      $region28: #{discriminator_forward.14} parent=23 // pred_fallthru
        _
    $region24: #{discriminator_forward.14} parent=5 // pred_fallthru
      _
    %p191 = scmp.le.s32.totalorder 1, %s12
    %p192 = scmp.lt.s32.totalorder %s12, 3
    %p193 = pnand %p191, %p192
    %p194 = pneg %p193
    // Predicated region
    $region29: #{discriminator_forward.14} parent=5 // pred_check
      _
    $region30: #{discriminator_forward.14} parent=5 // pred_check_branch
      %196 = sbr.rel (%p193) target = $region32
    $region31: #{discriminator_forward.14} parent=5 // pred_region
      %s197 = ssub.s32 %s12, 1
      %p198 = scmp.lt.s32.totalorder %s17, 1
      %s199 = scalar_select %p198, %s17, 1
      %s200 = smul.addr %s199, 3
      %s201 = smul.addr %s200, 4
      %s202 = scalar_lea.vmem %s0, %s201
      %p203 = pneg %p38
      %p204 = pneg %p35
      %p205 = pneg %p59
      %p206 = pneg %p56
      %p207 = pneg %p80
      %p208 = pneg %p77
      %p209 = pneg %p106
      %p210 = pneg %p103
      %p211 = scmp.lt.s32.totalorder %s17, 1
      %s212 = scalar_select %p211, %s17, 1
      %s213 = scalar_lea.vmem %s3, %s212
      %p214 = pneg %p132
      %p215 = pneg %p129
      %p216 = scmp.lt.s32.totalorder %s17, 1
      %s217 = scalar_select %p216, %s17, 1
      %s218 = scalar_lea.vmem %s4, %s217
      %p219 = pneg %p158
      %p220 = pneg %p155
      %p221 = scmp.lt.s32.totalorder %s17, 1
      %s222 = scalar_select %p221, %s17, 1
      %s223 = scalar_lea.vmem %s5, %s222
      %p224 = scmp.lt.s32.totalorder %s17, 1
      %s225 = scalar_select %p224, %s17, 1
      %s226 = smul.addr %s225, 3
      %s227 = smul.addr %s226, 4
      %s228 = scalar_lea.vmem %s0, %s227
      %p229 = scmp.lt.s32.totalorder %s17, 1
      %s230 = scalar_select %p229, %s17, 1
      %s231 = scalar_lea.vmem %s3, %s230
      %p232 = scmp.lt.s32.totalorder %s17, 1
      %s233 = scalar_select %p232, %s17, 1
      %s234 = scalar_lea.vmem %s4, %s233
      %p235 = scmp.lt.s32.totalorder %s17, 1
      %s236 = scalar_select %p235, %s17, 1
      %s237 = scalar_lea.vmem %s5, %s236
      %v239 = vld [vmem:[%s228] sm:$0x3]
      %v240 = vld [vmem:[%s1] sm:$0xf]
      %v241 = vld [vmem:[%s1 + $0x4] sm:$0xf]
      %v242 = vld [vmem:[%s1 + $0x8] sm:$0xf]
      %v243 = vld [vmem:[%s1 + $0xc] sm:$0xf]
      %v244 = vld [vmem:[%s1 + $0x10] sm:$0xf]
      %v245 = vld [vmem:[%s1 + $0x14] sm:$0xf]
      %v246 = vld [vmem:[%s1 + $0x18] sm:$0xf]
      %v247 = vld [vmem:[%s1 + $0x1c] sm:$0xf]
      %v248 = vld [vmem:[%s228] sm:$0x7]
      %s249 = scalar_lea.vmem %s1, 32
      %v250 = vld [vmem:[%s249] sm:$0xf]
      %v251 = vld [vmem:[%s249 + $0x4] sm:$0xf]
      %v252 = vld [vmem:[%s249 + $0x8] sm:$0xf]
      %v253 = vld [vmem:[%s249 + $0xc] sm:$0xf]
      %v254 = vld [vmem:[%s249 + $0x10] sm:$0xf]
      %v255 = vld [vmem:[%s249 + $0x14] sm:$0xf]
      %v256 = vld [vmem:[%s249 + $0x18] sm:$0xf]
      %v257 = vld [vmem:[%s249 + $0x1c] sm:$0xf]
      %v259 = vunpack.c.l.b16 %v248
      %v260 = vpack.c.b16 %v259, %v259
      %v262 = vshrl.u32 %v260, 16
      %v264 = vshll.u32 %v260, 16
      %v266 = vrot.slane %v264, 1
      %v267 = vor.u32 %v262, %v266
      %v276 = vunpack.c.l.b16 %v250
      %v277 = vunpack.c.l.b16 %v251
      %v278 = vunpack.c.l.b16 %v252
      %v279 = vunpack.c.l.b16 %v253
      %v280 = vunpack.c.l.b16 %v254
      %v281 = vunpack.c.l.b16 %v255
      %v282 = vunpack.c.l.b16 %v256
      %v283 = vunpack.c.l.b16 %v257
      %v284 = vpack.c.b16 %v277, %v276
      %v285 = vpack.c.b16 %v279, %v278
      %v286 = vpack.c.b16 %v281, %v280
      %v287 = vpack.c.b16 %v283, %v282
      %vm292 = vcmask 523264
      %v294 = vsel %vm292, %v267, 0
      %296 = vmatprep.subr.bf16.mxu0 0
      %297 = vmatpush1.bf16.msra.mxu0 %v284
      %298 = vmatprep.subr.bf16.mxu0 0
      %299 = vmatpush1.bf16.msra.mxu0 %v285
      %300 = vmatprep.subr.bf16.mxu0 0
      %301 = vmatpush1.bf16.msra.mxu0 %v286
      %302 = vmatprep.subr.bf16.mxu0 0
      %303 = vmatpush1.bf16.msra.mxu0 %v287
      %304 = vmatprep.subr.bf16.mxu0 0
      %305 = vmatpush1.bf16.msra.mxu0 0
      %306 = vmatprep.subr.bf16.mxu0 0
      %307 = vmatpush1.bf16.msra.mxu0 0
      %308 = vmatprep.subr.bf16.mxu0 0
      %309 = vmatpush1.bf16.msra.mxu0 0
      %310 = vmatprep.subr.bf16.mxu0 0
      %311 = vmatpush1.bf16.msra.mxu0 0
      %312 = vmatprep.subr.bf16.mxu0 0
      %313 = vmatpush1.bf16.msra.mxu0 0
      %314 = vmatprep.subr.bf16.mxu0 0
      %315 = vmatpush1.bf16.msra.mxu0 0
      %316 = vmatprep.subr.bf16.mxu0 0
      %317 = vmatpush1.bf16.msra.mxu0 0
      %318 = vmatprep.subr.bf16.mxu0 0
      %319 = vmatpush1.bf16.msra.mxu0 0
      %320 = vmatprep.subr.bf16.mxu0 0
      %321 = vmatpush1.bf16.msra.mxu0 0
      %322 = vmatprep.subr.bf16.mxu0 0
      %323 = vmatpush1.bf16.msra.mxu0 0
      %324 = vmatprep.subr.bf16.mxu0 0
      %325 = vmatpush1.bf16.msra.mxu0 0
      %326 = vmatprep.subr.bf16.mxu0 0
      %327 = vmatpush1.bf16.msra.mxu0 0
      %328 = vmatprep.mubr.bf16.mxu0 0
      %329 = vmatmul.mubr.bf16.gmra.mrb[0].mxu0 %v294
      %v330 = vpop.f32.mrb[0].mxu0
      %v331 = vadd.f32 0.0, %v330
      %v332 = vpop.f32.mrb[0].mxu0
      %v333 = vpop.f32.mrb[0].mxu0
      %v334 = vpop.f32.mrb[0].mxu0
      %335 = vdwg.mxu0
      %v344 = vunpack.c.l.b16 %v240
      %v345 = vunpack.c.l.b16 %v241
      %v346 = vunpack.c.l.b16 %v242
      %v347 = vunpack.c.l.b16 %v243
      %v348 = vunpack.c.l.b16 %v244
      %v349 = vunpack.c.l.b16 %v245
      %v350 = vunpack.c.l.b16 %v246
      %v351 = vunpack.c.l.b16 %v247
      %v352 = vpack.c.b16 %v345, %v344
      %v353 = vpack.c.b16 %v347, %v346
      %v354 = vpack.c.b16 %v349, %v348
      %v355 = vpack.c.b16 %v351, %v350
      %v361 = vsel %vm292, %v239, 0
      %363 = vmatprep.subr.bf16.mxu0 0
      %364 = vmatpush1.bf16.msra.mxu0 %v352
      %365 = vmatprep.subr.bf16.mxu0 0
      %366 = vmatpush1.bf16.msra.mxu0 %v353
      %367 = vmatprep.subr.bf16.mxu0 0
      %368 = vmatpush1.bf16.msra.mxu0 %v354
      %369 = vmatprep.subr.bf16.mxu0 0
      %370 = vmatpush1.bf16.msra.mxu0 %v355
      %371 = vmatprep.subr.bf16.mxu0 0
      %372 = vmatpush1.bf16.msra.mxu0 0
      %373 = vmatprep.subr.bf16.mxu0 0
      %374 = vmatpush1.bf16.msra.mxu0 0
      %375 = vmatprep.subr.bf16.mxu0 0
      %376 = vmatpush1.bf16.msra.mxu0 0
      %377 = vmatprep.subr.bf16.mxu0 0
      %378 = vmatpush1.bf16.msra.mxu0 0
      %379 = vmatprep.subr.bf16.mxu0 0
      %380 = vmatpush1.bf16.msra.mxu0 0
      %381 = vmatprep.subr.bf16.mxu0 0
      %382 = vmatpush1.bf16.msra.mxu0 0
      %383 = vmatprep.subr.bf16.mxu0 0
      %384 = vmatpush1.bf16.msra.mxu0 0
      %385 = vmatprep.subr.bf16.mxu0 0
      %386 = vmatpush1.bf16.msra.mxu0 0
      %387 = vmatprep.subr.bf16.mxu0 0
      %388 = vmatpush1.bf16.msra.mxu0 0
      %389 = vmatprep.subr.bf16.mxu0 0
      %390 = vmatpush1.bf16.msra.mxu0 0
      %391 = vmatprep.subr.bf16.mxu0 0
      %392 = vmatpush1.bf16.msra.mxu0 0
      %393 = vmatprep.subr.bf16.mxu0 0
      %394 = vmatpush1.bf16.msra.mxu0 0
      %395 = vmatprep.mubr.bf16.mxu0 0
      %396 = vmatmul.mubr.bf16.gmra.mrb[0].mxu0 %v361
      %v397 = vpop.f32.mrb[0].mxu0
      %v398 = vadd.f32 %v331, %v397
      %v399 = vpop.f32.mrb[0].mxu0
      %v400 = vpop.f32.mrb[0].mxu0
      %v401 = vpop.f32.mrb[0].mxu0
      %402 = vdwg.mxu0
      %v403 = vld [vmem:[%s228] sm:$0x6]
      %s404 = scalar_lea.vmem %s1, 64
      %v405 = vld [vmem:[%s404] sm:$0xf]
      %v406 = vld [vmem:[%s404 + $0x4] sm:$0xf]
      %v407 = vld [vmem:[%s404 + $0x8] sm:$0xf]
      %v408 = vld [vmem:[%s404 + $0xc] sm:$0xf]
      %v409 = vld [vmem:[%s404 + $0x10] sm:$0xf]
      %v410 = vld [vmem:[%s404 + $0x14] sm:$0xf]
      %v411 = vld [vmem:[%s404 + $0x18] sm:$0xf]
      %v412 = vld [vmem:[%s404 + $0x1c] sm:$0xf]
      %v414 = vunpack.c.l.b16 %v403
      %v415 = vpack.c.b16 %v414, %v414
      %v416 = vrot.slane %v415, 1
      %v425 = vunpack.c.l.b16 %v405
      %v426 = vunpack.c.l.b16 %v406
      %v427 = vunpack.c.l.b16 %v407
      %v428 = vunpack.c.l.b16 %v408
      %v429 = vunpack.c.l.b16 %v409
      %v430 = vunpack.c.l.b16 %v410
      %v431 = vunpack.c.l.b16 %v411
      %v432 = vunpack.c.l.b16 %v412
      %v433 = vpack.c.b16 %v426, %v425
      %v434 = vpack.c.b16 %v428, %v427
      %v435 = vpack.c.b16 %v430, %v429
      %v436 = vpack.c.b16 %v432, %v431
      %v442 = vsel %vm292, %v416, 0
      %444 = vmatprep.subr.bf16.mxu0 0
      %445 = vmatpush1.bf16.msra.mxu0 %v433
      %446 = vmatprep.subr.bf16.mxu0 0
      %447 = vmatpush1.bf16.msra.mxu0 %v434
      %448 = vmatprep.subr.bf16.mxu0 0
      %449 = vmatpush1.bf16.msra.mxu0 %v435
      %450 = vmatprep.subr.bf16.mxu0 0
      %451 = vmatpush1.bf16.msra.mxu0 %v436
      %452 = vmatprep.subr.bf16.mxu0 0
      %453 = vmatpush1.bf16.msra.mxu0 0
      %454 = vmatprep.subr.bf16.mxu0 0
      %455 = vmatpush1.bf16.msra.mxu0 0
      %456 = vmatprep.subr.bf16.mxu0 0
      %457 = vmatpush1.bf16.msra.mxu0 0
      %458 = vmatprep.subr.bf16.mxu0 0
      %459 = vmatpush1.bf16.msra.mxu0 0
      %460 = vmatprep.subr.bf16.mxu0 0
      %461 = vmatpush1.bf16.msra.mxu0 0
      %462 = vmatprep.subr.bf16.mxu0 0
      %463 = vmatpush1.bf16.msra.mxu0 0
      %464 = vmatprep.subr.bf16.mxu0 0
      %465 = vmatpush1.bf16.msra.mxu0 0
      %466 = vmatprep.subr.bf16.mxu0 0
      %467 = vmatpush1.bf16.msra.mxu0 0
      %468 = vmatprep.subr.bf16.mxu0 0
      %469 = vmatpush1.bf16.msra.mxu0 0
      %470 = vmatprep.subr.bf16.mxu0 0
      %471 = vmatpush1.bf16.msra.mxu0 0
      %472 = vmatprep.subr.bf16.mxu0 0
      %473 = vmatpush1.bf16.msra.mxu0 0
      %474 = vmatprep.subr.bf16.mxu0 0
      %475 = vmatpush1.bf16.msra.mxu0 0
      %476 = vmatprep.mubr.bf16.mxu0 0
      %477 = vmatmul.mubr.bf16.gmra.mrb[0].mxu0 %v442
      %v478 = vpop.f32.mrb[0].mxu0
      %v479 = vadd.f32 0.0, %v478
      %v480 = vpop.f32.mrb[0].mxu0
      %v481 = vpop.f32.mrb[0].mxu0
      %v482 = vpop.f32.mrb[0].mxu0
      %483 = vdwg.mxu0
      %v484 = vadd.f32 %v398, %v479
      %v485 = vld [vmem:[%s228] sm:$0xe]
      %s486 = scalar_lea.vmem %s1, 96
      %v487 = vld [vmem:[%s486] sm:$0xf]
      %v488 = vld [vmem:[%s486 + $0x4] sm:$0xf]
      %v489 = vld [vmem:[%s486 + $0x8] sm:$0xf]
      %v490 = vld [vmem:[%s486 + $0xc] sm:$0xf]
      %v491 = vld [vmem:[%s486 + $0x10] sm:$0xf]
      %v492 = vld [vmem:[%s486 + $0x14] sm:$0xf]
      %v493 = vld [vmem:[%s486 + $0x18] sm:$0xf]
      %v494 = vld [vmem:[%s486 + $0x1c] sm:$0xf]
      %v496 = vunpack.c.l.b16 %v485
      %v497 = vpack.c.b16 %v496, %v496
      %v499 = vshrl.u32 %v497, 16
      %v501 = vrot.slane %v499, 1
      %v502 = vshll.u32 %v497, 16
      %v504 = vrot.slane %v502, 2
      %v505 = vor.u32 %v501, %v504
      %v514 = vunpack.c.l.b16 %v487
      %v515 = vunpack.c.l.b16 %v488
      %v516 = vunpack.c.l.b16 %v489
      %v517 = vunpack.c.l.b16 %v490
      %v518 = vunpack.c.l.b16 %v491
      %v519 = vunpack.c.l.b16 %v492
      %v520 = vunpack.c.l.b16 %v493
      %v521 = vunpack.c.l.b16 %v494
      %v522 = vpack.c.b16 %v515, %v514
      %v523 = vpack.c.b16 %v517, %v516
      %v524 = vpack.c.b16 %v519, %v518
      %v525 = vpack.c.b16 %v521, %v520
      %v531 = vsel %vm292, %v505, 0
      %533 = vmatprep.subr.bf16.mxu0 0
      %534 = vmatpush1.bf16.msra.mxu0 %v522
      %535 = vmatprep.subr.bf16.mxu0 0
      %536 = vmatpush1.bf16.msra.mxu0 %v523
      %537 = vmatprep.subr.bf16.mxu0 0
      %538 = vmatpush1.bf16.msra.mxu0 %v524
      %539 = vmatprep.subr.bf16.mxu0 0
      %540 = vmatpush1.bf16.msra.mxu0 %v525
      %541 = vmatprep.subr.bf16.mxu0 0
      %542 = vmatpush1.bf16.msra.mxu0 0
      %543 = vmatprep.subr.bf16.mxu0 0
      %544 = vmatpush1.bf16.msra.mxu0 0
      %545 = vmatprep.subr.bf16.mxu0 0
      %546 = vmatpush1.bf16.msra.mxu0 0
      %547 = vmatprep.subr.bf16.mxu0 0
      %548 = vmatpush1.bf16.msra.mxu0 0
      %549 = vmatprep.subr.bf16.mxu0 0
      %550 = vmatpush1.bf16.msra.mxu0 0
      %551 = vmatprep.subr.bf16.mxu0 0
      %552 = vmatpush1.bf16.msra.mxu0 0
      %553 = vmatprep.subr.bf16.mxu0 0
      %554 = vmatpush1.bf16.msra.mxu0 0
      %555 = vmatprep.subr.bf16.mxu0 0
      %556 = vmatpush1.bf16.msra.mxu0 0
      %557 = vmatprep.subr.bf16.mxu0 0
      %558 = vmatpush1.bf16.msra.mxu0 0
      %559 = vmatprep.subr.bf16.mxu0 0
      %560 = vmatpush1.bf16.msra.mxu0 0
      %561 = vmatprep.subr.bf16.mxu0 0
      %562 = vmatpush1.bf16.msra.mxu0 0
      %563 = vmatprep.subr.bf16.mxu0 0
      %564 = vmatpush1.bf16.msra.mxu0 0
      %565 = vmatprep.mubr.bf16.mxu0 0
      %566 = vmatmul.mubr.bf16.gmra.mrb[0].mxu0 %v531
      %v567 = vpop.f32.mrb[0].mxu0
      %v568 = vadd.f32 0.0, %v567
      %v569 = vpop.f32.mrb[0].mxu0
      %v570 = vpop.f32.mrb[0].mxu0
      %v571 = vpop.f32.mrb[0].mxu0
      %572 = vdwg.mxu0
      %v573 = vadd.f32 %v484, %v568
      %v574 = vld [vmem:[%s228] sm:$0xc]
      %s575 = scalar_lea.vmem %s1, 128
      %v576 = vld [vmem:[%s575] sm:$0xf]
      %v577 = vld [vmem:[%s575 + $0x4] sm:$0xf]
      %v578 = vld [vmem:[%s575 + $0x8] sm:$0xf]
      %v579 = vld [vmem:[%s575 + $0xc] sm:$0xf]
      %v580 = vld [vmem:[%s575 + $0x10] sm:$0xf]
      %v581 = vld [vmem:[%s575 + $0x14] sm:$0xf]
      %v582 = vld [vmem:[%s575 + $0x18] sm:$0xf]
      %v583 = vld [vmem:[%s575 + $0x1c] sm:$0xf]
      %v585 = vunpack.c.l.b16 %v574
      %v586 = vpack.c.b16 %v585, %v585
      %v587 = vrot.slane %v586, 2
      %v596 = vunpack.c.l.b16 %v576
      %v597 = vunpack.c.l.b16 %v577
      %v598 = vunpack.c.l.b16 %v578
      %v599 = vunpack.c.l.b16 %v579
      %v600 = vunpack.c.l.b16 %v580
      %v601 = vunpack.c.l.b16 %v581
      %v602 = vunpack.c.l.b16 %v582
      %v603 = vunpack.c.l.b16 %v583
      %v604 = vpack.c.b16 %v597, %v596
      %v605 = vpack.c.b16 %v599, %v598
      %v606 = vpack.c.b16 %v601, %v600
      %v607 = vpack.c.b16 %v603, %v602
      %v613 = vsel %vm292, %v587, 0
      %615 = vmatprep.subr.bf16.mxu0 0
      %616 = vmatpush1.bf16.msra.mxu0 %v604
      %617 = vmatprep.subr.bf16.mxu0 0
      %618 = vmatpush1.bf16.msra.mxu0 %v605
      %619 = vmatprep.subr.bf16.mxu0 0
      %620 = vmatpush1.bf16.msra.mxu0 %v606
      %621 = vmatprep.subr.bf16.mxu0 0
      %622 = vmatpush1.bf16.msra.mxu0 %v607
      %623 = vmatprep.subr.bf16.mxu0 0
      %624 = vmatpush1.bf16.msra.mxu0 0
      %625 = vmatprep.subr.bf16.mxu0 0
      %626 = vmatpush1.bf16.msra.mxu0 0
      %627 = vmatprep.subr.bf16.mxu0 0
      %628 = vmatpush1.bf16.msra.mxu0 0
      %629 = vmatprep.subr.bf16.mxu0 0
      %630 = vmatpush1.bf16.msra.mxu0 0
      %631 = vmatprep.subr.bf16.mxu0 0
      %632 = vmatpush1.bf16.msra.mxu0 0
      %633 = vmatprep.subr.bf16.mxu0 0
      %634 = vmatpush1.bf16.msra.mxu0 0
      %635 = vmatprep.subr.bf16.mxu0 0
      %636 = vmatpush1.bf16.msra.mxu0 0
      %637 = vmatprep.subr.bf16.mxu0 0
      %638 = vmatpush1.bf16.msra.mxu0 0
      %639 = vmatprep.subr.bf16.mxu0 0
      %640 = vmatpush1.bf16.msra.mxu0 0
      %641 = vmatprep.subr.bf16.mxu0 0
      %642 = vmatpush1.bf16.msra.mxu0 0
      %643 = vmatprep.subr.bf16.mxu0 0
      %644 = vmatpush1.bf16.msra.mxu0 0
      %645 = vmatprep.subr.bf16.mxu0 0
      %646 = vmatpush1.bf16.msra.mxu0 0
      %647 = vmatprep.mubr.bf16.mxu0 0
      %648 = vmatmul.mubr.bf16.gmra.mrb[0].mxu0 %v613
      %v649 = vpop.f32.mrb[0].mxu0
      %v650 = vadd.f32 0.0, %v649
      %v651 = vpop.f32.mrb[0].mxu0
      %v652 = vpop.f32.mrb[0].mxu0
      %v653 = vpop.f32.mrb[0].mxu0
      %654 = vdwg.mxu0
      %v655 = vadd.f32 %v573, %v650
      %v656 = vld [vmem:[%s228] sm:$0xc]
      %v657 = vld [vmem:[%s228 + $0x4] sm:$0x1]
      %s658 = scalar_lea.vmem %s1, 160
      %v659 = vld [vmem:[%s658] sm:$0xf]
      %v660 = vld [vmem:[%s658 + $0x4] sm:$0xf]
      %v661 = vld [vmem:[%s658 + $0x8] sm:$0xf]
      %v662 = vld [vmem:[%s658 + $0xc] sm:$0xf]
      %v663 = vld [vmem:[%s658 + $0x10] sm:$0xf]
      %v664 = vld [vmem:[%s658 + $0x14] sm:$0xf]
      %v665 = vld [vmem:[%s658 + $0x18] sm:$0xf]
      %v666 = vld [vmem:[%s658 + $0x1c] sm:$0xf]
      %v669 = vunpack.c.l.b16 %v656
      %v670 = vunpack.c.l.b16 %v657
      %v671 = vpack.c.b16 %v670, %v669
      %v673 = vshrl.u32 %v671, 16
      %v675 = vrot.slane %v673, 2
      %v676 = vshll.u32 %v671, 16
      %v678 = vrot.slane %v676, 3
      %v679 = vor.u32 %v675, %v678
      %v688 = vunpack.c.l.b16 %v659
      %v689 = vunpack.c.l.b16 %v660
      %v690 = vunpack.c.l.b16 %v661
      %v691 = vunpack.c.l.b16 %v662
      %v692 = vunpack.c.l.b16 %v663
      %v693 = vunpack.c.l.b16 %v664
      %v694 = vunpack.c.l.b16 %v665
      %v695 = vunpack.c.l.b16 %v666
      %v696 = vpack.c.b16 %v689, %v688
      %v697 = vpack.c.b16 %v691, %v690
      %v698 = vpack.c.b16 %v693, %v692
      %v699 = vpack.c.b16 %v695, %v694
      %v705 = vsel %vm292, %v679, 0
      %707 = vmatprep.subr.bf16.mxu0 0
      %708 = vmatpush1.bf16.msra.mxu0 %v696
      %709 = vmatprep.subr.bf16.mxu0 0
      %710 = vmatpush1.bf16.msra.mxu0 %v697
      %711 = vmatprep.subr.bf16.mxu0 0
      %712 = vmatpush1.bf16.msra.mxu0 %v698
      %713 = vmatprep.subr.bf16.mxu0 0
      %714 = vmatpush1.bf16.msra.mxu0 %v699
      %715 = vmatprep.subr.bf16.mxu0 0
      %716 = vmatpush1.bf16.msra.mxu0 0
      %717 = vmatprep.subr.bf16.mxu0 0
      %718 = vmatpush1.bf16.msra.mxu0 0
      %719 = vmatprep.subr.bf16.mxu0 0
      %720 = vmatpush1.bf16.msra.mxu0 0
      %721 = vmatprep.subr.bf16.mxu0 0
      %722 = vmatpush1.bf16.msra.mxu0 0
      %723 = vmatprep.subr.bf16.mxu0 0
      %724 = vmatpush1.bf16.msra.mxu0 0
      %725 = vmatprep.subr.bf16.mxu0 0
      %726 = vmatpush1.bf16.msra.mxu0 0
      %727 = vmatprep.subr.bf16.mxu0 0
      %728 = vmatpush1.bf16.msra.mxu0 0
      %729 = vmatprep.subr.bf16.mxu0 0
      %730 = vmatpush1.bf16.msra.mxu0 0
      %731 = vmatprep.subr.bf16.mxu0 0
      %732 = vmatpush1.bf16.msra.mxu0 0
      %733 = vmatprep.subr.bf16.mxu0 0
      %734 = vmatpush1.bf16.msra.mxu0 0
      %735 = vmatprep.subr.bf16.mxu0 0
      %736 = vmatpush1.bf16.msra.mxu0 0
      %737 = vmatprep.subr.bf16.mxu0 0
      %738 = vmatpush1.bf16.msra.mxu0 0
      %739 = vmatprep.mubr.bf16.mxu0 0
      %740 = vmatmul.mubr.bf16.gmra.mrb[0].mxu0 %v705
      %v741 = vpop.f32.mrb[0].mxu0
      %v742 = vadd.f32 0.0, %v741
      %v743 = vpop.f32.mrb[0].mxu0
      %v744 = vpop.f32.mrb[0].mxu0
      %v745 = vpop.f32.mrb[0].mxu0
      %746 = vdwg.mxu0
      %v747 = vadd.f32 %v655, %v742
      %v748 = vld [vmem:[%s228] sm:$0x8]
      %s749 = scalar_lea.vmem %s1, 192
      %v750 = vld [vmem:[%s749] sm:$0xf]
      %v751 = vld [vmem:[%s749 + $0x4] sm:$0xf]
      %v752 = vld [vmem:[%s749 + $0x8] sm:$0xf]
      %v753 = vld [vmem:[%s749 + $0xc] sm:$0xf]
      %v754 = vld [vmem:[%s749 + $0x10] sm:$0xf]
      %v755 = vld [vmem:[%s749 + $0x14] sm:$0xf]
      %v756 = vld [vmem:[%s749 + $0x18] sm:$0xf]
      %v757 = vld [vmem:[%s749 + $0x1c] sm:$0xf]
      %v759 = vunpack.c.l.b16 %v748
      %v760 = vpack.c.b16 %v670, %v759
      %v761 = vrot.slane %v760, 3
      %v770 = vunpack.c.l.b16 %v750
      %v771 = vunpack.c.l.b16 %v751
      %v772 = vunpack.c.l.b16 %v752
      %v773 = vunpack.c.l.b16 %v753
      %v774 = vunpack.c.l.b16 %v754
      %v775 = vunpack.c.l.b16 %v755
      %v776 = vunpack.c.l.b16 %v756
      %v777 = vunpack.c.l.b16 %v757
      %v778 = vpack.c.b16 %v771, %v770
      %v779 = vpack.c.b16 %v773, %v772
      %v780 = vpack.c.b16 %v775, %v774
      %v781 = vpack.c.b16 %v777, %v776
      %v787 = vsel %vm292, %v761, 0
      %789 = vmatprep.subr.bf16.mxu0 0
      %790 = vmatpush1.bf16.msra.mxu0 %v778
      %791 = vmatprep.subr.bf16.mxu0 0
      %792 = vmatpush1.bf16.msra.mxu0 %v779
      %793 = vmatprep.subr.bf16.mxu0 0
      %794 = vmatpush1.bf16.msra.mxu0 %v780
      %795 = vmatprep.subr.bf16.mxu0 0
      %796 = vmatpush1.bf16.msra.mxu0 %v781
      %797 = vmatprep.subr.bf16.mxu0 0
      %798 = vmatpush1.bf16.msra.mxu0 0
      %799 = vmatprep.subr.bf16.mxu0 0
      %800 = vmatpush1.bf16.msra.mxu0 0
      %801 = vmatprep.subr.bf16.mxu0 0
      %802 = vmatpush1.bf16.msra.mxu0 0
      %803 = vmatprep.subr.bf16.mxu0 0
      %804 = vmatpush1.bf16.msra.mxu0 0
      %805 = vmatprep.subr.bf16.mxu0 0
      %806 = vmatpush1.bf16.msra.mxu0 0
      %807 = vmatprep.subr.bf16.mxu0 0
      %808 = vmatpush1.bf16.msra.mxu0 0
      %809 = vmatprep.subr.bf16.mxu0 0
      %810 = vmatpush1.bf16.msra.mxu0 0
      %811 = vmatprep.subr.bf16.mxu0 0
      %812 = vmatpush1.bf16.msra.mxu0 0
      %813 = vmatprep.subr.bf16.mxu0 0
      %814 = vmatpush1.bf16.msra.mxu0 0
      %815 = vmatprep.subr.bf16.mxu0 0
      %816 = vmatpush1.bf16.msra.mxu0 0
      %817 = vmatprep.subr.bf16.mxu0 0
      %818 = vmatpush1.bf16.msra.mxu0 0
      %819 = vmatprep.subr.bf16.mxu0 0
      %820 = vmatpush1.bf16.msra.mxu0 0
      %821 = vmatprep.mubr.bf16.mxu0 0
      %822 = vmatmul.mubr.bf16.gmra.mrb[0].mxu0 %v787
      %v823 = vpop.f32.mrb[0].mxu0
      %v824 = vadd.f32 0.0, %v823
      %v825 = vpop.f32.mrb[0].mxu0
      %v826 = vpop.f32.mrb[0].mxu0
      %v827 = vpop.f32.mrb[0].mxu0
      %828 = vdwg.mxu0
      %v829 = vadd.f32 %v747, %v824
      %v830 = vld [vmem:[%s228 + $0x4] sm:$0x3]
      %s831 = scalar_lea.vmem %s1, 224
      %v832 = vld [vmem:[%s831] sm:$0xf]
      %v833 = vld [vmem:[%s831 + $0x4] sm:$0xf]
      %v834 = vld [vmem:[%s831 + $0x8] sm:$0xf]
      %v835 = vld [vmem:[%s831 + $0xc] sm:$0xf]
      %v836 = vld [vmem:[%s831 + $0x10] sm:$0xf]
      %v837 = vld [vmem:[%s831 + $0x14] sm:$0xf]
      %v838 = vld [vmem:[%s831 + $0x18] sm:$0xf]
      %v839 = vld [vmem:[%s831 + $0x1c] sm:$0xf]
      %v841 = vunpack.c.l.b16 %v830
      %v842 = vpack.c.b16 %v841, %v759
      %v844 = vshrl.u32 %v842, 16
      %v846 = vrot.slane %v844, 3
      %v847 = vshll.u32 %v842, 16
      %v849 = vrot.slane %v847, 4
      %v850 = vor.u32 %v846, %v849
      %v859 = vunpack.c.l.b16 %v832
      %v860 = vunpack.c.l.b16 %v833
      %v861 = vunpack.c.l.b16 %v834
      %v862 = vunpack.c.l.b16 %v835
      %v863 = vunpack.c.l.b16 %v836
      %v864 = vunpack.c.l.b16 %v837
      %v865 = vunpack.c.l.b16 %v838
      %v866 = vunpack.c.l.b16 %v839
      %v867 = vpack.c.b16 %v860, %v859
      %v868 = vpack.c.b16 %v862, %v861
      %v869 = vpack.c.b16 %v864, %v863
      %v870 = vpack.c.b16 %v866, %v865
      %v876 = vsel %vm292, %v850, 0
      %878 = vmatprep.subr.bf16.mxu0 0
      %879 = vmatpush1.bf16.msra.mxu0 %v867
      %880 = vmatprep.subr.bf16.mxu0 0
      %881 = vmatpush1.bf16.msra.mxu0 %v868
      %882 = vmatprep.subr.bf16.mxu0 0
      %883 = vmatpush1.bf16.msra.mxu0 %v869
      %884 = vmatprep.subr.bf16.mxu0 0
      %885 = vmatpush1.bf16.msra.mxu0 %v870
      %886 = vmatprep.subr.bf16.mxu0 0
      %887 = vmatpush1.bf16.msra.mxu0 0
      %888 = vmatprep.subr.bf16.mxu0 0
      %889 = vmatpush1.bf16.msra.mxu0 0
      %890 = vmatprep.subr.bf16.mxu0 0
      %891 = vmatpush1.bf16.msra.mxu0 0
      %892 = vmatprep.subr.bf16.mxu0 0
      %893 = vmatpush1.bf16.msra.mxu0 0
      %894 = vmatprep.subr.bf16.mxu0 0
      %895 = vmatpush1.bf16.msra.mxu0 0
      %896 = vmatprep.subr.bf16.mxu0 0
      %897 = vmatpush1.bf16.msra.mxu0 0
      %898 = vmatprep.subr.bf16.mxu0 0
      %899 = vmatpush1.bf16.msra.mxu0 0
      %900 = vmatprep.subr.bf16.mxu0 0
      %901 = vmatpush1.bf16.msra.mxu0 0
      %902 = vmatprep.subr.bf16.mxu0 0
      %903 = vmatpush1.bf16.msra.mxu0 0
      %904 = vmatprep.subr.bf16.mxu0 0
      %905 = vmatpush1.bf16.msra.mxu0 0
      %906 = vmatprep.subr.bf16.mxu0 0
      %907 = vmatpush1.bf16.msra.mxu0 0
      %908 = vmatprep.subr.bf16.mxu0 0
      %909 = vmatpush1.bf16.msra.mxu0 0
      %910 = vmatprep.mubr.bf16.mxu0 0
      %911 = vmatmul.mubr.bf16.gmra.mrb[0].mxu0 %v876
      %v912 = vpop.f32.mrb[0].mxu0
      %v913 = vadd.f32 0.0, %v912
      %v914 = vpop.f32.mrb[0].mxu0
      %v915 = vpop.f32.mrb[0].mxu0
      %v916 = vpop.f32.mrb[0].mxu0
      %917 = vdwg.mxu0
      %v918 = vadd.f32 %v829, %v913
      %s919 = scalar_lea.vmem %s1, 256
      %v920 = vld [vmem:[%s919] sm:$0xf]
      %v921 = vld [vmem:[%s919 + $0x4] sm:$0xf]
      %v922 = vld [vmem:[%s919 + $0x8] sm:$0xf]
      %v923 = vld [vmem:[%s919 + $0xc] sm:$0xf]
      %v924 = vld [vmem:[%s919 + $0x10] sm:$0xf]
      %v925 = vld [vmem:[%s919 + $0x14] sm:$0xf]
      %v926 = vld [vmem:[%s919 + $0x18] sm:$0xf]
      %v927 = vld [vmem:[%s919 + $0x1c] sm:$0xf]
      %v936 = vunpack.c.l.b16 %v920
      %v937 = vunpack.c.l.b16 %v921
      %v938 = vunpack.c.l.b16 %v922
      %v939 = vunpack.c.l.b16 %v923
      %v940 = vunpack.c.l.b16 %v924
      %v941 = vunpack.c.l.b16 %v925
      %v942 = vunpack.c.l.b16 %v926
      %v943 = vunpack.c.l.b16 %v927
      %v944 = vpack.c.b16 %v937, %v936
      %v945 = vpack.c.b16 %v939, %v938
      %v946 = vpack.c.b16 %v941, %v940
      %v947 = vpack.c.b16 %v943, %v942
      %v953 = vsel %vm292, %v830, 0
      %955 = vmatprep.subr.bf16.mxu0 0
      %956 = vmatpush1.bf16.msra.mxu0 %v944
      %957 = vmatprep.subr.bf16.mxu0 0
      %958 = vmatpush1.bf16.msra.mxu0 %v945
      %959 = vmatprep.subr.bf16.mxu0 0
      %960 = vmatpush1.bf16.msra.mxu0 %v946
      %961 = vmatprep.subr.bf16.mxu0 0
      %962 = vmatpush1.bf16.msra.mxu0 %v947
      %963 = vmatprep.subr.bf16.mxu0 0
      %964 = vmatpush1.bf16.msra.mxu0 0
      %965 = vmatprep.subr.bf16.mxu0 0
      %966 = vmatpush1.bf16.msra.mxu0 0
      %967 = vmatprep.subr.bf16.mxu0 0
      %968 = vmatpush1.bf16.msra.mxu0 0
      %969 = vmatprep.subr.bf16.mxu0 0
      %970 = vmatpush1.bf16.msra.mxu0 0
      %971 = vmatprep.subr.bf16.mxu0 0
      %972 = vmatpush1.bf16.msra.mxu0 0
      %973 = vmatprep.subr.bf16.mxu0 0
      %974 = vmatpush1.bf16.msra.mxu0 0
      %975 = vmatprep.subr.bf16.mxu0 0
      %976 = vmatpush1.bf16.msra.mxu0 0
      %977 = vmatprep.subr.bf16.mxu0 0
      %978 = vmatpush1.bf16.msra.mxu0 0
      %979 = vmatprep.subr.bf16.mxu0 0
      %980 = vmatpush1.bf16.msra.mxu0 0
      %981 = vmatprep.subr.bf16.mxu0 0
      %982 = vmatpush1.bf16.msra.mxu0 0
      %983 = vmatprep.subr.bf16.mxu0 0
      %984 = vmatpush1.bf16.msra.mxu0 0
      %985 = vmatprep.subr.bf16.mxu0 0
      %986 = vmatpush1.bf16.msra.mxu0 0
      %987 = vmatprep.mubr.bf16.mxu0 0
      %988 = vmatmul.mubr.bf16.gmra.mrb[0].mxu0 %v953
      %v989 = vpop.f32.mrb[0].mxu0
      %v990 = vadd.f32 0.0, %v989
      %v991 = vpop.f32.mrb[0].mxu0
      %v992 = vpop.f32.mrb[0].mxu0
      %v993 = vpop.f32.mrb[0].mxu0
      %994 = vdwg.mxu0
      %v995 = vadd.f32 %v918, %v990
      %v996 = vld [vmem:[%s228 + $0x4] sm:$0x7]
      %s997 = scalar_lea.vmem %s1, 288
      %v998 = vld [vmem:[%s997] sm:$0xf]
      %v999 = vld [vmem:[%s997 + $0x4] sm:$0xf]
      %v1000 = vld [vmem:[%s997 + $0x8] sm:$0xf]
      %v1001 = vld [vmem:[%s997 + $0xc] sm:$0xf]
      %v1002 = vld [vmem:[%s997 + $0x10] sm:$0xf]
      %v1003 = vld [vmem:[%s997 + $0x14] sm:$0xf]
      %v1004 = vld [vmem:[%s997 + $0x18] sm:$0xf]
      %v1005 = vld [vmem:[%s997 + $0x1c] sm:$0xf]
      %v1007 = vunpack.c.l.b16 %v996
      %v1008 = vpack.c.b16 %v1007, %v1007
      %v1010 = vshrl.u32 %v1008, 16
      %v1012 = vshll.u32 %v1008, 16
      %v1014 = vrot.slane %v1012, 1
      %v1015 = vor.u32 %v1010, %v1014
      %v1024 = vunpack.c.l.b16 %v998
      %v1025 = vunpack.c.l.b16 %v999
      %v1026 = vunpack.c.l.b16 %v1000
      %v1027 = vunpack.c.l.b16 %v1001
      %v1028 = vunpack.c.l.b16 %v1002
      %v1029 = vunpack.c.l.b16 %v1003
      %v1030 = vunpack.c.l.b16 %v1004
      %v1031 = vunpack.c.l.b16 %v1005
      %v1032 = vpack.c.b16 %v1025, %v1024
      %v1033 = vpack.c.b16 %v1027, %v1026
      %v1034 = vpack.c.b16 %v1029, %v1028
      %v1035 = vpack.c.b16 %v1031, %v1030
      %v1041 = vsel %vm292, %v1015, 0
      %1043 = vmatprep.subr.bf16.mxu0 0
      %1044 = vmatpush1.bf16.msra.mxu0 %v1032
      %1045 = vmatprep.subr.bf16.mxu0 0
      %1046 = vmatpush1.bf16.msra.mxu0 %v1033
      %1047 = vmatprep.subr.bf16.mxu0 0
      %1048 = vmatpush1.bf16.msra.mxu0 %v1034
      %1049 = vmatprep.subr.bf16.mxu0 0
      %1050 = vmatpush1.bf16.msra.mxu0 %v1035
      %1051 = vmatprep.subr.bf16.mxu0 0
      %1052 = vmatpush1.bf16.msra.mxu0 0
      %1053 = vmatprep.subr.bf16.mxu0 0
      %1054 = vmatpush1.bf16.msra.mxu0 0
      %1055 = vmatprep.subr.bf16.mxu0 0
      %1056 = vmatpush1.bf16.msra.mxu0 0
      %1057 = vmatprep.subr.bf16.mxu0 0
      %1058 = vmatpush1.bf16.msra.mxu0 0
      %1059 = vmatprep.subr.bf16.mxu0 0
      %1060 = vmatpush1.bf16.msra.mxu0 0
      %1061 = vmatprep.subr.bf16.mxu0 0
      %1062 = vmatpush1.bf16.msra.mxu0 0
      %1063 = vmatprep.subr.bf16.mxu0 0
      %1064 = vmatpush1.bf16.msra.mxu0 0
      %1065 = vmatprep.subr.bf16.mxu0 0
      %1066 = vmatpush1.bf16.msra.mxu0 0
      %1067 = vmatprep.subr.bf16.mxu0 0
      %1068 = vmatpush1.bf16.msra.mxu0 0
      %1069 = vmatprep.subr.bf16.mxu0 0
      %1070 = vmatpush1.bf16.msra.mxu0 0
      %1071 = vmatprep.subr.bf16.mxu0 0
      %1072 = vmatpush1.bf16.msra.mxu0 0
      %1073 = vmatprep.subr.bf16.mxu0 0
      %1074 = vmatpush1.bf16.msra.mxu0 0
      %1075 = vmatprep.mubr.bf16.mxu0 0
      %1076 = vmatmul.mubr.bf16.gmra.mrb[0].mxu0 %v1041
      %v1077 = vpop.f32.mrb[0].mxu0
      %v1078 = vadd.f32 0.0, %v1077
      %v1079 = vpop.f32.mrb[0].mxu0
      %v1080 = vpop.f32.mrb[0].mxu0
      %v1081 = vpop.f32.mrb[0].mxu0
      %1082 = vdwg.mxu0
      %v1083 = vadd.f32 %v995, %v1078
      %v1084 = vld [vmem:[%s228 + $0x4] sm:$0x6]
      %s1085 = scalar_lea.vmem %s1, 320
      %v1086 = vld [vmem:[%s1085] sm:$0xf]
      %v1087 = vld [vmem:[%s1085 + $0x4] sm:$0xf]
      %v1088 = vld [vmem:[%s1085 + $0x8] sm:$0xf]
      %v1089 = vld [vmem:[%s1085 + $0xc] sm:$0xf]
      %v1090 = vld [vmem:[%s1085 + $0x10] sm:$0xf]
      %v1091 = vld [vmem:[%s1085 + $0x14] sm:$0xf]
      %v1092 = vld [vmem:[%s1085 + $0x18] sm:$0xf]
      %v1093 = vld [vmem:[%s1085 + $0x1c] sm:$0xf]
      %v1095 = vunpack.c.l.b16 %v1084
      %v1096 = vpack.c.b16 %v1095, %v1095
      %v1097 = vrot.slane %v1096, 1
      %v1106 = vunpack.c.l.b16 %v1086
      %v1107 = vunpack.c.l.b16 %v1087
      %v1108 = vunpack.c.l.b16 %v1088
      %v1109 = vunpack.c.l.b16 %v1089
      %v1110 = vunpack.c.l.b16 %v1090
      %v1111 = vunpack.c.l.b16 %v1091
      %v1112 = vunpack.c.l.b16 %v1092
      %v1113 = vunpack.c.l.b16 %v1093
      %v1114 = vpack.c.b16 %v1107, %v1106
      %v1115 = vpack.c.b16 %v1109, %v1108
      %v1116 = vpack.c.b16 %v1111, %v1110
      %v1117 = vpack.c.b16 %v1113, %v1112
      %v1123 = vsel %vm292, %v1097, 0
      %1125 = vmatprep.subr.bf16.mxu0 0
      %1126 = vmatpush1.bf16.msra.mxu0 %v1114
      %1127 = vmatprep.subr.bf16.mxu0 0
      %1128 = vmatpush1.bf16.msra.mxu0 %v1115
      %1129 = vmatprep.subr.bf16.mxu0 0
      %1130 = vmatpush1.bf16.msra.mxu0 %v1116
      %1131 = vmatprep.subr.bf16.mxu0 0
      %1132 = vmatpush1.bf16.msra.mxu0 %v1117
      %1133 = vmatprep.subr.bf16.mxu0 0
      %1134 = vmatpush1.bf16.msra.mxu0 0
      %1135 = vmatprep.subr.bf16.mxu0 0
      %1136 = vmatpush1.bf16.msra.mxu0 0
      %1137 = vmatprep.subr.bf16.mxu0 0
      %1138 = vmatpush1.bf16.msra.mxu0 0
      %1139 = vmatprep.subr.bf16.mxu0 0
      %1140 = vmatpush1.bf16.msra.mxu0 0
      %1141 = vmatprep.subr.bf16.mxu0 0
      %1142 = vmatpush1.bf16.msra.mxu0 0
      %1143 = vmatprep.subr.bf16.mxu0 0
      %1144 = vmatpush1.bf16.msra.mxu0 0
      %1145 = vmatprep.subr.bf16.mxu0 0
      %1146 = vmatpush1.bf16.msra.mxu0 0
      %1147 = vmatprep.subr.bf16.mxu0 0
      %1148 = vmatpush1.bf16.msra.mxu0 0
      %1149 = vmatprep.subr.bf16.mxu0 0
      %1150 = vmatpush1.bf16.msra.mxu0 0
      %1151 = vmatprep.subr.bf16.mxu0 0
      %1152 = vmatpush1.bf16.msra.mxu0 0
      %1153 = vmatprep.subr.bf16.mxu0 0
      %1154 = vmatpush1.bf16.msra.mxu0 0
      %1155 = vmatprep.subr.bf16.mxu0 0
      %1156 = vmatpush1.bf16.msra.mxu0 0
      %1157 = vmatprep.mubr.bf16.mxu0 0
      %1158 = vmatmul.mubr.bf16.gmra.mrb[0].mxu0 %v1123
      %v1159 = vpop.f32.mrb[0].mxu0
      %v1160 = vadd.f32 0.0, %v1159
      %v1161 = vpop.f32.mrb[0].mxu0
      %v1162 = vpop.f32.mrb[0].mxu0
      %v1163 = vpop.f32.mrb[0].mxu0
      %1164 = vdwg.mxu0
      %v1165 = vadd.f32 %v1083, %v1160
      %v1166 = vld [vmem:[%s228 + $0x4] sm:$0xe]
      %s1167 = scalar_lea.vmem %s1, 352
      %v1168 = vld [vmem:[%s1167] sm:$0xf]
      %v1169 = vld [vmem:[%s1167 + $0x4] sm:$0xf]
      %v1170 = vld [vmem:[%s1167 + $0x8] sm:$0xf]
      %v1171 = vld [vmem:[%s1167 + $0xc] sm:$0xf]
      %v1172 = vld [vmem:[%s1167 + $0x10] sm:$0xf]
      %v1173 = vld [vmem:[%s1167 + $0x14] sm:$0xf]
      %v1174 = vld [vmem:[%s1167 + $0x18] sm:$0xf]
      %v1175 = vld [vmem:[%s1167 + $0x1c] sm:$0xf]
      %v1177 = vunpack.c.l.b16 %v1166
      %v1178 = vpack.c.b16 %v1177, %v1177
      %v1180 = vshrl.u32 %v1178, 16
      %v1182 = vrot.slane %v1180, 1
      %v1183 = vshll.u32 %v1178, 16
      %v1185 = vrot.slane %v1183, 2
      %v1186 = vor.u32 %v1182, %v1185
      %v1195 = vunpack.c.l.b16 %v1168
      %v1196 = vunpack.c.l.b16 %v1169
      %v1197 = vunpack.c.l.b16 %v1170
      %v1198 = vunpack.c.l.b16 %v1171
      %v1199 = vunpack.c.l.b16 %v1172
      %v1200 = vunpack.c.l.b16 %v1173
      %v1201 = vunpack.c.l.b16 %v1174
      %v1202 = vunpack.c.l.b16 %v1175
      %v1203 = vpack.c.b16 %v1196, %v1195
      %v1204 = vpack.c.b16 %v1198, %v1197
      %v1205 = vpack.c.b16 %v1200, %v1199
      %v1206 = vpack.c.b16 %v1202, %v1201
      %v1212 = vsel %vm292, %v1186, 0
      %1214 = vmatprep.subr.bf16.mxu0 0
      %1215 = vmatpush1.bf16.msra.mxu0 %v1203
      %1216 = vmatprep.subr.bf16.mxu0 0
      %1217 = vmatpush1.bf16.msra.mxu0 %v1204
      %1218 = vmatprep.subr.bf16.mxu0 0
      %1219 = vmatpush1.bf16.msra.mxu0 %v1205
      %1220 = vmatprep.subr.bf16.mxu0 0
      %1221 = vmatpush1.bf16.msra.mxu0 %v1206
      %1222 = vmatprep.subr.bf16.mxu0 0
      %1223 = vmatpush1.bf16.msra.mxu0 0
      %1224 = vmatprep.subr.bf16.mxu0 0
      %1225 = vmatpush1.bf16.msra.mxu0 0
      %1226 = vmatprep.subr.bf16.mxu0 0
      %1227 = vmatpush1.bf16.msra.mxu0 0
      %1228 = vmatprep.subr.bf16.mxu0 0
      %1229 = vmatpush1.bf16.msra.mxu0 0
      %1230 = vmatprep.subr.bf16.mxu0 0
      %1231 = vmatpush1.bf16.msra.mxu0 0
      %1232 = vmatprep.subr.bf16.mxu0 0
      %1233 = vmatpush1.bf16.msra.mxu0 0
      %1234 = vmatprep.subr.bf16.mxu0 0
      %1235 = vmatpush1.bf16.msra.mxu0 0
      %1236 = vmatprep.subr.bf16.mxu0 0
      %1237 = vmatpush1.bf16.msra.mxu0 0
      %1238 = vmatprep.subr.bf16.mxu0 0
      %1239 = vmatpush1.bf16.msra.mxu0 0
      %1240 = vmatprep.subr.bf16.mxu0 0
      %1241 = vmatpush1.bf16.msra.mxu0 0
      %1242 = vmatprep.subr.bf16.mxu0 0
      %1243 = vmatpush1.bf16.msra.mxu0 0
      %1244 = vmatprep.subr.bf16.mxu0 0
      %1245 = vmatpush1.bf16.msra.mxu0 0
      %1246 = vmatprep.mubr.bf16.mxu0 0
      %1247 = vmatmul.mubr.bf16.gmra.mrb[0].mxu0 %v1212
      %v1248 = vpop.f32.mrb[0].mxu0
      %v1249 = vadd.f32 0.0, %v1248
      %v1250 = vpop.f32.mrb[0].mxu0
      %v1251 = vpop.f32.mrb[0].mxu0
      %v1252 = vpop.f32.mrb[0].mxu0
      %1253 = vdwg.mxu0
      %v1254 = vadd.f32 %v1165, %v1249
      %v1255 = vld [vmem:[%s228 + $0x4] sm:$0xc]
      %s1256 = scalar_lea.vmem %s1, 384
      %v1257 = vld [vmem:[%s1256] sm:$0xf]
      %v1258 = vld [vmem:[%s1256 + $0x4] sm:$0xf]
      %v1259 = vld [vmem:[%s1256 + $0x8] sm:$0xf]
      %v1260 = vld [vmem:[%s1256 + $0xc] sm:$0xf]
      %v1261 = vld [vmem:[%s1256 + $0x10] sm:$0xf]
      %v1262 = vld [vmem:[%s1256 + $0x14] sm:$0xf]
      %v1263 = vld [vmem:[%s1256 + $0x18] sm:$0xf]
      %v1264 = vld [vmem:[%s1256 + $0x1c] sm:$0xf]
      %v1266 = vunpack.c.l.b16 %v1255
      %v1267 = vpack.c.b16 %v1266, %v1266
      %v1268 = vrot.slane %v1267, 2
      %v1277 = vunpack.c.l.b16 %v1257
      %v1278 = vunpack.c.l.b16 %v1258
      %v1279 = vunpack.c.l.b16 %v1259
      %v1280 = vunpack.c.l.b16 %v1260
      %v1281 = vunpack.c.l.b16 %v1261
      %v1282 = vunpack.c.l.b16 %v1262
      %v1283 = vunpack.c.l.b16 %v1263
      %v1284 = vunpack.c.l.b16 %v1264
      %v1285 = vpack.c.b16 %v1278, %v1277
      %v1286 = vpack.c.b16 %v1280, %v1279
      %v1287 = vpack.c.b16 %v1282, %v1281
      %v1288 = vpack.c.b16 %v1284, %v1283
      %v1294 = vsel %vm292, %v1268, 0
      %1296 = vmatprep.subr.bf16.mxu0 0
      %1297 = vmatpush1.bf16.msra.mxu0 %v1285
      %1298 = vmatprep.subr.bf16.mxu0 0
      %1299 = vmatpush1.bf16.msra.mxu0 %v1286
      %1300 = vmatprep.subr.bf16.mxu0 0
      %1301 = vmatpush1.bf16.msra.mxu0 %v1287
      %1302 = vmatprep.subr.bf16.mxu0 0
      %1303 = vmatpush1.bf16.msra.mxu0 %v1288
      %1304 = vmatprep.subr.bf16.mxu0 0
      %1305 = vmatpush1.bf16.msra.mxu0 0
      %1306 = vmatprep.subr.bf16.mxu0 0
      %1307 = vmatpush1.bf16.msra.mxu0 0
      %1308 = vmatprep.subr.bf16.mxu0 0
      %1309 = vmatpush1.bf16.msra.mxu0 0
      %1310 = vmatprep.subr.bf16.mxu0 0
      %1311 = vmatpush1.bf16.msra.mxu0 0
      %1312 = vmatprep.subr.bf16.mxu0 0
      %1313 = vmatpush1.bf16.msra.mxu0 0
      %1314 = vmatprep.subr.bf16.mxu0 0
      %1315 = vmatpush1.bf16.msra.mxu0 0
      %1316 = vmatprep.subr.bf16.mxu0 0
      %1317 = vmatpush1.bf16.msra.mxu0 0
      %1318 = vmatprep.subr.bf16.mxu0 0
      %1319 = vmatpush1.bf16.msra.mxu0 0
      %1320 = vmatprep.subr.bf16.mxu0 0
      %1321 = vmatpush1.bf16.msra.mxu0 0
      %1322 = vmatprep.subr.bf16.mxu0 0
      %1323 = vmatpush1.bf16.msra.mxu0 0
      %1324 = vmatprep.subr.bf16.mxu0 0
      %1325 = vmatpush1.bf16.msra.mxu0 0
      %1326 = vmatprep.subr.bf16.mxu0 0
      %1327 = vmatpush1.bf16.msra.mxu0 0
      %1328 = vmatprep.mubr.bf16.mxu0 0
      %1329 = vmatmul.mubr.bf16.gmra.mrb[0].mxu0 %v1294
      %v1330 = vpop.f32.mrb[0].mxu0
      %v1331 = vadd.f32 0.0, %v1330
      %v1332 = vpop.f32.mrb[0].mxu0
      %v1333 = vpop.f32.mrb[0].mxu0
      %v1334 = vpop.f32.mrb[0].mxu0
      %1335 = vdwg.mxu0
      %v1336 = vadd.f32 %v1254, %v1331
      %v1337 = vld [vmem:[%s228 + $0x4] sm:$0xc]
      %v1338 = vld [vmem:[%s228 + $0x8] sm:$0x1]
      %s1339 = scalar_lea.vmem %s1, 416
      %v1340 = vld [vmem:[%s1339] sm:$0xf]
      %v1341 = vld [vmem:[%s1339 + $0x4] sm:$0xf]
      %v1342 = vld [vmem:[%s1339 + $0x8] sm:$0xf]
      %v1343 = vld [vmem:[%s1339 + $0xc] sm:$0xf]
      %v1344 = vld [vmem:[%s1339 + $0x10] sm:$0xf]
      %v1345 = vld [vmem:[%s1339 + $0x14] sm:$0xf]
      %v1346 = vld [vmem:[%s1339 + $0x18] sm:$0xf]
      %v1347 = vld [vmem:[%s1339 + $0x1c] sm:$0xf]
      %v1350 = vunpack.c.l.b16 %v1337
      %v1351 = vunpack.c.l.b16 %v1338
      %v1352 = vpack.c.b16 %v1351, %v1350
      %v1354 = vshrl.u32 %v1352, 16
      %v1356 = vrot.slane %v1354, 2
      %v1357 = vshll.u32 %v1352, 16
      %v1359 = vrot.slane %v1357, 3
      %v1360 = vor.u32 %v1356, %v1359
      %v1369 = vunpack.c.l.b16 %v1340
      %v1370 = vunpack.c.l.b16 %v1341
      %v1371 = vunpack.c.l.b16 %v1342
      %v1372 = vunpack.c.l.b16 %v1343
      %v1373 = vunpack.c.l.b16 %v1344
      %v1374 = vunpack.c.l.b16 %v1345
      %v1375 = vunpack.c.l.b16 %v1346
      %v1376 = vunpack.c.l.b16 %v1347
      %v1377 = vpack.c.b16 %v1370, %v1369
      %v1378 = vpack.c.b16 %v1372, %v1371
      %v1379 = vpack.c.b16 %v1374, %v1373
      %v1380 = vpack.c.b16 %v1376, %v1375
      %v1386 = vsel %vm292, %v1360, 0
      %1388 = vmatprep.subr.bf16.mxu0 0
      %1389 = vmatpush1.bf16.msra.mxu0 %v1377
      %1390 = vmatprep.subr.bf16.mxu0 0
      %1391 = vmatpush1.bf16.msra.mxu0 %v1378
      %1392 = vmatprep.subr.bf16.mxu0 0
      %1393 = vmatpush1.bf16.msra.mxu0 %v1379
      %1394 = vmatprep.subr.bf16.mxu0 0
      %1395 = vmatpush1.bf16.msra.mxu0 %v1380
      %1396 = vmatprep.subr.bf16.mxu0 0
      %1397 = vmatpush1.bf16.msra.mxu0 0
      %1398 = vmatprep.subr.bf16.mxu0 0
      %1399 = vmatpush1.bf16.msra.mxu0 0
      %1400 = vmatprep.subr.bf16.mxu0 0
      %1401 = vmatpush1.bf16.msra.mxu0 0
      %1402 = vmatprep.subr.bf16.mxu0 0
      %1403 = vmatpush1.bf16.msra.mxu0 0
      %1404 = vmatprep.subr.bf16.mxu0 0
      %1405 = vmatpush1.bf16.msra.mxu0 0
      %1406 = vmatprep.subr.bf16.mxu0 0
      %1407 = vmatpush1.bf16.msra.mxu0 0
      %1408 = vmatprep.subr.bf16.mxu0 0
      %1409 = vmatpush1.bf16.msra.mxu0 0
      %1410 = vmatprep.subr.bf16.mxu0 0
      %1411 = vmatpush1.bf16.msra.mxu0 0
      %1412 = vmatprep.subr.bf16.mxu0 0
      %1413 = vmatpush1.bf16.msra.mxu0 0
      %1414 = vmatprep.subr.bf16.mxu0 0
      %1415 = vmatpush1.bf16.msra.mxu0 0
      %1416 = vmatprep.subr.bf16.mxu0 0
      %1417 = vmatpush1.bf16.msra.mxu0 0
      %1418 = vmatprep.subr.bf16.mxu0 0
      %1419 = vmatpush1.bf16.msra.mxu0 0
      %1420 = vmatprep.mubr.bf16.mxu0 0
      %1421 = vmatmul.mubr.bf16.gmra.mrb[0].mxu0 %v1386
      %v1422 = vpop.f32.mrb[0].mxu0
      %v1423 = vadd.f32 0.0, %v1422
      %v1424 = vpop.f32.mrb[0].mxu0
      %v1425 = vpop.f32.mrb[0].mxu0
      %v1426 = vpop.f32.mrb[0].mxu0
      %1427 = vdwg.mxu0
      %v1428 = vadd.f32 %v1336, %v1423
      %v1429 = vld [vmem:[%s228 + $0x4] sm:$0x8]
      %s1430 = scalar_lea.vmem %s1, 448
      %v1431 = vld [vmem:[%s1430] sm:$0xf]
      %v1432 = vld [vmem:[%s1430 + $0x4] sm:$0xf]
      %v1433 = vld [vmem:[%s1430 + $0x8] sm:$0xf]
      %v1434 = vld [vmem:[%s1430 + $0xc] sm:$0xf]
      %v1435 = vld [vmem:[%s1430 + $0x10] sm:$0xf]
      %v1436 = vld [vmem:[%s1430 + $0x14] sm:$0xf]
      %v1437 = vld [vmem:[%s1430 + $0x18] sm:$0xf]
      %v1438 = vld [vmem:[%s1430 + $0x1c] sm:$0xf]
      %v1440 = vunpack.c.l.b16 %v1429
      %v1441 = vpack.c.b16 %v1351, %v1440
      %v1442 = vrot.slane %v1441, 3
      %v1451 = vunpack.c.l.b16 %v1431
      %v1452 = vunpack.c.l.b16 %v1432
      %v1453 = vunpack.c.l.b16 %v1433
      %v1454 = vunpack.c.l.b16 %v1434
      %v1455 = vunpack.c.l.b16 %v1435
      %v1456 = vunpack.c.l.b16 %v1436
      %v1457 = vunpack.c.l.b16 %v1437
      %v1458 = vunpack.c.l.b16 %v1438
      %v1459 = vpack.c.b16 %v1452, %v1451
      %v1460 = vpack.c.b16 %v1454, %v1453
      %v1461 = vpack.c.b16 %v1456, %v1455
      %v1462 = vpack.c.b16 %v1458, %v1457
      %v1468 = vsel %vm292, %v1442, 0
      %1470 = vmatprep.subr.bf16.mxu0 0
      %1471 = vmatpush1.bf16.msra.mxu0 %v1459
      %1472 = vmatprep.subr.bf16.mxu0 0
      %1473 = vmatpush1.bf16.msra.mxu0 %v1460
      %1474 = vmatprep.subr.bf16.mxu0 0
      %1475 = vmatpush1.bf16.msra.mxu0 %v1461
      %1476 = vmatprep.subr.bf16.mxu0 0
      %1477 = vmatpush1.bf16.msra.mxu0 %v1462
      %1478 = vmatprep.subr.bf16.mxu0 0
      %1479 = vmatpush1.bf16.msra.mxu0 0
      %1480 = vmatprep.subr.bf16.mxu0 0
      %1481 = vmatpush1.bf16.msra.mxu0 0
      %1482 = vmatprep.subr.bf16.mxu0 0
      %1483 = vmatpush1.bf16.msra.mxu0 0
      %1484 = vmatprep.subr.bf16.mxu0 0
      %1485 = vmatpush1.bf16.msra.mxu0 0
      %1486 = vmatprep.subr.bf16.mxu0 0
      %1487 = vmatpush1.bf16.msra.mxu0 0
      %1488 = vmatprep.subr.bf16.mxu0 0
      %1489 = vmatpush1.bf16.msra.mxu0 0
      %1490 = vmatprep.subr.bf16.mxu0 0
      %1491 = vmatpush1.bf16.msra.mxu0 0
      %1492 = vmatprep.subr.bf16.mxu0 0
      %1493 = vmatpush1.bf16.msra.mxu0 0
      %1494 = vmatprep.subr.bf16.mxu0 0
      %1495 = vmatpush1.bf16.msra.mxu0 0
      %1496 = vmatprep.subr.bf16.mxu0 0
      %1497 = vmatpush1.bf16.msra.mxu0 0
      %1498 = vmatprep.subr.bf16.mxu0 0
      %1499 = vmatpush1.bf16.msra.mxu0 0
      %1500 = vmatprep.subr.bf16.mxu0 0
      %1501 = vmatpush1.bf16.msra.mxu0 0
      %1502 = vmatprep.mubr.bf16.mxu0 0
      %1503 = vmatmul.mubr.bf16.gmra.mrb[0].mxu0 %v1468
      %v1504 = vpop.f32.mrb[0].mxu0
      %v1505 = vadd.f32 0.0, %v1504
      %v1506 = vpop.f32.mrb[0].mxu0
      %v1507 = vpop.f32.mrb[0].mxu0
      %v1508 = vpop.f32.mrb[0].mxu0
      %1509 = vdwg.mxu0
      %v1510 = vadd.f32 %v1428, %v1505
      %v1511 = vld [vmem:[%s228 + $0x8] sm:$0x3]
      %s1512 = scalar_lea.vmem %s1, 480
      %v1513 = vld [vmem:[%s1512] sm:$0xf]
      %v1514 = vld [vmem:[%s1512 + $0x4] sm:$0xf]
      %v1515 = vld [vmem:[%s1512 + $0x8] sm:$0xf]
      %v1516 = vld [vmem:[%s1512 + $0xc] sm:$0xf]
      %v1517 = vld [vmem:[%s1512 + $0x10] sm:$0xf]
      %v1518 = vld [vmem:[%s1512 + $0x14] sm:$0xf]
      %v1519 = vld [vmem:[%s1512 + $0x18] sm:$0xf]
      %v1520 = vld [vmem:[%s1512 + $0x1c] sm:$0xf]
      %v1522 = vunpack.c.l.b16 %v1511
      %v1523 = vpack.c.b16 %v1522, %v1440
      %v1525 = vshrl.u32 %v1523, 16
      %v1527 = vrot.slane %v1525, 3
      %v1528 = vshll.u32 %v1523, 16
      %v1530 = vrot.slane %v1528, 4
      %v1531 = vor.u32 %v1527, %v1530
      %v1540 = vunpack.c.l.b16 %v1513
      %v1541 = vunpack.c.l.b16 %v1514
      %v1542 = vunpack.c.l.b16 %v1515
      %v1543 = vunpack.c.l.b16 %v1516
      %v1544 = vunpack.c.l.b16 %v1517
      %v1545 = vunpack.c.l.b16 %v1518
      %v1546 = vunpack.c.l.b16 %v1519
      %v1547 = vunpack.c.l.b16 %v1520
      %v1548 = vpack.c.b16 %v1541, %v1540
      %v1549 = vpack.c.b16 %v1543, %v1542
      %v1550 = vpack.c.b16 %v1545, %v1544
      %v1551 = vpack.c.b16 %v1547, %v1546
      %v1557 = vsel %vm292, %v1531, 0
      %1559 = vmatprep.subr.bf16.mxu0 0
      %1560 = vmatpush1.bf16.msra.mxu0 %v1548
      %1561 = vmatprep.subr.bf16.mxu0 0
      %1562 = vmatpush1.bf16.msra.mxu0 %v1549
      %1563 = vmatprep.subr.bf16.mxu0 0
      %1564 = vmatpush1.bf16.msra.mxu0 %v1550
      %1565 = vmatprep.subr.bf16.mxu0 0
      %1566 = vmatpush1.bf16.msra.mxu0 %v1551
      %1567 = vmatprep.subr.bf16.mxu0 0
      %1568 = vmatpush1.bf16.msra.mxu0 0
      %1569 = vmatprep.subr.bf16.mxu0 0
      %1570 = vmatpush1.bf16.msra.mxu0 0
      %1571 = vmatprep.subr.bf16.mxu0 0
      %1572 = vmatpush1.bf16.msra.mxu0 0
      %1573 = vmatprep.subr.bf16.mxu0 0
      %1574 = vmatpush1.bf16.msra.mxu0 0
      %1575 = vmatprep.subr.bf16.mxu0 0
      %1576 = vmatpush1.bf16.msra.mxu0 0
      %1577 = vmatprep.subr.bf16.mxu0 0
      %1578 = vmatpush1.bf16.msra.mxu0 0
      %1579 = vmatprep.subr.bf16.mxu0 0
      %1580 = vmatpush1.bf16.msra.mxu0 0
      %1581 = vmatprep.subr.bf16.mxu0 0
      %1582 = vmatpush1.bf16.msra.mxu0 0
      %1583 = vmatprep.subr.bf16.mxu0 0
      %1584 = vmatpush1.bf16.msra.mxu0 0
      %1585 = vmatprep.subr.bf16.mxu0 0
      %1586 = vmatpush1.bf16.msra.mxu0 0
      %1587 = vmatprep.subr.bf16.mxu0 0
      %1588 = vmatpush1.bf16.msra.mxu0 0
      %1589 = vmatprep.subr.bf16.mxu0 0
      %1590 = vmatpush1.bf16.msra.mxu0 0
      %1591 = vmatprep.mubr.bf16.mxu0 0
      %1592 = vmatmul.mubr.bf16.gmra.mrb[0].mxu0 %v1557
      %v1593 = vpop.f32.mrb[0].mxu0
      %v1594 = vadd.f32 0.0, %v1593
      %v1595 = vpop.f32.mrb[0].mxu0
      %v1596 = vpop.f32.mrb[0].mxu0
      %v1597 = vpop.f32.mrb[0].mxu0
      %1598 = vdwg.mxu0
      %v1599 = vadd.f32 %v1510, %v1594
      %vm1600 = vcmask 0
      %1601 = vst.msk [vmem:[%s231] sm:$0x1] %vm1600, %v1599
      %v1602 = vld [vmem:[%s2] sm:$0xf]
      %v1603 = vmul.f32 %v1599, %v1602
      %vm1604 = vcmask 3072
      %v1605 = vsel %vm1604, %v1603, 0.0
      %v1606 = vrot.slane %v1605, 4
      %v1607 = vadd.f32 %v1605, %v1606
      %v1608 = vrot.slane %v1607, 2
      %v1609 = vadd.f32 %v1607, %v1608
      %v1610 = vrot.slane %v1609, 1
      %v1611 = vadd.f32 %v1609, %v1610
      %1612 = vst.msk [vmem:[%s234] sm:$0x1] %vm1600, %v1611
      %v1613 = vmul.f32 %v1603, %v1599
      %v1614 = vsel %vm1604, %v1613, 0.0
      %v1615 = vrot.slane %v1614, 4
      %v1616 = vadd.f32 %v1614, %v1615
      %v1617 = vrot.slane %v1616, 2
      %v1618 = vadd.f32 %v1616, %v1617
      %v1619 = vrot.slane %v1618, 1
      %v1620 = vadd.f32 %v1618, %v1619
      %1621 = vst.msk [vmem:[%s237] sm:$0x1] %vm1600, %v1620
      %p1622 = scmp.lt.s32.totalorder %s17, 1
      %s1623 = scalar_select %p1622, %s17, 1
      %s1624 = scalar_lea.vmem %s3, %s1623
      %p1625 = scmp.lt.s32.totalorder %s17, 1
      %s1626 = scalar_select %p1625, %s17, 1
      %s1627 = scalar_lea.vmem %s4, %s1626
      %p1628 = scmp.lt.s32.totalorder %s17, 1
      %s1629 = scalar_select %p1628, %s17, 1
      %s1630 = scalar_lea.vmem %s5, %s1629
      // Predicated region
      $region33: #{discriminator_forward.14} parent=31 // pred_check
        %p1631 = pneg %p103
      $region34: #{discriminator_forward.14} parent=31 // pred_check_branch
        %1633 = sbr.rel (%p1631) target = $region36
      $region35: #{discriminator_forward.14} parent=31 // pred_region
        _
      $region36: #{discriminator_forward.14} parent=31 // pred_fallthru
        _
      // Predicated region
      $region37: #{discriminator_forward.14} parent=31 // pred_check
        %p1634 = pneg %p129
      $region38: #{discriminator_forward.14} parent=31 // pred_check_branch
        %1636 = sbr.rel (%p1634) target = $region40
      $region39: #{discriminator_forward.14} parent=31 // pred_region
        _
      $region40: #{discriminator_forward.14} parent=31 // pred_fallthru
        _
      // Predicated region
      $region41: #{discriminator_forward.14} parent=31 // pred_check
        %p1637 = pneg %p155
      $region42: #{discriminator_forward.14} parent=31 // pred_check_branch
        %1639 = sbr.rel (%p1637) target = $region44
      $region43: #{discriminator_forward.14} parent=31 // pred_region
        _
      $region44: #{discriminator_forward.14} parent=31 // pred_fallthru
        _
    $region32: #{discriminator_forward.14} parent=5 // pred_fallthru
      _
    %p1640 = scmp.le.s32.totalorder 2, %s12
    // Predicated region
    $region45: #{discriminator_forward.14} parent=5 // pred_check
      %p1641 = pneg %p1640
    $region46: #{discriminator_forward.14} parent=5 // pred_check_branch
      %1643 = sbr.rel (%p1641) target = $region48
    $region47: #{discriminator_forward.14} parent=5 // pred_region
      %s1644 = ssub.s32 %s12, 2
      // Predicated region
      $region49: #{discriminator_forward.14} parent=47 // pred_check
        %p1645 = pneg %p109
      $region50: #{discriminator_forward.14} parent=47 // pred_check_branch
        %1647 = sbr.rel (%p1645) target = $region52
      $region51: #{discriminator_forward.14} parent=47 // pred_region
        %p1648 = scmp.lt.s32.totalorder %s18, 1
        %s1649 = scalar_select %p1648, %s18, 1
        %s1650 = scalar_lea.vmem %s3, %s1649
      $region52: #{discriminator_forward.14} parent=47 // pred_fallthru
        _
      // Predicated region
      $region53: #{discriminator_forward.14} parent=47 // pred_check
        %p1651 = pneg %p135
      $region54: #{discriminator_forward.14} parent=47 // pred_check_branch
        %1653 = sbr.rel (%p1651) target = $region56
      $region55: #{discriminator_forward.14} parent=47 // pred_region
        %p1654 = scmp.lt.s32.totalorder %s18, 1
        %s1655 = scalar_select %p1654, %s18, 1
        %s1656 = scalar_lea.vmem %s4, %s1655
      $region56: #{discriminator_forward.14} parent=47 // pred_fallthru
        _
      // Predicated region
      $region57: #{discriminator_forward.14} parent=47 // pred_check
        %p1657 = pneg %p161
      $region58: #{discriminator_forward.14} parent=47 // pred_check_branch
        %1659 = sbr.rel (%p1657) target = $region60
      $region59: #{discriminator_forward.14} parent=47 // pred_region
        %p1660 = scmp.lt.s32.totalorder %s18, 1
        %s1661 = scalar_select %p1660, %s18, 1
        %s1662 = scalar_lea.vmem %s5, %s1661
      $region60: #{discriminator_forward.14} parent=47 // pred_fallthru
        _
    $region48: #{discriminator_forward.14} parent=5 // pred_fallthru
      _
  $region6: #{discriminator_forward.14} parent=0 // loop_footer
    %s16 = sadd.s32 1, %s12
  $region7: #{discriminator_forward.14} parent=0 // loop_footer_branch
    %11 = sbr.rel target = $region3
  $region8: #{discriminator_forward.14} parent=0 // loop_exit
    _

</llo_original>
